<compile_context>
chip_gen: v7x
topology: tpu7x:2x2x1
jax: 0.10.0
libtpu: 0.0.40
codegen_flags: <defaults>
</compile_context>

<pallas_src>
import functools
import math

import jax
import jax.numpy as jnp
from jax import lax
from jax.experimental import pallas as pl
from jax.experimental.pallas import tpu as pltpu

_SQRT_HALF = 0.7071067811865476


def _erf_f32(x):
    # Rational f32 erf approximation (same family as XLA/Eigen's f32 erf).
    alpha = (-2.72614225801306e-10, 2.77068142495902e-08, -2.10102402082508e-06,
             -5.69250639462346e-05, -7.34990630326855e-04, -2.95459980854025e-03,
             -1.60960333262415e-02)
    beta = (-1.45660718464996e-05, -2.13374055278905e-04, -1.68282697438203e-03,
            -7.37332916720468e-03, -1.42647390514189e-02)
    xc = jnp.clip(x, -4.0, 4.0)
    x2 = xc * xc
    p = jnp.full_like(x2, alpha[0])
    for a in alpha[1:]:
        p = p * x2 + a
    q = jnp.full_like(x2, beta[0])
    for b in beta[1:]:
        q = q * x2 + b
    # EUP approx reciprocal instead of a VPU divide (free bundle slot).
    return xc * p * pl.reciprocal(q, approx=True)


def _gelu_erf(x):
    # F.gelu default (erf-based, not tanh approximation).
    return 0.5 * x * (1.0 + _erf_f32(x * _SQRT_HALF))


# --------------------------------------------------------------------------
# Kernel A: ConvTranspose2d(k=2, s=2) as a single lane-dense matmul per sample.
# Output rows = (kh, kw, cout) taps, lanes = flat H*W input positions.
# --------------------------------------------------------------------------
def _upconv_kernel(x_ref, w_ref, b_ref, o_ref):
    # x_ref: (Cin, H*W); w_ref: (4*Cout, Cin); b_ref: (4*Cout, 1); o_ref: (4*Cout, H*W)
    o_ref[...] = (jnp.dot(w_ref[...], x_ref[...],
                          preferred_element_type=jnp.float32)
                  + b_ref[...]).astype(o_ref.dtype)


# --------------------------------------------------------------------------
# Kernel B: fused [concat + pad + conv1 + BN + GELU + conv2 + BN + GELU].
# Flat padded plane trick: the padded activation is stored as (C, Sp) with
# Sp = S + 4*W2 (two leading + two trailing zero rows).  The shifted plane for
# conv tap (dh, dw) is then a *contiguous* lane slice of length S starting at
# PADL + (dh-1)*W2 + (dw-1); left/right-column taps additionally get a lane
# mask (applied to the matmul OUTPUT, once per column-group) that zeroes the
# output positions whose source wrapped across a row boundary.
# --------------------------------------------------------------------------
def _fused_convblock_kernel(skips_ref, up_ref, mask_ref, w1_ref, w2_ref,
                            shift1_ref, shift2_ref,
                            out_ref, zp_ref, yp_ref, *, W2):
    Cskip, S = skips_ref.shape
    Cout = up_ref.shape[0]
    Cin1 = zp_ref.shape[0]
    Sp = zp_ref.shape[1]
    PADL = 2 * W2                       # two leading zero rows in the flat buffers

    mask_l = mask_ref[0:1, :]           # zero where output column c == 0      (taps reading c-1)
    mask_r = mask_ref[1:2, :]           # zero where output column c == W2 - 1 (taps reading c+1)

    def conv3x3(src_ref, w9_ref):
        # src_ref: (C, Sp) flat padded plane; w9_ref: (9, Cout, C), BN scale folded in.
        def col_taps(dw):
            acc = jnp.zeros((Cout, S), jnp.float32)
            for dh in range(3):         # 3 whole-plane MXU matmuls per column group
                t = 3 * dh + dw
                start = PADL + (dh - 1) * W2 + (dw - 1)
                acc = acc + jnp.dot(w9_ref[t], src_ref[:, start:start + S],
                                    preferred_element_type=jnp.float32)
            return acc
        # Mask commutes with the channel contraction -> apply once per group on (Cout, S).
        return col_taps(0) * mask_l + col_taps(1) + col_taps(2) * mask_r

    # ---- torch.cat([skips, up], channel) + zero padding, built in VMEM ----
    # Only the pad rows need (re)zeroing; the valid region is fully overwritten.
    zp_ref[:, 0:PADL] = jnp.zeros((Cin1, PADL), jnp.float32)
    zp_ref[:, PADL + S:Sp] = jnp.zeros((Cin1, Sp - PADL - S), jnp.float32)
    zp_ref[0:Cskip, PADL:PADL + S] = skips_ref[...]
    zp_ref[Cskip:Cin1, PADL:PADL + S] = up_ref[...]

    # ---- conv1 (BN scale pre-folded into weights) + folded bias/BN shift + GELU ----
    y1 = _gelu_erf(conv3x3(zp_ref, w1_ref) + shift1_ref[...])

    yp_ref[:, 0:PADL] = jnp.zeros((Cout, PADL), jnp.float32)
    yp_ref[:, PADL + S:Sp] = jnp.zeros((Cout, Sp - PADL - S), jnp.float32)
    yp_ref[:, PADL:PADL + S] = y1

    # ---- conv2 + folded bias/BN shift + GELU ----
    y2 = _gelu_erf(conv3x3(yp_ref, w2_ref) + shift2_ref[...])
    out_ref[...] = y2.astype(out_ref.dtype)                  # single lane-dense store


# --------------------------------------------------------------------------
# UpBlock forward (NCHW in / NCHW out, like PyTorch).
# --------------------------------------------------------------------------
def upblock_forward(params, x_nchw, skips_nchw):
    eps = 1e-5
    N, Cin_x, H, W = x_nchw.shape
    Cout = params["up_b"].shape[0]
    Cskip = skips_nchw.shape[1]
    Cin1 = Cskip + Cout                     # conv1 input channels (== UpBlock inchannels)
    H2, W2 = 2 * H, 2 * W
    S, HW = H2 * W2, H * W
    Sp = S + 4 * W2                         # flat padded width (2 lead + 2 trail rows)
    f32 = jnp.float32

    # ---------------- Kernel A: upconv matmul ----------------
    # PyTorch ConvTranspose2d weight layout: (Cin, Cout, kH, kW)
    w_up = jnp.transpose(params["up_w"], (2, 3, 1, 0)).reshape(4 * Cout, Cin_x)
    b_up = jnp.tile(params["up_b"], 4).reshape(4 * Cout, 1)
    x_flat = x_nchw.reshape(N, Cin_x, HW)   # free reshape, stays NCHW-ordered

    taps = pl.pallas_call(
        _upconv_kernel,
        out_shape=jax.ShapeDtypeStruct((N, 4 * Cout, HW), f32),
        grid=(N,),
        in_specs=[
            pl.BlockSpec((None, Cin_x, HW), lambda n: (n, 0, 0)),
            pl.BlockSpec((4 * Cout, Cin_x), lambda n: (0, 0)),
            pl.BlockSpec((4 * Cout, 1), lambda n: (0, 0)),
        ],
        out_specs=pl.BlockSpec((None, 4 * Cout, HW), lambda n: (n, 0, 0)),
        compiler_params=pltpu.CompilerParams(dimension_semantics=("parallel",)),
    )(x_flat, w_up, b_up)

    # 2x2 tap interleave onto the upsampled grid: one small XLA transpose of the
    # smallest tensor in the block; the surrounding reshapes are free.
    # TODO(synk): fold this interleave into the fused kernel (needs stride-2 lane
    #             stores or an in-kernel minor-dim shuffle, no clean Pallas primitive).
    up = taps.reshape(N, 2, 2, Cout, H, W)
    up = jnp.transpose(up, (0, 3, 4, 1, 5, 2)).reshape(N, Cout, S)

    # ---------------- Kernel B: fused ConvBlock ----------------
    # conv1 and conv2 share the same BatchNorm module (self.conv_bn); fold conv
    # bias + BN into a per-conv shift, and fold the BN scale into the conv
    # weights (per output channel) so the kernel does conv + shift only.
    s = params["bn_gamma"] / jnp.sqrt(params["bn_var"] + eps)
    shift1 = (params["c1_b"] - params["bn_mean"]) * s + params["bn_beta"]
    shift2 = (params["c2_b"] - params["bn_mean"]) * s + params["bn_beta"]
    # (Cout, Cin, 3, 3) -> (9, Cout, Cin), tap index t = 3*kh + kw, BN scale folded in.
    w1_9 = jnp.transpose(params["c1_w"] * s[:, None, None, None],
                         (2, 3, 0, 1)).reshape(9, Cout, Cin1)
    w2_9 = jnp.transpose(params["c2_w"] * s[:, None, None, None],
                         (2, 3, 0, 1)).reshape(9, Cout, Cout)

    col = jnp.arange(S, dtype=jnp.int32) % W2
    masks = jnp.stack([(col != 0), (col != W2 - 1)]).astype(f32)   # (2, S)

    skips_flat = skips_nchw.reshape(N, Cskip, S)                   # free reshape

    out_flat = pl.pallas_call(
        functools.partial(_fused_convblock_kernel, W2=W2),
        out_shape=jax.ShapeDtypeStruct((N, Cout, S), f32),
        grid=(N,),
        in_specs=[
            pl.BlockSpec((None, Cskip, S), lambda n: (n, 0, 0)),
            pl.BlockSpec((None, Cout, S), lambda n: (n, 0, 0)),
            pl.BlockSpec((2, S), lambda n: (0, 0)),
            pl.BlockSpec((9, Cout, Cin1), lambda n: (0, 0, 0)),
            pl.BlockSpec((9, Cout, Cout), lambda n: (0, 0, 0)),
            pl.BlockSpec((Cout, 1), lambda n: (0, 0)),
            pl.BlockSpec((Cout, 1), lambda n: (0, 0)),
        ],
        out_specs=pl.BlockSpec((None, Cout, S), lambda n: (n, 0, 0)),
        scratch_shapes=[
            pltpu.VMEM((Cin1, Sp), f32),    # padded concat([skips, up]) plane
            pltpu.VMEM((Cout, Sp), f32),    # padded conv1-output plane
        ],
        compiler_params=pltpu.CompilerParams(dimension_semantics=("parallel",)),
    )(skips_flat, up, masks, w1_9, w2_9,
      shift1.reshape(Cout, 1), shift2.reshape(Cout, 1))

    # TODO(synk): for large decoder planes (e.g. H=W>=64 with hundreds of channels),
    #             add row-strip tiling with a 1-row halo so the per-sample padded
    #             plane stays within v7x's 64 MiB VMEM.
    return out_flat.reshape(N, Cout, H2, W2)


# --------------------------------------------------------------------------
# Pure-JAX reference (NCHW) for numerical cross-check.
# --------------------------------------------------------------------------
def reference_forward(params, x_nchw, skips_nchw):
    eps = 1e-5
    N, _, H, W = x_nchw.shape
    Co = params["up_b"].shape[0]
    t = jnp.einsum("nihw,iokl->nohkwl", x_nchw, params["up_w"],
                   precision=lax.Precision.HIGHEST)
    up = t.reshape(N, Co, 2 * H, 2 * W) + params["up_b"][None, :, None, None]
    z = jnp.concatenate([skips_nchw, up], axis=1)

    def conv_bn_gelu(zz, w, b):
        y = lax.conv_general_dilated(zz, w, (1, 1), ((1, 1), (1, 1)),
                                     dimension_numbers=("NCHW", "OIHW", "NCHW"),
                                     precision=lax.Precision.HIGHEST)
        y = y + b[None, :, None, None]
        y = (y - params["bn_mean"][None, :, None, None]) / jnp.sqrt(
            params["bn_var"][None, :, None, None] + eps)
        y = y * params["bn_gamma"][None, :, None, None] + params["bn_beta"][None, :, None, None]
        return jax.nn.gelu(y, approximate=False)

    z = conv_bn_gelu(z, params["c1_w"], params["c1_b"])
    z = conv_bn_gelu(z, params["c2_w"], params["c2_b"])
    return z


if __name__ == "__main__":
    inC, outC = 8, 4                   # inchannels = 2 * outchannels (U-Net)
    N, H, W = 2, 16, 16                # x is the small decoder input (output is 32x32)
    key = jax.random.PRNGKey(0)
    keys = jax.random.split(key, 12)

    params = {
        "up_w": jax.random.normal(keys[0], (inC, outC, 2, 2), jnp.float32) / math.sqrt(inC * 4),
        "up_b": 0.1 * jax.random.normal(keys[1], (outC,), jnp.float32),
        "c1_w": jax.random.normal(keys[2], (outC, inC, 3, 3), jnp.float32) / math.sqrt(inC * 9),
        "c1_b": 0.1 * jax.random.normal(keys[3], (outC,), jnp.float32),
        "c2_w": jax.random.normal(keys[4], (outC, outC, 3, 3), jnp.float32) / math.sqrt(outC * 9),
        "c2_b": 0.1 * jax.random.normal(keys[5], (outC,), jnp.float32),
        "bn_gamma": 1.0 + 0.1 * jax.random.normal(keys[6], (outC,), jnp.float32),
        "bn_beta": 0.1 * jax.random.normal(keys[7], (outC,), jnp.float32),
        "bn_mean": 0.1 * jax.random.normal(keys[8], (outC,), jnp.float32),
        "bn_var": 1.0 + 0.1 * jax.random.uniform(keys[9], (outC,), jnp.float32),
    }

    x = jax.random.normal(keys[10], (N, inC, H, W), jnp.float32)                     # NCHW
    skips = jax.random.normal(keys[11], (N, inC - outC, 2 * H, 2 * W), jnp.float32)  # NCHW

    out = jax.jit(upblock_forward)(params, x, skips)
    out = jax.block_until_ready(out)
    assert out.shape == (N, outC, 2 * H, 2 * W), out.shape

    ref = jax.block_until_ready(reference_forward(params, x, skips))
    if not bool(jnp.allclose(out, ref, atol=1e-2, rtol=1e-2)):
        raise AssertionError(
            f"mismatch vs reference, max abs err = {float(jnp.max(jnp.abs(out - ref)))}")

    print("KERNEL_OK")
</pallas_src>

<mosaic_0001>
module attributes {stable_mosaic.version = 11 : i64} {
  func.func @_upconv_kernel(%arg0: i32, %arg1: memref<1x8x256xf32, #tpu.memory_space<vmem>>, %arg2: memref<16x8xf32, #tpu.memory_space<vmem>>, %arg3: memref<16x1xf32, #tpu.memory_space<vmem>>, %arg4: memref<1x16x256xf32, #tpu.memory_space<vmem>>) attributes {dimension_semantics = [#tpu.dimension_semantics<parallel>], iteration_bounds = array<i64: 2>, scalar_prefetch = 0 : i64, scratch_operands = 0 : i64, tpu.core_type = #tpu.core_type<tc>, window_params = [{transform_indices = @transform_0, window_bounds = array<i64: 1, 8, 256>}, {pipeline_mode = #tpu.pipeline_mode<synchronous>, transform_indices = @transform_1, window_bounds = array<i64: 16, 8>}, {pipeline_mode = #tpu.pipeline_mode<synchronous>, transform_indices = @transform_2, window_bounds = array<i64: 16, 1>}, {transform_indices = @transform_3, window_bounds = array<i64: 1, 16, 256>}]} {
    %c0 = arith.constant 0 : index
    %c0_0 = arith.constant 0 : index
    %0 = vector.load %arg2[%c0, %c0_0] : memref<16x8xf32, #tpu.memory_space<vmem>>, vector<16x8xf32>
    %c0_1 = arith.constant 0 : index
    %c0_2 = arith.constant 0 : index
    %c0_3 = arith.constant 0 : index
    %1 = vector.load %arg1[%c0_1, %c0_2, %c0_3] : memref<1x8x256xf32, #tpu.memory_space<vmem>>, vector<1x8x256xf32>
    %2 = vector.shape_cast %1 : vector<1x8x256xf32> to vector<8x256xf32>
    %cst = arith.constant dense<0.000000e+00> : vector<16x256xf32>
    %3 = tpu.matmul %0, %2, %cst {dimension_numbers = #tpu.dot_dimension_numbers<[1], [0], [0], [1], [0, 0, 1, 1], [], []>} : vector<16x8xf32>, vector<8x256xf32>, vector<16x256xf32> -> vector<16x256xf32>
    %c0_4 = arith.constant 0 : index
    %c0_5 = arith.constant 0 : index
    %4 = vector.load %arg3[%c0_4, %c0_5] : memref<16x1xf32, #tpu.memory_space<vmem>>, vector<16x1xf32>
    %5 = vector.broadcast %4 : vector<16x1xf32> to vector<16x256xf32>
    %6 = arith.addf %3, %5 : vector<16x256xf32>
    %c0_6 = arith.constant 0 : index
    %c0_7 = arith.constant 0 : index
    %c0_8 = arith.constant 0 : index
    %7 = vector.load %arg4[%c0_6, %c0_7, %c0_8] : memref<1x16x256xf32, #tpu.memory_space<vmem>>, vector<1x16x256xf32>
    %8 = vector.shape_cast %7 : vector<1x16x256xf32> to vector<16x256xf32>
    %9 = vector.shape_cast %6 : vector<16x256xf32> to vector<1x16x256xf32>
    tpu.vector_store %arg4[%c0_6, %c0_7, %c0_8], %9 {strides = array<i32>} : memref<1x16x256xf32, #tpu.memory_space<vmem>>, vector<1x16x256xf32>,
    return
  }
  func.func @transform_0(%arg0: i32) -> (i32, i32, i32) {
    %c0_i32 = arith.constant 0 : i32
    %c0_i32_0 = arith.constant 0 : i32
    %c0_i32_1 = arith.constant 0 : i32
    return %arg0, %c0_i32, %c0_i32_0 : i32, i32, i32
  }
  func.func @transform_1(%arg0: i32) -> (i32, i32) {
    %c0_i32 = arith.constant 0 : i32
    %c0_i32_0 = arith.constant 0 : i32
    %c0_i32_1 = arith.constant 0 : i32
    return %c0_i32, %c0_i32_0 : i32, i32
  }
  func.func @transform_2(%arg0: i32) -> (i32, i32) {
    %c0_i32 = arith.constant 0 : i32
    %c0_i32_0 = arith.constant 0 : i32
    %c0_i32_1 = arith.constant 0 : i32
    return %c0_i32, %c0_i32_0 : i32, i32
  }
  func.func @transform_3(%arg0: i32) -> (i32, i32, i32) {
    %c0_i32 = arith.constant 0 : i32
    %c0_i32_0 = arith.constant 0 : i32
    %c0_i32_1 = arith.constant 0 : i32
    return %arg0, %c0_i32, %c0_i32_0 : i32, i32, i32
  }
}

module attributes {stable_mosaic.version = 11 : i64} {
  func.func @_fused_convblock_kernel(%arg0: i32, %arg1: memref<1x4x1024xf32, #tpu.memory_space<vmem>>, %arg2: memref<1x4x1024xf32, #tpu.memory_space<vmem>>, %arg3: memref<2x1024xf32, #tpu.memory_space<vmem>>, %arg4: memref<9x4x8xf32, #tpu.memory_space<vmem>>, %arg5: memref<9x4x4xf32, #tpu.memory_space<vmem>>, %arg6: memref<4x1xf32, #tpu.memory_space<vmem>>, %arg7: memref<4x1xf32, #tpu.memory_space<vmem>>, %arg8: memref<1x4x1024xf32, #tpu.memory_space<vmem>>, %arg9: memref<8x1152xf32, #tpu.memory_space<vmem>>, %arg10: memref<4x1152xf32, #tpu.memory_space<vmem>>) attributes {dimension_semantics = [#tpu.dimension_semantics<parallel>], iteration_bounds = array<i64: 2>, scalar_prefetch = 0 : i64, scratch_operands = 2 : i64, tpu.core_type = #tpu.core_type<tc>, window_params = [{transform_indices = @transform_0, window_bounds = array<i64: 1, 4, 1024>}, {transform_indices = @transform_1, window_bounds = array<i64: 1, 4, 1024>}, {pipeline_mode = #tpu.pipeline_mode<synchronous>, transform_indices = @transform_2, window_bounds = array<i64: 2, 1024>}, {pipeline_mode = #tpu.pipeline_mode<synchronous>, transform_indices = @transform_3, window_bounds = array<i64: 9, 4, 8>}, {pipeline_mode = #tpu.pipeline_mode<synchronous>, transform_indices = @transform_4, window_bounds = array<i64: 9, 4, 4>}, {pipeline_mode = #tpu.pipeline_mode<synchronous>, transform_indices = @transform_5, window_bounds = array<i64: 4, 1>}, {pipeline_mode = #tpu.pipeline_mode<synchronous>, transform_indices = @transform_6, window_bounds = array<i64: 4, 1>}, {transform_indices = @transform_7, window_bounds = array<i64: 1, 4, 1024>}]} {
    %c0 = arith.constant 0 : index
    %c0_0 = arith.constant 0 : index
    %0 = vector.load %arg3[%c0, %c0_0] : memref<2x1024xf32, #tpu.memory_space<vmem>>, vector<1x1024xf32>
    %c1 = arith.constant 1 : index
    %c0_1 = arith.constant 0 : index
    %1 = vector.load %arg3[%c1, %c0_1] : memref<2x1024xf32, #tpu.memory_space<vmem>>, vector<1x1024xf32>
    %cst = arith.constant 0.000000e+00 : f32
    %2 = vector.broadcast %cst : f32 to vector<8x64xf32>
    %c0_2 = arith.constant 0 : index
    %c0_3 = arith.constant 0 : index
    %3 = vector.load %arg9[%c0_2, %c0_3] : memref<8x1152xf32, #tpu.memory_space<vmem>>, vector<8x64xf32>
    tpu.vector_store %arg9[%c0_2, %c0_3], %2 {strides = array<i32>} : memref<8x1152xf32, #tpu.memory_space<vmem>>, vector<8x64xf32>,
    %cst_4 = arith.constant 0.000000e+00 : f32
    %4 = vector.broadcast %cst_4 : f32 to vector<8x64xf32>
    %c0_5 = arith.constant 0 : index
    %c1088 = arith.constant 1088 : index
    %5 = vector.load %arg9[%c0_5, %c1088] : memref<8x1152xf32, #tpu.memory_space<vmem>>, vector<8x64xf32>
    tpu.vector_store %arg9[%c0_5, %c1088], %4 {strides = array<i32>} : memref<8x1152xf32, #tpu.memory_space<vmem>>, vector<8x64xf32>,
    %c0_6 = arith.constant 0 : index
    %c0_7 = arith.constant 0 : index
    %c0_8 = arith.constant 0 : index
    %6 = vector.load %arg1[%c0_6, %c0_7, %c0_8] : memref<1x4x1024xf32, #tpu.memory_space<vmem>>, vector<1x4x1024xf32>
    %7 = vector.shape_cast %6 : vector<1x4x1024xf32> to vector<4x1024xf32>
    %c0_9 = arith.constant 0 : index
    %c64 = arith.constant 64 : index
    %8 = vector.load %arg9[%c0_9, %c64] : memref<8x1152xf32, #tpu.memory_space<vmem>>, vector<4x1024xf32>
    tpu.vector_store %arg9[%c0_9, %c64], %7 {strides = array<i32>} : memref<8x1152xf32, #tpu.memory_space<vmem>>, vector<4x1024xf32>,
    %c0_10 = arith.constant 0 : index
    %c0_11 = arith.constant 0 : index
    %c0_12 = arith.constant 0 : index
    %9 = vector.load %arg2[%c0_10, %c0_11, %c0_12] : memref<1x4x1024xf32, #tpu.memory_space<vmem>>, vector<1x4x1024xf32>
    %10 = vector.shape_cast %9 : vector<1x4x1024xf32> to vector<4x1024xf32>
    %c4 = arith.constant 4 : index
    %c64_13 = arith.constant 64 : index
    %11 = vector.load %arg9[%c4, %c64_13] : memref<8x1152xf32, #tpu.memory_space<vmem>>, vector<4x1024xf32>
    tpu.vector_store %arg9[%c4, %c64_13], %10 {strides = array<i32>} : memref<8x1152xf32, #tpu.memory_space<vmem>>, vector<4x1024xf32>,
    %cst_14 = arith.constant 0.000000e+00 : f32
    %12 = vector.broadcast %cst_14 : f32 to vector<4x1024xf32>
    %c0_15 = arith.constant 0 : index
    %c0_16 = arith.constant 0 : index
    %c0_17 = arith.constant 0 : index
    %13 = vector.load %arg4[%c0_15, %c0_16, %c0_17] : memref<9x4x8xf32, #tpu.memory_space<vmem>>, vector<1x4x8xf32>
    %14 = vector.shape_cast %13 : vector<1x4x8xf32> to vector<4x8xf32>
    %c0_18 = arith.constant 0 : index
    %c31 = arith.constant 31 : index
    %15 = vector.load %arg9[%c0_18, %c31] : memref<8x1152xf32, #tpu.memory_space<vmem>>, vector<8x1024xf32>
    %cst_19 = arith.constant dense<0.000000e+00> : vector<4x1024xf32>
    %16 = tpu.matmul %14, %15, %cst_19 {dimension_numbers = #tpu.dot_dimension_numbers<[1], [0], [0], [1], [0, 0, 1, 1], [], []>} : vector<4x8xf32>, vector<8x1024xf32>, vector<4x1024xf32> -> vector<4x1024xf32>
    %17 = arith.addf %12, %16 : vector<4x1024xf32>
    %c3 = arith.constant 3 : index
    %c0_20 = arith.constant 0 : index
    %c0_21 = arith.constant 0 : index
    %18 = vector.load %arg4[%c3, %c0_20, %c0_21] : memref<9x4x8xf32, #tpu.memory_space<vmem>>, vector<1x4x8xf32>
    %19 = vector.shape_cast %18 : vector<1x4x8xf32> to vector<4x8xf32>
    %c0_22 = arith.constant 0 : index
    %c63 = arith.constant 63 : index
    %20 = vector.load %arg9[%c0_22, %c63] : memref<8x1152xf32, #tpu.memory_space<vmem>>, vector<8x1024xf32>
    %cst_23 = arith.constant dense<0.000000e+00> : vector<4x1024xf32>
    %21 = tpu.matmul %19, %20, %cst_23 {dimension_numbers = #tpu.dot_dimension_numbers<[1], [0], [0], [1], [0, 0, 1, 1], [], []>} : vector<4x8xf32>, vector<8x1024xf32>, vector<4x1024xf32> -> vector<4x1024xf32>
    %22 = arith.addf %17, %21 : vector<4x1024xf32>
    %c6 = arith.constant 6 : index
    %c0_24 = arith.constant 0 : index
    %c0_25 = arith.constant 0 : index
    %23 = vector.load %arg4[%c6, %c0_24, %c0_25] : memref<9x4x8xf32, #tpu.memory_space<vmem>>, vector<1x4x8xf32>
    %24 = vector.shape_cast %23 : vector<1x4x8xf32> to vector<4x8xf32>
    %c0_26 = arith.constant 0 : index
    %c95 = arith.constant 95 : index
    %25 = vector.load %arg9[%c0_26, %c95] : memref<8x1152xf32, #tpu.memory_space<vmem>>, vector<8x1024xf32>
    %cst_27 = arith.constant dense<0.000000e+00> : vector<4x1024xf32>
    %26 = tpu.matmul %24, %25, %cst_27 {dimension_numbers = #tpu.dot_dimension_numbers<[1], [0], [0], [1], [0, 0, 1, 1], [], []>} : vector<4x8xf32>, vector<8x1024xf32>, vector<4x1024xf32> -> vector<4x1024xf32>
    %27 = arith.addf %22, %26 : vector<4x1024xf32>
    %28 = vector.broadcast %0 : vector<1x1024xf32> to vector<4x1024xf32>
    %29 = arith.mulf %27, %28 : vector<4x1024xf32>
    %cst_28 = arith.constant 0.000000e+00 : f32
    %30 = vector.broadcast %cst_28 : f32 to vector<4x1024xf32>
    %c1_29 = arith.constant 1 : index
    %c0_30 = arith.constant 0 : index
    %c0_31 = arith.constant 0 : index
    %31 = vector.load %arg4[%c1_29, %c0_30, %c0_31] : memref<9x4x8xf32, #tpu.memory_space<vmem>>, vector<1x4x8xf32>
    %32 = vector.shape_cast %31 : vector<1x4x8xf32> to vector<4x8xf32>
    %c0_32 = arith.constant 0 : index
    %c32 = arith.constant 32 : index
    %33 = vector.load %arg9[%c0_32, %c32] : memref<8x1152xf32, #tpu.memory_space<vmem>>, vector<8x1024xf32>
    %cst_33 = arith.constant dense<0.000000e+00> : vector<4x1024xf32>
    %34 = tpu.matmul %32, %33, %cst_33 {dimension_numbers = #tpu.dot_dimension_numbers<[1], [0], [0], [1], [0, 0, 1, 1], [], []>} : vector<4x8xf32>, vector<8x1024xf32>, vector<4x1024xf32> -> vector<4x1024xf32>
    %35 = arith.addf %30, %34 : vector<4x1024xf32>
    %c4_34 = arith.constant 4 : index
    %c0_35 = arith.constant 0 : index
    %c0_36 = arith.constant 0 : index
    %36 = vector.load %arg4[%c4_34, %c0_35, %c0_36] : memref<9x4x8xf32, #tpu.memory_space<vmem>>, vector<1x4x8xf32>
    %37 = vector.shape_cast %36 : vector<1x4x8xf32> to vector<4x8xf32>
    %c0_37 = arith.constant 0 : index
    %c64_38 = arith.constant 64 : index
    %38 = vector.load %arg9[%c0_37, %c64_38] : memref<8x1152xf32, #tpu.memory_space<vmem>>, vector<8x1024xf32>
    %cst_39 = arith.constant dense<0.000000e+00> : vector<4x1024xf32>
    %39 = tpu.matmul %37, %38, %cst_39 {dimension_numbers = #tpu.dot_dimension_numbers<[1], [0], [0], [1], [0, 0, 1, 1], [], []>} : vector<4x8xf32>, vector<8x1024xf32>, vector<4x1024xf32> -> vector<4x1024xf32>
    %40 = arith.addf %35, %39 : vector<4x1024xf32>
    %c7 = arith.constant 7 : index
    %c0_40 = arith.constant 0 : index
    %c0_41 = arith.constant 0 : index
    %41 = vector.load %arg4[%c7, %c0_40, %c0_41] : memref<9x4x8xf32, #tpu.memory_space<vmem>>, vector<1x4x8xf32>
    %42 = vector.shape_cast %41 : vector<1x4x8xf32> to vector<4x8xf32>
    %c0_42 = arith.constant 0 : index
    %c96 = arith.constant 96 : index
    %43 = vector.load %arg9[%c0_42, %c96] : memref<8x1152xf32, #tpu.memory_space<vmem>>, vector<8x1024xf32>
    %cst_43 = arith.constant dense<0.000000e+00> : vector<4x1024xf32>
    %44 = tpu.matmul %42, %43, %cst_43 {dimension_numbers = #tpu.dot_dimension_numbers<[1], [0], [0], [1], [0, 0, 1, 1], [], []>} : vector<4x8xf32>, vector<8x1024xf32>, vector<4x1024xf32> -> vector<4x1024xf32>
    %45 = arith.addf %40, %44 : vector<4x1024xf32>
    %46 = arith.addf %29, %45 : vector<4x1024xf32>
    %cst_44 = arith.constant 0.000000e+00 : f32
    %47 = vector.broadcast %cst_44 : f32 to vector<4x1024xf32>
    %c2 = arith.constant 2 : index
    %c0_45 = arith.constant 0 : index
    %c0_46 = arith.constant 0 : index
    %48 = vector.load %arg4[%c2, %c0_45, %c0_46] : memref<9x4x8xf32, #tpu.memory_space<vmem>>, vector<1x4x8xf32>
    %49 = vector.shape_cast %48 : vector<1x4x8xf32> to vector<4x8xf32>
    %c0_47 = arith.constant 0 : index
    %c33 = arith.constant 33 : index
    %50 = vector.load %arg9[%c0_47, %c33] : memref<8x1152xf32, #tpu.memory_space<vmem>>, vector<8x1024xf32>
    %cst_48 = arith.constant dense<0.000000e+00> : vector<4x1024xf32>
    %51 = tpu.matmul %49, %50, %cst_48 {dimension_numbers = #tpu.dot_dimension_numbers<[1], [0], [0], [1], [0, 0, 1, 1], [], []>} : vector<4x8xf32>, vector<8x1024xf32>, vector<4x1024xf32> -> vector<4x1024xf32>
    %52 = arith.addf %47, %51 : vector<4x1024xf32>
    %c5 = arith.constant 5 : index
    %c0_49 = arith.constant 0 : index
    %c0_50 = arith.constant 0 : index
    %53 = vector.load %arg4[%c5, %c0_49, %c0_50] : memref<9x4x8xf32, #tpu.memory_space<vmem>>, vector<1x4x8xf32>
    %54 = vector.shape_cast %53 : vector<1x4x8xf32> to vector<4x8xf32>
    %c0_51 = arith.constant 0 : index
    %c65 = arith.constant 65 : index
    %55 = vector.load %arg9[%c0_51, %c65] : memref<8x1152xf32, #tpu.memory_space<vmem>>, vector<8x1024xf32>
    %cst_52 = arith.constant dense<0.000000e+00> : vector<4x1024xf32>
    %56 = tpu.matmul %54, %55, %cst_52 {dimension_numbers = #tpu.dot_dimension_numbers<[1], [0], [0], [1], [0, 0, 1, 1], [], []>} : vector<4x8xf32>, vector<8x1024xf32>, vector<4x1024xf32> -> vector<4x1024xf32>
    %57 = arith.addf %52, %56 : vector<4x1024xf32>
    %c8 = arith.constant 8 : index
    %c0_53 = arith.constant 0 : index
    %c0_54 = arith.constant 0 : index
    %58 = vector.load %arg4[%c8, %c0_53, %c0_54] : memref<9x4x8xf32, #tpu.memory_space<vmem>>, vector<1x4x8xf32>
    %59 = vector.shape_cast %58 : vector<1x4x8xf32> to vector<4x8xf32>
    %c0_55 = arith.constant 0 : index
    %c97 = arith.constant 97 : index
    %60 = vector.load %arg9[%c0_55, %c97] : memref<8x1152xf32, #tpu.memory_space<vmem>>, vector<8x1024xf32>
    %cst_56 = arith.constant dense<0.000000e+00> : vector<4x1024xf32>
    %61 = tpu.matmul %59, %60, %cst_56 {dimension_numbers = #tpu.dot_dimension_numbers<[1], [0], [0], [1], [0, 0, 1, 1], [], []>} : vector<4x8xf32>, vector<8x1024xf32>, vector<4x1024xf32> -> vector<4x1024xf32>
    %62 = arith.addf %57, %61 : vector<4x1024xf32>
    %63 = vector.broadcast %1 : vector<1x1024xf32> to vector<4x1024xf32>
    %64 = arith.mulf %62, %63 : vector<4x1024xf32>
    %65 = arith.addf %46, %64 : vector<4x1024xf32>
    %c0_57 = arith.constant 0 : index
    %c0_58 = arith.constant 0 : index
    %66 = vector.load %arg6[%c0_57, %c0_58] : memref<4x1xf32, #tpu.memory_space<vmem>>, vector<4x1xf32>
    %67 = vector.broadcast %66 : vector<4x1xf32> to vector<4x1024xf32>
    %68 = arith.addf %65, %67 : vector<4x1024xf32>
    %cst_59 = arith.constant 5.000000e-01 : f32
    %69 = vector.broadcast %cst_59 : f32 to vector<4x1024xf32>
    %70 = arith.mulf %69, %68 : vector<4x1024xf32>
    %cst_60 = arith.constant 0.707106769 : f32
    %71 = vector.broadcast %cst_60 : f32 to vector<4x1024xf32>
    %72 = arith.mulf %68, %71 : vector<4x1024xf32>
    %cst_61 = arith.constant -4.000000e+00 : f32
    %cst_62 = arith.constant 4.000000e+00 : f32
    %73 = vector.broadcast %cst_61 : f32 to vector<4x1024xf32>
    %74 = arith.maximumf %73, %72 : vector<4x1024xf32>
    %75 = vector.broadcast %cst_62 : f32 to vector<4x1024xf32>
    %76 = arith.minimumf %75, %74 : vector<4x1024xf32>
    %77 = arith.mulf %76, %76 : vector<4x1024xf32>
    %cst_63 = arith.constant -2.72614237E-10 : f32
    %78 = vector.broadcast %cst_63 : f32 to vector<4x1024xf32>
    %79 = arith.mulf %78, %77 : vector<4x1024xf32>
    %cst_64 = arith.constant 2.77068146E-8 : f32
    %80 = vector.broadcast %cst_64 : f32 to vector<4x1024xf32>
    %81 = arith.addf %79, %80 : vector<4x1024xf32>
    %82 = arith.mulf %81, %77 : vector<4x1024xf32>
    %cst_65 = arith.constant -2.10102394E-6 : f32
    %83 = vector.broadcast %cst_65 : f32 to vector<4x1024xf32>
    %84 = arith.addf %82, %83 : vector<4x1024xf32>
    %85 = arith.mulf %84, %77 : vector<4x1024xf32>
    %cst_66 = arith.constant -5.69250624E-5 : f32
    %86 = vector.broadcast %cst_66 : f32 to vector<4x1024xf32>
    %87 = arith.addf %85, %86 : vector<4x1024xf32>
    %88 = arith.mulf %87, %77 : vector<4x1024xf32>
    %cst_67 = arith.constant -7.34990637E-4 : f32
    %89 = vector.broadcast %cst_67 : f32 to vector<4x1024xf32>
    %90 = arith.addf %88, %89 : vector<4x1024xf32>
    %91 = arith.mulf %90, %77 : vector<4x1024xf32>
    %cst_68 = arith.constant -2.954600e-03 : f32
    %92 = vector.broadcast %cst_68 : f32 to vector<4x1024xf32>
    %93 = arith.addf %91, %92 : vector<4x1024xf32>
    %94 = arith.mulf %93, %77 : vector<4x1024xf32>
    %cst_69 = arith.constant -0.0160960332 : f32
    %95 = vector.broadcast %cst_69 : f32 to vector<4x1024xf32>
    %96 = arith.addf %94, %95 : vector<4x1024xf32>
    %cst_70 = arith.constant -1.45660715E-5 : f32
    %97 = vector.broadcast %cst_70 : f32 to vector<4x1024xf32>
    %98 = arith.mulf %97, %77 : vector<4x1024xf32>
    %cst_71 = arith.constant -2.13374049E-4 : f32
    %99 = vector.broadcast %cst_71 : f32 to vector<4x1024xf32>
    %100 = arith.addf %98, %99 : vector<4x1024xf32>
    %101 = arith.mulf %100, %77 : vector<4x1024xf32>
    %cst_72 = arith.constant -0.00168282702 : f32
    %102 = vector.broadcast %cst_72 : f32 to vector<4x1024xf32>
    %103 = arith.addf %101, %102 : vector<4x1024xf32>
    %104 = arith.mulf %103, %77 : vector<4x1024xf32>
    %cst_73 = arith.constant -0.00737332925 : f32
    %105 = vector.broadcast %cst_73 : f32 to vector<4x1024xf32>
    %106 = arith.addf %104, %105 : vector<4x1024xf32>
    %107 = arith.mulf %106, %77 : vector<4x1024xf32>
    %cst_74 = arith.constant -0.0142647391 : f32
    %108 = vector.broadcast %cst_74 : f32 to vector<4x1024xf32>
    %109 = arith.addf %107, %108 : vector<4x1024xf32>
    %110 = arith.mulf %76, %96 : vector<4x1024xf32>
    %111 = tpu.reciprocal %109 {approx = true} : vector<4x1024xf32> -> vector<4x1024xf32>
    %112 = arith.mulf %110, %111 : vector<4x1024xf32>
    %cst_75 = arith.constant 1.000000e+00 : f32
    %113 = vector.broadcast %cst_75 : f32 to vector<4x1024xf32>
    %114 = arith.addf %113, %112 : vector<4x1024xf32>
    %115 = arith.mulf %70, %114 : vector<4x1024xf32>
    %cst_76 = arith.constant 0.000000e+00 : f32
    %116 = vector.broadcast %cst_76 : f32 to vector<4x64xf32>
    %c0_77 = arith.constant 0 : index
    %c0_78 = arith.constant 0 : index
    %117 = vector.load %arg10[%c0_77, %c0_78] : memref<4x1152xf32, #tpu.memory_space<vmem>>, vector<4x64xf32>
    tpu.vector_store %arg10[%c0_77, %c0_78], %116 {strides = array<i32>} : memref<4x1152xf32, #tpu.memory_space<vmem>>, vector<4x64xf32>,
    %cst_79 = arith.constant 0.000000e+00 : f32
    %118 = vector.broadcast %cst_79 : f32 to vector<4x64xf32>
    %c0_80 = arith.constant 0 : index
    %c1088_81 = arith.constant 1088 : index
    %119 = vector.load %arg10[%c0_80, %c1088_81] : memref<4x1152xf32, #tpu.memory_space<vmem>>, vector<4x64xf32>
    tpu.vector_store %arg10[%c0_80, %c1088_81], %118 {strides = array<i32>} : memref<4x1152xf32, #tpu.memory_space<vmem>>, vector<4x64xf32>,
    %c0_82 = arith.constant 0 : index
    %c64_83 = arith.constant 64 : index
    %120 = vector.load %arg10[%c0_82, %c64_83] : memref<4x1152xf32, #tpu.memory_space<vmem>>, vector<4x1024xf32>
    tpu.vector_store %arg10[%c0_82, %c64_83], %115 {strides = array<i32>} : memref<4x1152xf32, #tpu.memory_space<vmem>>, vector<4x1024xf32>,
    %cst_84 = arith.constant 0.000000e+00 : f32
    %121 = vector.broadcast %cst_84 : f32 to vector<4x1024xf32>
    %c0_85 = arith.constant 0 : index
    %c0_86 = arith.constant 0 : index
    %c0_87 = arith.constant 0 : index
    %122 = vector.load %arg5[%c0_85, %c0_86, %c0_87] : memref<9x4x4xf32, #tpu.memory_space<vmem>>, vector<1x4x4xf32>
    %123 = vector.shape_cast %122 : vector<1x4x4xf32> to vector<4x4xf32>
    %c0_88 = arith.constant 0 : index
    %c31_89 = arith.constant 31 : index
    %124 = vector.load %arg10[%c0_88, %c31_89] : memref<4x1152xf32, #tpu.memory_space<vmem>>, vector<4x1024xf32>
    %cst_90 = arith.constant dense<0.000000e+00> : vector<4x1024xf32>
    %125 = tpu.matmul %123, %124, %cst_90 {dimension_numbers = #tpu.dot_dimension_numbers<[1], [0], [0], [1], [0, 0, 1, 1], [], []>} : vector<4x4xf32>, vector<4x1024xf32>, vector<4x1024xf32> -> vector<4x1024xf32>
    %126 = arith.addf %121, %125 : vector<4x1024xf32>
    %c3_91 = arith.constant 3 : index
    %c0_92 = arith.constant 0 : index
    %c0_93 = arith.constant 0 : index
    %127 = vector.load %arg5[%c3_91, %c0_92, %c0_93] : memref<9x4x4xf32, #tpu.memory_space<vmem>>, vector<1x4x4xf32>
    %128 = vector.shape_cast %127 : vector<1x4x4xf32> to vector<4x4xf32>
    %c0_94 = arith.constant 0 : index
    %c63_95 = arith.constant 63 : index
    %129 = vector.load %arg10[%c0_94, %c63_95] : memref<4x1152xf32, #tpu.memory_space<vmem>>, vector<4x1024xf32>
    %cst_96 = arith.constant dense<0.000000e+00> : vector<4x1024xf32>
    %130 = tpu.matmul %128, %129, %cst_96 {dimension_numbers = #tpu.dot_dimension_numbers<[1], [0], [0], [1], [0, 0, 1, 1], [], []>} : vector<4x4xf32>, vector<4x1024xf32>, vector<4x1024xf32> -> vector<4x1024xf32>
    %131 = arith.addf %126, %130 : vector<4x1024xf32>
    %c6_97 = arith.constant 6 : index
    %c0_98 = arith.constant 0 : index
    %c0_99 = arith.constant 0 : index
    %132 = vector.load %arg5[%c6_97, %c0_98, %c0_99] : memref<9x4x4xf32, #tpu.memory_space<vmem>>, vector<1x4x4xf32>
    %133 = vector.shape_cast %132 : vector<1x4x4xf32> to vector<4x4xf32>
    %c0_100 = arith.constant 0 : index
    %c95_101 = arith.constant 95 : index
    %134 = vector.load %arg10[%c0_100, %c95_101] : memref<4x1152xf32, #tpu.memory_space<vmem>>, vector<4x1024xf32>
    %cst_102 = arith.constant dense<0.000000e+00> : vector<4x1024xf32>
    %135 = tpu.matmul %133, %134, %cst_102 {dimension_numbers = #tpu.dot_dimension_numbers<[1], [0], [0], [1], [0, 0, 1, 1], [], []>} : vector<4x4xf32>, vector<4x1024xf32>, vector<4x1024xf32> -> vector<4x1024xf32>
    %136 = arith.addf %131, %135 : vector<4x1024xf32>
    %137 = vector.broadcast %0 : vector<1x1024xf32> to vector<4x1024xf32>
    %138 = arith.mulf %136, %137 : vector<4x1024xf32>
    %cst_103 = arith.constant 0.000000e+00 : f32
    %139 = vector.broadcast %cst_103 : f32 to vector<4x1024xf32>
    %c1_104 = arith.constant 1 : index
    %c0_105 = arith.constant 0 : index
    %c0_106 = arith.constant 0 : index
    %140 = vector.load %arg5[%c1_104, %c0_105, %c0_106] : memref<9x4x4xf32, #tpu.memory_space<vmem>>, vector<1x4x4xf32>
    %141 = vector.shape_cast %140 : vector<1x4x4xf32> to vector<4x4xf32>
    %c0_107 = arith.constant 0 : index
    %c32_108 = arith.constant 32 : index
    %142 = vector.load %arg10[%c0_107, %c32_108] : memref<4x1152xf32, #tpu.memory_space<vmem>>, vector<4x1024xf32>
    %cst_109 = arith.constant dense<0.000000e+00> : vector<4x1024xf32>
    %143 = tpu.matmul %141, %142, %cst_109 {dimension_numbers = #tpu.dot_dimension_numbers<[1], [0], [0], [1], [0, 0, 1, 1], [], []>} : vector<4x4xf32>, vector<4x1024xf32>, vector<4x1024xf32> -> vector<4x1024xf32>
    %144 = arith.addf %139, %143 : vector<4x1024xf32>
    %c4_110 = arith.constant 4 : index
    %c0_111 = arith.constant 0 : index
    %c0_112 = arith.constant 0 : index
    %145 = vector.load %arg5[%c4_110, %c0_111, %c0_112] : memref<9x4x4xf32, #tpu.memory_space<vmem>>, vector<1x4x4xf32>
    %146 = vector.shape_cast %145 : vector<1x4x4xf32> to vector<4x4xf32>
    %c0_113 = arith.constant 0 : index
    %c64_114 = arith.constant 64 : index
    %147 = vector.load %arg10[%c0_113, %c64_114] : memref<4x1152xf32, #tpu.memory_space<vmem>>, vector<4x1024xf32>
    %cst_115 = arith.constant dense<0.000000e+00> : vector<4x1024xf32>
    %148 = tpu.matmul %146, %147, %cst_115 {dimension_numbers = #tpu.dot_dimension_numbers<[1], [0], [0], [1], [0, 0, 1, 1], [], []>} : vector<4x4xf32>, vector<4x1024xf32>, vector<4x1024xf32> -> vector<4x1024xf32>
    %149 = arith.addf %144, %148 : vector<4x1024xf32>
    %c7_116 = arith.constant 7 : index
    %c0_117 = arith.constant 0 : index
    %c0_118 = arith.constant 0 : index
    %150 = vector.load %arg5[%c7_116, %c0_117, %c0_118] : memref<9x4x4xf32, #tpu.memory_space<vmem>>, vector<1x4x4xf32>
    %151 = vector.shape_cast %150 : vector<1x4x4xf32> to vector<4x4xf32>
    %c0_119 = arith.constant 0 : index
    %c96_120 = arith.constant 96 : index
    %152 = vector.load %arg10[%c0_119, %c96_120] : memref<4x1152xf32, #tpu.memory_space<vmem>>, vector<4x1024xf32>
    %cst_121 = arith.constant dense<0.000000e+00> : vector<4x1024xf32>
    %153 = tpu.matmul %151, %152, %cst_121 {dimension_numbers = #tpu.dot_dimension_numbers<[1], [0], [0], [1], [0, 0, 1, 1], [], []>} : vector<4x4xf32>, vector<4x1024xf32>, vector<4x1024xf32> -> vector<4x1024xf32>
    %154 = arith.addf %149, %153 : vector<4x1024xf32>
    %155 = arith.addf %138, %154 : vector<4x1024xf32>
    %cst_122 = arith.constant 0.000000e+00 : f32
    %156 = vector.broadcast %cst_122 : f32 to vector<4x1024xf32>
    %c2_123 = arith.constant 2 : index
    %c0_124 = arith.constant 0 : index
    %c0_125 = arith.constant 0 : index
    %157 = vector.load %arg5[%c2_123, %c0_124, %c0_125] : memref<9x4x4xf32, #tpu.memory_space<vmem>>, vector<1x4x4xf32>
    %158 = vector.shape_cast %157 : vector<1x4x4xf32> to vector<4x4xf32>
    %c0_126 = arith.constant 0 : index
    %c33_127 = arith.constant 33 : index
    %159 = vector.load %arg10[%c0_126, %c33_127] : memref<4x1152xf32, #tpu.memory_space<vmem>>, vector<4x1024xf32>
    %cst_128 = arith.constant dense<0.000000e+00> : vector<4x1024xf32>
    %160 = tpu.matmul %158, %159, %cst_128 {dimension_numbers = #tpu.dot_dimension_numbers<[1], [0], [0], [1], [0, 0, 1, 1], [], []>} : vector<4x4xf32>, vector<4x1024xf32>, vector<4x1024xf32> -> vector<4x1024xf32>
    %161 = arith.addf %156, %160 : vector<4x1024xf32>
    %c5_129 = arith.constant 5 : index
    %c0_130 = arith.constant 0 : index
    %c0_131 = arith.constant 0 : index
    %162 = vector.load %arg5[%c5_129, %c0_130, %c0_131] : memref<9x4x4xf32, #tpu.memory_space<vmem>>, vector<1x4x4xf32>
    %163 = vector.shape_cast %162 : vector<1x4x4xf32> to vector<4x4xf32>
    %c0_132 = arith.constant 0 : index
    %c65_133 = arith.constant 65 : index
    %164 = vector.load %arg10[%c0_132, %c65_133] : memref<4x1152xf32, #tpu.memory_space<vmem>>, vector<4x1024xf32>
    %cst_134 = arith.constant dense<0.000000e+00> : vector<4x1024xf32>
    %165 = tpu.matmul %163, %164, %cst_134 {dimension_numbers = #tpu.dot_dimension_numbers<[1], [0], [0], [1], [0, 0, 1, 1], [], []>} : vector<4x4xf32>, vector<4x1024xf32>, vector<4x1024xf32> -> vector<4x1024xf32>
    %166 = arith.addf %161, %165 : vector<4x1024xf32>
    %c8_135 = arith.constant 8 : index
    %c0_136 = arith.constant 0 : index
    %c0_137 = arith.constant 0 : index
    %167 = vector.load %arg5[%c8_135, %c0_136, %c0_137] : memref<9x4x4xf32, #tpu.memory_space<vmem>>, vector<1x4x4xf32>
    %168 = vector.shape_cast %167 : vector<1x4x4xf32> to vector<4x4xf32>
    %c0_138 = arith.constant 0 : index
    %c97_139 = arith.constant 97 : index
    %169 = vector.load %arg10[%c0_138, %c97_139] : memref<4x1152xf32, #tpu.memory_space<vmem>>, vector<4x1024xf32>
    %cst_140 = arith.constant dense<0.000000e+00> : vector<4x1024xf32>
    %170 = tpu.matmul %168, %169, %cst_140 {dimension_numbers = #tpu.dot_dimension_numbers<[1], [0], [0], [1], [0, 0, 1, 1], [], []>} : vector<4x4xf32>, vector<4x1024xf32>, vector<4x1024xf32> -> vector<4x1024xf32>
    %171 = arith.addf %166, %170 : vector<4x1024xf32>
    %172 = vector.broadcast %1 : vector<1x1024xf32> to vector<4x1024xf32>
    %173 = arith.mulf %171, %172 : vector<4x1024xf32>
    %174 = arith.addf %155, %173 : vector<4x1024xf32>
    %c0_141 = arith.constant 0 : index
    %c0_142 = arith.constant 0 : index
    %175 = vector.load %arg7[%c0_141, %c0_142] : memref<4x1xf32, #tpu.memory_space<vmem>>, vector<4x1xf32>
    %176 = vector.broadcast %175 : vector<4x1xf32> to vector<4x1024xf32>
    %177 = arith.addf %174, %176 : vector<4x1024xf32>
    %cst_143 = arith.constant 5.000000e-01 : f32
    %178 = vector.broadcast %cst_143 : f32 to vector<4x1024xf32>
    %179 = arith.mulf %178, %177 : vector<4x1024xf32>
    %cst_144 = arith.constant 0.707106769 : f32
    %180 = vector.broadcast %cst_144 : f32 to vector<4x1024xf32>
    %181 = arith.mulf %177, %180 : vector<4x1024xf32>
    %cst_145 = arith.constant -4.000000e+00 : f32
    %cst_146 = arith.constant 4.000000e+00 : f32
    %182 = vector.broadcast %cst_145 : f32 to vector<4x1024xf32>
    %183 = arith.maximumf %182, %181 : vector<4x1024xf32>
    %184 = vector.broadcast %cst_146 : f32 to vector<4x1024xf32>
    %185 = arith.minimumf %184, %183 : vector<4x1024xf32>
    %186 = arith.mulf %185, %185 : vector<4x1024xf32>
    %cst_147 = arith.constant -2.72614237E-10 : f32
    %187 = vector.broadcast %cst_147 : f32 to vector<4x1024xf32>
    %188 = arith.mulf %187, %186 : vector<4x1024xf32>
    %cst_148 = arith.constant 2.77068146E-8 : f32
    %189 = vector.broadcast %cst_148 : f32 to vector<4x1024xf32>
    %190 = arith.addf %188, %189 : vector<4x1024xf32>
    %191 = arith.mulf %190, %186 : vector<4x1024xf32>
    %cst_149 = arith.constant -2.10102394E-6 : f32
    %192 = vector.broadcast %cst_149 : f32 to vector<4x1024xf32>
    %193 = arith.addf %191, %192 : vector<4x1024xf32>
    %194 = arith.mulf %193, %186 : vector<4x1024xf32>
    %cst_150 = arith.constant -5.69250624E-5 : f32
    %195 = vector.broadcast %cst_150 : f32 to vector<4x1024xf32>
    %196 = arith.addf %194, %195 : vector<4x1024xf32>
    %197 = arith.mulf %196, %186 : vector<4x1024xf32>
    %cst_151 = arith.constant -7.34990637E-4 : f32
    %198 = vector.broadcast %cst_151 : f32 to vector<4x1024xf32>
    %199 = arith.addf %197, %198 : vector<4x1024xf32>
    %200 = arith.mulf %199, %186 : vector<4x1024xf32>
    %cst_152 = arith.constant -2.954600e-03 : f32
    %201 = vector.broadcast %cst_152 : f32 to vector<4x1024xf32>
    %202 = arith.addf %200, %201 : vector<4x1024xf32>
    %203 = arith.mulf %202, %186 : vector<4x1024xf32>
    %cst_153 = arith.constant -0.0160960332 : f32
    %204 = vector.broadcast %cst_153 : f32 to vector<4x1024xf32>
    %205 = arith.addf %203, %204 : vector<4x1024xf32>
    %cst_154 = arith.constant -1.45660715E-5 : f32
    %206 = vector.broadcast %cst_154 : f32 to vector<4x1024xf32>
    %207 = arith.mulf %206, %186 : vector<4x1024xf32>
    %cst_155 = arith.constant -2.13374049E-4 : f32
    %208 = vector.broadcast %cst_155 : f32 to vector<4x1024xf32>
    %209 = arith.addf %207, %208 : vector<4x1024xf32>
    %210 = arith.mulf %209, %186 : vector<4x1024xf32>
    %cst_156 = arith.constant -0.00168282702 : f32
    %211 = vector.broadcast %cst_156 : f32 to vector<4x1024xf32>
    %212 = arith.addf %210, %211 : vector<4x1024xf32>
    %213 = arith.mulf %212, %186 : vector<4x1024xf32>
    %cst_157 = arith.constant -0.00737332925 : f32
    %214 = vector.broadcast %cst_157 : f32 to vector<4x1024xf32>
    %215 = arith.addf %213, %214 : vector<4x1024xf32>
    %216 = arith.mulf %215, %186 : vector<4x1024xf32>
    %cst_158 = arith.constant -0.0142647391 : f32
    %217 = vector.broadcast %cst_158 : f32 to vector<4x1024xf32>
    %218 = arith.addf %216, %217 : vector<4x1024xf32>
    %219 = arith.mulf %185, %205 : vector<4x1024xf32>
    %220 = tpu.reciprocal %218 {approx = true} : vector<4x1024xf32> -> vector<4x1024xf32>
    %221 = arith.mulf %219, %220 : vector<4x1024xf32>
    %cst_159 = arith.constant 1.000000e+00 : f32
    %222 = vector.broadcast %cst_159 : f32 to vector<4x1024xf32>
    %223 = arith.addf %222, %221 : vector<4x1024xf32>
    %224 = arith.mulf %179, %223 : vector<4x1024xf32>
    %c0_160 = arith.constant 0 : index
    %c0_161 = arith.constant 0 : index
    %c0_162 = arith.constant 0 : index
    %225 = vector.load %arg8[%c0_160, %c0_161, %c0_162] : memref<1x4x1024xf32, #tpu.memory_space<vmem>>, vector<1x4x1024xf32>
    %226 = vector.shape_cast %225 : vector<1x4x1024xf32> to vector<4x1024xf32>
    %227 = vector.shape_cast %224 : vector<4x1024xf32> to vector<1x4x1024xf32>
    tpu.vector_store %arg8[%c0_160, %c0_161, %c0_162], %227 {strides = array<i32>} : memref<1x4x1024xf32, #tpu.memory_space<vmem>>, vector<1x4x1024xf32>,
    return
  }
  func.func @transform_0(%arg0: i32) -> (i32, i32, i32) {
    %c0_i32 = arith.constant 0 : i32
    %c0_i32_0 = arith.constant 0 : i32
    %c0_i32_1 = arith.constant 0 : i32
    return %arg0, %c0_i32, %c0_i32_0 : i32, i32, i32
  }
  func.func @transform_1(%arg0: i32) -> (i32, i32, i32) {
    %c0_i32 = arith.constant 0 : i32
    %c0_i32_0 = arith.constant 0 : i32
    %c0_i32_1 = arith.constant 0 : i32
    return %arg0, %c0_i32, %c0_i32_0 : i32, i32, i32
  }
  func.func @transform_2(%arg0: i32) -> (i32, i32) {
    %c0_i32 = arith.constant 0 : i32
    %c0_i32_0 = arith.constant 0 : i32
    %c0_i32_1 = arith.constant 0 : i32
    return %c0_i32, %c0_i32_0 : i32, i32
  }
  func.func @transform_3(%arg0: i32) -> (i32, i32, i32) {
    %c0_i32 = arith.constant 0 : i32
    %c0_i32_0 = arith.constant 0 : i32
    %c0_i32_1 = arith.constant 0 : i32
    %c0_i32_2 = arith.constant 0 : i32
    return %c0_i32, %c0_i32_0, %c0_i32_1 : i32, i32, i32
  }
  func.func @transform_4(%arg0: i32) -> (i32, i32, i32) {
    %c0_i32 = arith.constant 0 : i32
    %c0_i32_0 = arith.constant 0 : i32
    %c0_i32_1 = arith.constant 0 : i32
    %c0_i32_2 = arith.constant 0 : i32
    return %c0_i32, %c0_i32_0, %c0_i32_1 : i32, i32, i32
  }
  func.func @transform_5(%arg0: i32) -> (i32, i32) {
    %c0_i32 = arith.constant 0 : i32
    %c0_i32_0 = arith.constant 0 : i32
    %c0_i32_1 = arith.constant 0 : i32
    return %c0_i32, %c0_i32_0 : i32, i32
  }
  func.func @transform_6(%arg0: i32) -> (i32, i32) {
    %c0_i32 = arith.constant 0 : i32
    %c0_i32_0 = arith.constant 0 : i32
    %c0_i32_1 = arith.constant 0 : i32
    return %c0_i32, %c0_i32_0 : i32, i32
  }
  func.func @transform_7(%arg0: i32) -> (i32, i32, i32) {
    %c0_i32 = arith.constant 0 : i32
    %c0_i32_0 = arith.constant 0 : i32
    %c0_i32_1 = arith.constant 0 : i32
    return %arg0, %c0_i32, %c0_i32_0 : i32, i32, i32
  }
}

</mosaic_0001>

<llo_original>
// kernel: tile.8
$region0: #{tile.8}
  #allocation0 [shape = 's32[1]{0}', space=sflag, size = 0x4, scoped, tag = 'scoped memory for tile.8']
  %s0 = inlined_call_operand.vmem [shape: f32[4], index: 0, kind: input, shape index: {}]
  %s1 = inlined_call_operand.vmem [shape: f32[4,4], index: 1, kind: output, shape index: {}]
  // Predicated region
  $region2: #{tile.8} parent=0 // pred_check
    _
  $region3: #{tile.8} parent=0 // pred_check_branch
    %3 = sbr.rel (0) target = $region5
  $region4: #{tile.8} parent=0 // pred_region
    _
  $region5: #{tile.8} parent=0 // pred_fallthru
    _
  %v4 = vld [vmem:[%s0] ss:$0 sm:$0xff]
  %5 = vst [vmem:[%s1] sm:$0xf] %v4

// kernel: tile.0
$region0: #{tile.0}
  %s0 = inlined_call_operand.vmem [shape: f32[4,4], index: 0, kind: input, shape index: {}]
  %s1 = inlined_call_operand.vmem [shape: f32[16,1], index: 1, kind: output, shape index: {}]
  $region1: #{tile.0} parent=0
    #allocation0 [shape = 'u8[4096]{0}', space=vmem, size = 0x1000, scoped, tag = 'scoped mem for input reshape']
    %s3 = sshllo.u32 0, 4
    %v4 = vld [vmem:[%s0] sm:%s3]
    %5 = vst [vmem:[#allocation0] sm:%s3] %v4
    %v6 = vld [vmem:[#allocation0] sm:$0xf]
    %vm7 = vcmask 7168
    %8 = vst.msk [vmem:[%s1] ss:$4 sm:$0xf] %vm7, %v6
    %v9 = vld [vmem:[#allocation0] sm:$0xf]
    %10 = vrot.lane.b32.xlu0 %v9, 127
    %v11 = vpop.permute.xlu0 %10
    %vm12 = vcmask 7168
    %s13 = scalar_lea.vmem %s1, 1
    %14 = vst.msk [vmem:[%s13] ss:$4 sm:$0xf] %vm12, %v11
    %v15 = vld [vmem:[#allocation0] sm:$0xf]
    %16 = vrot.lane.b32.xlu0 %v15, 126
    %v17 = vpop.permute.xlu0 %16
    %vm18 = vcmask 7168
    %s19 = scalar_lea.vmem %s1, 2
    %20 = vst.msk [vmem:[%s19] ss:$4 sm:$0xf] %vm18, %v17
    %v21 = vld [vmem:[#allocation0] sm:$0xf]
    %22 = vrot.lane.b32.xlu0 %v21, 125
    %v23 = vpop.permute.xlu0 %22
    %vm24 = vcmask 7168
    %s25 = scalar_lea.vmem %s1, 3
    %26 = vst.msk [vmem:[%s25] ss:$4 sm:$0xf] %vm24, %v23

// kernel: upblock_forward.2
$region0: #{upblock_forward.2}
  #allocation0 [shape = 'u32[]', space=smem, size = 0x4, offset = 0x4, fixed_abs, tag = 'smem constant byte address 0x4 - core index']
  #allocation1 [shape = 'u32[144,128]{1,0:T(1,128)}', space=vmem, size = 0x12000, scoped, tag = 'internal scratch']
  %s0 = inlined_call_operand.vmem [shape: f32[2,8,256], index: 0, kind: input, shape index: {}]
  %s1 = inlined_call_operand.vmem [shape: f32[16,8], index: 1, kind: input, shape index: {}]
  %s2 = inlined_call_operand.vmem [shape: f32[16,1], index: 2, kind: input, shape index: {}]
  %s3 = inlined_call_operand.vmem [shape: f32[2,16,256], index: 3, kind: output, shape index: {}]
  %s4 = sld [smem:[#allocation0]]
  $region45: #{upblock_forward.2} parent=0
    _
  %s6 = ssub.s32 1, %s4
  %s7 = scalar_select 0, %s6, %s4
  loop: start=0, step=1, limit=4
  $region2: #{upblock_forward.2} parent=0 // loop_pre_header
    _
  $region3: #{upblock_forward.2} parent=0 // loop_header
    %s9 = sphi 0, %s13
    %p10 = scmp.ge.s32.totalorder %s9, 4
    %s19 = sphi 0, %s21
    %s22 = sphi 0, %s19
    %s23 = sphi 0, %s22
    %s39 = sphi 0, %s23
    %s43 = sphi 0, %s43
    %s45 = sphi 0, %s43
    %s46 = sphi 0, %s45
    %s60 = sphi 0, %s46
    %s64 = sphi 0, %s64
    %s66 = sphi 0, %s64
    %s67 = sphi 0, %s66
    %s81 = sphi 0, %s67
    %s87 = sphi 0, %s89
    %s90 = sphi 0, %s87
    %s91 = sphi 0, %s90
    %s107 = sphi 0, %s91
  $region4: #{upblock_forward.2} parent=0 // loop_header_branch
    %12 = sbr.rel (%p10) target = $region8
  $region5: #{upblock_forward.2} parent=0 // loop_body
    %s14 = ssub.s32 %s9, 1
    %s15 = ssub.s32 %s9, 2
    %s16 = sadd.s32 %s9, 1
    %s17 = ssub.s32 %s9, %s16
    %p18 = scmp.eq.s32.totalorder %s17, 0
    %s20 = sadd.s32 %s19, 1
    %s21 = scalar_select %p18, %s19, %s20
    %p24 = pneg %p18
    %p25 = scmp.eq.s32.totalorder %s9, 1
    %p26 = por %p24, %p25
    %p27 = scmp.ne.s32.totalorder %s19, %s22
    %p28 = scmp.eq.s32.totalorder %s9, 0
    %p29 = por %p27, %p28
    %p30 = scmp.ne.s32.totalorder %s19, %s22
    %p31 = scmp.eq.s32.totalorder %s14, 1
    %p32 = por %p30, %p31
    %p33 = scmp.ne.s32.totalorder %s22, %s23
    %p34 = scmp.eq.s32.totalorder %s14, 0
    %p35 = por %p33, %p34
    %p36 = scmp.ne.s32.totalorder %s22, %s23
    %p37 = scmp.eq.s32.totalorder %s15, 1
    %p38 = por %p36, %p37
    %p40 = scmp.ne.s32.totalorder %s23, %s39
    %p41 = scmp.eq.s32.totalorder %s15, 0
    %p42 = por %p40, %p41
    %s44 = sadd.s32 %s43, 1
    %p47 = scmp.eq.s32.totalorder %s9, 1
    %p48 = scmp.ne.s32.totalorder %s43, %s45
    %p49 = scmp.eq.s32.totalorder %s9, 0
    %p50 = por %p48, %p49
    %p51 = scmp.ne.s32.totalorder %s43, %s45
    %p52 = scmp.eq.s32.totalorder %s14, 1
    %p53 = por %p51, %p52
    %p54 = scmp.ne.s32.totalorder %s45, %s46
    %p55 = scmp.eq.s32.totalorder %s14, 0
    %p56 = por %p54, %p55
    %p57 = scmp.ne.s32.totalorder %s45, %s46
    %p58 = scmp.eq.s32.totalorder %s15, 1
    %p59 = por %p57, %p58
    %p61 = scmp.ne.s32.totalorder %s46, %s60
    %p62 = scmp.eq.s32.totalorder %s15, 0
    %p63 = por %p61, %p62
    %s65 = sadd.s32 %s64, 1
    %p68 = scmp.eq.s32.totalorder %s9, 1
    %p69 = scmp.ne.s32.totalorder %s64, %s66
    %p70 = scmp.eq.s32.totalorder %s9, 0
    %p71 = por %p69, %p70
    %p72 = scmp.ne.s32.totalorder %s64, %s66
    %p73 = scmp.eq.s32.totalorder %s14, 1
    %p74 = por %p72, %p73
    %p75 = scmp.ne.s32.totalorder %s66, %s67
    %p76 = scmp.eq.s32.totalorder %s14, 0
    %p77 = por %p75, %p76
    %p78 = scmp.ne.s32.totalorder %s66, %s67
    %p79 = scmp.eq.s32.totalorder %s15, 1
    %p80 = por %p78, %p79
    %p82 = scmp.ne.s32.totalorder %s67, %s81
    %p83 = scmp.eq.s32.totalorder %s15, 0
    %p84 = por %p82, %p83
    %s85 = ssub.s32 %s9, %s16
    %p86 = scmp.eq.s32.totalorder %s85, 0
    %s88 = sadd.s32 %s87, 1
    %s89 = scalar_select %p86, %s87, %s88
    %p92 = pneg %p86
    %p93 = scmp.eq.s32.totalorder %s9, 1
    %p94 = por %p92, %p93
    %p95 = scmp.ne.s32.totalorder %s87, %s90
    %p96 = scmp.eq.s32.totalorder %s9, 0
    %p97 = por %p95, %p96
    %p98 = scmp.ne.s32.totalorder %s87, %s90
    %p99 = scmp.eq.s32.totalorder %s14, 1
    %p100 = por %p98, %p99
    %p101 = scmp.ne.s32.totalorder %s90, %s91
    %p102 = scmp.eq.s32.totalorder %s14, 0
    %p103 = por %p101, %p102
    %p104 = scmp.ne.s32.totalorder %s90, %s91
    %p105 = scmp.eq.s32.totalorder %s15, 1
    %p106 = por %p104, %p105
    %p108 = scmp.ne.s32.totalorder %s91, %s107
    %p109 = scmp.eq.s32.totalorder %s15, 0
    %p110 = por %p108, %p109
    %p111 = scmp.le.s32.totalorder 1, %s9
    %p112 = scmp.lt.s32.totalorder %s9, 3
    %p113 = pnand %p111, %p112
    %p114 = pneg %p113
    // Predicated region
    $region9: #{upblock_forward.2} parent=5 // pred_check
      _
    $region10: #{upblock_forward.2} parent=5 // pred_check_branch
      %116 = sbr.rel (%p113) target = $region12
    $region11: #{upblock_forward.2} parent=5 // pred_region
      %s117 = ssub.s32 %s9, 1
      // Predicated region
      $region13: #{upblock_forward.2} parent=11 // pred_check
        %p118 = pneg %p56
      $region14: #{upblock_forward.2} parent=11 // pred_check_branch
        %120 = sbr.rel (%p118) target = $region16
      $region15: #{upblock_forward.2} parent=11 // pred_region
        _
      $region16: #{upblock_forward.2} parent=11 // pred_fallthru
        _
      // Predicated region
      $region17: #{upblock_forward.2} parent=11 // pred_check
        %p121 = pneg %p77
      $region18: #{upblock_forward.2} parent=11 // pred_check_branch
        %123 = sbr.rel (%p121) target = $region20
      $region19: #{upblock_forward.2} parent=11 // pred_region
        _
      $region20: #{upblock_forward.2} parent=11 // pred_fallthru
        _
    $region12: #{upblock_forward.2} parent=5 // pred_fallthru
      _
    %p124 = scmp.lt.s32.totalorder %s9, 2
    // Predicated region
    $region21: #{upblock_forward.2} parent=5 // pred_check
      %p125 = pneg %p124
    $region22: #{upblock_forward.2} parent=5 // pred_check_branch
      %127 = sbr.rel (%p125) target = $region24
    $region23: #{upblock_forward.2} parent=5 // pred_region
      // Predicated region
      $region25: #{upblock_forward.2} parent=23 // pred_check
        %p128 = pneg %p29
      $region26: #{upblock_forward.2} parent=23 // pred_check_branch
        %130 = sbr.rel (%p128) target = $region28
      $region27: #{upblock_forward.2} parent=23 // pred_region
        %p131 = scmp.lt.s32.totalorder %s9, 1
        %s132 = scalar_select %p131, %s9, 1
        %s133 = smul.addr %s132, 2
        %s134 = smul.addr %s133, 8
        %s135 = scalar_lea.vmem %s0, %s134
      $region28: #{upblock_forward.2} parent=23 // pred_fallthru
        _
    $region24: #{upblock_forward.2} parent=5 // pred_fallthru
      _
    %p136 = scmp.le.s32.totalorder 1, %s9
    %p137 = scmp.lt.s32.totalorder %s9, 3
    %p138 = pnand %p136, %p137
    %p139 = pneg %p138
    // Predicated region
    $region29: #{upblock_forward.2} parent=5 // pred_check
      _
    $region30: #{upblock_forward.2} parent=5 // pred_check_branch
      %141 = sbr.rel (%p138) target = $region32
    $region31: #{upblock_forward.2} parent=5 // pred_region
      %s142 = ssub.s32 %s9, 1
      %p143 = scmp.lt.s32.totalorder %s14, 1
      %s144 = scalar_select %p143, %s14, 1
      %s145 = smul.addr %s144, 2
      %s146 = smul.addr %s145, 8
      %s147 = scalar_lea.vmem %s0, %s146
      %p148 = pneg %p35
      %p149 = pneg %p32
      %p150 = pneg %p56
      %p151 = pneg %p53
      %p152 = pneg %p77
      %p153 = pneg %p74
      %p154 = pneg %p103
      %p155 = pneg %p100
      %p156 = scmp.lt.s32.totalorder %s14, 1
      %s157 = scalar_select %p156, %s14, 1
      %s158 = smul.addr %s157, 4
      %s159 = smul.addr %s158, 8
      %s160 = scalar_lea.vmem %s3, %s159
      %p161 = scmp.lt.s32.totalorder %s14, 1
      %s162 = scalar_select %p161, %s14, 1
      %s163 = smul.addr %s162, 2
      %s164 = smul.addr %s163, 8
      %s165 = scalar_lea.vmem %s0, %s164
      %p166 = scmp.lt.s32.totalorder %s14, 1
      %s167 = scalar_select %p166, %s14, 1
      %s168 = smul.addr %s167, 4
      %s169 = smul.addr %s168, 8
      %s170 = scalar_lea.vmem %s3, %s169
      %v171 = vld [vmem:[%s1] sm:$0xff]
      %v172 = vld [vmem:[%s1 + $0x8] sm:$0xff]
      %v173 = vld [vmem:[%s165] sm:$0xff]
      %v174 = vld [vmem:[%s165 + $0x8] sm:$0xff]
      %v175 = vld [vmem:[%s2] sm:$0xff]
      %v176 = vld [vmem:[%s2 + $0x8] sm:$0xff]
      %178 = vset.pattern.permute.xlu0 0
      %179 = vperm.xlu0 %178, %v175
      %v180 = vpop.permute.xlu0 %179
      %183 = vset.pattern.permute.xlu0 0
      %184 = vperm.xlu0 %183, %v176
      %v185 = vpop.permute.xlu0 %184
      %vm187 = vcmask 64512
      %v189 = vsel %vm187, %v171, 0
      %v192 = vsel %vm187, %v172, 0
      %194 = vmatprep.subr.mxu0 %v174
      %195 = vmatpush1.msra.mxu0 %v173
      %196 = vmatprep.subr.mxu0 0.0
      %197 = vmatpush1.msra.mxu0 0.0
      %198 = vmatprep.subr.mxu0 0.0
      %199 = vmatpush1.msra.mxu0 0.0
      %200 = vmatprep.subr.mxu0 0.0
      %201 = vmatpush1.msra.mxu0 0.0
      %202 = vmatprep.subr.mxu0 0.0
      %203 = vmatpush1.msra.mxu0 0.0
      %204 = vmatprep.subr.mxu0 0.0
      %205 = vmatpush1.msra.mxu0 0.0
      %206 = vmatprep.subr.mxu0 0.0
      %207 = vmatpush1.msra.mxu0 0.0
      %208 = vmatprep.subr.mxu0 0.0
      %209 = vmatpush1.msra.mxu0 0.0
      %210 = vmatprep.subr.mxu0 0.0
      %211 = vmatpush1.msra.mxu0 0.0
      %212 = vmatprep.subr.mxu0 0.0
      %213 = vmatpush1.msra.mxu0 0.0
      %214 = vmatprep.subr.mxu0 0.0
      %215 = vmatpush1.msra.mxu0 0.0
      %216 = vmatprep.subr.mxu0 0.0
      %217 = vmatpush1.msra.mxu0 0.0
      %218 = vmatprep.subr.mxu0 0.0
      %219 = vmatpush1.msra.mxu0 0.0
      %220 = vmatprep.subr.mxu0 0.0
      %221 = vmatpush1.msra.mxu0 0.0
      %222 = vmatprep.subr.mxu0 0.0
      %223 = vmatpush1.msra.mxu0 0.0
      %224 = vmatprep.subr.mxu0 0.0
      %225 = vmatpush1.msra.mxu0 0.0
      %226 = vmatprep.subr.mxu0 0.0
      %227 = vmatpush1.msra.mxu0 0.0
      %228 = vmatprep.subr.mxu0 0.0
      %229 = vmatpush1.msra.mxu0 0.0
      %230 = vmatprep.subr.mxu0 0.0
      %231 = vmatpush1.msra.mxu0 0.0
      %232 = vmatprep.subr.mxu0 0.0
      %233 = vmatpush1.msra.mxu0 0.0
      %234 = vmatprep.subr.mxu0 0.0
      %235 = vmatpush1.msra.mxu0 0.0
      %236 = vmatprep.subr.mxu0 0.0
      %237 = vmatpush1.msra.mxu0 0.0
      %238 = vmatprep.subr.mxu0 0.0
      %239 = vmatpush1.msra.mxu0 0.0
      %240 = vmatprep.subr.mxu0 0.0
      %241 = vmatpush1.msra.mxu0 0.0
      %242 = vmatprep.subr.mxu0 0.0
      %243 = vmatpush1.msra.mxu0 0.0
      %244 = vmatprep.subr.mxu0 0.0
      %245 = vmatpush1.msra.mxu0 0.0
      %246 = vmatprep.subr.mxu0 0.0
      %247 = vmatpush1.msra.mxu0 0.0
      %248 = vmatprep.subr.mxu0 0.0
      %249 = vmatpush1.msra.mxu0 0.0
      %250 = vmatprep.subr.mxu0 0.0
      %251 = vmatpush1.msra.mxu0 0.0
      %252 = vmatprep.subr.mxu0 0.0
      %253 = vmatpush1.msra.mxu0 0.0
      %254 = vmatprep.subr.mxu0 0.0
      %255 = vmatpush1.msra.mxu0 0.0
      %256 = vmatprep.subr.mxu0 0.0
      %257 = vmatpush1.msra.mxu0 0.0
      %258 = vmatprep.mubr.f32.mxu0 0.0
      %259 = vmatmul.mubr.f32.gmra.mrb[0].mxu0 %v189
      %v260 = vpop.f32.mrb[0].mxu0
      %v261 = vadd.f32 %v180, %v260
      %v262 = vpop.f32.mrb[0].mxu0
      %v263 = vadd.f32 %v180, %v262
      %264 = vmatprep.mubr.f32.mxu0 0.0
      %265 = vmatmul.mubr.f32.gmra.mrb[0].mxu0 %v192
      %v266 = vpop.f32.mrb[0].mxu0
      %v267 = vadd.f32 %v185, %v266
      %v268 = vpop.f32.mrb[0].mxu0
      %v269 = vadd.f32 %v185, %v268
      %270 = vdwg.mxu0
      %271 = vst [vmem:[%s170] sm:$0xff] %v261
      %272 = vst [vmem:[%s170 + $0x8] sm:$0xff] %v263
      %273 = vst [vmem:[%s170 + $0x10] sm:$0xff] %v267
      %274 = vst [vmem:[%s170 + $0x18] sm:$0xff] %v269
      %p275 = scmp.lt.s32.totalorder %s14, 1
      %s276 = scalar_select %p275, %s14, 1
      %s277 = smul.addr %s276, 4
      %s278 = smul.addr %s277, 8
      %s279 = scalar_lea.vmem %s3, %s278
      // Predicated region
      $region33: #{upblock_forward.2} parent=31 // pred_check
        %p280 = pneg %p100
      $region34: #{upblock_forward.2} parent=31 // pred_check_branch
        %282 = sbr.rel (%p280) target = $region36
      $region35: #{upblock_forward.2} parent=31 // pred_region
        _
      $region36: #{upblock_forward.2} parent=31 // pred_fallthru
        _
    $region32: #{upblock_forward.2} parent=5 // pred_fallthru
      _
    %p283 = scmp.le.s32.totalorder 2, %s9
    // Predicated region
    $region37: #{upblock_forward.2} parent=5 // pred_check
      %p284 = pneg %p283
    $region38: #{upblock_forward.2} parent=5 // pred_check_branch
      %286 = sbr.rel (%p284) target = $region40
    $region39: #{upblock_forward.2} parent=5 // pred_region
      %s287 = ssub.s32 %s9, 2
      // Predicated region
      $region41: #{upblock_forward.2} parent=39 // pred_check
        %p288 = pneg %p106
      $region42: #{upblock_forward.2} parent=39 // pred_check_branch
        %290 = sbr.rel (%p288) target = $region44
      $region43: #{upblock_forward.2} parent=39 // pred_region
        %p291 = scmp.lt.s32.totalorder %s15, 1
        %s292 = scalar_select %p291, %s15, 1
        %s293 = smul.addr %s292, 4
        %s294 = smul.addr %s293, 8
        %s295 = scalar_lea.vmem %s3, %s294
      $region44: #{upblock_forward.2} parent=39 // pred_fallthru
        _
    $region40: #{upblock_forward.2} parent=5 // pred_fallthru
      _
  $region6: #{upblock_forward.2} parent=0 // loop_footer
    %s13 = sadd.s32 1, %s9
  $region7: #{upblock_forward.2} parent=0 // loop_footer_branch
    %8 = sbr.rel target = $region3
  $region8: #{upblock_forward.2} parent=0 // loop_exit
    _

// kernel: upblock_forward.3
$region0: #{upblock_forward.3}
  #allocation0 [shape = 'u32[]', space=smem, size = 0x4, offset = 0x4, fixed_abs, tag = 'smem constant byte address 0x4 - core index']
  #allocation1 [shape = 'u32[144,128]{1,0:T(1,128)}', space=vmem, size = 0x12000, scoped, tag = 'internal scratch']
  #allocation2 [shape = 'f32[8,1152]{1,0:T(8,128)}', space=vmem, size = 0x9000, scoped, tag = 'scratch operand']
  #allocation3 [shape = 'f32[4,1152]{1,0:T(4,128)}', space=vmem, size = 0x4800, scoped, tag = 'scratch operand']
  %s0 = inlined_call_operand.vmem [shape: f32[2,4,1024], index: 0, kind: input, shape index: {}]
  %s1 = inlined_call_operand.vmem [shape: f32[2,4,1024], index: 1, kind: input, shape index: {}]
  %s2 = inlined_call_operand.vmem [shape: f32[2,1024], index: 2, kind: input, shape index: {}]
  %s3 = inlined_call_operand.vmem [shape: f32[9,4,8], index: 3, kind: input, shape index: {}]
  %s4 = inlined_call_operand.vmem [shape: f32[9,4,4], index: 4, kind: input, shape index: {}]
  %s5 = inlined_call_operand.vmem [shape: f32[4,1], index: 5, kind: input, shape index: {}]
  %s6 = inlined_call_operand.vmem [shape: f32[4,1], index: 6, kind: input, shape index: {}]
  %s7 = inlined_call_operand.vmem [shape: f32[2,4,1024], index: 7, kind: output, shape index: {}]
  %s8 = sld [smem:[#allocation0]]
  $region61: #{upblock_forward.3} parent=0
    _
  %s10 = ssub.s32 1, %s8
  %s11 = scalar_select 0, %s10, %s8
  loop: start=0, step=1, limit=4
  $region2: #{upblock_forward.3} parent=0 // loop_pre_header
    _
  $region3: #{upblock_forward.3} parent=0 // loop_header
    %s13 = sphi 0, %s17
    %p14 = scmp.ge.s32.totalorder %s13, 4
    %s23 = sphi 0, %s25
    %s26 = sphi 0, %s23
    %s27 = sphi 0, %s26
    %s43 = sphi 0, %s27
    %s49 = sphi 0, %s51
    %s52 = sphi 0, %s49
    %s53 = sphi 0, %s52
    %s69 = sphi 0, %s53
    %s73 = sphi 0, %s73
    %s75 = sphi 0, %s73
    %s76 = sphi 0, %s75
    %s90 = sphi 0, %s76
    %s94 = sphi 0, %s94
    %s96 = sphi 0, %s94
    %s97 = sphi 0, %s96
    %s111 = sphi 0, %s97
    %s115 = sphi 0, %s115
    %s117 = sphi 0, %s115
    %s118 = sphi 0, %s117
    %s132 = sphi 0, %s118
    %s136 = sphi 0, %s136
    %s138 = sphi 0, %s136
    %s139 = sphi 0, %s138
    %s153 = sphi 0, %s139
    %s157 = sphi 0, %s157
    %s159 = sphi 0, %s157
    %s160 = sphi 0, %s159
    %s174 = sphi 0, %s160
    %s180 = sphi 0, %s182
    %s183 = sphi 0, %s180
    %s184 = sphi 0, %s183
    %s200 = sphi 0, %s184
  $region4: #{upblock_forward.3} parent=0 // loop_header_branch
    %16 = sbr.rel (%p14) target = $region8
  $region5: #{upblock_forward.3} parent=0 // loop_body
    %s18 = ssub.s32 %s13, 1
    %s19 = ssub.s32 %s13, 2
    %s20 = sadd.s32 %s13, 1
    %s21 = ssub.s32 %s13, %s20
    %p22 = scmp.eq.s32.totalorder %s21, 0
    %s24 = sadd.s32 %s23, 1
    %s25 = scalar_select %p22, %s23, %s24
    %p28 = pneg %p22
    %p29 = scmp.eq.s32.totalorder %s13, 1
    %p30 = por %p28, %p29
    %p31 = scmp.ne.s32.totalorder %s23, %s26
    %p32 = scmp.eq.s32.totalorder %s13, 0
    %p33 = por %p31, %p32
    %p34 = scmp.ne.s32.totalorder %s23, %s26
    %p35 = scmp.eq.s32.totalorder %s18, 1
    %p36 = por %p34, %p35
    %p37 = scmp.ne.s32.totalorder %s26, %s27
    %p38 = scmp.eq.s32.totalorder %s18, 0
    %p39 = por %p37, %p38
    %p40 = scmp.ne.s32.totalorder %s26, %s27
    %p41 = scmp.eq.s32.totalorder %s19, 1
    %p42 = por %p40, %p41
    %p44 = scmp.ne.s32.totalorder %s27, %s43
    %p45 = scmp.eq.s32.totalorder %s19, 0
    %p46 = por %p44, %p45
    %s47 = ssub.s32 %s13, %s20
    %p48 = scmp.eq.s32.totalorder %s47, 0
    %s50 = sadd.s32 %s49, 1
    %s51 = scalar_select %p48, %s49, %s50
    %p54 = pneg %p48
    %p55 = scmp.eq.s32.totalorder %s13, 1
    %p56 = por %p54, %p55
    %p57 = scmp.ne.s32.totalorder %s49, %s52
    %p58 = scmp.eq.s32.totalorder %s13, 0
    %p59 = por %p57, %p58
    %p60 = scmp.ne.s32.totalorder %s49, %s52
    %p61 = scmp.eq.s32.totalorder %s18, 1
    %p62 = por %p60, %p61
    %p63 = scmp.ne.s32.totalorder %s52, %s53
    %p64 = scmp.eq.s32.totalorder %s18, 0
    %p65 = por %p63, %p64
    %p66 = scmp.ne.s32.totalorder %s52, %s53
    %p67 = scmp.eq.s32.totalorder %s19, 1
    %p68 = por %p66, %p67
    %p70 = scmp.ne.s32.totalorder %s53, %s69
    %p71 = scmp.eq.s32.totalorder %s19, 0
    %p72 = por %p70, %p71
    %s74 = sadd.s32 %s73, 1
    %p77 = scmp.eq.s32.totalorder %s13, 1
    %p78 = scmp.ne.s32.totalorder %s73, %s75
    %p79 = scmp.eq.s32.totalorder %s13, 0
    %p80 = por %p78, %p79
    %p81 = scmp.ne.s32.totalorder %s73, %s75
    %p82 = scmp.eq.s32.totalorder %s18, 1
    %p83 = por %p81, %p82
    %p84 = scmp.ne.s32.totalorder %s75, %s76
    %p85 = scmp.eq.s32.totalorder %s18, 0
    %p86 = por %p84, %p85
    %p87 = scmp.ne.s32.totalorder %s75, %s76
    %p88 = scmp.eq.s32.totalorder %s19, 1
    %p89 = por %p87, %p88
    %p91 = scmp.ne.s32.totalorder %s76, %s90
    %p92 = scmp.eq.s32.totalorder %s19, 0
    %p93 = por %p91, %p92
    %s95 = sadd.s32 %s94, 1
    %p98 = scmp.eq.s32.totalorder %s13, 1
    %p99 = scmp.ne.s32.totalorder %s94, %s96
    %p100 = scmp.eq.s32.totalorder %s13, 0
    %p101 = por %p99, %p100
    %p102 = scmp.ne.s32.totalorder %s94, %s96
    %p103 = scmp.eq.s32.totalorder %s18, 1
    %p104 = por %p102, %p103
    %p105 = scmp.ne.s32.totalorder %s96, %s97
    %p106 = scmp.eq.s32.totalorder %s18, 0
    %p107 = por %p105, %p106
    %p108 = scmp.ne.s32.totalorder %s96, %s97
    %p109 = scmp.eq.s32.totalorder %s19, 1
    %p110 = por %p108, %p109
    %p112 = scmp.ne.s32.totalorder %s97, %s111
    %p113 = scmp.eq.s32.totalorder %s19, 0
    %p114 = por %p112, %p113
    %s116 = sadd.s32 %s115, 1
    %p119 = scmp.eq.s32.totalorder %s13, 1
    %p120 = scmp.ne.s32.totalorder %s115, %s117
    %p121 = scmp.eq.s32.totalorder %s13, 0
    %p122 = por %p120, %p121
    %p123 = scmp.ne.s32.totalorder %s115, %s117
    %p124 = scmp.eq.s32.totalorder %s18, 1
    %p125 = por %p123, %p124
    %p126 = scmp.ne.s32.totalorder %s117, %s118
    %p127 = scmp.eq.s32.totalorder %s18, 0
    %p128 = por %p126, %p127
    %p129 = scmp.ne.s32.totalorder %s117, %s118
    %p130 = scmp.eq.s32.totalorder %s19, 1
    %p131 = por %p129, %p130
    %p133 = scmp.ne.s32.totalorder %s118, %s132
    %p134 = scmp.eq.s32.totalorder %s19, 0
    %p135 = por %p133, %p134
    %s137 = sadd.s32 %s136, 1
    %p140 = scmp.eq.s32.totalorder %s13, 1
    %p141 = scmp.ne.s32.totalorder %s136, %s138
    %p142 = scmp.eq.s32.totalorder %s13, 0
    %p143 = por %p141, %p142
    %p144 = scmp.ne.s32.totalorder %s136, %s138
    %p145 = scmp.eq.s32.totalorder %s18, 1
    %p146 = por %p144, %p145
    %p147 = scmp.ne.s32.totalorder %s138, %s139
    %p148 = scmp.eq.s32.totalorder %s18, 0
    %p149 = por %p147, %p148
    %p150 = scmp.ne.s32.totalorder %s138, %s139
    %p151 = scmp.eq.s32.totalorder %s19, 1
    %p152 = por %p150, %p151
    %p154 = scmp.ne.s32.totalorder %s139, %s153
    %p155 = scmp.eq.s32.totalorder %s19, 0
    %p156 = por %p154, %p155
    %s158 = sadd.s32 %s157, 1
    %p161 = scmp.eq.s32.totalorder %s13, 1
    %p162 = scmp.ne.s32.totalorder %s157, %s159
    %p163 = scmp.eq.s32.totalorder %s13, 0
    %p164 = por %p162, %p163
    %p165 = scmp.ne.s32.totalorder %s157, %s159
    %p166 = scmp.eq.s32.totalorder %s18, 1
    %p167 = por %p165, %p166
    %p168 = scmp.ne.s32.totalorder %s159, %s160
    %p169 = scmp.eq.s32.totalorder %s18, 0
    %p170 = por %p168, %p169
    %p171 = scmp.ne.s32.totalorder %s159, %s160
    %p172 = scmp.eq.s32.totalorder %s19, 1
    %p173 = por %p171, %p172
    %p175 = scmp.ne.s32.totalorder %s160, %s174
    %p176 = scmp.eq.s32.totalorder %s19, 0
    %p177 = por %p175, %p176
    %s178 = ssub.s32 %s13, %s20
    %p179 = scmp.eq.s32.totalorder %s178, 0
    %s181 = sadd.s32 %s180, 1
    %s182 = scalar_select %p179, %s180, %s181
    %p185 = pneg %p179
    %p186 = scmp.eq.s32.totalorder %s13, 1
    %p187 = por %p185, %p186
    %p188 = scmp.ne.s32.totalorder %s180, %s183
    %p189 = scmp.eq.s32.totalorder %s13, 0
    %p190 = por %p188, %p189
    %p191 = scmp.ne.s32.totalorder %s180, %s183
    %p192 = scmp.eq.s32.totalorder %s18, 1
    %p193 = por %p191, %p192
    %p194 = scmp.ne.s32.totalorder %s183, %s184
    %p195 = scmp.eq.s32.totalorder %s18, 0
    %p196 = por %p194, %p195
    %p197 = scmp.ne.s32.totalorder %s183, %s184
    %p198 = scmp.eq.s32.totalorder %s19, 1
    %p199 = por %p197, %p198
    %p201 = scmp.ne.s32.totalorder %s184, %s200
    %p202 = scmp.eq.s32.totalorder %s19, 0
    %p203 = por %p201, %p202
    %p204 = scmp.le.s32.totalorder 1, %s13
    %p205 = scmp.lt.s32.totalorder %s13, 3
    %p206 = pnand %p204, %p205
    %p207 = pneg %p206
    // Predicated region
    $region9: #{upblock_forward.3} parent=5 // pred_check
      _
    $region10: #{upblock_forward.3} parent=5 // pred_check_branch
      %209 = sbr.rel (%p206) target = $region12
    $region11: #{upblock_forward.3} parent=5 // pred_region
      %s210 = ssub.s32 %s13, 1
      // Predicated region
      $region13: #{upblock_forward.3} parent=11 // pred_check
        %p211 = pneg %p86
      $region14: #{upblock_forward.3} parent=11 // pred_check_branch
        %213 = sbr.rel (%p211) target = $region16
      $region15: #{upblock_forward.3} parent=11 // pred_region
        _
      $region16: #{upblock_forward.3} parent=11 // pred_fallthru
        _
      // Predicated region
      $region17: #{upblock_forward.3} parent=11 // pred_check
        %p214 = pneg %p107
      $region18: #{upblock_forward.3} parent=11 // pred_check_branch
        %216 = sbr.rel (%p214) target = $region20
      $region19: #{upblock_forward.3} parent=11 // pred_region
        _
      $region20: #{upblock_forward.3} parent=11 // pred_fallthru
        _
      // Predicated region
      $region21: #{upblock_forward.3} parent=11 // pred_check
        %p217 = pneg %p128
      $region22: #{upblock_forward.3} parent=11 // pred_check_branch
        %219 = sbr.rel (%p217) target = $region24
      $region23: #{upblock_forward.3} parent=11 // pred_region
        _
      $region24: #{upblock_forward.3} parent=11 // pred_fallthru
        _
      // Predicated region
      $region25: #{upblock_forward.3} parent=11 // pred_check
        %p220 = pneg %p149
      $region26: #{upblock_forward.3} parent=11 // pred_check_branch
        %222 = sbr.rel (%p220) target = $region28
      $region27: #{upblock_forward.3} parent=11 // pred_region
        _
      $region28: #{upblock_forward.3} parent=11 // pred_fallthru
        _
      // Predicated region
      $region29: #{upblock_forward.3} parent=11 // pred_check
        %p223 = pneg %p170
      $region30: #{upblock_forward.3} parent=11 // pred_check_branch
        %225 = sbr.rel (%p223) target = $region32
      $region31: #{upblock_forward.3} parent=11 // pred_region
        _
      $region32: #{upblock_forward.3} parent=11 // pred_fallthru
        _
    $region12: #{upblock_forward.3} parent=5 // pred_fallthru
      _
    %p226 = scmp.lt.s32.totalorder %s13, 2
    // Predicated region
    $region33: #{upblock_forward.3} parent=5 // pred_check
      %p227 = pneg %p226
    $region34: #{upblock_forward.3} parent=5 // pred_check_branch
      %229 = sbr.rel (%p227) target = $region36
    $region35: #{upblock_forward.3} parent=5 // pred_region
      // Predicated region
      $region37: #{upblock_forward.3} parent=35 // pred_check
        %p230 = pneg %p33
      $region38: #{upblock_forward.3} parent=35 // pred_check_branch
        %232 = sbr.rel (%p230) target = $region40
      $region39: #{upblock_forward.3} parent=35 // pred_region
        %p233 = scmp.lt.s32.totalorder %s13, 1
        %s234 = scalar_select %p233, %s13, 1
        %s235 = smul.addr %s234, 8
        %s236 = smul.addr %s235, 4
        %s237 = scalar_lea.vmem %s0, %s236
      $region40: #{upblock_forward.3} parent=35 // pred_fallthru
        _
      // Predicated region
      $region41: #{upblock_forward.3} parent=35 // pred_check
        %p238 = pneg %p59
      $region42: #{upblock_forward.3} parent=35 // pred_check_branch
        %240 = sbr.rel (%p238) target = $region44
      $region43: #{upblock_forward.3} parent=35 // pred_region
        %p241 = scmp.lt.s32.totalorder %s13, 1
        %s242 = scalar_select %p241, %s13, 1
        %s243 = smul.addr %s242, 8
        %s244 = smul.addr %s243, 4
        %s245 = scalar_lea.vmem %s1, %s244
      $region44: #{upblock_forward.3} parent=35 // pred_fallthru
        _
    $region36: #{upblock_forward.3} parent=5 // pred_fallthru
      _
    %p246 = scmp.le.s32.totalorder 1, %s13
    %p247 = scmp.lt.s32.totalorder %s13, 3
    %p248 = pnand %p246, %p247
    %p249 = pneg %p248
    // Predicated region
    $region45: #{upblock_forward.3} parent=5 // pred_check
      _
    $region46: #{upblock_forward.3} parent=5 // pred_check_branch
      %251 = sbr.rel (%p248) target = $region48
    $region47: #{upblock_forward.3} parent=5 // pred_region
      %s252 = ssub.s32 %s13, 1
      %p253 = scmp.lt.s32.totalorder %s18, 1
      %s254 = scalar_select %p253, %s18, 1
      %s255 = smul.addr %s254, 8
      %s256 = smul.addr %s255, 4
      %s257 = scalar_lea.vmem %s0, %s256
      %p258 = pneg %p39
      %p259 = pneg %p36
      %p260 = scmp.lt.s32.totalorder %s18, 1
      %s261 = scalar_select %p260, %s18, 1
      %s262 = smul.addr %s261, 8
      %s263 = smul.addr %s262, 4
      %s264 = scalar_lea.vmem %s1, %s263
      %p265 = pneg %p65
      %p266 = pneg %p62
      %p267 = pneg %p86
      %p268 = pneg %p83
      %p269 = pneg %p107
      %p270 = pneg %p104
      %p271 = pneg %p128
      %p272 = pneg %p125
      %p273 = pneg %p149
      %p274 = pneg %p146
      %p275 = pneg %p170
      %p276 = pneg %p167
      %p277 = pneg %p196
      %p278 = pneg %p193
      %p279 = scmp.lt.s32.totalorder %s18, 1
      %s280 = scalar_select %p279, %s18, 1
      %s281 = smul.addr %s280, 8
      %s282 = smul.addr %s281, 4
      %s283 = scalar_lea.vmem %s7, %s282
      %p284 = scmp.lt.s32.totalorder %s18, 1
      %s285 = scalar_select %p284, %s18, 1
      %s286 = smul.addr %s285, 8
      %s287 = smul.addr %s286, 4
      %s288 = scalar_lea.vmem %s0, %s287
      %p289 = scmp.lt.s32.totalorder %s18, 1
      %s290 = scalar_select %p289, %s18, 1
      %s291 = smul.addr %s290, 8
      %s292 = smul.addr %s291, 4
      %s293 = scalar_lea.vmem %s1, %s292
      %p294 = scmp.lt.s32.totalorder %s18, 1
      %s295 = scalar_select %p294, %s18, 1
      %s296 = smul.addr %s295, 8
      %s297 = smul.addr %s296, 4
      %s298 = scalar_lea.vmem %s7, %s297
      %v299 = vld [vmem:[%s2] ss:$2 sm:$0xff]
      %s300 = scalar_lea.vmem %s2, 1
      %v301 = vld [vmem:[%s300] ss:$2 sm:$0xff]
      %vm302 = vcmask 523264
      %303 = vst.msk [vmem:[#allocation2] sm:$0xff] %vm302, 0.0
      %vm304 = vcmask 1048064
      %305 = vst.msk [vmem:[#allocation2 + $0x40] sm:$0xff] %vm304, 0.0
      %v306 = vld [vmem:[%s288] sm:$0xff]
      %v307 = vld [vmem:[%s288 + $0x8] sm:$0xff]
      %v308 = vld [vmem:[%s288 + $0x10] sm:$0xff]
      %v309 = vld [vmem:[%s288 + $0x18] sm:$0xff]
      %v314 = vcombine.high %v306, %v306
      %v315 = vcombine.high %v307, %v307
      %v316 = vcombine.high %v308, %v308
      %v317 = vcombine.high %v309, %v309
      %318 = vrot.lane.b32.xlu0 %v306, 64
      %v319 = vpop.permute.xlu0 %318
      %320 = vrot.lane.b32.xlu0 %v314, 64
      %v321 = vpop.permute.xlu0 %320
      %322 = vrot.lane.b32.xlu0 %v307, 64
      %v323 = vpop.permute.xlu0 %322
      %324 = vrot.lane.b32.xlu0 %v315, 64
      %v325 = vpop.permute.xlu0 %324
      %326 = vrot.lane.b32.xlu0 %v308, 64
      %v327 = vpop.permute.xlu0 %326
      %328 = vrot.lane.b32.xlu0 %v316, 64
      %v329 = vpop.permute.xlu0 %328
      %330 = vrot.lane.b32.xlu0 %v309, 64
      %v331 = vpop.permute.xlu0 %330
      %332 = vrot.lane.b32.xlu0 %v317, 64
      %v333 = vpop.permute.xlu0 %332
      %v334 = vsel %vm302, %v319, %v321
      %v335 = vsel %vm302, %v321, %v323
      %v336 = vsel %vm302, %v323, %v325
      %v337 = vsel %vm302, %v325, %v327
      %v338 = vsel %vm302, %v327, %v329
      %v339 = vsel %vm302, %v329, %v331
      %v340 = vsel %vm302, %v331, %v333
      %vm350 = vcmask 1043968
      %351 = vst.msk [vmem:[#allocation2] sm:$0xf] %vm350, %v319
      %352 = vst [vmem:[#allocation2 + $0x8] sm:$0xf] %v334
      %353 = vst [vmem:[#allocation2 + $0x10] sm:$0xf] %v335
      %354 = vst [vmem:[#allocation2 + $0x18] sm:$0xf] %v336
      %355 = vst [vmem:[#allocation2 + $0x20] sm:$0xf] %v337
      %356 = vst [vmem:[#allocation2 + $0x28] sm:$0xf] %v338
      %357 = vst [vmem:[#allocation2 + $0x30] sm:$0xf] %v339
      %358 = vst [vmem:[#allocation2 + $0x38] sm:$0xf] %v340
      %vm359 = vcmask 519168
      %360 = vst.msk [vmem:[#allocation2 + $0x40] sm:$0xf] %vm359, %v333
      %v361 = vld [vmem:[%s293] sm:$0xff]
      %v362 = vld [vmem:[%s293 + $0x8] sm:$0xff]
      %v363 = vld [vmem:[%s293 + $0x10] sm:$0xff]
      %v364 = vld [vmem:[%s293 + $0x18] sm:$0xff]
      %v369 = vcombine.low %v361, %v361
      %v370 = vcombine.low %v362, %v362
      %v371 = vcombine.low %v363, %v363
      %v372 = vcombine.low %v364, %v364
      %373 = vrot.lane.b32.xlu0 %v369, 64
      %v374 = vpop.permute.xlu0 %373
      %375 = vrot.lane.b32.xlu0 %v361, 64
      %v376 = vpop.permute.xlu0 %375
      %377 = vrot.lane.b32.xlu0 %v370, 64
      %v378 = vpop.permute.xlu0 %377
      %379 = vrot.lane.b32.xlu0 %v362, 64
      %v380 = vpop.permute.xlu0 %379
      %381 = vrot.lane.b32.xlu0 %v371, 64
      %v382 = vpop.permute.xlu0 %381
      %383 = vrot.lane.b32.xlu0 %v363, 64
      %v384 = vpop.permute.xlu0 %383
      %385 = vrot.lane.b32.xlu0 %v372, 64
      %v386 = vpop.permute.xlu0 %385
      %387 = vrot.lane.b32.xlu0 %v364, 64
      %v388 = vpop.permute.xlu0 %387
      %v389 = vsel %vm302, %v374, %v376
      %v390 = vsel %vm302, %v376, %v378
      %v391 = vsel %vm302, %v378, %v380
      %v392 = vsel %vm302, %v380, %v382
      %v393 = vsel %vm302, %v382, %v384
      %v394 = vsel %vm302, %v384, %v386
      %v395 = vsel %vm302, %v386, %v388
      %vm405 = vcmask 1048068
      %406 = vst.msk [vmem:[#allocation2] sm:$0xf0] %vm405, %v374
      %407 = vst [vmem:[#allocation2 + $0x8] sm:$0xf0] %v389
      %408 = vst [vmem:[#allocation2 + $0x10] sm:$0xf0] %v390
      %409 = vst [vmem:[#allocation2 + $0x18] sm:$0xf0] %v391
      %410 = vst [vmem:[#allocation2 + $0x20] sm:$0xf0] %v392
      %411 = vst [vmem:[#allocation2 + $0x28] sm:$0xf0] %v393
      %412 = vst [vmem:[#allocation2 + $0x30] sm:$0xf0] %v394
      %413 = vst [vmem:[#allocation2 + $0x38] sm:$0xf0] %v395
      %vm414 = vcmask 523268
      %415 = vst.msk [vmem:[#allocation2 + $0x40] sm:$0xf0] %vm414, %v388
      %v416 = vld [vmem:[%s3] sm:$0xf]
      %v417 = vld [vmem:[#allocation2] sm:$0xff]
      %v418 = vld [vmem:[#allocation2 + $0x8] sm:$0xff]
      %v419 = vld [vmem:[#allocation2 + $0x10] sm:$0xff]
      %v420 = vld [vmem:[#allocation2 + $0x18] sm:$0xff]
      %v421 = vld [vmem:[#allocation2 + $0x20] sm:$0xff]
      %v422 = vld [vmem:[#allocation2 + $0x28] sm:$0xff]
      %v423 = vld [vmem:[#allocation2 + $0x30] sm:$0xff]
      %v424 = vld [vmem:[#allocation2 + $0x38] sm:$0xff]
      %v425 = vld [vmem:[#allocation2 + $0x40] sm:$0xff]
      %s426 = scalar_lea.vmem %s3, 12
      %v427 = vld [vmem:[%s426] sm:$0xf]
      %437 = vrot.lane.b32.xlu0 %v417, 65
      %v438 = vpop.permute.xlu0 %437
      %439 = vrot.lane.b32.xlu0 %v418, 65
      %v440 = vpop.permute.xlu0 %439
      %441 = vrot.lane.b32.xlu0 %v419, 65
      %v442 = vpop.permute.xlu0 %441
      %443 = vrot.lane.b32.xlu0 %v420, 65
      %v444 = vpop.permute.xlu0 %443
      %445 = vrot.lane.b32.xlu0 %v421, 65
      %v446 = vpop.permute.xlu0 %445
      %447 = vrot.lane.b32.xlu0 %v422, 65
      %v448 = vpop.permute.xlu0 %447
      %449 = vrot.lane.b32.xlu0 %v423, 65
      %v450 = vpop.permute.xlu0 %449
      %451 = vrot.lane.b32.xlu0 %v424, 65
      %v452 = vpop.permute.xlu0 %451
      %453 = vrot.lane.b32.xlu0 %v425, 65
      %v454 = vpop.permute.xlu0 %453
      %vm455 = vcmask 531456
      %v456 = vsel %vm455, %v438, %v440
      %v457 = vsel %vm455, %v440, %v442
      %v458 = vsel %vm455, %v442, %v444
      %v459 = vsel %vm455, %v444, %v446
      %v460 = vsel %vm455, %v446, %v448
      %v461 = vsel %vm455, %v448, %v450
      %v462 = vsel %vm455, %v450, %v452
      %v463 = vsel %vm455, %v452, %v454
      %vm472 = vcmask 64512
      %v474 = vsel %vm472, %v427, 0
      %476 = vmatprep.subr.mxu0 %v457
      %477 = vmatpush1.msra.mxu0 %v456
      %478 = vmatprep.subr.mxu0 0.0
      %479 = vmatpush1.msra.mxu0 0.0
      %480 = vmatprep.subr.mxu0 0.0
      %481 = vmatpush1.msra.mxu0 0.0
      %482 = vmatprep.subr.mxu0 0.0
      %483 = vmatpush1.msra.mxu0 0.0
      %484 = vmatprep.subr.mxu0 0.0
      %485 = vmatpush1.msra.mxu0 0.0
      %486 = vmatprep.subr.mxu0 0.0
      %487 = vmatpush1.msra.mxu0 0.0
      %488 = vmatprep.subr.mxu0 0.0
      %489 = vmatpush1.msra.mxu0 0.0
      %490 = vmatprep.subr.mxu0 0.0
      %491 = vmatpush1.msra.mxu0 0.0
      %492 = vmatprep.subr.mxu0 0.0
      %493 = vmatpush1.msra.mxu0 0.0
      %494 = vmatprep.subr.mxu0 0.0
      %495 = vmatpush1.msra.mxu0 0.0
      %496 = vmatprep.subr.mxu0 0.0
      %497 = vmatpush1.msra.mxu0 0.0
      %498 = vmatprep.subr.mxu0 0.0
      %499 = vmatpush1.msra.mxu0 0.0
      %500 = vmatprep.subr.mxu0 0.0
      %501 = vmatpush1.msra.mxu0 0.0
      %502 = vmatprep.subr.mxu0 0.0
      %503 = vmatpush1.msra.mxu0 0.0
      %504 = vmatprep.subr.mxu0 0.0
      %505 = vmatpush1.msra.mxu0 0.0
      %506 = vmatprep.subr.mxu0 0.0
      %507 = vmatpush1.msra.mxu0 0.0
      %508 = vmatprep.subr.mxu0 0.0
      %509 = vmatpush1.msra.mxu0 0.0
      %510 = vmatprep.subr.mxu0 0.0
      %511 = vmatpush1.msra.mxu0 0.0
      %512 = vmatprep.subr.mxu0 0.0
      %513 = vmatpush1.msra.mxu0 0.0
      %514 = vmatprep.subr.mxu0 0.0
      %515 = vmatpush1.msra.mxu0 0.0
      %516 = vmatprep.subr.mxu0 0.0
      %517 = vmatpush1.msra.mxu0 0.0
      %518 = vmatprep.subr.mxu0 0.0
      %519 = vmatpush1.msra.mxu0 0.0
      %520 = vmatprep.subr.mxu0 0.0
      %521 = vmatpush1.msra.mxu0 0.0
      %522 = vmatprep.subr.mxu0 0.0
      %523 = vmatpush1.msra.mxu0 0.0
      %524 = vmatprep.subr.mxu0 0.0
      %525 = vmatpush1.msra.mxu0 0.0
      %526 = vmatprep.subr.mxu0 0.0
      %527 = vmatpush1.msra.mxu0 0.0
      %528 = vmatprep.subr.mxu0 0.0
      %529 = vmatpush1.msra.mxu0 0.0
      %530 = vmatprep.subr.mxu0 0.0
      %531 = vmatpush1.msra.mxu0 0.0
      %532 = vmatprep.subr.mxu0 0.0
      %533 = vmatpush1.msra.mxu0 0.0
      %534 = vmatprep.subr.mxu0 0.0
      %535 = vmatpush1.msra.mxu0 0.0
      %536 = vmatprep.subr.mxu0 0.0
      %537 = vmatpush1.msra.mxu0 0.0
      %538 = vmatprep.subr.mxu0 0.0
      %539 = vmatpush1.msra.mxu0 0.0
      %540 = vmatprep.mubr.f32.mxu0 0.0
      %541 = vmatmul.mubr.f32.gmra.mrb[0].mxu0 %v474
      %v542 = vpop.f32.mrb[0].mxu0
      %v543 = vadd.f32 0.0, %v542
      %v544 = vpop.f32.mrb[0].mxu0
      %v545 = vadd.f32 0.0, %v544
      %546 = vdwg.mxu0
      %547 = vmatprep.subr.mxu0 %v459
      %548 = vmatpush1.msra.mxu0 %v458
      %549 = vmatprep.subr.mxu0 0.0
      %550 = vmatpush1.msra.mxu0 0.0
      %551 = vmatprep.subr.mxu0 0.0
      %552 = vmatpush1.msra.mxu0 0.0
      %553 = vmatprep.subr.mxu0 0.0
      %554 = vmatpush1.msra.mxu0 0.0
      %555 = vmatprep.subr.mxu0 0.0
      %556 = vmatpush1.msra.mxu0 0.0
      %557 = vmatprep.subr.mxu0 0.0
      %558 = vmatpush1.msra.mxu0 0.0
      %559 = vmatprep.subr.mxu0 0.0
      %560 = vmatpush1.msra.mxu0 0.0
      %561 = vmatprep.subr.mxu0 0.0
      %562 = vmatpush1.msra.mxu0 0.0
      %563 = vmatprep.subr.mxu0 0.0
      %564 = vmatpush1.msra.mxu0 0.0
      %565 = vmatprep.subr.mxu0 0.0
      %566 = vmatpush1.msra.mxu0 0.0
      %567 = vmatprep.subr.mxu0 0.0
      %568 = vmatpush1.msra.mxu0 0.0
      %569 = vmatprep.subr.mxu0 0.0
      %570 = vmatpush1.msra.mxu0 0.0
      %571 = vmatprep.subr.mxu0 0.0
      %572 = vmatpush1.msra.mxu0 0.0
      %573 = vmatprep.subr.mxu0 0.0
      %574 = vmatpush1.msra.mxu0 0.0
      %575 = vmatprep.subr.mxu0 0.0
      %576 = vmatpush1.msra.mxu0 0.0
      %577 = vmatprep.subr.mxu0 0.0
      %578 = vmatpush1.msra.mxu0 0.0
      %579 = vmatprep.subr.mxu0 0.0
      %580 = vmatpush1.msra.mxu0 0.0
      %581 = vmatprep.subr.mxu0 0.0
      %582 = vmatpush1.msra.mxu0 0.0
      %583 = vmatprep.subr.mxu0 0.0
      %584 = vmatpush1.msra.mxu0 0.0
      %585 = vmatprep.subr.mxu0 0.0
      %586 = vmatpush1.msra.mxu0 0.0
      %587 = vmatprep.subr.mxu0 0.0
      %588 = vmatpush1.msra.mxu0 0.0
      %589 = vmatprep.subr.mxu0 0.0
      %590 = vmatpush1.msra.mxu0 0.0
      %591 = vmatprep.subr.mxu0 0.0
      %592 = vmatpush1.msra.mxu0 0.0
      %593 = vmatprep.subr.mxu0 0.0
      %594 = vmatpush1.msra.mxu0 0.0
      %595 = vmatprep.subr.mxu0 0.0
      %596 = vmatpush1.msra.mxu0 0.0
      %597 = vmatprep.subr.mxu0 0.0
      %598 = vmatpush1.msra.mxu0 0.0
      %599 = vmatprep.subr.mxu0 0.0
      %600 = vmatpush1.msra.mxu0 0.0
      %601 = vmatprep.subr.mxu0 0.0
      %602 = vmatpush1.msra.mxu0 0.0
      %603 = vmatprep.subr.mxu0 0.0
      %604 = vmatpush1.msra.mxu0 0.0
      %605 = vmatprep.subr.mxu0 0.0
      %606 = vmatpush1.msra.mxu0 0.0
      %607 = vmatprep.subr.mxu0 0.0
      %608 = vmatpush1.msra.mxu0 0.0
      %609 = vmatprep.subr.mxu0 0.0
      %610 = vmatpush1.msra.mxu0 0.0
      %611 = vmatprep.mubr.f32.mxu0 0.0
      %612 = vmatmul.mubr.f32.gmra.mrb[0].mxu0 %v474
      %v613 = vpop.f32.mrb[0].mxu0
      %v614 = vadd.f32 0.0, %v613
      %v615 = vpop.f32.mrb[0].mxu0
      %v616 = vadd.f32 0.0, %v615
      %617 = vdwg.mxu0
      %618 = vmatprep.subr.mxu0 %v461
      %619 = vmatpush1.msra.mxu0 %v460
      %620 = vmatprep.subr.mxu0 0.0
      %621 = vmatpush1.msra.mxu0 0.0
      %622 = vmatprep.subr.mxu0 0.0
      %623 = vmatpush1.msra.mxu0 0.0
      %624 = vmatprep.subr.mxu0 0.0
      %625 = vmatpush1.msra.mxu0 0.0
      %626 = vmatprep.subr.mxu0 0.0
      %627 = vmatpush1.msra.mxu0 0.0
      %628 = vmatprep.subr.mxu0 0.0
      %629 = vmatpush1.msra.mxu0 0.0
      %630 = vmatprep.subr.mxu0 0.0
      %631 = vmatpush1.msra.mxu0 0.0
      %632 = vmatprep.subr.mxu0 0.0
      %633 = vmatpush1.msra.mxu0 0.0
      %634 = vmatprep.subr.mxu0 0.0
      %635 = vmatpush1.msra.mxu0 0.0
      %636 = vmatprep.subr.mxu0 0.0
      %637 = vmatpush1.msra.mxu0 0.0
      %638 = vmatprep.subr.mxu0 0.0
      %639 = vmatpush1.msra.mxu0 0.0
      %640 = vmatprep.subr.mxu0 0.0
      %641 = vmatpush1.msra.mxu0 0.0
      %642 = vmatprep.subr.mxu0 0.0
      %643 = vmatpush1.msra.mxu0 0.0
      %644 = vmatprep.subr.mxu0 0.0
      %645 = vmatpush1.msra.mxu0 0.0
      %646 = vmatprep.subr.mxu0 0.0
      %647 = vmatpush1.msra.mxu0 0.0
      %648 = vmatprep.subr.mxu0 0.0
      %649 = vmatpush1.msra.mxu0 0.0
      %650 = vmatprep.subr.mxu0 0.0
      %651 = vmatpush1.msra.mxu0 0.0
      %652 = vmatprep.subr.mxu0 0.0
      %653 = vmatpush1.msra.mxu0 0.0
      %654 = vmatprep.subr.mxu0 0.0
      %655 = vmatpush1.msra.mxu0 0.0
      %656 = vmatprep.subr.mxu0 0.0
      %657 = vmatpush1.msra.mxu0 0.0
      %658 = vmatprep.subr.mxu0 0.0
      %659 = vmatpush1.msra.mxu0 0.0
      %660 = vmatprep.subr.mxu0 0.0
      %661 = vmatpush1.msra.mxu0 0.0
      %662 = vmatprep.subr.mxu0 0.0
      %663 = vmatpush1.msra.mxu0 0.0
      %664 = vmatprep.subr.mxu0 0.0
      %665 = vmatpush1.msra.mxu0 0.0
      %666 = vmatprep.subr.mxu0 0.0
      %667 = vmatpush1.msra.mxu0 0.0
      %668 = vmatprep.subr.mxu0 0.0
      %669 = vmatpush1.msra.mxu0 0.0
      %670 = vmatprep.subr.mxu0 0.0
      %671 = vmatpush1.msra.mxu0 0.0
      %672 = vmatprep.subr.mxu0 0.0
      %673 = vmatpush1.msra.mxu0 0.0
      %674 = vmatprep.subr.mxu0 0.0
      %675 = vmatpush1.msra.mxu0 0.0
      %676 = vmatprep.subr.mxu0 0.0
      %677 = vmatpush1.msra.mxu0 0.0
      %678 = vmatprep.subr.mxu0 0.0
      %679 = vmatpush1.msra.mxu0 0.0
      %680 = vmatprep.subr.mxu0 0.0
      %681 = vmatpush1.msra.mxu0 0.0
      %682 = vmatprep.mubr.f32.mxu0 0.0
      %683 = vmatmul.mubr.f32.gmra.mrb[0].mxu0 %v474
      %v684 = vpop.f32.mrb[0].mxu0
      %v685 = vadd.f32 0.0, %v684
      %v686 = vpop.f32.mrb[0].mxu0
      %v687 = vadd.f32 0.0, %v686
      %688 = vdwg.mxu0
      %689 = vmatprep.subr.mxu0 %v463
      %690 = vmatpush1.msra.mxu0 %v462
      %691 = vmatprep.subr.mxu0 0.0
      %692 = vmatpush1.msra.mxu0 0.0
      %693 = vmatprep.subr.mxu0 0.0
      %694 = vmatpush1.msra.mxu0 0.0
      %695 = vmatprep.subr.mxu0 0.0
      %696 = vmatpush1.msra.mxu0 0.0
      %697 = vmatprep.subr.mxu0 0.0
      %698 = vmatpush1.msra.mxu0 0.0
      %699 = vmatprep.subr.mxu0 0.0
      %700 = vmatpush1.msra.mxu0 0.0
      %701 = vmatprep.subr.mxu0 0.0
      %702 = vmatpush1.msra.mxu0 0.0
      %703 = vmatprep.subr.mxu0 0.0
      %704 = vmatpush1.msra.mxu0 0.0
      %705 = vmatprep.subr.mxu0 0.0
      %706 = vmatpush1.msra.mxu0 0.0
      %707 = vmatprep.subr.mxu0 0.0
      %708 = vmatpush1.msra.mxu0 0.0
      %709 = vmatprep.subr.mxu0 0.0
      %710 = vmatpush1.msra.mxu0 0.0
      %711 = vmatprep.subr.mxu0 0.0
      %712 = vmatpush1.msra.mxu0 0.0
      %713 = vmatprep.subr.mxu0 0.0
      %714 = vmatpush1.msra.mxu0 0.0
      %715 = vmatprep.subr.mxu0 0.0
      %716 = vmatpush1.msra.mxu0 0.0
      %717 = vmatprep.subr.mxu0 0.0
      %718 = vmatpush1.msra.mxu0 0.0
      %719 = vmatprep.subr.mxu0 0.0
      %720 = vmatpush1.msra.mxu0 0.0
      %721 = vmatprep.subr.mxu0 0.0
      %722 = vmatpush1.msra.mxu0 0.0
      %723 = vmatprep.subr.mxu0 0.0
      %724 = vmatpush1.msra.mxu0 0.0
      %725 = vmatprep.subr.mxu0 0.0
      %726 = vmatpush1.msra.mxu0 0.0
      %727 = vmatprep.subr.mxu0 0.0
      %728 = vmatpush1.msra.mxu0 0.0
      %729 = vmatprep.subr.mxu0 0.0
      %730 = vmatpush1.msra.mxu0 0.0
      %731 = vmatprep.subr.mxu0 0.0
      %732 = vmatpush1.msra.mxu0 0.0
      %733 = vmatprep.subr.mxu0 0.0
      %734 = vmatpush1.msra.mxu0 0.0
      %735 = vmatprep.subr.mxu0 0.0
      %736 = vmatpush1.msra.mxu0 0.0
      %737 = vmatprep.subr.mxu0 0.0
      %738 = vmatpush1.msra.mxu0 0.0
      %739 = vmatprep.subr.mxu0 0.0
      %740 = vmatpush1.msra.mxu0 0.0
      %741 = vmatprep.subr.mxu0 0.0
      %742 = vmatpush1.msra.mxu0 0.0
      %743 = vmatprep.subr.mxu0 0.0
      %744 = vmatpush1.msra.mxu0 0.0
      %745 = vmatprep.subr.mxu0 0.0
      %746 = vmatpush1.msra.mxu0 0.0
      %747 = vmatprep.subr.mxu0 0.0
      %748 = vmatpush1.msra.mxu0 0.0
      %749 = vmatprep.subr.mxu0 0.0
      %750 = vmatpush1.msra.mxu0 0.0
      %751 = vmatprep.subr.mxu0 0.0
      %752 = vmatpush1.msra.mxu0 0.0
      %753 = vmatprep.mubr.f32.mxu0 0.0
      %754 = vmatmul.mubr.f32.gmra.mrb[0].mxu0 %v474
      %v755 = vpop.f32.mrb[0].mxu0
      %v756 = vadd.f32 0.0, %v755
      %v757 = vpop.f32.mrb[0].mxu0
      %v758 = vadd.f32 0.0, %v757
      %759 = vdwg.mxu0
      %760 = vrot.lane.b32.xlu0 %v417, 97
      %v761 = vpop.permute.xlu0 %760
      %762 = vrot.lane.b32.xlu0 %v418, 97
      %v763 = vpop.permute.xlu0 %762
      %764 = vrot.lane.b32.xlu0 %v419, 97
      %v765 = vpop.permute.xlu0 %764
      %766 = vrot.lane.b32.xlu0 %v420, 97
      %v767 = vpop.permute.xlu0 %766
      %768 = vrot.lane.b32.xlu0 %v421, 97
      %v769 = vpop.permute.xlu0 %768
      %770 = vrot.lane.b32.xlu0 %v422, 97
      %v771 = vpop.permute.xlu0 %770
      %772 = vrot.lane.b32.xlu0 %v423, 97
      %v773 = vpop.permute.xlu0 %772
      %774 = vrot.lane.b32.xlu0 %v424, 97
      %v775 = vpop.permute.xlu0 %774
      %776 = vrot.lane.b32.xlu0 %v425, 97
      %v777 = vpop.permute.xlu0 %776
      %vm778 = vcmask 793600
      %v779 = vsel %vm778, %v761, %v763
      %v780 = vsel %vm778, %v763, %v765
      %v781 = vsel %vm778, %v765, %v767
      %v782 = vsel %vm778, %v767, %v769
      %v783 = vsel %vm778, %v769, %v771
      %v784 = vsel %vm778, %v771, %v773
      %v785 = vsel %vm778, %v773, %v775
      %v786 = vsel %vm778, %v775, %v777
      %v796 = vsel %vm472, %v416, 0
      %798 = vmatprep.subr.mxu0 %v780
      %799 = vmatpush1.msra.mxu0 %v779
      %800 = vmatprep.subr.mxu0 0.0
      %801 = vmatpush1.msra.mxu0 0.0
      %802 = vmatprep.subr.mxu0 0.0
      %803 = vmatpush1.msra.mxu0 0.0
      %804 = vmatprep.subr.mxu0 0.0
      %805 = vmatpush1.msra.mxu0 0.0
      %806 = vmatprep.subr.mxu0 0.0
      %807 = vmatpush1.msra.mxu0 0.0
      %808 = vmatprep.subr.mxu0 0.0
      %809 = vmatpush1.msra.mxu0 0.0
      %810 = vmatprep.subr.mxu0 0.0
      %811 = vmatpush1.msra.mxu0 0.0
      %812 = vmatprep.subr.mxu0 0.0
      %813 = vmatpush1.msra.mxu0 0.0
      %814 = vmatprep.subr.mxu0 0.0
      %815 = vmatpush1.msra.mxu0 0.0
      %816 = vmatprep.subr.mxu0 0.0
      %817 = vmatpush1.msra.mxu0 0.0
      %818 = vmatprep.subr.mxu0 0.0
      %819 = vmatpush1.msra.mxu0 0.0
      %820 = vmatprep.subr.mxu0 0.0
      %821 = vmatpush1.msra.mxu0 0.0
      %822 = vmatprep.subr.mxu0 0.0
      %823 = vmatpush1.msra.mxu0 0.0
      %824 = vmatprep.subr.mxu0 0.0
      %825 = vmatpush1.msra.mxu0 0.0
      %826 = vmatprep.subr.mxu0 0.0
      %827 = vmatpush1.msra.mxu0 0.0
      %828 = vmatprep.subr.mxu0 0.0
      %829 = vmatpush1.msra.mxu0 0.0
      %830 = vmatprep.subr.mxu0 0.0
      %831 = vmatpush1.msra.mxu0 0.0
      %832 = vmatprep.subr.mxu0 0.0
      %833 = vmatpush1.msra.mxu0 0.0
      %834 = vmatprep.subr.mxu0 0.0
      %835 = vmatpush1.msra.mxu0 0.0
      %836 = vmatprep.subr.mxu0 0.0
      %837 = vmatpush1.msra.mxu0 0.0
      %838 = vmatprep.subr.mxu0 0.0
      %839 = vmatpush1.msra.mxu0 0.0
      %840 = vmatprep.subr.mxu0 0.0
      %841 = vmatpush1.msra.mxu0 0.0
      %842 = vmatprep.subr.mxu0 0.0
      %843 = vmatpush1.msra.mxu0 0.0
      %844 = vmatprep.subr.mxu0 0.0
      %845 = vmatpush1.msra.mxu0 0.0
      %846 = vmatprep.subr.mxu0 0.0
      %847 = vmatpush1.msra.mxu0 0.0
      %848 = vmatprep.subr.mxu0 0.0
      %849 = vmatpush1.msra.mxu0 0.0
      %850 = vmatprep.subr.mxu0 0.0
      %851 = vmatpush1.msra.mxu0 0.0
      %852 = vmatprep.subr.mxu0 0.0
      %853 = vmatpush1.msra.mxu0 0.0
      %854 = vmatprep.subr.mxu0 0.0
      %855 = vmatpush1.msra.mxu0 0.0
      %856 = vmatprep.subr.mxu0 0.0
      %857 = vmatpush1.msra.mxu0 0.0
      %858 = vmatprep.subr.mxu0 0.0
      %859 = vmatpush1.msra.mxu0 0.0
      %860 = vmatprep.subr.mxu0 0.0
      %861 = vmatpush1.msra.mxu0 0.0
      %862 = vmatprep.mubr.f32.mxu0 0.0
      %863 = vmatmul.mubr.f32.gmra.mrb[0].mxu0 %v796
      %v864 = vpop.f32.mrb[0].mxu0
      %v865 = vadd.f32 %v543, %v864
      %v866 = vpop.f32.mrb[0].mxu0
      %v867 = vadd.f32 %v545, %v866
      %868 = vdwg.mxu0
      %869 = vmatprep.subr.mxu0 %v782
      %870 = vmatpush1.msra.mxu0 %v781
      %871 = vmatprep.subr.mxu0 0.0
      %872 = vmatpush1.msra.mxu0 0.0
      %873 = vmatprep.subr.mxu0 0.0
      %874 = vmatpush1.msra.mxu0 0.0
      %875 = vmatprep.subr.mxu0 0.0
      %876 = vmatpush1.msra.mxu0 0.0
      %877 = vmatprep.subr.mxu0 0.0
      %878 = vmatpush1.msra.mxu0 0.0
      %879 = vmatprep.subr.mxu0 0.0
      %880 = vmatpush1.msra.mxu0 0.0
      %881 = vmatprep.subr.mxu0 0.0
      %882 = vmatpush1.msra.mxu0 0.0
      %883 = vmatprep.subr.mxu0 0.0
      %884 = vmatpush1.msra.mxu0 0.0
      %885 = vmatprep.subr.mxu0 0.0
      %886 = vmatpush1.msra.mxu0 0.0
      %887 = vmatprep.subr.mxu0 0.0
      %888 = vmatpush1.msra.mxu0 0.0
      %889 = vmatprep.subr.mxu0 0.0
      %890 = vmatpush1.msra.mxu0 0.0
      %891 = vmatprep.subr.mxu0 0.0
      %892 = vmatpush1.msra.mxu0 0.0
      %893 = vmatprep.subr.mxu0 0.0
      %894 = vmatpush1.msra.mxu0 0.0
      %895 = vmatprep.subr.mxu0 0.0
      %896 = vmatpush1.msra.mxu0 0.0
      %897 = vmatprep.subr.mxu0 0.0
      %898 = vmatpush1.msra.mxu0 0.0
      %899 = vmatprep.subr.mxu0 0.0
      %900 = vmatpush1.msra.mxu0 0.0
      %901 = vmatprep.subr.mxu0 0.0
      %902 = vmatpush1.msra.mxu0 0.0
      %903 = vmatprep.subr.mxu0 0.0
      %904 = vmatpush1.msra.mxu0 0.0
      %905 = vmatprep.subr.mxu0 0.0
      %906 = vmatpush1.msra.mxu0 0.0
      %907 = vmatprep.subr.mxu0 0.0
      %908 = vmatpush1.msra.mxu0 0.0
      %909 = vmatprep.subr.mxu0 0.0
      %910 = vmatpush1.msra.mxu0 0.0
      %911 = vmatprep.subr.mxu0 0.0
      %912 = vmatpush1.msra.mxu0 0.0
      %913 = vmatprep.subr.mxu0 0.0
      %914 = vmatpush1.msra.mxu0 0.0
      %915 = vmatprep.subr.mxu0 0.0
      %916 = vmatpush1.msra.mxu0 0.0
      %917 = vmatprep.subr.mxu0 0.0
      %918 = vmatpush1.msra.mxu0 0.0
      %919 = vmatprep.subr.mxu0 0.0
      %920 = vmatpush1.msra.mxu0 0.0
      %921 = vmatprep.subr.mxu0 0.0
      %922 = vmatpush1.msra.mxu0 0.0
      %923 = vmatprep.subr.mxu0 0.0
      %924 = vmatpush1.msra.mxu0 0.0
      %925 = vmatprep.subr.mxu0 0.0
      %926 = vmatpush1.msra.mxu0 0.0
      %927 = vmatprep.subr.mxu0 0.0
      %928 = vmatpush1.msra.mxu0 0.0
      %929 = vmatprep.subr.mxu0 0.0
      %930 = vmatpush1.msra.mxu0 0.0
      %931 = vmatprep.subr.mxu0 0.0
      %932 = vmatpush1.msra.mxu0 0.0
      %933 = vmatprep.mubr.f32.mxu0 0.0
      %934 = vmatmul.mubr.f32.gmra.mrb[0].mxu0 %v796
      %v935 = vpop.f32.mrb[0].mxu0
      %v936 = vadd.f32 %v614, %v935
      %v937 = vpop.f32.mrb[0].mxu0
      %v938 = vadd.f32 %v616, %v937
      %939 = vdwg.mxu0
      %940 = vmatprep.subr.mxu0 %v784
      %941 = vmatpush1.msra.mxu0 %v783
      %942 = vmatprep.subr.mxu0 0.0
      %943 = vmatpush1.msra.mxu0 0.0
      %944 = vmatprep.subr.mxu0 0.0
      %945 = vmatpush1.msra.mxu0 0.0
      %946 = vmatprep.subr.mxu0 0.0
      %947 = vmatpush1.msra.mxu0 0.0
      %948 = vmatprep.subr.mxu0 0.0
      %949 = vmatpush1.msra.mxu0 0.0
      %950 = vmatprep.subr.mxu0 0.0
      %951 = vmatpush1.msra.mxu0 0.0
      %952 = vmatprep.subr.mxu0 0.0
      %953 = vmatpush1.msra.mxu0 0.0
      %954 = vmatprep.subr.mxu0 0.0
      %955 = vmatpush1.msra.mxu0 0.0
      %956 = vmatprep.subr.mxu0 0.0
      %957 = vmatpush1.msra.mxu0 0.0
      %958 = vmatprep.subr.mxu0 0.0
      %959 = vmatpush1.msra.mxu0 0.0
      %960 = vmatprep.subr.mxu0 0.0
      %961 = vmatpush1.msra.mxu0 0.0
      %962 = vmatprep.subr.mxu0 0.0
      %963 = vmatpush1.msra.mxu0 0.0
      %964 = vmatprep.subr.mxu0 0.0
      %965 = vmatpush1.msra.mxu0 0.0
      %966 = vmatprep.subr.mxu0 0.0
      %967 = vmatpush1.msra.mxu0 0.0
      %968 = vmatprep.subr.mxu0 0.0
      %969 = vmatpush1.msra.mxu0 0.0
      %970 = vmatprep.subr.mxu0 0.0
      %971 = vmatpush1.msra.mxu0 0.0
      %972 = vmatprep.subr.mxu0 0.0
      %973 = vmatpush1.msra.mxu0 0.0
      %974 = vmatprep.subr.mxu0 0.0
      %975 = vmatpush1.msra.mxu0 0.0
      %976 = vmatprep.subr.mxu0 0.0
      %977 = vmatpush1.msra.mxu0 0.0
      %978 = vmatprep.subr.mxu0 0.0
      %979 = vmatpush1.msra.mxu0 0.0
      %980 = vmatprep.subr.mxu0 0.0
      %981 = vmatpush1.msra.mxu0 0.0
      %982 = vmatprep.subr.mxu0 0.0
      %983 = vmatpush1.msra.mxu0 0.0
      %984 = vmatprep.subr.mxu0 0.0
      %985 = vmatpush1.msra.mxu0 0.0
      %986 = vmatprep.subr.mxu0 0.0
      %987 = vmatpush1.msra.mxu0 0.0
      %988 = vmatprep.subr.mxu0 0.0
      %989 = vmatpush1.msra.mxu0 0.0
      %990 = vmatprep.subr.mxu0 0.0
      %991 = vmatpush1.msra.mxu0 0.0
      %992 = vmatprep.subr.mxu0 0.0
      %993 = vmatpush1.msra.mxu0 0.0
      %994 = vmatprep.subr.mxu0 0.0
      %995 = vmatpush1.msra.mxu0 0.0
      %996 = vmatprep.subr.mxu0 0.0
      %997 = vmatpush1.msra.mxu0 0.0
      %998 = vmatprep.subr.mxu0 0.0
      %999 = vmatpush1.msra.mxu0 0.0
      %1000 = vmatprep.subr.mxu0 0.0
      %1001 = vmatpush1.msra.mxu0 0.0
      %1002 = vmatprep.subr.mxu0 0.0
      %1003 = vmatpush1.msra.mxu0 0.0
      %1004 = vmatprep.mubr.f32.mxu0 0.0
      %1005 = vmatmul.mubr.f32.gmra.mrb[0].mxu0 %v796
      %v1006 = vpop.f32.mrb[0].mxu0
      %v1007 = vadd.f32 %v685, %v1006
      %v1008 = vpop.f32.mrb[0].mxu0
      %v1009 = vadd.f32 %v687, %v1008
      %1010 = vdwg.mxu0
      %1011 = vmatprep.subr.mxu0 %v786
      %1012 = vmatpush1.msra.mxu0 %v785
      %1013 = vmatprep.subr.mxu0 0.0
      %1014 = vmatpush1.msra.mxu0 0.0
      %1015 = vmatprep.subr.mxu0 0.0
      %1016 = vmatpush1.msra.mxu0 0.0
      %1017 = vmatprep.subr.mxu0 0.0
      %1018 = vmatpush1.msra.mxu0 0.0
      %1019 = vmatprep.subr.mxu0 0.0
      %1020 = vmatpush1.msra.mxu0 0.0
      %1021 = vmatprep.subr.mxu0 0.0
      %1022 = vmatpush1.msra.mxu0 0.0
      %1023 = vmatprep.subr.mxu0 0.0
      %1024 = vmatpush1.msra.mxu0 0.0
      %1025 = vmatprep.subr.mxu0 0.0
      %1026 = vmatpush1.msra.mxu0 0.0
      %1027 = vmatprep.subr.mxu0 0.0
      %1028 = vmatpush1.msra.mxu0 0.0
      %1029 = vmatprep.subr.mxu0 0.0
      %1030 = vmatpush1.msra.mxu0 0.0
      %1031 = vmatprep.subr.mxu0 0.0
      %1032 = vmatpush1.msra.mxu0 0.0
      %1033 = vmatprep.subr.mxu0 0.0
      %1034 = vmatpush1.msra.mxu0 0.0
      %1035 = vmatprep.subr.mxu0 0.0
      %1036 = vmatpush1.msra.mxu0 0.0
      %1037 = vmatprep.subr.mxu0 0.0
      %1038 = vmatpush1.msra.mxu0 0.0
      %1039 = vmatprep.subr.mxu0 0.0
      %1040 = vmatpush1.msra.mxu0 0.0
      %1041 = vmatprep.subr.mxu0 0.0
      %1042 = vmatpush1.msra.mxu0 0.0
      %1043 = vmatprep.subr.mxu0 0.0
      %1044 = vmatpush1.msra.mxu0 0.0
      %1045 = vmatprep.subr.mxu0 0.0
      %1046 = vmatpush1.msra.mxu0 0.0
      %1047 = vmatprep.subr.mxu0 0.0
      %1048 = vmatpush1.msra.mxu0 0.0
      %1049 = vmatprep.subr.mxu0 0.0
      %1050 = vmatpush1.msra.mxu0 0.0
      %1051 = vmatprep.subr.mxu0 0.0
      %1052 = vmatpush1.msra.mxu0 0.0
      %1053 = vmatprep.subr.mxu0 0.0
      %1054 = vmatpush1.msra.mxu0 0.0
      %1055 = vmatprep.subr.mxu0 0.0
      %1056 = vmatpush1.msra.mxu0 0.0
      %1057 = vmatprep.subr.mxu0 0.0
      %1058 = vmatpush1.msra.mxu0 0.0
      %1059 = vmatprep.subr.mxu0 0.0
      %1060 = vmatpush1.msra.mxu0 0.0
      %1061 = vmatprep.subr.mxu0 0.0
      %1062 = vmatpush1.msra.mxu0 0.0
      %1063 = vmatprep.subr.mxu0 0.0
      %1064 = vmatpush1.msra.mxu0 0.0
      %1065 = vmatprep.subr.mxu0 0.0
      %1066 = vmatpush1.msra.mxu0 0.0
      %1067 = vmatprep.subr.mxu0 0.0
      %1068 = vmatpush1.msra.mxu0 0.0
      %1069 = vmatprep.subr.mxu0 0.0
      %1070 = vmatpush1.msra.mxu0 0.0
      %1071 = vmatprep.subr.mxu0 0.0
      %1072 = vmatpush1.msra.mxu0 0.0
      %1073 = vmatprep.subr.mxu0 0.0
      %1074 = vmatpush1.msra.mxu0 0.0
      %1075 = vmatprep.mubr.f32.mxu0 0.0
      %1076 = vmatmul.mubr.f32.gmra.mrb[0].mxu0 %v796
      %v1077 = vpop.f32.mrb[0].mxu0
      %v1078 = vadd.f32 %v756, %v1077
      %v1079 = vpop.f32.mrb[0].mxu0
      %v1080 = vadd.f32 %v758, %v1079
      %1081 = vdwg.mxu0
      %s1082 = scalar_lea.vmem %s3, 24
      %v1083 = vld [vmem:[%s1082] sm:$0xf]
      %1084 = vrot.lane.b32.xlu0 %v417, 33
      %v1085 = vpop.permute.xlu0 %1084
      %1086 = vrot.lane.b32.xlu0 %v418, 33
      %v1087 = vpop.permute.xlu0 %1086
      %1088 = vrot.lane.b32.xlu0 %v419, 33
      %v1089 = vpop.permute.xlu0 %1088
      %1090 = vrot.lane.b32.xlu0 %v420, 33
      %v1091 = vpop.permute.xlu0 %1090
      %1092 = vrot.lane.b32.xlu0 %v421, 33
      %v1093 = vpop.permute.xlu0 %1092
      %1094 = vrot.lane.b32.xlu0 %v422, 33
      %v1095 = vpop.permute.xlu0 %1094
      %1096 = vrot.lane.b32.xlu0 %v423, 33
      %v1097 = vpop.permute.xlu0 %1096
      %1098 = vrot.lane.b32.xlu0 %v424, 33
      %v1099 = vpop.permute.xlu0 %1098
      %1100 = vrot.lane.b32.xlu0 %v425, 33
      %v1101 = vpop.permute.xlu0 %1100
      %vm1102 = vcmask 269312
      %v1103 = vsel %vm1102, %v1085, %v1087
      %v1104 = vsel %vm1102, %v1087, %v1089
      %v1105 = vsel %vm1102, %v1089, %v1091
      %v1106 = vsel %vm1102, %v1091, %v1093
      %v1107 = vsel %vm1102, %v1093, %v1095
      %v1108 = vsel %vm1102, %v1095, %v1097
      %v1109 = vsel %vm1102, %v1097, %v1099
      %v1110 = vsel %vm1102, %v1099, %v1101
      %v1120 = vsel %vm472, %v1083, 0
      %1122 = vmatprep.subr.mxu0 %v1104
      %1123 = vmatpush1.msra.mxu0 %v1103
      %1124 = vmatprep.subr.mxu0 0.0
      %1125 = vmatpush1.msra.mxu0 0.0
      %1126 = vmatprep.subr.mxu0 0.0
      %1127 = vmatpush1.msra.mxu0 0.0
      %1128 = vmatprep.subr.mxu0 0.0
      %1129 = vmatpush1.msra.mxu0 0.0
      %1130 = vmatprep.subr.mxu0 0.0
      %1131 = vmatpush1.msra.mxu0 0.0
      %1132 = vmatprep.subr.mxu0 0.0
      %1133 = vmatpush1.msra.mxu0 0.0
      %1134 = vmatprep.subr.mxu0 0.0
      %1135 = vmatpush1.msra.mxu0 0.0
      %1136 = vmatprep.subr.mxu0 0.0
      %1137 = vmatpush1.msra.mxu0 0.0
      %1138 = vmatprep.subr.mxu0 0.0
      %1139 = vmatpush1.msra.mxu0 0.0
      %1140 = vmatprep.subr.mxu0 0.0
      %1141 = vmatpush1.msra.mxu0 0.0
      %1142 = vmatprep.subr.mxu0 0.0
      %1143 = vmatpush1.msra.mxu0 0.0
      %1144 = vmatprep.subr.mxu0 0.0
      %1145 = vmatpush1.msra.mxu0 0.0
      %1146 = vmatprep.subr.mxu0 0.0
      %1147 = vmatpush1.msra.mxu0 0.0
      %1148 = vmatprep.subr.mxu0 0.0
      %1149 = vmatpush1.msra.mxu0 0.0
      %1150 = vmatprep.subr.mxu0 0.0
      %1151 = vmatpush1.msra.mxu0 0.0
      %1152 = vmatprep.subr.mxu0 0.0
      %1153 = vmatpush1.msra.mxu0 0.0
      %1154 = vmatprep.subr.mxu0 0.0
      %1155 = vmatpush1.msra.mxu0 0.0
      %1156 = vmatprep.subr.mxu0 0.0
      %1157 = vmatpush1.msra.mxu0 0.0
      %1158 = vmatprep.subr.mxu0 0.0
      %1159 = vmatpush1.msra.mxu0 0.0
      %1160 = vmatprep.subr.mxu0 0.0
      %1161 = vmatpush1.msra.mxu0 0.0
      %1162 = vmatprep.subr.mxu0 0.0
      %1163 = vmatpush1.msra.mxu0 0.0
      %1164 = vmatprep.subr.mxu0 0.0
      %1165 = vmatpush1.msra.mxu0 0.0
      %1166 = vmatprep.subr.mxu0 0.0
      %1167 = vmatpush1.msra.mxu0 0.0
      %1168 = vmatprep.subr.mxu0 0.0
      %1169 = vmatpush1.msra.mxu0 0.0
      %1170 = vmatprep.subr.mxu0 0.0
      %1171 = vmatpush1.msra.mxu0 0.0
      %1172 = vmatprep.subr.mxu0 0.0
      %1173 = vmatpush1.msra.mxu0 0.0
      %1174 = vmatprep.subr.mxu0 0.0
      %1175 = vmatpush1.msra.mxu0 0.0
      %1176 = vmatprep.subr.mxu0 0.0
      %1177 = vmatpush1.msra.mxu0 0.0
      %1178 = vmatprep.subr.mxu0 0.0
      %1179 = vmatpush1.msra.mxu0 0.0
      %1180 = vmatprep.subr.mxu0 0.0
      %1181 = vmatpush1.msra.mxu0 0.0
      %1182 = vmatprep.subr.mxu0 0.0
      %1183 = vmatpush1.msra.mxu0 0.0
      %1184 = vmatprep.subr.mxu0 0.0
      %1185 = vmatpush1.msra.mxu0 0.0
      %1186 = vmatprep.mubr.f32.mxu0 0.0
      %1187 = vmatmul.mubr.f32.gmra.mrb[0].mxu0 %v1120
      %v1188 = vpop.f32.mrb[0].mxu0
      %v1189 = vadd.f32 0.0, %v1188
      %v1190 = vpop.f32.mrb[0].mxu0
      %v1191 = vadd.f32 0.0, %v1190
      %1192 = vdwg.mxu0
      %1193 = vmatprep.subr.mxu0 %v1106
      %1194 = vmatpush1.msra.mxu0 %v1105
      %1195 = vmatprep.subr.mxu0 0.0
      %1196 = vmatpush1.msra.mxu0 0.0
      %1197 = vmatprep.subr.mxu0 0.0
      %1198 = vmatpush1.msra.mxu0 0.0
      %1199 = vmatprep.subr.mxu0 0.0
      %1200 = vmatpush1.msra.mxu0 0.0
      %1201 = vmatprep.subr.mxu0 0.0
      %1202 = vmatpush1.msra.mxu0 0.0
      %1203 = vmatprep.subr.mxu0 0.0
      %1204 = vmatpush1.msra.mxu0 0.0
      %1205 = vmatprep.subr.mxu0 0.0
      %1206 = vmatpush1.msra.mxu0 0.0
      %1207 = vmatprep.subr.mxu0 0.0
      %1208 = vmatpush1.msra.mxu0 0.0
      %1209 = vmatprep.subr.mxu0 0.0
      %1210 = vmatpush1.msra.mxu0 0.0
      %1211 = vmatprep.subr.mxu0 0.0
      %1212 = vmatpush1.msra.mxu0 0.0
      %1213 = vmatprep.subr.mxu0 0.0
      %1214 = vmatpush1.msra.mxu0 0.0
      %1215 = vmatprep.subr.mxu0 0.0
      %1216 = vmatpush1.msra.mxu0 0.0
      %1217 = vmatprep.subr.mxu0 0.0
      %1218 = vmatpush1.msra.mxu0 0.0
      %1219 = vmatprep.subr.mxu0 0.0
      %1220 = vmatpush1.msra.mxu0 0.0
      %1221 = vmatprep.subr.mxu0 0.0
      %1222 = vmatpush1.msra.mxu0 0.0
      %1223 = vmatprep.subr.mxu0 0.0
      %1224 = vmatpush1.msra.mxu0 0.0
      %1225 = vmatprep.subr.mxu0 0.0
      %1226 = vmatpush1.msra.mxu0 0.0
      %1227 = vmatprep.subr.mxu0 0.0
      %1228 = vmatpush1.msra.mxu0 0.0
      %1229 = vmatprep.subr.mxu0 0.0
      %1230 = vmatpush1.msra.mxu0 0.0
      %1231 = vmatprep.subr.mxu0 0.0
      %1232 = vmatpush1.msra.mxu0 0.0
      %1233 = vmatprep.subr.mxu0 0.0
      %1234 = vmatpush1.msra.mxu0 0.0
      %1235 = vmatprep.subr.mxu0 0.0
      %1236 = vmatpush1.msra.mxu0 0.0
      %1237 = vmatprep.subr.mxu0 0.0
      %1238 = vmatpush1.msra.mxu0 0.0
      %1239 = vmatprep.subr.mxu0 0.0
      %1240 = vmatpush1.msra.mxu0 0.0
      %1241 = vmatprep.subr.mxu0 0.0
      %1242 = vmatpush1.msra.mxu0 0.0
      %1243 = vmatprep.subr.mxu0 0.0
      %1244 = vmatpush1.msra.mxu0 0.0
      %1245 = vmatprep.subr.mxu0 0.0
      %1246 = vmatpush1.msra.mxu0 0.0
      %1247 = vmatprep.subr.mxu0 0.0
      %1248 = vmatpush1.msra.mxu0 0.0
      %1249 = vmatprep.subr.mxu0 0.0
      %1250 = vmatpush1.msra.mxu0 0.0
      %1251 = vmatprep.subr.mxu0 0.0
      %1252 = vmatpush1.msra.mxu0 0.0
      %1253 = vmatprep.subr.mxu0 0.0
      %1254 = vmatpush1.msra.mxu0 0.0
      %1255 = vmatprep.subr.mxu0 0.0
      %1256 = vmatpush1.msra.mxu0 0.0
      %1257 = vmatprep.mubr.f32.mxu0 0.0
      %1258 = vmatmul.mubr.f32.gmra.mrb[0].mxu0 %v1120
      %v1259 = vpop.f32.mrb[0].mxu0
      %v1260 = vadd.f32 0.0, %v1259
      %v1261 = vpop.f32.mrb[0].mxu0
      %v1262 = vadd.f32 0.0, %v1261
      %1263 = vdwg.mxu0
      %1264 = vmatprep.subr.mxu0 %v1108
      %1265 = vmatpush1.msra.mxu0 %v1107
      %1266 = vmatprep.subr.mxu0 0.0
      %1267 = vmatpush1.msra.mxu0 0.0
      %1268 = vmatprep.subr.mxu0 0.0
      %1269 = vmatpush1.msra.mxu0 0.0
      %1270 = vmatprep.subr.mxu0 0.0
      %1271 = vmatpush1.msra.mxu0 0.0
      %1272 = vmatprep.subr.mxu0 0.0
      %1273 = vmatpush1.msra.mxu0 0.0
      %1274 = vmatprep.subr.mxu0 0.0
      %1275 = vmatpush1.msra.mxu0 0.0
      %1276 = vmatprep.subr.mxu0 0.0
      %1277 = vmatpush1.msra.mxu0 0.0
      %1278 = vmatprep.subr.mxu0 0.0
      %1279 = vmatpush1.msra.mxu0 0.0
      %1280 = vmatprep.subr.mxu0 0.0
      %1281 = vmatpush1.msra.mxu0 0.0
      %1282 = vmatprep.subr.mxu0 0.0
      %1283 = vmatpush1.msra.mxu0 0.0
      %1284 = vmatprep.subr.mxu0 0.0
      %1285 = vmatpush1.msra.mxu0 0.0
      %1286 = vmatprep.subr.mxu0 0.0
      %1287 = vmatpush1.msra.mxu0 0.0
      %1288 = vmatprep.subr.mxu0 0.0
      %1289 = vmatpush1.msra.mxu0 0.0
      %1290 = vmatprep.subr.mxu0 0.0
      %1291 = vmatpush1.msra.mxu0 0.0
      %1292 = vmatprep.subr.mxu0 0.0
      %1293 = vmatpush1.msra.mxu0 0.0
      %1294 = vmatprep.subr.mxu0 0.0
      %1295 = vmatpush1.msra.mxu0 0.0
      %1296 = vmatprep.subr.mxu0 0.0
      %1297 = vmatpush1.msra.mxu0 0.0
      %1298 = vmatprep.subr.mxu0 0.0
      %1299 = vmatpush1.msra.mxu0 0.0
      %1300 = vmatprep.subr.mxu0 0.0
      %1301 = vmatpush1.msra.mxu0 0.0
      %1302 = vmatprep.subr.mxu0 0.0
      %1303 = vmatpush1.msra.mxu0 0.0
      %1304 = vmatprep.subr.mxu0 0.0
      %1305 = vmatpush1.msra.mxu0 0.0
      %1306 = vmatprep.subr.mxu0 0.0
      %1307 = vmatpush1.msra.mxu0 0.0
      %1308 = vmatprep.subr.mxu0 0.0
      %1309 = vmatpush1.msra.mxu0 0.0
      %1310 = vmatprep.subr.mxu0 0.0
      %1311 = vmatpush1.msra.mxu0 0.0
      %1312 = vmatprep.subr.mxu0 0.0
      %1313 = vmatpush1.msra.mxu0 0.0
      %1314 = vmatprep.subr.mxu0 0.0
      %1315 = vmatpush1.msra.mxu0 0.0
      %1316 = vmatprep.subr.mxu0 0.0
      %1317 = vmatpush1.msra.mxu0 0.0
      %1318 = vmatprep.subr.mxu0 0.0
      %1319 = vmatpush1.msra.mxu0 0.0
      %1320 = vmatprep.subr.mxu0 0.0
      %1321 = vmatpush1.msra.mxu0 0.0
      %1322 = vmatprep.subr.mxu0 0.0
      %1323 = vmatpush1.msra.mxu0 0.0
      %1324 = vmatprep.subr.mxu0 0.0
      %1325 = vmatpush1.msra.mxu0 0.0
      %1326 = vmatprep.subr.mxu0 0.0
      %1327 = vmatpush1.msra.mxu0 0.0
      %1328 = vmatprep.mubr.f32.mxu0 0.0
      %1329 = vmatmul.mubr.f32.gmra.mrb[0].mxu0 %v1120
      %v1330 = vpop.f32.mrb[0].mxu0
      %v1331 = vadd.f32 0.0, %v1330
      %v1332 = vpop.f32.mrb[0].mxu0
      %v1333 = vadd.f32 0.0, %v1332
      %1334 = vdwg.mxu0
      %1335 = vmatprep.subr.mxu0 %v1110
      %1336 = vmatpush1.msra.mxu0 %v1109
      %1337 = vmatprep.subr.mxu0 0.0
      %1338 = vmatpush1.msra.mxu0 0.0
      %1339 = vmatprep.subr.mxu0 0.0
      %1340 = vmatpush1.msra.mxu0 0.0
      %1341 = vmatprep.subr.mxu0 0.0
      %1342 = vmatpush1.msra.mxu0 0.0
      %1343 = vmatprep.subr.mxu0 0.0
      %1344 = vmatpush1.msra.mxu0 0.0
      %1345 = vmatprep.subr.mxu0 0.0
      %1346 = vmatpush1.msra.mxu0 0.0
      %1347 = vmatprep.subr.mxu0 0.0
      %1348 = vmatpush1.msra.mxu0 0.0
      %1349 = vmatprep.subr.mxu0 0.0
      %1350 = vmatpush1.msra.mxu0 0.0
      %1351 = vmatprep.subr.mxu0 0.0
      %1352 = vmatpush1.msra.mxu0 0.0
      %1353 = vmatprep.subr.mxu0 0.0
      %1354 = vmatpush1.msra.mxu0 0.0
      %1355 = vmatprep.subr.mxu0 0.0
      %1356 = vmatpush1.msra.mxu0 0.0
      %1357 = vmatprep.subr.mxu0 0.0
      %1358 = vmatpush1.msra.mxu0 0.0
      %1359 = vmatprep.subr.mxu0 0.0
      %1360 = vmatpush1.msra.mxu0 0.0
      %1361 = vmatprep.subr.mxu0 0.0
      %1362 = vmatpush1.msra.mxu0 0.0
      %1363 = vmatprep.subr.mxu0 0.0
      %1364 = vmatpush1.msra.mxu0 0.0
      %1365 = vmatprep.subr.mxu0 0.0
      %1366 = vmatpush1.msra.mxu0 0.0
      %1367 = vmatprep.subr.mxu0 0.0
      %1368 = vmatpush1.msra.mxu0 0.0
      %1369 = vmatprep.subr.mxu0 0.0
      %1370 = vmatpush1.msra.mxu0 0.0
      %1371 = vmatprep.subr.mxu0 0.0
      %1372 = vmatpush1.msra.mxu0 0.0
      %1373 = vmatprep.subr.mxu0 0.0
      %1374 = vmatpush1.msra.mxu0 0.0
      %1375 = vmatprep.subr.mxu0 0.0
      %1376 = vmatpush1.msra.mxu0 0.0
      %1377 = vmatprep.subr.mxu0 0.0
      %1378 = vmatpush1.msra.mxu0 0.0
      %1379 = vmatprep.subr.mxu0 0.0
      %1380 = vmatpush1.msra.mxu0 0.0
      %1381 = vmatprep.subr.mxu0 0.0
      %1382 = vmatpush1.msra.mxu0 0.0
      %1383 = vmatprep.subr.mxu0 0.0
      %1384 = vmatpush1.msra.mxu0 0.0
      %1385 = vmatprep.subr.mxu0 0.0
      %1386 = vmatpush1.msra.mxu0 0.0
      %1387 = vmatprep.subr.mxu0 0.0
      %1388 = vmatpush1.msra.mxu0 0.0
      %1389 = vmatprep.subr.mxu0 0.0
      %1390 = vmatpush1.msra.mxu0 0.0
      %1391 = vmatprep.subr.mxu0 0.0
      %1392 = vmatpush1.msra.mxu0 0.0
      %1393 = vmatprep.subr.mxu0 0.0
      %1394 = vmatpush1.msra.mxu0 0.0
      %1395 = vmatprep.subr.mxu0 0.0
      %1396 = vmatpush1.msra.mxu0 0.0
      %1397 = vmatprep.subr.mxu0 0.0
      %1398 = vmatpush1.msra.mxu0 0.0
      %1399 = vmatprep.mubr.f32.mxu0 0.0
      %1400 = vmatmul.mubr.f32.gmra.mrb[0].mxu0 %v1120
      %v1401 = vpop.f32.mrb[0].mxu0
      %v1402 = vadd.f32 0.0, %v1401
      %v1403 = vpop.f32.mrb[0].mxu0
      %v1404 = vadd.f32 0.0, %v1403
      %1405 = vdwg.mxu0
      %v1406 = vadd.f32 %v865, %v1189
      %v1407 = vadd.f32 %v867, %v1191
      %v1408 = vadd.f32 %v936, %v1260
      %v1409 = vadd.f32 %v938, %v1262
      %v1410 = vadd.f32 %v1007, %v1331
      %v1411 = vadd.f32 %v1009, %v1333
      %v1412 = vadd.f32 %v1078, %v1402
      %v1413 = vadd.f32 %v1080, %v1404
      %v1415 = vlaneseq
      %v1416 = vshrl.u32 %v1415, 7
      %v1417 = vsub.s32 0, %v1416
      %v1418 = vrot.slane %v299, %v1417
      %v1419 = vlaneseq
      %v1420 = vshrl.u32 %v1419, 7
      %v1421 = vsub.s32 1, %v1420
      %v1422 = vrot.slane %v299, %v1421
      %v1423 = vlaneseq
      %v1424 = vshrl.u32 %v1423, 7
      %v1425 = vsub.s32 2, %v1424
      %v1426 = vrot.slane %v299, %v1425
      %v1427 = vlaneseq
      %v1428 = vshrl.u32 %v1427, 7
      %v1429 = vsub.s32 3, %v1428
      %v1430 = vrot.slane %v299, %v1429
      %v1431 = vlaneseq
      %v1432 = vshrl.u32 %v1431, 7
      %v1433 = vsub.s32 4, %v1432
      %v1434 = vrot.slane %v299, %v1433
      %v1435 = vlaneseq
      %v1436 = vshrl.u32 %v1435, 7
      %v1437 = vsub.s32 5, %v1436
      %v1438 = vrot.slane %v299, %v1437
      %v1439 = vlaneseq
      %v1440 = vshrl.u32 %v1439, 7
      %v1441 = vsub.s32 6, %v1440
      %v1442 = vrot.slane %v299, %v1441
      %v1443 = vlaneseq
      %v1444 = vshrl.u32 %v1443, 7
      %v1445 = vsub.s32 7, %v1444
      %v1446 = vrot.slane %v299, %v1445
      %v1455 = vmul.f32 %v1406, %v1418
      %v1456 = vmul.f32 %v1407, %v1422
      %v1457 = vmul.f32 %v1408, %v1426
      %v1458 = vmul.f32 %v1409, %v1430
      %v1459 = vmul.f32 %v1410, %v1434
      %v1460 = vmul.f32 %v1411, %v1438
      %v1461 = vmul.f32 %v1412, %v1442
      %v1462 = vmul.f32 %v1413, %v1446
      %s1463 = scalar_lea.vmem %s3, 4
      %v1464 = vld [vmem:[%s1463] sm:$0xf]
      %s1465 = scalar_lea.vmem %s3, 16
      %v1466 = vld [vmem:[%s1465] sm:$0xf]
      %1467 = vrot.lane.b32.xlu0 %v417, 64
      %v1468 = vpop.permute.xlu0 %1467
      %1469 = vrot.lane.b32.xlu0 %v418, 64
      %v1470 = vpop.permute.xlu0 %1469
      %1471 = vrot.lane.b32.xlu0 %v419, 64
      %v1472 = vpop.permute.xlu0 %1471
      %1473 = vrot.lane.b32.xlu0 %v420, 64
      %v1474 = vpop.permute.xlu0 %1473
      %1475 = vrot.lane.b32.xlu0 %v421, 64
      %v1476 = vpop.permute.xlu0 %1475
      %1477 = vrot.lane.b32.xlu0 %v422, 64
      %v1478 = vpop.permute.xlu0 %1477
      %1479 = vrot.lane.b32.xlu0 %v423, 64
      %v1480 = vpop.permute.xlu0 %1479
      %1481 = vrot.lane.b32.xlu0 %v424, 64
      %v1482 = vpop.permute.xlu0 %1481
      %1483 = vrot.lane.b32.xlu0 %v425, 64
      %v1484 = vpop.permute.xlu0 %1483
      %v1485 = vsel %vm302, %v1468, %v1470
      %v1486 = vsel %vm302, %v1470, %v1472
      %v1487 = vsel %vm302, %v1472, %v1474
      %v1488 = vsel %vm302, %v1474, %v1476
      %v1489 = vsel %vm302, %v1476, %v1478
      %v1490 = vsel %vm302, %v1478, %v1480
      %v1491 = vsel %vm302, %v1480, %v1482
      %v1492 = vsel %vm302, %v1482, %v1484
      %v1502 = vsel %vm472, %v1466, 0
      %1504 = vmatprep.subr.mxu0 %v1486
      %1505 = vmatpush1.msra.mxu0 %v1485
      %1506 = vmatprep.subr.mxu0 0.0
      %1507 = vmatpush1.msra.mxu0 0.0
      %1508 = vmatprep.subr.mxu0 0.0
      %1509 = vmatpush1.msra.mxu0 0.0
      %1510 = vmatprep.subr.mxu0 0.0
      %1511 = vmatpush1.msra.mxu0 0.0
      %1512 = vmatprep.subr.mxu0 0.0
      %1513 = vmatpush1.msra.mxu0 0.0
      %1514 = vmatprep.subr.mxu0 0.0
      %1515 = vmatpush1.msra.mxu0 0.0
      %1516 = vmatprep.subr.mxu0 0.0
      %1517 = vmatpush1.msra.mxu0 0.0
      %1518 = vmatprep.subr.mxu0 0.0
      %1519 = vmatpush1.msra.mxu0 0.0
      %1520 = vmatprep.subr.mxu0 0.0
      %1521 = vmatpush1.msra.mxu0 0.0
      %1522 = vmatprep.subr.mxu0 0.0
      %1523 = vmatpush1.msra.mxu0 0.0
      %1524 = vmatprep.subr.mxu0 0.0
      %1525 = vmatpush1.msra.mxu0 0.0
      %1526 = vmatprep.subr.mxu0 0.0
      %1527 = vmatpush1.msra.mxu0 0.0
      %1528 = vmatprep.subr.mxu0 0.0
      %1529 = vmatpush1.msra.mxu0 0.0
      %1530 = vmatprep.subr.mxu0 0.0
      %1531 = vmatpush1.msra.mxu0 0.0
      %1532 = vmatprep.subr.mxu0 0.0
      %1533 = vmatpush1.msra.mxu0 0.0
      %1534 = vmatprep.subr.mxu0 0.0
      %1535 = vmatpush1.msra.mxu0 0.0
      %1536 = vmatprep.subr.mxu0 0.0
      %1537 = vmatpush1.msra.mxu0 0.0
      %1538 = vmatprep.subr.mxu0 0.0
      %1539 = vmatpush1.msra.mxu0 0.0
      %1540 = vmatprep.subr.mxu0 0.0
      %1541 = vmatpush1.msra.mxu0 0.0
      %1542 = vmatprep.subr.mxu0 0.0
      %1543 = vmatpush1.msra.mxu0 0.0
      %1544 = vmatprep.subr.mxu0 0.0
      %1545 = vmatpush1.msra.mxu0 0.0
      %1546 = vmatprep.subr.mxu0 0.0
      %1547 = vmatpush1.msra.mxu0 0.0
      %1548 = vmatprep.subr.mxu0 0.0
      %1549 = vmatpush1.msra.mxu0 0.0
      %1550 = vmatprep.subr.mxu0 0.0
      %1551 = vmatpush1.msra.mxu0 0.0
      %1552 = vmatprep.subr.mxu0 0.0
      %1553 = vmatpush1.msra.mxu0 0.0
      %1554 = vmatprep.subr.mxu0 0.0
      %1555 = vmatpush1.msra.mxu0 0.0
      %1556 = vmatprep.subr.mxu0 0.0
      %1557 = vmatpush1.msra.mxu0 0.0
      %1558 = vmatprep.subr.mxu0 0.0
      %1559 = vmatpush1.msra.mxu0 0.0
      %1560 = vmatprep.subr.mxu0 0.0
      %1561 = vmatpush1.msra.mxu0 0.0
      %1562 = vmatprep.subr.mxu0 0.0
      %1563 = vmatpush1.msra.mxu0 0.0
      %1564 = vmatprep.subr.mxu0 0.0
      %1565 = vmatpush1.msra.mxu0 0.0
      %1566 = vmatprep.subr.mxu0 0.0
      %1567 = vmatpush1.msra.mxu0 0.0
      %1568 = vmatprep.mubr.f32.mxu0 0.0
      %1569 = vmatmul.mubr.f32.gmra.mrb[0].mxu0 %v1502
      %v1570 = vpop.f32.mrb[0].mxu0
      %v1571 = vadd.f32 0.0, %v1570
      %v1572 = vpop.f32.mrb[0].mxu0
      %v1573 = vadd.f32 0.0, %v1572
      %1574 = vdwg.mxu0
      %1575 = vmatprep.subr.mxu0 %v1488
      %1576 = vmatpush1.msra.mxu0 %v1487
      %1577 = vmatprep.subr.mxu0 0.0
      %1578 = vmatpush1.msra.mxu0 0.0
      %1579 = vmatprep.subr.mxu0 0.0
      %1580 = vmatpush1.msra.mxu0 0.0
      %1581 = vmatprep.subr.mxu0 0.0
      %1582 = vmatpush1.msra.mxu0 0.0
      %1583 = vmatprep.subr.mxu0 0.0
      %1584 = vmatpush1.msra.mxu0 0.0
      %1585 = vmatprep.subr.mxu0 0.0
      %1586 = vmatpush1.msra.mxu0 0.0
      %1587 = vmatprep.subr.mxu0 0.0
      %1588 = vmatpush1.msra.mxu0 0.0
      %1589 = vmatprep.subr.mxu0 0.0
      %1590 = vmatpush1.msra.mxu0 0.0
      %1591 = vmatprep.subr.mxu0 0.0
      %1592 = vmatpush1.msra.mxu0 0.0
      %1593 = vmatprep.subr.mxu0 0.0
      %1594 = vmatpush1.msra.mxu0 0.0
      %1595 = vmatprep.subr.mxu0 0.0
      %1596 = vmatpush1.msra.mxu0 0.0
      %1597 = vmatprep.subr.mxu0 0.0
      %1598 = vmatpush1.msra.mxu0 0.0
      %1599 = vmatprep.subr.mxu0 0.0
      %1600 = vmatpush1.msra.mxu0 0.0
      %1601 = vmatprep.subr.mxu0 0.0
      %1602 = vmatpush1.msra.mxu0 0.0
      %1603 = vmatprep.subr.mxu0 0.0
      %1604 = vmatpush1.msra.mxu0 0.0
      %1605 = vmatprep.subr.mxu0 0.0
      %1606 = vmatpush1.msra.mxu0 0.0
      %1607 = vmatprep.subr.mxu0 0.0
      %1608 = vmatpush1.msra.mxu0 0.0
      %1609 = vmatprep.subr.mxu0 0.0
      %1610 = vmatpush1.msra.mxu0 0.0
      %1611 = vmatprep.subr.mxu0 0.0
      %1612 = vmatpush1.msra.mxu0 0.0
      %1613 = vmatprep.subr.mxu0 0.0
      %1614 = vmatpush1.msra.mxu0 0.0
      %1615 = vmatprep.subr.mxu0 0.0
      %1616 = vmatpush1.msra.mxu0 0.0
      %1617 = vmatprep.subr.mxu0 0.0
      %1618 = vmatpush1.msra.mxu0 0.0
      %1619 = vmatprep.subr.mxu0 0.0
      %1620 = vmatpush1.msra.mxu0 0.0
      %1621 = vmatprep.subr.mxu0 0.0
      %1622 = vmatpush1.msra.mxu0 0.0
      %1623 = vmatprep.subr.mxu0 0.0
      %1624 = vmatpush1.msra.mxu0 0.0
      %1625 = vmatprep.subr.mxu0 0.0
      %1626 = vmatpush1.msra.mxu0 0.0
      %1627 = vmatprep.subr.mxu0 0.0
      %1628 = vmatpush1.msra.mxu0 0.0
      %1629 = vmatprep.subr.mxu0 0.0
      %1630 = vmatpush1.msra.mxu0 0.0
      %1631 = vmatprep.subr.mxu0 0.0
      %1632 = vmatpush1.msra.mxu0 0.0
      %1633 = vmatprep.subr.mxu0 0.0
      %1634 = vmatpush1.msra.mxu0 0.0
      %1635 = vmatprep.subr.mxu0 0.0
      %1636 = vmatpush1.msra.mxu0 0.0
      %1637 = vmatprep.subr.mxu0 0.0
      %1638 = vmatpush1.msra.mxu0 0.0
      %1639 = vmatprep.mubr.f32.mxu0 0.0
      %1640 = vmatmul.mubr.f32.gmra.mrb[0].mxu0 %v1502
      %v1641 = vpop.f32.mrb[0].mxu0
      %v1642 = vadd.f32 0.0, %v1641
      %v1643 = vpop.f32.mrb[0].mxu0
      %v1644 = vadd.f32 0.0, %v1643
      %1645 = vdwg.mxu0
      %1646 = vmatprep.subr.mxu0 %v1490
      %1647 = vmatpush1.msra.mxu0 %v1489
      %1648 = vmatprep.subr.mxu0 0.0
      %1649 = vmatpush1.msra.mxu0 0.0
      %1650 = vmatprep.subr.mxu0 0.0
      %1651 = vmatpush1.msra.mxu0 0.0
      %1652 = vmatprep.subr.mxu0 0.0
      %1653 = vmatpush1.msra.mxu0 0.0
      %1654 = vmatprep.subr.mxu0 0.0
      %1655 = vmatpush1.msra.mxu0 0.0
      %1656 = vmatprep.subr.mxu0 0.0
      %1657 = vmatpush1.msra.mxu0 0.0
      %1658 = vmatprep.subr.mxu0 0.0
      %1659 = vmatpush1.msra.mxu0 0.0
      %1660 = vmatprep.subr.mxu0 0.0
      %1661 = vmatpush1.msra.mxu0 0.0
      %1662 = vmatprep.subr.mxu0 0.0
      %1663 = vmatpush1.msra.mxu0 0.0
      %1664 = vmatprep.subr.mxu0 0.0
      %1665 = vmatpush1.msra.mxu0 0.0
      %1666 = vmatprep.subr.mxu0 0.0
      %1667 = vmatpush1.msra.mxu0 0.0
      %1668 = vmatprep.subr.mxu0 0.0
      %1669 = vmatpush1.msra.mxu0 0.0
      %1670 = vmatprep.subr.mxu0 0.0
      %1671 = vmatpush1.msra.mxu0 0.0
      %1672 = vmatprep.subr.mxu0 0.0
      %1673 = vmatpush1.msra.mxu0 0.0
      %1674 = vmatprep.subr.mxu0 0.0
      %1675 = vmatpush1.msra.mxu0 0.0
      %1676 = vmatprep.subr.mxu0 0.0
      %1677 = vmatpush1.msra.mxu0 0.0
      %1678 = vmatprep.subr.mxu0 0.0
      %1679 = vmatpush1.msra.mxu0 0.0
      %1680 = vmatprep.subr.mxu0 0.0
      %1681 = vmatpush1.msra.mxu0 0.0
      %1682 = vmatprep.subr.mxu0 0.0
      %1683 = vmatpush1.msra.mxu0 0.0
      %1684 = vmatprep.subr.mxu0 0.0
      %1685 = vmatpush1.msra.mxu0 0.0
      %1686 = vmatprep.subr.mxu0 0.0
      %1687 = vmatpush1.msra.mxu0 0.0
      %1688 = vmatprep.subr.mxu0 0.0
      %1689 = vmatpush1.msra.mxu0 0.0
      %1690 = vmatprep.subr.mxu0 0.0
      %1691 = vmatpush1.msra.mxu0 0.0
      %1692 = vmatprep.subr.mxu0 0.0
      %1693 = vmatpush1.msra.mxu0 0.0
      %1694 = vmatprep.subr.mxu0 0.0
      %1695 = vmatpush1.msra.mxu0 0.0
      %1696 = vmatprep.subr.mxu0 0.0
      %1697 = vmatpush1.msra.mxu0 0.0
      %1698 = vmatprep.subr.mxu0 0.0
      %1699 = vmatpush1.msra.mxu0 0.0
      %1700 = vmatprep.subr.mxu0 0.0
      %1701 = vmatpush1.msra.mxu0 0.0
      %1702 = vmatprep.subr.mxu0 0.0
      %1703 = vmatpush1.msra.mxu0 0.0
      %1704 = vmatprep.subr.mxu0 0.0
      %1705 = vmatpush1.msra.mxu0 0.0
      %1706 = vmatprep.subr.mxu0 0.0
      %1707 = vmatpush1.msra.mxu0 0.0
      %1708 = vmatprep.subr.mxu0 0.0
      %1709 = vmatpush1.msra.mxu0 0.0
      %1710 = vmatprep.mubr.f32.mxu0 0.0
      %1711 = vmatmul.mubr.f32.gmra.mrb[0].mxu0 %v1502
      %v1712 = vpop.f32.mrb[0].mxu0
      %v1713 = vadd.f32 0.0, %v1712
      %v1714 = vpop.f32.mrb[0].mxu0
      %v1715 = vadd.f32 0.0, %v1714
      %1716 = vdwg.mxu0
      %1717 = vmatprep.subr.mxu0 %v1492
      %1718 = vmatpush1.msra.mxu0 %v1491
      %1719 = vmatprep.subr.mxu0 0.0
      %1720 = vmatpush1.msra.mxu0 0.0
      %1721 = vmatprep.subr.mxu0 0.0
      %1722 = vmatpush1.msra.mxu0 0.0
      %1723 = vmatprep.subr.mxu0 0.0
      %1724 = vmatpush1.msra.mxu0 0.0
      %1725 = vmatprep.subr.mxu0 0.0
      %1726 = vmatpush1.msra.mxu0 0.0
      %1727 = vmatprep.subr.mxu0 0.0
      %1728 = vmatpush1.msra.mxu0 0.0
      %1729 = vmatprep.subr.mxu0 0.0
      %1730 = vmatpush1.msra.mxu0 0.0
      %1731 = vmatprep.subr.mxu0 0.0
      %1732 = vmatpush1.msra.mxu0 0.0
      %1733 = vmatprep.subr.mxu0 0.0
      %1734 = vmatpush1.msra.mxu0 0.0
      %1735 = vmatprep.subr.mxu0 0.0
      %1736 = vmatpush1.msra.mxu0 0.0
      %1737 = vmatprep.subr.mxu0 0.0
      %1738 = vmatpush1.msra.mxu0 0.0
      %1739 = vmatprep.subr.mxu0 0.0
      %1740 = vmatpush1.msra.mxu0 0.0
      %1741 = vmatprep.subr.mxu0 0.0
      %1742 = vmatpush1.msra.mxu0 0.0
      %1743 = vmatprep.subr.mxu0 0.0
      %1744 = vmatpush1.msra.mxu0 0.0
      %1745 = vmatprep.subr.mxu0 0.0
      %1746 = vmatpush1.msra.mxu0 0.0
      %1747 = vmatprep.subr.mxu0 0.0
      %1748 = vmatpush1.msra.mxu0 0.0
      %1749 = vmatprep.subr.mxu0 0.0
      %1750 = vmatpush1.msra.mxu0 0.0
      %1751 = vmatprep.subr.mxu0 0.0
      %1752 = vmatpush1.msra.mxu0 0.0
      %1753 = vmatprep.subr.mxu0 0.0
      %1754 = vmatpush1.msra.mxu0 0.0
      %1755 = vmatprep.subr.mxu0 0.0
      %1756 = vmatpush1.msra.mxu0 0.0
      %1757 = vmatprep.subr.mxu0 0.0
      %1758 = vmatpush1.msra.mxu0 0.0
      %1759 = vmatprep.subr.mxu0 0.0
      %1760 = vmatpush1.msra.mxu0 0.0
      %1761 = vmatprep.subr.mxu0 0.0
      %1762 = vmatpush1.msra.mxu0 0.0
      %1763 = vmatprep.subr.mxu0 0.0
      %1764 = vmatpush1.msra.mxu0 0.0
      %1765 = vmatprep.subr.mxu0 0.0
      %1766 = vmatpush1.msra.mxu0 0.0
      %1767 = vmatprep.subr.mxu0 0.0
      %1768 = vmatpush1.msra.mxu0 0.0
      %1769 = vmatprep.subr.mxu0 0.0
      %1770 = vmatpush1.msra.mxu0 0.0
      %1771 = vmatprep.subr.mxu0 0.0
      %1772 = vmatpush1.msra.mxu0 0.0
      %1773 = vmatprep.subr.mxu0 0.0
      %1774 = vmatpush1.msra.mxu0 0.0
      %1775 = vmatprep.subr.mxu0 0.0
      %1776 = vmatpush1.msra.mxu0 0.0
      %1777 = vmatprep.subr.mxu0 0.0
      %1778 = vmatpush1.msra.mxu0 0.0
      %1779 = vmatprep.subr.mxu0 0.0
      %1780 = vmatpush1.msra.mxu0 0.0
      %1781 = vmatprep.mubr.f32.mxu0 0.0
      %1782 = vmatmul.mubr.f32.gmra.mrb[0].mxu0 %v1502
      %v1783 = vpop.f32.mrb[0].mxu0
      %v1784 = vadd.f32 0.0, %v1783
      %v1785 = vpop.f32.mrb[0].mxu0
      %v1786 = vadd.f32 0.0, %v1785
      %1787 = vdwg.mxu0
      %1788 = vrot.lane.b32.xlu0 %v417, 96
      %v1789 = vpop.permute.xlu0 %1788
      %1790 = vrot.lane.b32.xlu0 %v418, 96
      %v1791 = vpop.permute.xlu0 %1790
      %1792 = vrot.lane.b32.xlu0 %v419, 96
      %v1793 = vpop.permute.xlu0 %1792
      %1794 = vrot.lane.b32.xlu0 %v420, 96
      %v1795 = vpop.permute.xlu0 %1794
      %1796 = vrot.lane.b32.xlu0 %v421, 96
      %v1797 = vpop.permute.xlu0 %1796
      %1798 = vrot.lane.b32.xlu0 %v422, 96
      %v1799 = vpop.permute.xlu0 %1798
      %1800 = vrot.lane.b32.xlu0 %v423, 96
      %v1801 = vpop.permute.xlu0 %1800
      %1802 = vrot.lane.b32.xlu0 %v424, 96
      %v1803 = vpop.permute.xlu0 %1802
      %1804 = vrot.lane.b32.xlu0 %v425, 96
      %v1805 = vpop.permute.xlu0 %1804
      %vm1806 = vcmask 785408
      %v1807 = vsel %vm1806, %v1789, %v1791
      %v1808 = vsel %vm1806, %v1791, %v1793
      %v1809 = vsel %vm1806, %v1793, %v1795
      %v1810 = vsel %vm1806, %v1795, %v1797
      %v1811 = vsel %vm1806, %v1797, %v1799
      %v1812 = vsel %vm1806, %v1799, %v1801
      %v1813 = vsel %vm1806, %v1801, %v1803
      %v1814 = vsel %vm1806, %v1803, %v1805
      %v1824 = vsel %vm472, %v1464, 0
      %1826 = vmatprep.subr.mxu0 %v1808
      %1827 = vmatpush1.msra.mxu0 %v1807
      %1828 = vmatprep.subr.mxu0 0.0
      %1829 = vmatpush1.msra.mxu0 0.0
      %1830 = vmatprep.subr.mxu0 0.0
      %1831 = vmatpush1.msra.mxu0 0.0
      %1832 = vmatprep.subr.mxu0 0.0
      %1833 = vmatpush1.msra.mxu0 0.0
      %1834 = vmatprep.subr.mxu0 0.0
      %1835 = vmatpush1.msra.mxu0 0.0
      %1836 = vmatprep.subr.mxu0 0.0
      %1837 = vmatpush1.msra.mxu0 0.0
      %1838 = vmatprep.subr.mxu0 0.0
      %1839 = vmatpush1.msra.mxu0 0.0
      %1840 = vmatprep.subr.mxu0 0.0
      %1841 = vmatpush1.msra.mxu0 0.0
      %1842 = vmatprep.subr.mxu0 0.0
      %1843 = vmatpush1.msra.mxu0 0.0
      %1844 = vmatprep.subr.mxu0 0.0
      %1845 = vmatpush1.msra.mxu0 0.0
      %1846 = vmatprep.subr.mxu0 0.0
      %1847 = vmatpush1.msra.mxu0 0.0
      %1848 = vmatprep.subr.mxu0 0.0
      %1849 = vmatpush1.msra.mxu0 0.0
      %1850 = vmatprep.subr.mxu0 0.0
      %1851 = vmatpush1.msra.mxu0 0.0
      %1852 = vmatprep.subr.mxu0 0.0
      %1853 = vmatpush1.msra.mxu0 0.0
      %1854 = vmatprep.subr.mxu0 0.0
      %1855 = vmatpush1.msra.mxu0 0.0
      %1856 = vmatprep.subr.mxu0 0.0
      %1857 = vmatpush1.msra.mxu0 0.0
      %1858 = vmatprep.subr.mxu0 0.0
      %1859 = vmatpush1.msra.mxu0 0.0
      %1860 = vmatprep.subr.mxu0 0.0
      %1861 = vmatpush1.msra.mxu0 0.0
      %1862 = vmatprep.subr.mxu0 0.0
      %1863 = vmatpush1.msra.mxu0 0.0
      %1864 = vmatprep.subr.mxu0 0.0
      %1865 = vmatpush1.msra.mxu0 0.0
      %1866 = vmatprep.subr.mxu0 0.0
      %1867 = vmatpush1.msra.mxu0 0.0
      %1868 = vmatprep.subr.mxu0 0.0
      %1869 = vmatpush1.msra.mxu0 0.0
      %1870 = vmatprep.subr.mxu0 0.0
      %1871 = vmatpush1.msra.mxu0 0.0
      %1872 = vmatprep.subr.mxu0 0.0
      %1873 = vmatpush1.msra.mxu0 0.0
      %1874 = vmatprep.subr.mxu0 0.0
      %1875 = vmatpush1.msra.mxu0 0.0
      %1876 = vmatprep.subr.mxu0 0.0
      %1877 = vmatpush1.msra.mxu0 0.0
      %1878 = vmatprep.subr.mxu0 0.0
      %1879 = vmatpush1.msra.mxu0 0.0
      %1880 = vmatprep.subr.mxu0 0.0
      %1881 = vmatpush1.msra.mxu0 0.0
      %1882 = vmatprep.subr.mxu0 0.0
      %1883 = vmatpush1.msra.mxu0 0.0
      %1884 = vmatprep.subr.mxu0 0.0
      %1885 = vmatpush1.msra.mxu0 0.0
      %1886 = vmatprep.subr.mxu0 0.0
      %1887 = vmatpush1.msra.mxu0 0.0
      %1888 = vmatprep.subr.mxu0 0.0
      %1889 = vmatpush1.msra.mxu0 0.0
      %1890 = vmatprep.mubr.f32.mxu0 0.0
      %1891 = vmatmul.mubr.f32.gmra.mrb[0].mxu0 %v1824
      %v1892 = vpop.f32.mrb[0].mxu0
      %v1893 = vadd.f32 %v1571, %v1892
      %v1894 = vpop.f32.mrb[0].mxu0
      %v1895 = vadd.f32 %v1573, %v1894
      %1896 = vdwg.mxu0
      %1897 = vmatprep.subr.mxu0 %v1810
      %1898 = vmatpush1.msra.mxu0 %v1809
      %1899 = vmatprep.subr.mxu0 0.0
      %1900 = vmatpush1.msra.mxu0 0.0
      %1901 = vmatprep.subr.mxu0 0.0
      %1902 = vmatpush1.msra.mxu0 0.0
      %1903 = vmatprep.subr.mxu0 0.0
      %1904 = vmatpush1.msra.mxu0 0.0
      %1905 = vmatprep.subr.mxu0 0.0
      %1906 = vmatpush1.msra.mxu0 0.0
      %1907 = vmatprep.subr.mxu0 0.0
      %1908 = vmatpush1.msra.mxu0 0.0
      %1909 = vmatprep.subr.mxu0 0.0
      %1910 = vmatpush1.msra.mxu0 0.0
      %1911 = vmatprep.subr.mxu0 0.0
      %1912 = vmatpush1.msra.mxu0 0.0
      %1913 = vmatprep.subr.mxu0 0.0
      %1914 = vmatpush1.msra.mxu0 0.0
      %1915 = vmatprep.subr.mxu0 0.0
      %1916 = vmatpush1.msra.mxu0 0.0
      %1917 = vmatprep.subr.mxu0 0.0
      %1918 = vmatpush1.msra.mxu0 0.0
      %1919 = vmatprep.subr.mxu0 0.0
      %1920 = vmatpush1.msra.mxu0 0.0
      %1921 = vmatprep.subr.mxu0 0.0
      %1922 = vmatpush1.msra.mxu0 0.0
      %1923 = vmatprep.subr.mxu0 0.0
      %1924 = vmatpush1.msra.mxu0 0.0
      %1925 = vmatprep.subr.mxu0 0.0
      %1926 = vmatpush1.msra.mxu0 0.0
      %1927 = vmatprep.subr.mxu0 0.0
      %1928 = vmatpush1.msra.mxu0 0.0
      %1929 = vmatprep.subr.mxu0 0.0
      %1930 = vmatpush1.msra.mxu0 0.0
      %1931 = vmatprep.subr.mxu0 0.0
      %1932 = vmatpush1.msra.mxu0 0.0
      %1933 = vmatprep.subr.mxu0 0.0
      %1934 = vmatpush1.msra.mxu0 0.0
      %1935 = vmatprep.subr.mxu0 0.0
      %1936 = vmatpush1.msra.mxu0 0.0
      %1937 = vmatprep.subr.mxu0 0.0
      %1938 = vmatpush1.msra.mxu0 0.0
      %1939 = vmatprep.subr.mxu0 0.0
      %1940 = vmatpush1.msra.mxu0 0.0
      %1941 = vmatprep.subr.mxu0 0.0
      %1942 = vmatpush1.msra.mxu0 0.0
      %1943 = vmatprep.subr.mxu0 0.0
      %1944 = vmatpush1.msra.mxu0 0.0
      %1945 = vmatprep.subr.mxu0 0.0
      %1946 = vmatpush1.msra.mxu0 0.0
      %1947 = vmatprep.subr.mxu0 0.0
      %1948 = vmatpush1.msra.mxu0 0.0
      %1949 = vmatprep.subr.mxu0 0.0
      %1950 = vmatpush1.msra.mxu0 0.0
      %1951 = vmatprep.subr.mxu0 0.0
      %1952 = vmatpush1.msra.mxu0 0.0
      %1953 = vmatprep.subr.mxu0 0.0
      %1954 = vmatpush1.msra.mxu0 0.0
      %1955 = vmatprep.subr.mxu0 0.0
      %1956 = vmatpush1.msra.mxu0 0.0
      %1957 = vmatprep.subr.mxu0 0.0
      %1958 = vmatpush1.msra.mxu0 0.0
      %1959 = vmatprep.subr.mxu0 0.0
      %1960 = vmatpush1.msra.mxu0 0.0
      %1961 = vmatprep.mubr.f32.mxu0 0.0
      %1962 = vmatmul.mubr.f32.gmra.mrb[0].mxu0 %v1824
      %v1963 = vpop.f32.mrb[0].mxu0
      %v1964 = vadd.f32 %v1642, %v1963
      %v1965 = vpop.f32.mrb[0].mxu0
      %v1966 = vadd.f32 %v1644, %v1965
      %1967 = vdwg.mxu0
      %1968 = vmatprep.subr.mxu0 %v1812
      %1969 = vmatpush1.msra.mxu0 %v1811
      %1970 = vmatprep.subr.mxu0 0.0
      %1971 = vmatpush1.msra.mxu0 0.0
      %1972 = vmatprep.subr.mxu0 0.0
      %1973 = vmatpush1.msra.mxu0 0.0
      %1974 = vmatprep.subr.mxu0 0.0
      %1975 = vmatpush1.msra.mxu0 0.0
      %1976 = vmatprep.subr.mxu0 0.0
      %1977 = vmatpush1.msra.mxu0 0.0
      %1978 = vmatprep.subr.mxu0 0.0
      %1979 = vmatpush1.msra.mxu0 0.0
      %1980 = vmatprep.subr.mxu0 0.0
      %1981 = vmatpush1.msra.mxu0 0.0
      %1982 = vmatprep.subr.mxu0 0.0
      %1983 = vmatpush1.msra.mxu0 0.0
      %1984 = vmatprep.subr.mxu0 0.0
      %1985 = vmatpush1.msra.mxu0 0.0
      %1986 = vmatprep.subr.mxu0 0.0
      %1987 = vmatpush1.msra.mxu0 0.0
      %1988 = vmatprep.subr.mxu0 0.0
      %1989 = vmatpush1.msra.mxu0 0.0
      %1990 = vmatprep.subr.mxu0 0.0
      %1991 = vmatpush1.msra.mxu0 0.0
      %1992 = vmatprep.subr.mxu0 0.0
      %1993 = vmatpush1.msra.mxu0 0.0
      %1994 = vmatprep.subr.mxu0 0.0
      %1995 = vmatpush1.msra.mxu0 0.0
      %1996 = vmatprep.subr.mxu0 0.0
      %1997 = vmatpush1.msra.mxu0 0.0
      %1998 = vmatprep.subr.mxu0 0.0
      %1999 = vmatpush1.msra.mxu0 0.0
      %2000 = vmatprep.subr.mxu0 0.0
      %2001 = vmatpush1.msra.mxu0 0.0
      %2002 = vmatprep.subr.mxu0 0.0
      %2003 = vmatpush1.msra.mxu0 0.0
      %2004 = vmatprep.subr.mxu0 0.0
      %2005 = vmatpush1.msra.mxu0 0.0
      %2006 = vmatprep.subr.mxu0 0.0
      %2007 = vmatpush1.msra.mxu0 0.0
      %2008 = vmatprep.subr.mxu0 0.0
      %2009 = vmatpush1.msra.mxu0 0.0
      %2010 = vmatprep.subr.mxu0 0.0
      %2011 = vmatpush1.msra.mxu0 0.0
      %2012 = vmatprep.subr.mxu0 0.0
      %2013 = vmatpush1.msra.mxu0 0.0
      %2014 = vmatprep.subr.mxu0 0.0
      %2015 = vmatpush1.msra.mxu0 0.0
      %2016 = vmatprep.subr.mxu0 0.0
      %2017 = vmatpush1.msra.mxu0 0.0
      %2018 = vmatprep.subr.mxu0 0.0
      %2019 = vmatpush1.msra.mxu0 0.0
      %2020 = vmatprep.subr.mxu0 0.0
      %2021 = vmatpush1.msra.mxu0 0.0
      %2022 = vmatprep.subr.mxu0 0.0
      %2023 = vmatpush1.msra.mxu0 0.0
      %2024 = vmatprep.subr.mxu0 0.0
      %2025 = vmatpush1.msra.mxu0 0.0
      %2026 = vmatprep.subr.mxu0 0.0
      %2027 = vmatpush1.msra.mxu0 0.0
      %2028 = vmatprep.subr.mxu0 0.0
      %2029 = vmatpush1.msra.mxu0 0.0
      %2030 = vmatprep.subr.mxu0 0.0
      %2031 = vmatpush1.msra.mxu0 0.0
      %2032 = vmatprep.mubr.f32.mxu0 0.0
      %2033 = vmatmul.mubr.f32.gmra.mrb[0].mxu0 %v1824
      %v2034 = vpop.f32.mrb[0].mxu0
      %v2035 = vadd.f32 %v1713, %v2034
      %v2036 = vpop.f32.mrb[0].mxu0
      %v2037 = vadd.f32 %v1715, %v2036
      %2038 = vdwg.mxu0
      %2039 = vmatprep.subr.mxu0 %v1814
      %2040 = vmatpush1.msra.mxu0 %v1813
      %2041 = vmatprep.subr.mxu0 0.0
      %2042 = vmatpush1.msra.mxu0 0.0
      %2043 = vmatprep.subr.mxu0 0.0
      %2044 = vmatpush1.msra.mxu0 0.0
      %2045 = vmatprep.subr.mxu0 0.0
      %2046 = vmatpush1.msra.mxu0 0.0
      %2047 = vmatprep.subr.mxu0 0.0
      %2048 = vmatpush1.msra.mxu0 0.0
      %2049 = vmatprep.subr.mxu0 0.0
      %2050 = vmatpush1.msra.mxu0 0.0
      %2051 = vmatprep.subr.mxu0 0.0
      %2052 = vmatpush1.msra.mxu0 0.0
      %2053 = vmatprep.subr.mxu0 0.0
      %2054 = vmatpush1.msra.mxu0 0.0
      %2055 = vmatprep.subr.mxu0 0.0
      %2056 = vmatpush1.msra.mxu0 0.0
      %2057 = vmatprep.subr.mxu0 0.0
      %2058 = vmatpush1.msra.mxu0 0.0
      %2059 = vmatprep.subr.mxu0 0.0
      %2060 = vmatpush1.msra.mxu0 0.0
      %2061 = vmatprep.subr.mxu0 0.0
      %2062 = vmatpush1.msra.mxu0 0.0
      %2063 = vmatprep.subr.mxu0 0.0
      %2064 = vmatpush1.msra.mxu0 0.0
      %2065 = vmatprep.subr.mxu0 0.0
      %2066 = vmatpush1.msra.mxu0 0.0
      %2067 = vmatprep.subr.mxu0 0.0
      %2068 = vmatpush1.msra.mxu0 0.0
      %2069 = vmatprep.subr.mxu0 0.0
      %2070 = vmatpush1.msra.mxu0 0.0
      %2071 = vmatprep.subr.mxu0 0.0
      %2072 = vmatpush1.msra.mxu0 0.0
      %2073 = vmatprep.subr.mxu0 0.0
      %2074 = vmatpush1.msra.mxu0 0.0
      %2075 = vmatprep.subr.mxu0 0.0
      %2076 = vmatpush1.msra.mxu0 0.0
      %2077 = vmatprep.subr.mxu0 0.0
      %2078 = vmatpush1.msra.mxu0 0.0
      %2079 = vmatprep.subr.mxu0 0.0
      %2080 = vmatpush1.msra.mxu0 0.0
      %2081 = vmatprep.subr.mxu0 0.0
      %2082 = vmatpush1.msra.mxu0 0.0
      %2083 = vmatprep.subr.mxu0 0.0
      %2084 = vmatpush1.msra.mxu0 0.0
      %2085 = vmatprep.subr.mxu0 0.0
      %2086 = vmatpush1.msra.mxu0 0.0
      %2087 = vmatprep.subr.mxu0 0.0
      %2088 = vmatpush1.msra.mxu0 0.0
      %2089 = vmatprep.subr.mxu0 0.0
      %2090 = vmatpush1.msra.mxu0 0.0
      %2091 = vmatprep.subr.mxu0 0.0
      %2092 = vmatpush1.msra.mxu0 0.0
      %2093 = vmatprep.subr.mxu0 0.0
      %2094 = vmatpush1.msra.mxu0 0.0
      %2095 = vmatprep.subr.mxu0 0.0
      %2096 = vmatpush1.msra.mxu0 0.0
      %2097 = vmatprep.subr.mxu0 0.0
      %2098 = vmatpush1.msra.mxu0 0.0
      %2099 = vmatprep.subr.mxu0 0.0
      %2100 = vmatpush1.msra.mxu0 0.0
      %2101 = vmatprep.subr.mxu0 0.0
      %2102 = vmatpush1.msra.mxu0 0.0
      %2103 = vmatprep.mubr.f32.mxu0 0.0
      %2104 = vmatmul.mubr.f32.gmra.mrb[0].mxu0 %v1824
      %v2105 = vpop.f32.mrb[0].mxu0
      %v2106 = vadd.f32 %v1784, %v2105
      %v2107 = vpop.f32.mrb[0].mxu0
      %v2108 = vadd.f32 %v1786, %v2107
      %2109 = vdwg.mxu0
      %s2110 = scalar_lea.vmem %s3, 28
      %v2111 = vld [vmem:[%s2110] sm:$0xf]
      %2112 = vrot.lane.b32.xlu0 %v417, 32
      %v2113 = vpop.permute.xlu0 %2112
      %2114 = vrot.lane.b32.xlu0 %v418, 32
      %v2115 = vpop.permute.xlu0 %2114
      %2116 = vrot.lane.b32.xlu0 %v419, 32
      %v2117 = vpop.permute.xlu0 %2116
      %2118 = vrot.lane.b32.xlu0 %v420, 32
      %v2119 = vpop.permute.xlu0 %2118
      %2120 = vrot.lane.b32.xlu0 %v421, 32
      %v2121 = vpop.permute.xlu0 %2120
      %2122 = vrot.lane.b32.xlu0 %v422, 32
      %v2123 = vpop.permute.xlu0 %2122
      %2124 = vrot.lane.b32.xlu0 %v423, 32
      %v2125 = vpop.permute.xlu0 %2124
      %2126 = vrot.lane.b32.xlu0 %v424, 32
      %v2127 = vpop.permute.xlu0 %2126
      %2128 = vrot.lane.b32.xlu0 %v425, 32
      %v2129 = vpop.permute.xlu0 %2128
      %vm2130 = vcmask 261120
      %v2131 = vsel %vm2130, %v2113, %v2115
      %v2132 = vsel %vm2130, %v2115, %v2117
      %v2133 = vsel %vm2130, %v2117, %v2119
      %v2134 = vsel %vm2130, %v2119, %v2121
      %v2135 = vsel %vm2130, %v2121, %v2123
      %v2136 = vsel %vm2130, %v2123, %v2125
      %v2137 = vsel %vm2130, %v2125, %v2127
      %v2138 = vsel %vm2130, %v2127, %v2129
      %v2148 = vsel %vm472, %v2111, 0
      %2150 = vmatprep.subr.mxu0 %v2132
      %2151 = vmatpush1.msra.mxu0 %v2131
      %2152 = vmatprep.subr.mxu0 0.0
      %2153 = vmatpush1.msra.mxu0 0.0
      %2154 = vmatprep.subr.mxu0 0.0
      %2155 = vmatpush1.msra.mxu0 0.0
      %2156 = vmatprep.subr.mxu0 0.0
      %2157 = vmatpush1.msra.mxu0 0.0
      %2158 = vmatprep.subr.mxu0 0.0
      %2159 = vmatpush1.msra.mxu0 0.0
      %2160 = vmatprep.subr.mxu0 0.0
      %2161 = vmatpush1.msra.mxu0 0.0
      %2162 = vmatprep.subr.mxu0 0.0
      %2163 = vmatpush1.msra.mxu0 0.0
      %2164 = vmatprep.subr.mxu0 0.0
      %2165 = vmatpush1.msra.mxu0 0.0
      %2166 = vmatprep.subr.mxu0 0.0
      %2167 = vmatpush1.msra.mxu0 0.0
      %2168 = vmatprep.subr.mxu0 0.0
      %2169 = vmatpush1.msra.mxu0 0.0
      %2170 = vmatprep.subr.mxu0 0.0
      %2171 = vmatpush1.msra.mxu0 0.0
      %2172 = vmatprep.subr.mxu0 0.0
      %2173 = vmatpush1.msra.mxu0 0.0
      %2174 = vmatprep.subr.mxu0 0.0
      %2175 = vmatpush1.msra.mxu0 0.0
      %2176 = vmatprep.subr.mxu0 0.0
      %2177 = vmatpush1.msra.mxu0 0.0
      %2178 = vmatprep.subr.mxu0 0.0
      %2179 = vmatpush1.msra.mxu0 0.0
      %2180 = vmatprep.subr.mxu0 0.0
      %2181 = vmatpush1.msra.mxu0 0.0
      %2182 = vmatprep.subr.mxu0 0.0
      %2183 = vmatpush1.msra.mxu0 0.0
      %2184 = vmatprep.subr.mxu0 0.0
      %2185 = vmatpush1.msra.mxu0 0.0
      %2186 = vmatprep.subr.mxu0 0.0
      %2187 = vmatpush1.msra.mxu0 0.0
      %2188 = vmatprep.subr.mxu0 0.0
      %2189 = vmatpush1.msra.mxu0 0.0
      %2190 = vmatprep.subr.mxu0 0.0
      %2191 = vmatpush1.msra.mxu0 0.0
      %2192 = vmatprep.subr.mxu0 0.0
      %2193 = vmatpush1.msra.mxu0 0.0
      %2194 = vmatprep.subr.mxu0 0.0
      %2195 = vmatpush1.msra.mxu0 0.0
      %2196 = vmatprep.subr.mxu0 0.0
      %2197 = vmatpush1.msra.mxu0 0.0
      %2198 = vmatprep.subr.mxu0 0.0
      %2199 = vmatpush1.msra.mxu0 0.0
      %2200 = vmatprep.subr.mxu0 0.0
      %2201 = vmatpush1.msra.mxu0 0.0
      %2202 = vmatprep.subr.mxu0 0.0
      %2203 = vmatpush1.msra.mxu0 0.0
      %2204 = vmatprep.subr.mxu0 0.0
      %2205 = vmatpush1.msra.mxu0 0.0
      %2206 = vmatprep.subr.mxu0 0.0
      %2207 = vmatpush1.msra.mxu0 0.0
      %2208 = vmatprep.subr.mxu0 0.0
      %2209 = vmatpush1.msra.mxu0 0.0
      %2210 = vmatprep.subr.mxu0 0.0
      %2211 = vmatpush1.msra.mxu0 0.0
      %2212 = vmatprep.subr.mxu0 0.0
      %2213 = vmatpush1.msra.mxu0 0.0
      %2214 = vmatprep.mubr.f32.mxu0 0.0
      %2215 = vmatmul.mubr.f32.gmra.mrb[0].mxu0 %v2148
      %v2216 = vpop.f32.mrb[0].mxu0
      %v2217 = vadd.f32 0.0, %v2216
      %v2218 = vpop.f32.mrb[0].mxu0
      %v2219 = vadd.f32 0.0, %v2218
      %2220 = vdwg.mxu0
      %2221 = vmatprep.subr.mxu0 %v2134
      %2222 = vmatpush1.msra.mxu0 %v2133
      %2223 = vmatprep.subr.mxu0 0.0
      %2224 = vmatpush1.msra.mxu0 0.0
      %2225 = vmatprep.subr.mxu0 0.0
      %2226 = vmatpush1.msra.mxu0 0.0
      %2227 = vmatprep.subr.mxu0 0.0
      %2228 = vmatpush1.msra.mxu0 0.0
      %2229 = vmatprep.subr.mxu0 0.0
      %2230 = vmatpush1.msra.mxu0 0.0
      %2231 = vmatprep.subr.mxu0 0.0
      %2232 = vmatpush1.msra.mxu0 0.0
      %2233 = vmatprep.subr.mxu0 0.0
      %2234 = vmatpush1.msra.mxu0 0.0
      %2235 = vmatprep.subr.mxu0 0.0
      %2236 = vmatpush1.msra.mxu0 0.0
      %2237 = vmatprep.subr.mxu0 0.0
      %2238 = vmatpush1.msra.mxu0 0.0
      %2239 = vmatprep.subr.mxu0 0.0
      %2240 = vmatpush1.msra.mxu0 0.0
      %2241 = vmatprep.subr.mxu0 0.0
      %2242 = vmatpush1.msra.mxu0 0.0
      %2243 = vmatprep.subr.mxu0 0.0
      %2244 = vmatpush1.msra.mxu0 0.0
      %2245 = vmatprep.subr.mxu0 0.0
      %2246 = vmatpush1.msra.mxu0 0.0
      %2247 = vmatprep.subr.mxu0 0.0
      %2248 = vmatpush1.msra.mxu0 0.0
      %2249 = vmatprep.subr.mxu0 0.0
      %2250 = vmatpush1.msra.mxu0 0.0
      %2251 = vmatprep.subr.mxu0 0.0
      %2252 = vmatpush1.msra.mxu0 0.0
      %2253 = vmatprep.subr.mxu0 0.0
      %2254 = vmatpush1.msra.mxu0 0.0
      %2255 = vmatprep.subr.mxu0 0.0
      %2256 = vmatpush1.msra.mxu0 0.0
      %2257 = vmatprep.subr.mxu0 0.0
      %2258 = vmatpush1.msra.mxu0 0.0
      %2259 = vmatprep.subr.mxu0 0.0
      %2260 = vmatpush1.msra.mxu0 0.0
      %2261 = vmatprep.subr.mxu0 0.0
      %2262 = vmatpush1.msra.mxu0 0.0
      %2263 = vmatprep.subr.mxu0 0.0
      %2264 = vmatpush1.msra.mxu0 0.0
      %2265 = vmatprep.subr.mxu0 0.0
      %2266 = vmatpush1.msra.mxu0 0.0
      %2267 = vmatprep.subr.mxu0 0.0
      %2268 = vmatpush1.msra.mxu0 0.0
      %2269 = vmatprep.subr.mxu0 0.0
      %2270 = vmatpush1.msra.mxu0 0.0
      %2271 = vmatprep.subr.mxu0 0.0
      %2272 = vmatpush1.msra.mxu0 0.0
      %2273 = vmatprep.subr.mxu0 0.0
      %2274 = vmatpush1.msra.mxu0 0.0
      %2275 = vmatprep.subr.mxu0 0.0
      %2276 = vmatpush1.msra.mxu0 0.0
      %2277 = vmatprep.subr.mxu0 0.0
      %2278 = vmatpush1.msra.mxu0 0.0
      %2279 = vmatprep.subr.mxu0 0.0
      %2280 = vmatpush1.msra.mxu0 0.0
      %2281 = vmatprep.subr.mxu0 0.0
      %2282 = vmatpush1.msra.mxu0 0.0
      %2283 = vmatprep.subr.mxu0 0.0
      %2284 = vmatpush1.msra.mxu0 0.0
      %2285 = vmatprep.mubr.f32.mxu0 0.0
      %2286 = vmatmul.mubr.f32.gmra.mrb[0].mxu0 %v2148
      %v2287 = vpop.f32.mrb[0].mxu0
      %v2288 = vadd.f32 0.0, %v2287
      %v2289 = vpop.f32.mrb[0].mxu0
      %v2290 = vadd.f32 0.0, %v2289
      %2291 = vdwg.mxu0
      %2292 = vmatprep.subr.mxu0 %v2136
      %2293 = vmatpush1.msra.mxu0 %v2135
      %2294 = vmatprep.subr.mxu0 0.0
      %2295 = vmatpush1.msra.mxu0 0.0
      %2296 = vmatprep.subr.mxu0 0.0
      %2297 = vmatpush1.msra.mxu0 0.0
      %2298 = vmatprep.subr.mxu0 0.0
      %2299 = vmatpush1.msra.mxu0 0.0
      %2300 = vmatprep.subr.mxu0 0.0
      %2301 = vmatpush1.msra.mxu0 0.0
      %2302 = vmatprep.subr.mxu0 0.0
      %2303 = vmatpush1.msra.mxu0 0.0
      %2304 = vmatprep.subr.mxu0 0.0
      %2305 = vmatpush1.msra.mxu0 0.0
      %2306 = vmatprep.subr.mxu0 0.0
      %2307 = vmatpush1.msra.mxu0 0.0
      %2308 = vmatprep.subr.mxu0 0.0
      %2309 = vmatpush1.msra.mxu0 0.0
      %2310 = vmatprep.subr.mxu0 0.0
      %2311 = vmatpush1.msra.mxu0 0.0
      %2312 = vmatprep.subr.mxu0 0.0
      %2313 = vmatpush1.msra.mxu0 0.0
      %2314 = vmatprep.subr.mxu0 0.0
      %2315 = vmatpush1.msra.mxu0 0.0
      %2316 = vmatprep.subr.mxu0 0.0
      %2317 = vmatpush1.msra.mxu0 0.0
      %2318 = vmatprep.subr.mxu0 0.0
      %2319 = vmatpush1.msra.mxu0 0.0
      %2320 = vmatprep.subr.mxu0 0.0
      %2321 = vmatpush1.msra.mxu0 0.0
      %2322 = vmatprep.subr.mxu0 0.0
      %2323 = vmatpush1.msra.mxu0 0.0
      %2324 = vmatprep.subr.mxu0 0.0
      %2325 = vmatpush1.msra.mxu0 0.0
      %2326 = vmatprep.subr.mxu0 0.0
      %2327 = vmatpush1.msra.mxu0 0.0
      %2328 = vmatprep.subr.mxu0 0.0
      %2329 = vmatpush1.msra.mxu0 0.0
      %2330 = vmatprep.subr.mxu0 0.0
      %2331 = vmatpush1.msra.mxu0 0.0
      %2332 = vmatprep.subr.mxu0 0.0
      %2333 = vmatpush1.msra.mxu0 0.0
      %2334 = vmatprep.subr.mxu0 0.0
      %2335 = vmatpush1.msra.mxu0 0.0
      %2336 = vmatprep.subr.mxu0 0.0
      %2337 = vmatpush1.msra.mxu0 0.0
      %2338 = vmatprep.subr.mxu0 0.0
      %2339 = vmatpush1.msra.mxu0 0.0
      %2340 = vmatprep.subr.mxu0 0.0
      %2341 = vmatpush1.msra.mxu0 0.0
      %2342 = vmatprep.subr.mxu0 0.0
      %2343 = vmatpush1.msra.mxu0 0.0
      %2344 = vmatprep.subr.mxu0 0.0
      %2345 = vmatpush1.msra.mxu0 0.0
      %2346 = vmatprep.subr.mxu0 0.0
      %2347 = vmatpush1.msra.mxu0 0.0
      %2348 = vmatprep.subr.mxu0 0.0
      %2349 = vmatpush1.msra.mxu0 0.0
      %2350 = vmatprep.subr.mxu0 0.0
      %2351 = vmatpush1.msra.mxu0 0.0
      %2352 = vmatprep.subr.mxu0 0.0
      %2353 = vmatpush1.msra.mxu0 0.0
      %2354 = vmatprep.subr.mxu0 0.0
      %2355 = vmatpush1.msra.mxu0 0.0
      %2356 = vmatprep.mubr.f32.mxu0 0.0
      %2357 = vmatmul.mubr.f32.gmra.mrb[0].mxu0 %v2148
      %v2358 = vpop.f32.mrb[0].mxu0
      %v2359 = vadd.f32 0.0, %v2358
      %v2360 = vpop.f32.mrb[0].mxu0
      %v2361 = vadd.f32 0.0, %v2360
      %2362 = vdwg.mxu0
      %2363 = vmatprep.subr.mxu0 %v2138
      %2364 = vmatpush1.msra.mxu0 %v2137
      %2365 = vmatprep.subr.mxu0 0.0
      %2366 = vmatpush1.msra.mxu0 0.0
      %2367 = vmatprep.subr.mxu0 0.0
      %2368 = vmatpush1.msra.mxu0 0.0
      %2369 = vmatprep.subr.mxu0 0.0
      %2370 = vmatpush1.msra.mxu0 0.0
      %2371 = vmatprep.subr.mxu0 0.0
      %2372 = vmatpush1.msra.mxu0 0.0
      %2373 = vmatprep.subr.mxu0 0.0
      %2374 = vmatpush1.msra.mxu0 0.0
      %2375 = vmatprep.subr.mxu0 0.0
      %2376 = vmatpush1.msra.mxu0 0.0
      %2377 = vmatprep.subr.mxu0 0.0
      %2378 = vmatpush1.msra.mxu0 0.0
      %2379 = vmatprep.subr.mxu0 0.0
      %2380 = vmatpush1.msra.mxu0 0.0
      %2381 = vmatprep.subr.mxu0 0.0
      %2382 = vmatpush1.msra.mxu0 0.0
      %2383 = vmatprep.subr.mxu0 0.0
      %2384 = vmatpush1.msra.mxu0 0.0
      %2385 = vmatprep.subr.mxu0 0.0
      %2386 = vmatpush1.msra.mxu0 0.0
      %2387 = vmatprep.subr.mxu0 0.0
      %2388 = vmatpush1.msra.mxu0 0.0
      %2389 = vmatprep.subr.mxu0 0.0
      %2390 = vmatpush1.msra.mxu0 0.0
      %2391 = vmatprep.subr.mxu0 0.0
      %2392 = vmatpush1.msra.mxu0 0.0
      %2393 = vmatprep.subr.mxu0 0.0
      %2394 = vmatpush1.msra.mxu0 0.0
      %2395 = vmatprep.subr.mxu0 0.0
      %2396 = vmatpush1.msra.mxu0 0.0
      %2397 = vmatprep.subr.mxu0 0.0
      %2398 = vmatpush1.msra.mxu0 0.0
      %2399 = vmatprep.subr.mxu0 0.0
      %2400 = vmatpush1.msra.mxu0 0.0
      %2401 = vmatprep.subr.mxu0 0.0
      %2402 = vmatpush1.msra.mxu0 0.0
      %2403 = vmatprep.subr.mxu0 0.0
      %2404 = vmatpush1.msra.mxu0 0.0
      %2405 = vmatprep.subr.mxu0 0.0
      %2406 = vmatpush1.msra.mxu0 0.0
      %2407 = vmatprep.subr.mxu0 0.0
      %2408 = vmatpush1.msra.mxu0 0.0
      %2409 = vmatprep.subr.mxu0 0.0
      %2410 = vmatpush1.msra.mxu0 0.0
      %2411 = vmatprep.subr.mxu0 0.0
      %2412 = vmatpush1.msra.mxu0 0.0
      %2413 = vmatprep.subr.mxu0 0.0
      %2414 = vmatpush1.msra.mxu0 0.0
      %2415 = vmatprep.subr.mxu0 0.0
      %2416 = vmatpush1.msra.mxu0 0.0
      %2417 = vmatprep.subr.mxu0 0.0
      %2418 = vmatpush1.msra.mxu0 0.0
      %2419 = vmatprep.subr.mxu0 0.0
      %2420 = vmatpush1.msra.mxu0 0.0
      %2421 = vmatprep.subr.mxu0 0.0
      %2422 = vmatpush1.msra.mxu0 0.0
      %2423 = vmatprep.subr.mxu0 0.0
      %2424 = vmatpush1.msra.mxu0 0.0
      %2425 = vmatprep.subr.mxu0 0.0
      %2426 = vmatpush1.msra.mxu0 0.0
      %2427 = vmatprep.mubr.f32.mxu0 0.0
      %2428 = vmatmul.mubr.f32.gmra.mrb[0].mxu0 %v2148
      %v2429 = vpop.f32.mrb[0].mxu0
      %v2430 = vadd.f32 0.0, %v2429
      %v2431 = vpop.f32.mrb[0].mxu0
      %v2432 = vadd.f32 0.0, %v2431
      %2433 = vdwg.mxu0
      %v2434 = vadd.f32 %v1893, %v2217
      %v2435 = vadd.f32 %v1895, %v2219
      %v2436 = vadd.f32 %v1964, %v2288
      %v2437 = vadd.f32 %v1966, %v2290
      %v2438 = vadd.f32 %v2035, %v2359
      %v2439 = vadd.f32 %v2037, %v2361
      %v2440 = vadd.f32 %v2106, %v2430
      %v2441 = vadd.f32 %v2108, %v2432
      %v2442 = vadd.f32 %v1455, %v2434
      %v2443 = vadd.f32 %v1456, %v2435
      %v2444 = vadd.f32 %v1457, %v2436
      %v2445 = vadd.f32 %v1458, %v2437
      %v2446 = vadd.f32 %v1459, %v2438
      %v2447 = vadd.f32 %v1460, %v2439
      %v2448 = vadd.f32 %v1461, %v2440
      %v2449 = vadd.f32 %v1462, %v2441
      %s2450 = scalar_lea.vmem %s3, 8
      %v2451 = vld [vmem:[%s2450] sm:$0xf]
      %s2452 = scalar_lea.vmem %s3, 20
      %v2453 = vld [vmem:[%s2452] sm:$0xf]
      %2454 = vrot.lane.b32.xlu0 %v417, 63
      %v2455 = vpop.permute.xlu0 %2454
      %2456 = vrot.lane.b32.xlu0 %v418, 63
      %v2457 = vpop.permute.xlu0 %2456
      %2458 = vrot.lane.b32.xlu0 %v419, 63
      %v2459 = vpop.permute.xlu0 %2458
      %2460 = vrot.lane.b32.xlu0 %v420, 63
      %v2461 = vpop.permute.xlu0 %2460
      %2462 = vrot.lane.b32.xlu0 %v421, 63
      %v2463 = vpop.permute.xlu0 %2462
      %2464 = vrot.lane.b32.xlu0 %v422, 63
      %v2465 = vpop.permute.xlu0 %2464
      %2466 = vrot.lane.b32.xlu0 %v423, 63
      %v2467 = vpop.permute.xlu0 %2466
      %2468 = vrot.lane.b32.xlu0 %v424, 63
      %v2469 = vpop.permute.xlu0 %2468
      %2470 = vrot.lane.b32.xlu0 %v425, 63
      %v2471 = vpop.permute.xlu0 %2470
      %vm2472 = vcmask 515072
      %v2473 = vsel %vm2472, %v2455, %v2457
      %v2474 = vsel %vm2472, %v2457, %v2459
      %v2475 = vsel %vm2472, %v2459, %v2461
      %v2476 = vsel %vm2472, %v2461, %v2463
      %v2477 = vsel %vm2472, %v2463, %v2465
      %v2478 = vsel %vm2472, %v2465, %v2467
      %v2479 = vsel %vm2472, %v2467, %v2469
      %v2480 = vsel %vm2472, %v2469, %v2471
      %v2490 = vsel %vm472, %v2453, 0
      %2492 = vmatprep.subr.mxu0 %v2474
      %2493 = vmatpush1.msra.mxu0 %v2473
      %2494 = vmatprep.subr.mxu0 0.0
      %2495 = vmatpush1.msra.mxu0 0.0
      %2496 = vmatprep.subr.mxu0 0.0
      %2497 = vmatpush1.msra.mxu0 0.0
      %2498 = vmatprep.subr.mxu0 0.0
      %2499 = vmatpush1.msra.mxu0 0.0
      %2500 = vmatprep.subr.mxu0 0.0
      %2501 = vmatpush1.msra.mxu0 0.0
      %2502 = vmatprep.subr.mxu0 0.0
      %2503 = vmatpush1.msra.mxu0 0.0
      %2504 = vmatprep.subr.mxu0 0.0
      %2505 = vmatpush1.msra.mxu0 0.0
      %2506 = vmatprep.subr.mxu0 0.0
      %2507 = vmatpush1.msra.mxu0 0.0
      %2508 = vmatprep.subr.mxu0 0.0
      %2509 = vmatpush1.msra.mxu0 0.0
      %2510 = vmatprep.subr.mxu0 0.0
      %2511 = vmatpush1.msra.mxu0 0.0
      %2512 = vmatprep.subr.mxu0 0.0
      %2513 = vmatpush1.msra.mxu0 0.0
      %2514 = vmatprep.subr.mxu0 0.0
      %2515 = vmatpush1.msra.mxu0 0.0
      %2516 = vmatprep.subr.mxu0 0.0
      %2517 = vmatpush1.msra.mxu0 0.0
      %2518 = vmatprep.subr.mxu0 0.0
      %2519 = vmatpush1.msra.mxu0 0.0
      %2520 = vmatprep.subr.mxu0 0.0
      %2521 = vmatpush1.msra.mxu0 0.0
      %2522 = vmatprep.subr.mxu0 0.0
      %2523 = vmatpush1.msra.mxu0 0.0
      %2524 = vmatprep.subr.mxu0 0.0
      %2525 = vmatpush1.msra.mxu0 0.0
      %2526 = vmatprep.subr.mxu0 0.0
      %2527 = vmatpush1.msra.mxu0 0.0
      %2528 = vmatprep.subr.mxu0 0.0
      %2529 = vmatpush1.msra.mxu0 0.0
      %2530 = vmatprep.subr.mxu0 0.0
      %2531 = vmatpush1.msra.mxu0 0.0
      %2532 = vmatprep.subr.mxu0 0.0
      %2533 = vmatpush1.msra.mxu0 0.0
      %2534 = vmatprep.subr.mxu0 0.0
      %2535 = vmatpush1.msra.mxu0 0.0
      %2536 = vmatprep.subr.mxu0 0.0
      %2537 = vmatpush1.msra.mxu0 0.0
      %2538 = vmatprep.subr.mxu0 0.0
      %2539 = vmatpush1.msra.mxu0 0.0
      %2540 = vmatprep.subr.mxu0 0.0
      %2541 = vmatpush1.msra.mxu0 0.0
      %2542 = vmatprep.subr.mxu0 0.0
      %2543 = vmatpush1.msra.mxu0 0.0
      %2544 = vmatprep.subr.mxu0 0.0
      %2545 = vmatpush1.msra.mxu0 0.0
      %2546 = vmatprep.subr.mxu0 0.0
      %2547 = vmatpush1.msra.mxu0 0.0
      %2548 = vmatprep.subr.mxu0 0.0
      %2549 = vmatpush1.msra.mxu0 0.0
      %2550 = vmatprep.subr.mxu0 0.0
      %2551 = vmatpush1.msra.mxu0 0.0
      %2552 = vmatprep.subr.mxu0 0.0
      %2553 = vmatpush1.msra.mxu0 0.0
      %2554 = vmatprep.subr.mxu0 0.0
      %2555 = vmatpush1.msra.mxu0 0.0
      %2556 = vmatprep.mubr.f32.mxu0 0.0
      %2557 = vmatmul.mubr.f32.gmra.mrb[0].mxu0 %v2490
      %v2558 = vpop.f32.mrb[0].mxu0
      %v2559 = vadd.f32 0.0, %v2558
      %v2560 = vpop.f32.mrb[0].mxu0
      %v2561 = vadd.f32 0.0, %v2560
      %2562 = vdwg.mxu0
      %2563 = vmatprep.subr.mxu0 %v2476
      %2564 = vmatpush1.msra.mxu0 %v2475
      %2565 = vmatprep.subr.mxu0 0.0
      %2566 = vmatpush1.msra.mxu0 0.0
      %2567 = vmatprep.subr.mxu0 0.0
      %2568 = vmatpush1.msra.mxu0 0.0
      %2569 = vmatprep.subr.mxu0 0.0
      %2570 = vmatpush1.msra.mxu0 0.0
      %2571 = vmatprep.subr.mxu0 0.0
      %2572 = vmatpush1.msra.mxu0 0.0
      %2573 = vmatprep.subr.mxu0 0.0
      %2574 = vmatpush1.msra.mxu0 0.0
      %2575 = vmatprep.subr.mxu0 0.0
      %2576 = vmatpush1.msra.mxu0 0.0
      %2577 = vmatprep.subr.mxu0 0.0
      %2578 = vmatpush1.msra.mxu0 0.0
      %2579 = vmatprep.subr.mxu0 0.0
      %2580 = vmatpush1.msra.mxu0 0.0
      %2581 = vmatprep.subr.mxu0 0.0
      %2582 = vmatpush1.msra.mxu0 0.0
      %2583 = vmatprep.subr.mxu0 0.0
      %2584 = vmatpush1.msra.mxu0 0.0
      %2585 = vmatprep.subr.mxu0 0.0
      %2586 = vmatpush1.msra.mxu0 0.0
      %2587 = vmatprep.subr.mxu0 0.0
      %2588 = vmatpush1.msra.mxu0 0.0
      %2589 = vmatprep.subr.mxu0 0.0
      %2590 = vmatpush1.msra.mxu0 0.0
      %2591 = vmatprep.subr.mxu0 0.0
      %2592 = vmatpush1.msra.mxu0 0.0
      %2593 = vmatprep.subr.mxu0 0.0
      %2594 = vmatpush1.msra.mxu0 0.0
      %2595 = vmatprep.subr.mxu0 0.0
      %2596 = vmatpush1.msra.mxu0 0.0
      %2597 = vmatprep.subr.mxu0 0.0
      %2598 = vmatpush1.msra.mxu0 0.0
      %2599 = vmatprep.subr.mxu0 0.0
      %2600 = vmatpush1.msra.mxu0 0.0
      %2601 = vmatprep.subr.mxu0 0.0
      %2602 = vmatpush1.msra.mxu0 0.0
      %2603 = vmatprep.subr.mxu0 0.0
      %2604 = vmatpush1.msra.mxu0 0.0
      %2605 = vmatprep.subr.mxu0 0.0
      %2606 = vmatpush1.msra.mxu0 0.0
      %2607 = vmatprep.subr.mxu0 0.0
      %2608 = vmatpush1.msra.mxu0 0.0
      %2609 = vmatprep.subr.mxu0 0.0
      %2610 = vmatpush1.msra.mxu0 0.0
      %2611 = vmatprep.subr.mxu0 0.0
      %2612 = vmatpush1.msra.mxu0 0.0
      %2613 = vmatprep.subr.mxu0 0.0
      %2614 = vmatpush1.msra.mxu0 0.0
      %2615 = vmatprep.subr.mxu0 0.0
      %2616 = vmatpush1.msra.mxu0 0.0
      %2617 = vmatprep.subr.mxu0 0.0
      %2618 = vmatpush1.msra.mxu0 0.0
      %2619 = vmatprep.subr.mxu0 0.0
      %2620 = vmatpush1.msra.mxu0 0.0
      %2621 = vmatprep.subr.mxu0 0.0
      %2622 = vmatpush1.msra.mxu0 0.0
      %2623 = vmatprep.subr.mxu0 0.0
      %2624 = vmatpush1.msra.mxu0 0.0
      %2625 = vmatprep.subr.mxu0 0.0
      %2626 = vmatpush1.msra.mxu0 0.0
      %2627 = vmatprep.mubr.f32.mxu0 0.0
      %2628 = vmatmul.mubr.f32.gmra.mrb[0].mxu0 %v2490
      %v2629 = vpop.f32.mrb[0].mxu0
      %v2630 = vadd.f32 0.0, %v2629
      %v2631 = vpop.f32.mrb[0].mxu0
      %v2632 = vadd.f32 0.0, %v2631
      %2633 = vdwg.mxu0
      %2634 = vmatprep.subr.mxu0 %v2478
      %2635 = vmatpush1.msra.mxu0 %v2477
      %2636 = vmatprep.subr.mxu0 0.0
      %2637 = vmatpush1.msra.mxu0 0.0
      %2638 = vmatprep.subr.mxu0 0.0
      %2639 = vmatpush1.msra.mxu0 0.0
      %2640 = vmatprep.subr.mxu0 0.0
      %2641 = vmatpush1.msra.mxu0 0.0
      %2642 = vmatprep.subr.mxu0 0.0
      %2643 = vmatpush1.msra.mxu0 0.0
      %2644 = vmatprep.subr.mxu0 0.0
      %2645 = vmatpush1.msra.mxu0 0.0
      %2646 = vmatprep.subr.mxu0 0.0
      %2647 = vmatpush1.msra.mxu0 0.0
      %2648 = vmatprep.subr.mxu0 0.0
      %2649 = vmatpush1.msra.mxu0 0.0
      %2650 = vmatprep.subr.mxu0 0.0
      %2651 = vmatpush1.msra.mxu0 0.0
      %2652 = vmatprep.subr.mxu0 0.0
      %2653 = vmatpush1.msra.mxu0 0.0
      %2654 = vmatprep.subr.mxu0 0.0
      %2655 = vmatpush1.msra.mxu0 0.0
      %2656 = vmatprep.subr.mxu0 0.0
      %2657 = vmatpush1.msra.mxu0 0.0
      %2658 = vmatprep.subr.mxu0 0.0
      %2659 = vmatpush1.msra.mxu0 0.0
      %2660 = vmatprep.subr.mxu0 0.0
      %2661 = vmatpush1.msra.mxu0 0.0
      %2662 = vmatprep.subr.mxu0 0.0
      %2663 = vmatpush1.msra.mxu0 0.0
      %2664 = vmatprep.subr.mxu0 0.0
      %2665 = vmatpush1.msra.mxu0 0.0
      %2666 = vmatprep.subr.mxu0 0.0
      %2667 = vmatpush1.msra.mxu0 0.0
      %2668 = vmatprep.subr.mxu0 0.0
      %2669 = vmatpush1.msra.mxu0 0.0
      %2670 = vmatprep.subr.mxu0 0.0
      %2671 = vmatpush1.msra.mxu0 0.0
      %2672 = vmatprep.subr.mxu0 0.0
      %2673 = vmatpush1.msra.mxu0 0.0
      %2674 = vmatprep.subr.mxu0 0.0
      %2675 = vmatpush1.msra.mxu0 0.0
      %2676 = vmatprep.subr.mxu0 0.0
      %2677 = vmatpush1.msra.mxu0 0.0
      %2678 = vmatprep.subr.mxu0 0.0
      %2679 = vmatpush1.msra.mxu0 0.0
      %2680 = vmatprep.subr.mxu0 0.0
      %2681 = vmatpush1.msra.mxu0 0.0
      %2682 = vmatprep.subr.mxu0 0.0
      %2683 = vmatpush1.msra.mxu0 0.0
      %2684 = vmatprep.subr.mxu0 0.0
      %2685 = vmatpush1.msra.mxu0 0.0
      %2686 = vmatprep.subr.mxu0 0.0
      %2687 = vmatpush1.msra.mxu0 0.0
      %2688 = vmatprep.subr.mxu0 0.0
      %2689 = vmatpush1.msra.mxu0 0.0
      %2690 = vmatprep.subr.mxu0 0.0
      %2691 = vmatpush1.msra.mxu0 0.0
      %2692 = vmatprep.subr.mxu0 0.0
      %2693 = vmatpush1.msra.mxu0 0.0
      %2694 = vmatprep.subr.mxu0 0.0
      %2695 = vmatpush1.msra.mxu0 0.0
      %2696 = vmatprep.subr.mxu0 0.0
      %2697 = vmatpush1.msra.mxu0 0.0
      %2698 = vmatprep.mubr.f32.mxu0 0.0
      %2699 = vmatmul.mubr.f32.gmra.mrb[0].mxu0 %v2490
      %v2700 = vpop.f32.mrb[0].mxu0
      %v2701 = vadd.f32 0.0, %v2700
      %v2702 = vpop.f32.mrb[0].mxu0
      %v2703 = vadd.f32 0.0, %v2702
      %2704 = vdwg.mxu0
      %2705 = vmatprep.subr.mxu0 %v2480
      %2706 = vmatpush1.msra.mxu0 %v2479
      %2707 = vmatprep.subr.mxu0 0.0
      %2708 = vmatpush1.msra.mxu0 0.0
      %2709 = vmatprep.subr.mxu0 0.0
      %2710 = vmatpush1.msra.mxu0 0.0
      %2711 = vmatprep.subr.mxu0 0.0
      %2712 = vmatpush1.msra.mxu0 0.0
      %2713 = vmatprep.subr.mxu0 0.0
      %2714 = vmatpush1.msra.mxu0 0.0
      %2715 = vmatprep.subr.mxu0 0.0
      %2716 = vmatpush1.msra.mxu0 0.0
      %2717 = vmatprep.subr.mxu0 0.0
      %2718 = vmatpush1.msra.mxu0 0.0
      %2719 = vmatprep.subr.mxu0 0.0
      %2720 = vmatpush1.msra.mxu0 0.0
      %2721 = vmatprep.subr.mxu0 0.0
      %2722 = vmatpush1.msra.mxu0 0.0
      %2723 = vmatprep.subr.mxu0 0.0
      %2724 = vmatpush1.msra.mxu0 0.0
      %2725 = vmatprep.subr.mxu0 0.0
      %2726 = vmatpush1.msra.mxu0 0.0
      %2727 = vmatprep.subr.mxu0 0.0
      %2728 = vmatpush1.msra.mxu0 0.0
      %2729 = vmatprep.subr.mxu0 0.0
      %2730 = vmatpush1.msra.mxu0 0.0
      %2731 = vmatprep.subr.mxu0 0.0
      %2732 = vmatpush1.msra.mxu0 0.0
      %2733 = vmatprep.subr.mxu0 0.0
      %2734 = vmatpush1.msra.mxu0 0.0
      %2735 = vmatprep.subr.mxu0 0.0
      %2736 = vmatpush1.msra.mxu0 0.0
      %2737 = vmatprep.subr.mxu0 0.0
      %2738 = vmatpush1.msra.mxu0 0.0
      %2739 = vmatprep.subr.mxu0 0.0
      %2740 = vmatpush1.msra.mxu0 0.0
      %2741 = vmatprep.subr.mxu0 0.0
      %2742 = vmatpush1.msra.mxu0 0.0
      %2743 = vmatprep.subr.mxu0 0.0
      %2744 = vmatpush1.msra.mxu0 0.0
      %2745 = vmatprep.subr.mxu0 0.0
      %2746 = vmatpush1.msra.mxu0 0.0
      %2747 = vmatprep.subr.mxu0 0.0
      %2748 = vmatpush1.msra.mxu0 0.0
      %2749 = vmatprep.subr.mxu0 0.0
      %2750 = vmatpush1.msra.mxu0 0.0
      %2751 = vmatprep.subr.mxu0 0.0
      %2752 = vmatpush1.msra.mxu0 0.0
      %2753 = vmatprep.subr.mxu0 0.0
      %2754 = vmatpush1.msra.mxu0 0.0
      %2755 = vmatprep.subr.mxu0 0.0
      %2756 = vmatpush1.msra.mxu0 0.0
      %2757 = vmatprep.subr.mxu0 0.0
      %2758 = vmatpush1.msra.mxu0 0.0
      %2759 = vmatprep.subr.mxu0 0.0
      %2760 = vmatpush1.msra.mxu0 0.0
      %2761 = vmatprep.subr.mxu0 0.0
      %2762 = vmatpush1.msra.mxu0 0.0
      %2763 = vmatprep.subr.mxu0 0.0
      %2764 = vmatpush1.msra.mxu0 0.0
      %2765 = vmatprep.subr.mxu0 0.0
      %2766 = vmatpush1.msra.mxu0 0.0
      %2767 = vmatprep.subr.mxu0 0.0
      %2768 = vmatpush1.msra.mxu0 0.0
      %2769 = vmatprep.mubr.f32.mxu0 0.0
      %2770 = vmatmul.mubr.f32.gmra.mrb[0].mxu0 %v2490
      %v2771 = vpop.f32.mrb[0].mxu0
      %v2772 = vadd.f32 0.0, %v2771
      %v2773 = vpop.f32.mrb[0].mxu0
      %v2774 = vadd.f32 0.0, %v2773
      %2775 = vdwg.mxu0
      %2776 = vrot.lane.b32.xlu0 %v417, 95
      %v2777 = vpop.permute.xlu0 %2776
      %2778 = vrot.lane.b32.xlu0 %v418, 95
      %v2779 = vpop.permute.xlu0 %2778
      %2780 = vrot.lane.b32.xlu0 %v419, 95
      %v2781 = vpop.permute.xlu0 %2780
      %2782 = vrot.lane.b32.xlu0 %v420, 95
      %v2783 = vpop.permute.xlu0 %2782
      %2784 = vrot.lane.b32.xlu0 %v421, 95
      %v2785 = vpop.permute.xlu0 %2784
      %2786 = vrot.lane.b32.xlu0 %v422, 95
      %v2787 = vpop.permute.xlu0 %2786
      %2788 = vrot.lane.b32.xlu0 %v423, 95
      %v2789 = vpop.permute.xlu0 %2788
      %2790 = vrot.lane.b32.xlu0 %v424, 95
      %v2791 = vpop.permute.xlu0 %2790
      %2792 = vrot.lane.b32.xlu0 %v425, 95
      %v2793 = vpop.permute.xlu0 %2792
      %vm2794 = vcmask 777216
      %v2795 = vsel %vm2794, %v2777, %v2779
      %v2796 = vsel %vm2794, %v2779, %v2781
      %v2797 = vsel %vm2794, %v2781, %v2783
      %v2798 = vsel %vm2794, %v2783, %v2785
      %v2799 = vsel %vm2794, %v2785, %v2787
      %v2800 = vsel %vm2794, %v2787, %v2789
      %v2801 = vsel %vm2794, %v2789, %v2791
      %v2802 = vsel %vm2794, %v2791, %v2793
      %v2812 = vsel %vm472, %v2451, 0
      %2814 = vmatprep.subr.mxu0 %v2796
      %2815 = vmatpush1.msra.mxu0 %v2795
      %2816 = vmatprep.subr.mxu0 0.0
      %2817 = vmatpush1.msra.mxu0 0.0
      %2818 = vmatprep.subr.mxu0 0.0
      %2819 = vmatpush1.msra.mxu0 0.0
      %2820 = vmatprep.subr.mxu0 0.0
      %2821 = vmatpush1.msra.mxu0 0.0
      %2822 = vmatprep.subr.mxu0 0.0
      %2823 = vmatpush1.msra.mxu0 0.0
      %2824 = vmatprep.subr.mxu0 0.0
      %2825 = vmatpush1.msra.mxu0 0.0
      %2826 = vmatprep.subr.mxu0 0.0
      %2827 = vmatpush1.msra.mxu0 0.0
      %2828 = vmatprep.subr.mxu0 0.0
      %2829 = vmatpush1.msra.mxu0 0.0
      %2830 = vmatprep.subr.mxu0 0.0
      %2831 = vmatpush1.msra.mxu0 0.0
      %2832 = vmatprep.subr.mxu0 0.0
      %2833 = vmatpush1.msra.mxu0 0.0
      %2834 = vmatprep.subr.mxu0 0.0
      %2835 = vmatpush1.msra.mxu0 0.0
      %2836 = vmatprep.subr.mxu0 0.0
      %2837 = vmatpush1.msra.mxu0 0.0
      %2838 = vmatprep.subr.mxu0 0.0
      %2839 = vmatpush1.msra.mxu0 0.0
      %2840 = vmatprep.subr.mxu0 0.0
      %2841 = vmatpush1.msra.mxu0 0.0
      %2842 = vmatprep.subr.mxu0 0.0
      %2843 = vmatpush1.msra.mxu0 0.0
      %2844 = vmatprep.subr.mxu0 0.0
      %2845 = vmatpush1.msra.mxu0 0.0
      %2846 = vmatprep.subr.mxu0 0.0
      %2847 = vmatpush1.msra.mxu0 0.0
      %2848 = vmatprep.subr.mxu0 0.0
      %2849 = vmatpush1.msra.mxu0 0.0
      %2850 = vmatprep.subr.mxu0 0.0
      %2851 = vmatpush1.msra.mxu0 0.0
      %2852 = vmatprep.subr.mxu0 0.0
      %2853 = vmatpush1.msra.mxu0 0.0
      %2854 = vmatprep.subr.mxu0 0.0
      %2855 = vmatpush1.msra.mxu0 0.0
      %2856 = vmatprep.subr.mxu0 0.0
      %2857 = vmatpush1.msra.mxu0 0.0
      %2858 = vmatprep.subr.mxu0 0.0
      %2859 = vmatpush1.msra.mxu0 0.0
      %2860 = vmatprep.subr.mxu0 0.0
      %2861 = vmatpush1.msra.mxu0 0.0
      %2862 = vmatprep.subr.mxu0 0.0
      %2863 = vmatpush1.msra.mxu0 0.0
      %2864 = vmatprep.subr.mxu0 0.0
      %2865 = vmatpush1.msra.mxu0 0.0
      %2866 = vmatprep.subr.mxu0 0.0
      %2867 = vmatpush1.msra.mxu0 0.0
      %2868 = vmatprep.subr.mxu0 0.0
      %2869 = vmatpush1.msra.mxu0 0.0
      %2870 = vmatprep.subr.mxu0 0.0
      %2871 = vmatpush1.msra.mxu0 0.0
      %2872 = vmatprep.subr.mxu0 0.0
      %2873 = vmatpush1.msra.mxu0 0.0
      %2874 = vmatprep.subr.mxu0 0.0
      %2875 = vmatpush1.msra.mxu0 0.0
      %2876 = vmatprep.subr.mxu0 0.0
      %2877 = vmatpush1.msra.mxu0 0.0
      %2878 = vmatprep.mubr.f32.mxu0 0.0
      %2879 = vmatmul.mubr.f32.gmra.mrb[0].mxu0 %v2812
      %v2880 = vpop.f32.mrb[0].mxu0
      %v2881 = vadd.f32 %v2559, %v2880
      %v2882 = vpop.f32.mrb[0].mxu0
      %v2883 = vadd.f32 %v2561, %v2882
      %2884 = vdwg.mxu0
      %2885 = vmatprep.subr.mxu0 %v2798
      %2886 = vmatpush1.msra.mxu0 %v2797
      %2887 = vmatprep.subr.mxu0 0.0
      %2888 = vmatpush1.msra.mxu0 0.0
      %2889 = vmatprep.subr.mxu0 0.0
      %2890 = vmatpush1.msra.mxu0 0.0
      %2891 = vmatprep.subr.mxu0 0.0
      %2892 = vmatpush1.msra.mxu0 0.0
      %2893 = vmatprep.subr.mxu0 0.0
      %2894 = vmatpush1.msra.mxu0 0.0
      %2895 = vmatprep.subr.mxu0 0.0
      %2896 = vmatpush1.msra.mxu0 0.0
      %2897 = vmatprep.subr.mxu0 0.0
      %2898 = vmatpush1.msra.mxu0 0.0
      %2899 = vmatprep.subr.mxu0 0.0
      %2900 = vmatpush1.msra.mxu0 0.0
      %2901 = vmatprep.subr.mxu0 0.0
      %2902 = vmatpush1.msra.mxu0 0.0
      %2903 = vmatprep.subr.mxu0 0.0
      %2904 = vmatpush1.msra.mxu0 0.0
      %2905 = vmatprep.subr.mxu0 0.0
      %2906 = vmatpush1.msra.mxu0 0.0
      %2907 = vmatprep.subr.mxu0 0.0
      %2908 = vmatpush1.msra.mxu0 0.0
      %2909 = vmatprep.subr.mxu0 0.0
      %2910 = vmatpush1.msra.mxu0 0.0
      %2911 = vmatprep.subr.mxu0 0.0
      %2912 = vmatpush1.msra.mxu0 0.0
      %2913 = vmatprep.subr.mxu0 0.0
      %2914 = vmatpush1.msra.mxu0 0.0
      %2915 = vmatprep.subr.mxu0 0.0
      %2916 = vmatpush1.msra.mxu0 0.0
      %2917 = vmatprep.subr.mxu0 0.0
      %2918 = vmatpush1.msra.mxu0 0.0
      %2919 = vmatprep.subr.mxu0 0.0
      %2920 = vmatpush1.msra.mxu0 0.0
      %2921 = vmatprep.subr.mxu0 0.0
      %2922 = vmatpush1.msra.mxu0 0.0
      %2923 = vmatprep.subr.mxu0 0.0
      %2924 = vmatpush1.msra.mxu0 0.0
      %2925 = vmatprep.subr.mxu0 0.0
      %2926 = vmatpush1.msra.mxu0 0.0
      %2927 = vmatprep.subr.mxu0 0.0
      %2928 = vmatpush1.msra.mxu0 0.0
      %2929 = vmatprep.subr.mxu0 0.0
      %2930 = vmatpush1.msra.mxu0 0.0
      %2931 = vmatprep.subr.mxu0 0.0
      %2932 = vmatpush1.msra.mxu0 0.0
      %2933 = vmatprep.subr.mxu0 0.0
      %2934 = vmatpush1.msra.mxu0 0.0
      %2935 = vmatprep.subr.mxu0 0.0
      %2936 = vmatpush1.msra.mxu0 0.0
      %2937 = vmatprep.subr.mxu0 0.0
      %2938 = vmatpush1.msra.mxu0 0.0
      %2939 = vmatprep.subr.mxu0 0.0
      %2940 = vmatpush1.msra.mxu0 0.0
      %2941 = vmatprep.subr.mxu0 0.0
      %2942 = vmatpush1.msra.mxu0 0.0
      %2943 = vmatprep.subr.mxu0 0.0
      %2944 = vmatpush1.msra.mxu0 0.0
      %2945 = vmatprep.subr.mxu0 0.0
      %2946 = vmatpush1.msra.mxu0 0.0
      %2947 = vmatprep.subr.mxu0 0.0
      %2948 = vmatpush1.msra.mxu0 0.0
      %2949 = vmatprep.mubr.f32.mxu0 0.0
      %2950 = vmatmul.mubr.f32.gmra.mrb[0].mxu0 %v2812
      %v2951 = vpop.f32.mrb[0].mxu0
      %v2952 = vadd.f32 %v2630, %v2951
      %v2953 = vpop.f32.mrb[0].mxu0
      %v2954 = vadd.f32 %v2632, %v2953
      %2955 = vdwg.mxu0
      %2956 = vmatprep.subr.mxu0 %v2800
      %2957 = vmatpush1.msra.mxu0 %v2799
      %2958 = vmatprep.subr.mxu0 0.0
      %2959 = vmatpush1.msra.mxu0 0.0
      %2960 = vmatprep.subr.mxu0 0.0
      %2961 = vmatpush1.msra.mxu0 0.0
      %2962 = vmatprep.subr.mxu0 0.0
      %2963 = vmatpush1.msra.mxu0 0.0
      %2964 = vmatprep.subr.mxu0 0.0
      %2965 = vmatpush1.msra.mxu0 0.0
      %2966 = vmatprep.subr.mxu0 0.0
      %2967 = vmatpush1.msra.mxu0 0.0
      %2968 = vmatprep.subr.mxu0 0.0
      %2969 = vmatpush1.msra.mxu0 0.0
      %2970 = vmatprep.subr.mxu0 0.0
      %2971 = vmatpush1.msra.mxu0 0.0
      %2972 = vmatprep.subr.mxu0 0.0
      %2973 = vmatpush1.msra.mxu0 0.0
      %2974 = vmatprep.subr.mxu0 0.0
      %2975 = vmatpush1.msra.mxu0 0.0
      %2976 = vmatprep.subr.mxu0 0.0
      %2977 = vmatpush1.msra.mxu0 0.0
      %2978 = vmatprep.subr.mxu0 0.0
      %2979 = vmatpush1.msra.mxu0 0.0
      %2980 = vmatprep.subr.mxu0 0.0
      %2981 = vmatpush1.msra.mxu0 0.0
      %2982 = vmatprep.subr.mxu0 0.0
      %2983 = vmatpush1.msra.mxu0 0.0
      %2984 = vmatprep.subr.mxu0 0.0
      %2985 = vmatpush1.msra.mxu0 0.0
      %2986 = vmatprep.subr.mxu0 0.0
      %2987 = vmatpush1.msra.mxu0 0.0
      %2988 = vmatprep.subr.mxu0 0.0
      %2989 = vmatpush1.msra.mxu0 0.0
      %2990 = vmatprep.subr.mxu0 0.0
      %2991 = vmatpush1.msra.mxu0 0.0
      %2992 = vmatprep.subr.mxu0 0.0
      %2993 = vmatpush1.msra.mxu0 0.0
      %2994 = vmatprep.subr.mxu0 0.0
      %2995 = vmatpush1.msra.mxu0 0.0
      %2996 = vmatprep.subr.mxu0 0.0
      %2997 = vmatpush1.msra.mxu0 0.0
      %2998 = vmatprep.subr.mxu0 0.0
      %2999 = vmatpush1.msra.mxu0 0.0
      %3000 = vmatprep.subr.mxu0 0.0
      %3001 = vmatpush1.msra.mxu0 0.0
      %3002 = vmatprep.subr.mxu0 0.0
      %3003 = vmatpush1.msra.mxu0 0.0
      %3004 = vmatprep.subr.mxu0 0.0
      %3005 = vmatpush1.msra.mxu0 0.0
      %3006 = vmatprep.subr.mxu0 0.0
      %3007 = vmatpush1.msra.mxu0 0.0
      %3008 = vmatprep.subr.mxu0 0.0
      %3009 = vmatpush1.msra.mxu0 0.0
      %3010 = vmatprep.subr.mxu0 0.0
      %3011 = vmatpush1.msra.mxu0 0.0
      %3012 = vmatprep.subr.mxu0 0.0
      %3013 = vmatpush1.msra.mxu0 0.0
      %3014 = vmatprep.subr.mxu0 0.0
      %3015 = vmatpush1.msra.mxu0 0.0
      %3016 = vmatprep.subr.mxu0 0.0
      %3017 = vmatpush1.msra.mxu0 0.0
      %3018 = vmatprep.subr.mxu0 0.0
      %3019 = vmatpush1.msra.mxu0 0.0
      %3020 = vmatprep.mubr.f32.mxu0 0.0
      %3021 = vmatmul.mubr.f32.gmra.mrb[0].mxu0 %v2812
      %v3022 = vpop.f32.mrb[0].mxu0
      %v3023 = vadd.f32 %v2701, %v3022
      %v3024 = vpop.f32.mrb[0].mxu0
      %v3025 = vadd.f32 %v2703, %v3024
      %3026 = vdwg.mxu0
      %3027 = vmatprep.subr.mxu0 %v2802
      %3028 = vmatpush1.msra.mxu0 %v2801
      %3029 = vmatprep.subr.mxu0 0.0
      %3030 = vmatpush1.msra.mxu0 0.0
      %3031 = vmatprep.subr.mxu0 0.0
      %3032 = vmatpush1.msra.mxu0 0.0
      %3033 = vmatprep.subr.mxu0 0.0
      %3034 = vmatpush1.msra.mxu0 0.0
      %3035 = vmatprep.subr.mxu0 0.0
      %3036 = vmatpush1.msra.mxu0 0.0
      %3037 = vmatprep.subr.mxu0 0.0
      %3038 = vmatpush1.msra.mxu0 0.0
      %3039 = vmatprep.subr.mxu0 0.0
      %3040 = vmatpush1.msra.mxu0 0.0
      %3041 = vmatprep.subr.mxu0 0.0
      %3042 = vmatpush1.msra.mxu0 0.0
      %3043 = vmatprep.subr.mxu0 0.0
      %3044 = vmatpush1.msra.mxu0 0.0
      %3045 = vmatprep.subr.mxu0 0.0
      %3046 = vmatpush1.msra.mxu0 0.0
      %3047 = vmatprep.subr.mxu0 0.0
      %3048 = vmatpush1.msra.mxu0 0.0
      %3049 = vmatprep.subr.mxu0 0.0
      %3050 = vmatpush1.msra.mxu0 0.0
      %3051 = vmatprep.subr.mxu0 0.0
      %3052 = vmatpush1.msra.mxu0 0.0
      %3053 = vmatprep.subr.mxu0 0.0
      %3054 = vmatpush1.msra.mxu0 0.0
      %3055 = vmatprep.subr.mxu0 0.0
      %3056 = vmatpush1.msra.mxu0 0.0
      %3057 = vmatprep.subr.mxu0 0.0
      %3058 = vmatpush1.msra.mxu0 0.0
      %3059 = vmatprep.subr.mxu0 0.0
      %3060 = vmatpush1.msra.mxu0 0.0
      %3061 = vmatprep.subr.mxu0 0.0
      %3062 = vmatpush1.msra.mxu0 0.0
      %3063 = vmatprep.subr.mxu0 0.0
      %3064 = vmatpush1.msra.mxu0 0.0
      %3065 = vmatprep.subr.mxu0 0.0
      %3066 = vmatpush1.msra.mxu0 0.0
      %3067 = vmatprep.subr.mxu0 0.0
      %3068 = vmatpush1.msra.mxu0 0.0
      %3069 = vmatprep.subr.mxu0 0.0
      %3070 = vmatpush1.msra.mxu0 0.0
      %3071 = vmatprep.subr.mxu0 0.0
      %3072 = vmatpush1.msra.mxu0 0.0
      %3073 = vmatprep.subr.mxu0 0.0
      %3074 = vmatpush1.msra.mxu0 0.0
      %3075 = vmatprep.subr.mxu0 0.0
      %3076 = vmatpush1.msra.mxu0 0.0
      %3077 = vmatprep.subr.mxu0 0.0
      %3078 = vmatpush1.msra.mxu0 0.0
      %3079 = vmatprep.subr.mxu0 0.0
      %3080 = vmatpush1.msra.mxu0 0.0
      %3081 = vmatprep.subr.mxu0 0.0
      %3082 = vmatpush1.msra.mxu0 0.0
      %3083 = vmatprep.subr.mxu0 0.0
      %3084 = vmatpush1.msra.mxu0 0.0
      %3085 = vmatprep.subr.mxu0 0.0
      %3086 = vmatpush1.msra.mxu0 0.0
      %3087 = vmatprep.subr.mxu0 0.0
      %3088 = vmatpush1.msra.mxu0 0.0
      %3089 = vmatprep.subr.mxu0 0.0
      %3090 = vmatpush1.msra.mxu0 0.0
      %3091 = vmatprep.mubr.f32.mxu0 0.0
      %3092 = vmatmul.mubr.f32.gmra.mrb[0].mxu0 %v2812
      %v3093 = vpop.f32.mrb[0].mxu0
      %v3094 = vadd.f32 %v2772, %v3093
      %v3095 = vpop.f32.mrb[0].mxu0
      %v3096 = vadd.f32 %v2774, %v3095
      %3097 = vdwg.mxu0
      %s3098 = scalar_lea.vmem %s3, 32
      %v3099 = vld [vmem:[%s3098] sm:$0xf]
      %3100 = vrot.lane.b32.xlu0 %v417, 31
      %v3101 = vpop.permute.xlu0 %3100
      %3102 = vrot.lane.b32.xlu0 %v418, 31
      %v3103 = vpop.permute.xlu0 %3102
      %3104 = vrot.lane.b32.xlu0 %v419, 31
      %v3105 = vpop.permute.xlu0 %3104
      %3106 = vrot.lane.b32.xlu0 %v420, 31
      %v3107 = vpop.permute.xlu0 %3106
      %3108 = vrot.lane.b32.xlu0 %v421, 31
      %v3109 = vpop.permute.xlu0 %3108
      %3110 = vrot.lane.b32.xlu0 %v422, 31
      %v3111 = vpop.permute.xlu0 %3110
      %3112 = vrot.lane.b32.xlu0 %v423, 31
      %v3113 = vpop.permute.xlu0 %3112
      %3114 = vrot.lane.b32.xlu0 %v424, 31
      %v3115 = vpop.permute.xlu0 %3114
      %3116 = vrot.lane.b32.xlu0 %v425, 31
      %v3117 = vpop.permute.xlu0 %3116
      %vm3118 = vcmask 252928
      %v3119 = vsel %vm3118, %v3101, %v3103
      %v3120 = vsel %vm3118, %v3103, %v3105
      %v3121 = vsel %vm3118, %v3105, %v3107
      %v3122 = vsel %vm3118, %v3107, %v3109
      %v3123 = vsel %vm3118, %v3109, %v3111
      %v3124 = vsel %vm3118, %v3111, %v3113
      %v3125 = vsel %vm3118, %v3113, %v3115
      %v3126 = vsel %vm3118, %v3115, %v3117
      %v3136 = vsel %vm472, %v3099, 0
      %3138 = vmatprep.subr.mxu0 %v3120
      %3139 = vmatpush1.msra.mxu0 %v3119
      %3140 = vmatprep.subr.mxu0 0.0
      %3141 = vmatpush1.msra.mxu0 0.0
      %3142 = vmatprep.subr.mxu0 0.0
      %3143 = vmatpush1.msra.mxu0 0.0
      %3144 = vmatprep.subr.mxu0 0.0
      %3145 = vmatpush1.msra.mxu0 0.0
      %3146 = vmatprep.subr.mxu0 0.0
      %3147 = vmatpush1.msra.mxu0 0.0
      %3148 = vmatprep.subr.mxu0 0.0
      %3149 = vmatpush1.msra.mxu0 0.0
      %3150 = vmatprep.subr.mxu0 0.0
      %3151 = vmatpush1.msra.mxu0 0.0
      %3152 = vmatprep.subr.mxu0 0.0
      %3153 = vmatpush1.msra.mxu0 0.0
      %3154 = vmatprep.subr.mxu0 0.0
      %3155 = vmatpush1.msra.mxu0 0.0
      %3156 = vmatprep.subr.mxu0 0.0
      %3157 = vmatpush1.msra.mxu0 0.0
      %3158 = vmatprep.subr.mxu0 0.0
      %3159 = vmatpush1.msra.mxu0 0.0
      %3160 = vmatprep.subr.mxu0 0.0
      %3161 = vmatpush1.msra.mxu0 0.0
      %3162 = vmatprep.subr.mxu0 0.0
      %3163 = vmatpush1.msra.mxu0 0.0
      %3164 = vmatprep.subr.mxu0 0.0
      %3165 = vmatpush1.msra.mxu0 0.0
      %3166 = vmatprep.subr.mxu0 0.0
      %3167 = vmatpush1.msra.mxu0 0.0
      %3168 = vmatprep.subr.mxu0 0.0
      %3169 = vmatpush1.msra.mxu0 0.0
      %3170 = vmatprep.subr.mxu0 0.0
      %3171 = vmatpush1.msra.mxu0 0.0
      %3172 = vmatprep.subr.mxu0 0.0
      %3173 = vmatpush1.msra.mxu0 0.0
      %3174 = vmatprep.subr.mxu0 0.0
      %3175 = vmatpush1.msra.mxu0 0.0
      %3176 = vmatprep.subr.mxu0 0.0
      %3177 = vmatpush1.msra.mxu0 0.0
      %3178 = vmatprep.subr.mxu0 0.0
      %3179 = vmatpush1.msra.mxu0 0.0
      %3180 = vmatprep.subr.mxu0 0.0
      %3181 = vmatpush1.msra.mxu0 0.0
      %3182 = vmatprep.subr.mxu0 0.0
      %3183 = vmatpush1.msra.mxu0 0.0
      %3184 = vmatprep.subr.mxu0 0.0
      %3185 = vmatpush1.msra.mxu0 0.0
      %3186 = vmatprep.subr.mxu0 0.0
      %3187 = vmatpush1.msra.mxu0 0.0
      %3188 = vmatprep.subr.mxu0 0.0
      %3189 = vmatpush1.msra.mxu0 0.0
      %3190 = vmatprep.subr.mxu0 0.0
      %3191 = vmatpush1.msra.mxu0 0.0
      %3192 = vmatprep.subr.mxu0 0.0
      %3193 = vmatpush1.msra.mxu0 0.0
      %3194 = vmatprep.subr.mxu0 0.0
      %3195 = vmatpush1.msra.mxu0 0.0
      %3196 = vmatprep.subr.mxu0 0.0
      %3197 = vmatpush1.msra.mxu0 0.0
      %3198 = vmatprep.subr.mxu0 0.0
      %3199 = vmatpush1.msra.mxu0 0.0
      %3200 = vmatprep.subr.mxu0 0.0
      %3201 = vmatpush1.msra.mxu0 0.0
      %3202 = vmatprep.mubr.f32.mxu0 0.0
      %3203 = vmatmul.mubr.f32.gmra.mrb[0].mxu0 %v3136
      %v3204 = vpop.f32.mrb[0].mxu0
      %v3205 = vadd.f32 0.0, %v3204
      %v3206 = vpop.f32.mrb[0].mxu0
      %v3207 = vadd.f32 0.0, %v3206
      %3208 = vdwg.mxu0
      %3209 = vmatprep.subr.mxu0 %v3122
      %3210 = vmatpush1.msra.mxu0 %v3121
      %3211 = vmatprep.subr.mxu0 0.0
      %3212 = vmatpush1.msra.mxu0 0.0
      %3213 = vmatprep.subr.mxu0 0.0
      %3214 = vmatpush1.msra.mxu0 0.0
      %3215 = vmatprep.subr.mxu0 0.0
      %3216 = vmatpush1.msra.mxu0 0.0
      %3217 = vmatprep.subr.mxu0 0.0
      %3218 = vmatpush1.msra.mxu0 0.0
      %3219 = vmatprep.subr.mxu0 0.0
      %3220 = vmatpush1.msra.mxu0 0.0
      %3221 = vmatprep.subr.mxu0 0.0
      %3222 = vmatpush1.msra.mxu0 0.0
      %3223 = vmatprep.subr.mxu0 0.0
      %3224 = vmatpush1.msra.mxu0 0.0
      %3225 = vmatprep.subr.mxu0 0.0
      %3226 = vmatpush1.msra.mxu0 0.0
      %3227 = vmatprep.subr.mxu0 0.0
      %3228 = vmatpush1.msra.mxu0 0.0
      %3229 = vmatprep.subr.mxu0 0.0
      %3230 = vmatpush1.msra.mxu0 0.0
      %3231 = vmatprep.subr.mxu0 0.0
      %3232 = vmatpush1.msra.mxu0 0.0
      %3233 = vmatprep.subr.mxu0 0.0
      %3234 = vmatpush1.msra.mxu0 0.0
      %3235 = vmatprep.subr.mxu0 0.0
      %3236 = vmatpush1.msra.mxu0 0.0
      %3237 = vmatprep.subr.mxu0 0.0
      %3238 = vmatpush1.msra.mxu0 0.0
      %3239 = vmatprep.subr.mxu0 0.0
      %3240 = vmatpush1.msra.mxu0 0.0
      %3241 = vmatprep.subr.mxu0 0.0
      %3242 = vmatpush1.msra.mxu0 0.0
      %3243 = vmatprep.subr.mxu0 0.0
      %3244 = vmatpush1.msra.mxu0 0.0
      %3245 = vmatprep.subr.mxu0 0.0
      %3246 = vmatpush1.msra.mxu0 0.0
      %3247 = vmatprep.subr.mxu0 0.0
      %3248 = vmatpush1.msra.mxu0 0.0
      %3249 = vmatprep.subr.mxu0 0.0
      %3250 = vmatpush1.msra.mxu0 0.0
      %3251 = vmatprep.subr.mxu0 0.0
      %3252 = vmatpush1.msra.mxu0 0.0
      %3253 = vmatprep.subr.mxu0 0.0
      %3254 = vmatpush1.msra.mxu0 0.0
      %3255 = vmatprep.subr.mxu0 0.0
      %3256 = vmatpush1.msra.mxu0 0.0
      %3257 = vmatprep.subr.mxu0 0.0
      %3258 = vmatpush1.msra.mxu0 0.0
      %3259 = vmatprep.subr.mxu0 0.0
      %3260 = vmatpush1.msra.mxu0 0.0
      %3261 = vmatprep.subr.mxu0 0.0
      %3262 = vmatpush1.msra.mxu0 0.0
      %3263 = vmatprep.subr.mxu0 0.0
      %3264 = vmatpush1.msra.mxu0 0.0
      %3265 = vmatprep.subr.mxu0 0.0
      %3266 = vmatpush1.msra.mxu0 0.0
      %3267 = vmatprep.subr.mxu0 0.0
      %3268 = vmatpush1.msra.mxu0 0.0
      %3269 = vmatprep.subr.mxu0 0.0
      %3270 = vmatpush1.msra.mxu0 0.0
      %3271 = vmatprep.subr.mxu0 0.0
      %3272 = vmatpush1.msra.mxu0 0.0
      %3273 = vmatprep.mubr.f32.mxu0 0.0
      %3274 = vmatmul.mubr.f32.gmra.mrb[0].mxu0 %v3136
      %v3275 = vpop.f32.mrb[0].mxu0
      %v3276 = vadd.f32 0.0, %v3275
      %v3277 = vpop.f32.mrb[0].mxu0
      %v3278 = vadd.f32 0.0, %v3277
      %3279 = vdwg.mxu0
      %3280 = vmatprep.subr.mxu0 %v3124
      %3281 = vmatpush1.msra.mxu0 %v3123
      %3282 = vmatprep.subr.mxu0 0.0
      %3283 = vmatpush1.msra.mxu0 0.0
      %3284 = vmatprep.subr.mxu0 0.0
      %3285 = vmatpush1.msra.mxu0 0.0
      %3286 = vmatprep.subr.mxu0 0.0
      %3287 = vmatpush1.msra.mxu0 0.0
      %3288 = vmatprep.subr.mxu0 0.0
      %3289 = vmatpush1.msra.mxu0 0.0
      %3290 = vmatprep.subr.mxu0 0.0
      %3291 = vmatpush1.msra.mxu0 0.0
      %3292 = vmatprep.subr.mxu0 0.0
      %3293 = vmatpush1.msra.mxu0 0.0
      %3294 = vmatprep.subr.mxu0 0.0
      %3295 = vmatpush1.msra.mxu0 0.0
      %3296 = vmatprep.subr.mxu0 0.0
      %3297 = vmatpush1.msra.mxu0 0.0
      %3298 = vmatprep.subr.mxu0 0.0
      %3299 = vmatpush1.msra.mxu0 0.0
      %3300 = vmatprep.subr.mxu0 0.0
      %3301 = vmatpush1.msra.mxu0 0.0
      %3302 = vmatprep.subr.mxu0 0.0
      %3303 = vmatpush1.msra.mxu0 0.0
      %3304 = vmatprep.subr.mxu0 0.0
      %3305 = vmatpush1.msra.mxu0 0.0
      %3306 = vmatprep.subr.mxu0 0.0
      %3307 = vmatpush1.msra.mxu0 0.0
      %3308 = vmatprep.subr.mxu0 0.0
      %3309 = vmatpush1.msra.mxu0 0.0
      %3310 = vmatprep.subr.mxu0 0.0
      %3311 = vmatpush1.msra.mxu0 0.0
      %3312 = vmatprep.subr.mxu0 0.0
      %3313 = vmatpush1.msra.mxu0 0.0
      %3314 = vmatprep.subr.mxu0 0.0
      %3315 = vmatpush1.msra.mxu0 0.0
      %3316 = vmatprep.subr.mxu0 0.0
      %3317 = vmatpush1.msra.mxu0 0.0
      %3318 = vmatprep.subr.mxu0 0.0
      %3319 = vmatpush1.msra.mxu0 0.0
      %3320 = vmatprep.subr.mxu0 0.0
      %3321 = vmatpush1.msra.mxu0 0.0
      %3322 = vmatprep.subr.mxu0 0.0
      %3323 = vmatpush1.msra.mxu0 0.0
      %3324 = vmatprep.subr.mxu0 0.0
      %3325 = vmatpush1.msra.mxu0 0.0
      %3326 = vmatprep.subr.mxu0 0.0
      %3327 = vmatpush1.msra.mxu0 0.0
      %3328 = vmatprep.subr.mxu0 0.0
      %3329 = vmatpush1.msra.mxu0 0.0
      %3330 = vmatprep.subr.mxu0 0.0
      %3331 = vmatpush1.msra.mxu0 0.0
      %3332 = vmatprep.subr.mxu0 0.0
      %3333 = vmatpush1.msra.mxu0 0.0
      %3334 = vmatprep.subr.mxu0 0.0
      %3335 = vmatpush1.msra.mxu0 0.0
      %3336 = vmatprep.subr.mxu0 0.0
      %3337 = vmatpush1.msra.mxu0 0.0
      %3338 = vmatprep.subr.mxu0 0.0
      %3339 = vmatpush1.msra.mxu0 0.0
      %3340 = vmatprep.subr.mxu0 0.0
      %3341 = vmatpush1.msra.mxu0 0.0
      %3342 = vmatprep.subr.mxu0 0.0
      %3343 = vmatpush1.msra.mxu0 0.0
      %3344 = vmatprep.mubr.f32.mxu0 0.0
      %3345 = vmatmul.mubr.f32.gmra.mrb[0].mxu0 %v3136
      %v3346 = vpop.f32.mrb[0].mxu0
      %v3347 = vadd.f32 0.0, %v3346
      %v3348 = vpop.f32.mrb[0].mxu0
      %v3349 = vadd.f32 0.0, %v3348
      %3350 = vdwg.mxu0
      %3351 = vmatprep.subr.mxu0 %v3126
      %3352 = vmatpush1.msra.mxu0 %v3125
      %3353 = vmatprep.subr.mxu0 0.0
      %3354 = vmatpush1.msra.mxu0 0.0
      %3355 = vmatprep.subr.mxu0 0.0
      %3356 = vmatpush1.msra.mxu0 0.0
      %3357 = vmatprep.subr.mxu0 0.0
      %3358 = vmatpush1.msra.mxu0 0.0
      %3359 = vmatprep.subr.mxu0 0.0
      %3360 = vmatpush1.msra.mxu0 0.0
      %3361 = vmatprep.subr.mxu0 0.0
      %3362 = vmatpush1.msra.mxu0 0.0
      %3363 = vmatprep.subr.mxu0 0.0
      %3364 = vmatpush1.msra.mxu0 0.0
      %3365 = vmatprep.subr.mxu0 0.0
      %3366 = vmatpush1.msra.mxu0 0.0
      %3367 = vmatprep.subr.mxu0 0.0
      %3368 = vmatpush1.msra.mxu0 0.0
      %3369 = vmatprep.subr.mxu0 0.0
      %3370 = vmatpush1.msra.mxu0 0.0
      %3371 = vmatprep.subr.mxu0 0.0
      %3372 = vmatpush1.msra.mxu0 0.0
      %3373 = vmatprep.subr.mxu0 0.0
      %3374 = vmatpush1.msra.mxu0 0.0
      %3375 = vmatprep.subr.mxu0 0.0
      %3376 = vmatpush1.msra.mxu0 0.0
      %3377 = vmatprep.subr.mxu0 0.0
      %3378 = vmatpush1.msra.mxu0 0.0
      %3379 = vmatprep.subr.mxu0 0.0
      %3380 = vmatpush1.msra.mxu0 0.0
      %3381 = vmatprep.subr.mxu0 0.0
      %3382 = vmatpush1.msra.mxu0 0.0
      %3383 = vmatprep.subr.mxu0 0.0
      %3384 = vmatpush1.msra.mxu0 0.0
      %3385 = vmatprep.subr.mxu0 0.0
      %3386 = vmatpush1.msra.mxu0 0.0
      %3387 = vmatprep.subr.mxu0 0.0
      %3388 = vmatpush1.msra.mxu0 0.0
      %3389 = vmatprep.subr.mxu0 0.0
      %3390 = vmatpush1.msra.mxu0 0.0
      %3391 = vmatprep.subr.mxu0 0.0
      %3392 = vmatpush1.msra.mxu0 0.0
      %3393 = vmatprep.subr.mxu0 0.0
      %3394 = vmatpush1.msra.mxu0 0.0
      %3395 = vmatprep.subr.mxu0 0.0
      %3396 = vmatpush1.msra.mxu0 0.0
      %3397 = vmatprep.subr.mxu0 0.0
      %3398 = vmatpush1.msra.mxu0 0.0
      %3399 = vmatprep.subr.mxu0 0.0
      %3400 = vmatpush1.msra.mxu0 0.0
      %3401 = vmatprep.subr.mxu0 0.0
      %3402 = vmatpush1.msra.mxu0 0.0
      %3403 = vmatprep.subr.mxu0 0.0
      %3404 = vmatpush1.msra.mxu0 0.0
      %3405 = vmatprep.subr.mxu0 0.0
      %3406 = vmatpush1.msra.mxu0 0.0
      %3407 = vmatprep.subr.mxu0 0.0
      %3408 = vmatpush1.msra.mxu0 0.0
      %3409 = vmatprep.subr.mxu0 0.0
      %3410 = vmatpush1.msra.mxu0 0.0
      %3411 = vmatprep.subr.mxu0 0.0
      %3412 = vmatpush1.msra.mxu0 0.0
      %3413 = vmatprep.subr.mxu0 0.0
      %3414 = vmatpush1.msra.mxu0 0.0
      %3415 = vmatprep.mubr.f32.mxu0 0.0
      %3416 = vmatmul.mubr.f32.gmra.mrb[0].mxu0 %v3136
      %v3417 = vpop.f32.mrb[0].mxu0
      %v3418 = vadd.f32 0.0, %v3417
      %v3419 = vpop.f32.mrb[0].mxu0
      %v3420 = vadd.f32 0.0, %v3419
      %3421 = vdwg.mxu0
      %v3422 = vadd.f32 %v2881, %v3205
      %v3423 = vadd.f32 %v2883, %v3207
      %v3424 = vadd.f32 %v2952, %v3276
      %v3425 = vadd.f32 %v2954, %v3278
      %v3426 = vadd.f32 %v3023, %v3347
      %v3427 = vadd.f32 %v3025, %v3349
      %v3428 = vadd.f32 %v3094, %v3418
      %v3429 = vadd.f32 %v3096, %v3420
      %v3431 = vlaneseq
      %v3432 = vshrl.u32 %v3431, 7
      %v3433 = vsub.s32 0, %v3432
      %v3434 = vrot.slane %v301, %v3433
      %v3435 = vlaneseq
      %v3436 = vshrl.u32 %v3435, 7
      %v3437 = vsub.s32 1, %v3436
      %v3438 = vrot.slane %v301, %v3437
      %v3439 = vlaneseq
      %v3440 = vshrl.u32 %v3439, 7
      %v3441 = vsub.s32 2, %v3440
      %v3442 = vrot.slane %v301, %v3441
      %v3443 = vlaneseq
      %v3444 = vshrl.u32 %v3443, 7
      %v3445 = vsub.s32 3, %v3444
      %v3446 = vrot.slane %v301, %v3445
      %v3447 = vlaneseq
      %v3448 = vshrl.u32 %v3447, 7
      %v3449 = vsub.s32 4, %v3448
      %v3450 = vrot.slane %v301, %v3449
      %v3451 = vlaneseq
      %v3452 = vshrl.u32 %v3451, 7
      %v3453 = vsub.s32 5, %v3452
      %v3454 = vrot.slane %v301, %v3453
      %v3455 = vlaneseq
      %v3456 = vshrl.u32 %v3455, 7
      %v3457 = vsub.s32 6, %v3456
      %v3458 = vrot.slane %v301, %v3457
      %v3459 = vlaneseq
      %v3460 = vshrl.u32 %v3459, 7
      %v3461 = vsub.s32 7, %v3460
      %v3462 = vrot.slane %v301, %v3461
      %v3471 = vmul.f32 %v3422, %v3434
      %v3472 = vmul.f32 %v3423, %v3438
      %v3473 = vmul.f32 %v3424, %v3442
      %v3474 = vmul.f32 %v3425, %v3446
      %v3475 = vmul.f32 %v3426, %v3450
      %v3476 = vmul.f32 %v3427, %v3454
      %v3477 = vmul.f32 %v3428, %v3458
      %v3478 = vmul.f32 %v3429, %v3462
      %v3479 = vadd.f32 %v2442, %v3471
      %v3480 = vadd.f32 %v2443, %v3472
      %v3481 = vadd.f32 %v2444, %v3473
      %v3482 = vadd.f32 %v2445, %v3474
      %v3483 = vadd.f32 %v2446, %v3475
      %v3484 = vadd.f32 %v2447, %v3476
      %v3485 = vadd.f32 %v2448, %v3477
      %v3486 = vadd.f32 %v2449, %v3478
      %v3487 = vld [vmem:[%s5] sm:$0xf]
      %3489 = vset.pattern.permute.xlu0 0
      %3490 = vperm.xlu0 %3489, %v3487
      %v3491 = vpop.permute.xlu0 %3490
      %v3493 = vadd.f32 %v3479, %v3491
      %v3494 = vadd.f32 %v3480, %v3491
      %v3495 = vadd.f32 %v3481, %v3491
      %v3496 = vadd.f32 %v3482, %v3491
      %v3497 = vadd.f32 %v3483, %v3491
      %v3498 = vadd.f32 %v3484, %v3491
      %v3499 = vadd.f32 %v3485, %v3491
      %v3500 = vadd.f32 %v3486, %v3491
      %v3501 = vmul.f32 %v3493, 0.5
      %v3502 = vmul.f32 %v3494, 0.5
      %v3503 = vmul.f32 %v3495, 0.5
      %v3504 = vmul.f32 %v3496, 0.5
      %v3505 = vmul.f32 %v3497, 0.5
      %v3506 = vmul.f32 %v3498, 0.5
      %v3507 = vmul.f32 %v3499, 0.5
      %v3508 = vmul.f32 %v3500, 0.5
      %v3509 = vmul.f32 %v3493, 0.70710677
      %v3510 = vmul.f32 %v3494, 0.70710677
      %v3511 = vmul.f32 %v3495, 0.70710677
      %v3512 = vmul.f32 %v3496, 0.70710677
      %v3513 = vmul.f32 %v3497, 0.70710677
      %v3514 = vmul.f32 %v3498, 0.70710677
      %v3515 = vmul.f32 %v3499, 0.70710677
      %v3516 = vmul.f32 %v3500, 0.70710677
      %v3517 = vmax.f32 %v3509, -4.0
      %v3518 = vmax.f32 %v3510, -4.0
      %v3519 = vmax.f32 %v3511, -4.0
      %v3520 = vmax.f32 %v3512, -4.0
      %v3521 = vmax.f32 %v3513, -4.0
      %v3522 = vmax.f32 %v3514, -4.0
      %v3523 = vmax.f32 %v3515, -4.0
      %v3524 = vmax.f32 %v3516, -4.0
      %v3525 = vmin.f32 %v3517, 4.0
      %v3526 = vmin.f32 %v3518, 4.0
      %v3527 = vmin.f32 %v3519, 4.0
      %v3528 = vmin.f32 %v3520, 4.0
      %v3529 = vmin.f32 %v3521, 4.0
      %v3530 = vmin.f32 %v3522, 4.0
      %v3531 = vmin.f32 %v3523, 4.0
      %v3532 = vmin.f32 %v3524, 4.0
      %v3533 = vmul.f32 %v3525, %v3525
      %v3534 = vmul.f32 %v3526, %v3526
      %v3535 = vmul.f32 %v3527, %v3527
      %v3536 = vmul.f32 %v3528, %v3528
      %v3537 = vmul.f32 %v3529, %v3529
      %v3538 = vmul.f32 %v3530, %v3530
      %v3539 = vmul.f32 %v3531, %v3531
      %v3540 = vmul.f32 %v3532, %v3532
      %v3541 = vmul.f32 %v3533, -2.7261424e-10
      %v3542 = vmul.f32 %v3534, -2.7261424e-10
      %v3543 = vmul.f32 %v3535, -2.7261424e-10
      %v3544 = vmul.f32 %v3536, -2.7261424e-10
      %v3545 = vmul.f32 %v3537, -2.7261424e-10
      %v3546 = vmul.f32 %v3538, -2.7261424e-10
      %v3547 = vmul.f32 %v3539, -2.7261424e-10
      %v3548 = vmul.f32 %v3540, -2.7261424e-10
      %v3549 = vadd.f32 %v3541, 2.7706815e-08
      %v3550 = vadd.f32 %v3542, 2.7706815e-08
      %v3551 = vadd.f32 %v3543, 2.7706815e-08
      %v3552 = vadd.f32 %v3544, 2.7706815e-08
      %v3553 = vadd.f32 %v3545, 2.7706815e-08
      %v3554 = vadd.f32 %v3546, 2.7706815e-08
      %v3555 = vadd.f32 %v3547, 2.7706815e-08
      %v3556 = vadd.f32 %v3548, 2.7706815e-08
      %v3557 = vmul.f32 %v3549, %v3533
      %v3558 = vmul.f32 %v3550, %v3534
      %v3559 = vmul.f32 %v3551, %v3535
      %v3560 = vmul.f32 %v3552, %v3536
      %v3561 = vmul.f32 %v3553, %v3537
      %v3562 = vmul.f32 %v3554, %v3538
      %v3563 = vmul.f32 %v3555, %v3539
      %v3564 = vmul.f32 %v3556, %v3540
      %v3565 = vadd.f32 %v3557, -2.101024e-06
      %v3566 = vadd.f32 %v3558, -2.101024e-06
      %v3567 = vadd.f32 %v3559, -2.101024e-06
      %v3568 = vadd.f32 %v3560, -2.101024e-06
      %v3569 = vadd.f32 %v3561, -2.101024e-06
      %v3570 = vadd.f32 %v3562, -2.101024e-06
      %v3571 = vadd.f32 %v3563, -2.101024e-06
      %v3572 = vadd.f32 %v3564, -2.101024e-06
      %v3573 = vmul.f32 %v3565, %v3533
      %v3574 = vmul.f32 %v3566, %v3534
      %v3575 = vmul.f32 %v3567, %v3535
      %v3576 = vmul.f32 %v3568, %v3536
      %v3577 = vmul.f32 %v3569, %v3537
      %v3578 = vmul.f32 %v3570, %v3538
      %v3579 = vmul.f32 %v3571, %v3539
      %v3580 = vmul.f32 %v3572, %v3540
      %v3581 = vadd.f32 %v3573, -5.6925062e-05
      %v3582 = vadd.f32 %v3574, -5.6925062e-05
      %v3583 = vadd.f32 %v3575, -5.6925062e-05
      %v3584 = vadd.f32 %v3576, -5.6925062e-05
      %v3585 = vadd.f32 %v3577, -5.6925062e-05
      %v3586 = vadd.f32 %v3578, -5.6925062e-05
      %v3587 = vadd.f32 %v3579, -5.6925062e-05
      %v3588 = vadd.f32 %v3580, -5.6925062e-05
      %v3589 = vmul.f32 %v3581, %v3533
      %v3590 = vmul.f32 %v3582, %v3534
      %v3591 = vmul.f32 %v3583, %v3535
      %v3592 = vmul.f32 %v3584, %v3536
      %v3593 = vmul.f32 %v3585, %v3537
      %v3594 = vmul.f32 %v3586, %v3538
      %v3595 = vmul.f32 %v3587, %v3539
      %v3596 = vmul.f32 %v3588, %v3540
      %v3597 = vadd.f32 %v3589, -0.00073499064
      %v3598 = vadd.f32 %v3590, -0.00073499064
      %v3599 = vadd.f32 %v3591, -0.00073499064
      %v3600 = vadd.f32 %v3592, -0.00073499064
      %v3601 = vadd.f32 %v3593, -0.00073499064
      %v3602 = vadd.f32 %v3594, -0.00073499064
      %v3603 = vadd.f32 %v3595, -0.00073499064
      %v3604 = vadd.f32 %v3596, -0.00073499064
      %v3605 = vmul.f32 %v3597, %v3533
      %v3606 = vmul.f32 %v3598, %v3534
      %v3607 = vmul.f32 %v3599, %v3535
      %v3608 = vmul.f32 %v3600, %v3536
      %v3609 = vmul.f32 %v3601, %v3537
      %v3610 = vmul.f32 %v3602, %v3538
      %v3611 = vmul.f32 %v3603, %v3539
      %v3612 = vmul.f32 %v3604, %v3540
      %v3613 = vadd.f32 %v3605, -0.0029546
      %v3614 = vadd.f32 %v3606, -0.0029546
      %v3615 = vadd.f32 %v3607, -0.0029546
      %v3616 = vadd.f32 %v3608, -0.0029546
      %v3617 = vadd.f32 %v3609, -0.0029546
      %v3618 = vadd.f32 %v3610, -0.0029546
      %v3619 = vadd.f32 %v3611, -0.0029546
      %v3620 = vadd.f32 %v3612, -0.0029546
      %v3621 = vmul.f32 %v3613, %v3533
      %v3622 = vmul.f32 %v3614, %v3534
      %v3623 = vmul.f32 %v3615, %v3535
      %v3624 = vmul.f32 %v3616, %v3536
      %v3625 = vmul.f32 %v3617, %v3537
      %v3626 = vmul.f32 %v3618, %v3538
      %v3627 = vmul.f32 %v3619, %v3539
      %v3628 = vmul.f32 %v3620, %v3540
      %v3629 = vadd.f32 %v3621, -0.016096033
      %v3630 = vadd.f32 %v3622, -0.016096033
      %v3631 = vadd.f32 %v3623, -0.016096033
      %v3632 = vadd.f32 %v3624, -0.016096033
      %v3633 = vadd.f32 %v3625, -0.016096033
      %v3634 = vadd.f32 %v3626, -0.016096033
      %v3635 = vadd.f32 %v3627, -0.016096033
      %v3636 = vadd.f32 %v3628, -0.016096033
      %v3637 = vmul.f32 %v3533, -1.45660715e-05
      %v3638 = vmul.f32 %v3534, -1.45660715e-05
      %v3639 = vmul.f32 %v3535, -1.45660715e-05
      %v3640 = vmul.f32 %v3536, -1.45660715e-05
      %v3641 = vmul.f32 %v3537, -1.45660715e-05
      %v3642 = vmul.f32 %v3538, -1.45660715e-05
      %v3643 = vmul.f32 %v3539, -1.45660715e-05
      %v3644 = vmul.f32 %v3540, -1.45660715e-05
      %v3645 = vadd.f32 %v3637, -0.00021337405
      %v3646 = vadd.f32 %v3638, -0.00021337405
      %v3647 = vadd.f32 %v3639, -0.00021337405
      %v3648 = vadd.f32 %v3640, -0.00021337405
      %v3649 = vadd.f32 %v3641, -0.00021337405
      %v3650 = vadd.f32 %v3642, -0.00021337405
      %v3651 = vadd.f32 %v3643, -0.00021337405
      %v3652 = vadd.f32 %v3644, -0.00021337405
      %v3653 = vmul.f32 %v3645, %v3533
      %v3654 = vmul.f32 %v3646, %v3534
      %v3655 = vmul.f32 %v3647, %v3535
      %v3656 = vmul.f32 %v3648, %v3536
      %v3657 = vmul.f32 %v3649, %v3537
      %v3658 = vmul.f32 %v3650, %v3538
      %v3659 = vmul.f32 %v3651, %v3539
      %v3660 = vmul.f32 %v3652, %v3540
      %v3661 = vadd.f32 %v3653, -0.001682827
      %v3662 = vadd.f32 %v3654, -0.001682827
      %v3663 = vadd.f32 %v3655, -0.001682827
      %v3664 = vadd.f32 %v3656, -0.001682827
      %v3665 = vadd.f32 %v3657, -0.001682827
      %v3666 = vadd.f32 %v3658, -0.001682827
      %v3667 = vadd.f32 %v3659, -0.001682827
      %v3668 = vadd.f32 %v3660, -0.001682827
      %v3669 = vmul.f32 %v3661, %v3533
      %v3670 = vmul.f32 %v3662, %v3534
      %v3671 = vmul.f32 %v3663, %v3535
      %v3672 = vmul.f32 %v3664, %v3536
      %v3673 = vmul.f32 %v3665, %v3537
      %v3674 = vmul.f32 %v3666, %v3538
      %v3675 = vmul.f32 %v3667, %v3539
      %v3676 = vmul.f32 %v3668, %v3540
      %v3677 = vadd.f32 %v3669, -0.0073733293
      %v3678 = vadd.f32 %v3670, -0.0073733293
      %v3679 = vadd.f32 %v3671, -0.0073733293
      %v3680 = vadd.f32 %v3672, -0.0073733293
      %v3681 = vadd.f32 %v3673, -0.0073733293
      %v3682 = vadd.f32 %v3674, -0.0073733293
      %v3683 = vadd.f32 %v3675, -0.0073733293
      %v3684 = vadd.f32 %v3676, -0.0073733293
      %v3685 = vmul.f32 %v3677, %v3533
      %v3686 = vmul.f32 %v3678, %v3534
      %v3687 = vmul.f32 %v3679, %v3535
      %v3688 = vmul.f32 %v3680, %v3536
      %v3689 = vmul.f32 %v3681, %v3537
      %v3690 = vmul.f32 %v3682, %v3538
      %v3691 = vmul.f32 %v3683, %v3539
      %v3692 = vmul.f32 %v3684, %v3540
      %v3693 = vadd.f32 %v3685, -0.014264739
      %v3694 = vadd.f32 %v3686, -0.014264739
      %v3695 = vadd.f32 %v3687, -0.014264739
      %v3696 = vadd.f32 %v3688, -0.014264739
      %v3697 = vadd.f32 %v3689, -0.014264739
      %v3698 = vadd.f32 %v3690, -0.014264739
      %v3699 = vadd.f32 %v3691, -0.014264739
      %v3700 = vadd.f32 %v3692, -0.014264739
      %v3701 = vmul.f32 %v3525, %v3629
      %v3702 = vmul.f32 %v3526, %v3630
      %v3703 = vmul.f32 %v3527, %v3631
      %v3704 = vmul.f32 %v3528, %v3632
      %v3705 = vmul.f32 %v3529, %v3633
      %v3706 = vmul.f32 %v3530, %v3634
      %v3707 = vmul.f32 %v3531, %v3635
      %v3708 = vmul.f32 %v3532, %v3636
      %v3709 = vrcp.pop %v3693
      %v3710 = vrcp.pop %v3694
      %v3711 = vrcp.pop %v3695
      %v3712 = vrcp.pop %v3696
      %v3713 = vrcp.pop %v3697
      %v3714 = vrcp.pop %v3698
      %v3715 = vrcp.pop %v3699
      %v3716 = vrcp.pop %v3700
      %v3717 = vmul.f32 %v3701, %v3709
      %v3718 = vmul.f32 %v3702, %v3710
      %v3719 = vmul.f32 %v3703, %v3711
      %v3720 = vmul.f32 %v3704, %v3712
      %v3721 = vmul.f32 %v3705, %v3713
      %v3722 = vmul.f32 %v3706, %v3714
      %v3723 = vmul.f32 %v3707, %v3715
      %v3724 = vmul.f32 %v3708, %v3716
      %v3725 = vadd.f32 %v3717, 1.0
      %v3726 = vadd.f32 %v3718, 1.0
      %v3727 = vadd.f32 %v3719, 1.0
      %v3728 = vadd.f32 %v3720, 1.0
      %v3729 = vadd.f32 %v3721, 1.0
      %v3730 = vadd.f32 %v3722, 1.0
      %v3731 = vadd.f32 %v3723, 1.0
      %v3732 = vadd.f32 %v3724, 1.0
      %v3733 = vmul.f32 %v3501, %v3725
      %v3734 = vmul.f32 %v3502, %v3726
      %v3735 = vmul.f32 %v3503, %v3727
      %v3736 = vmul.f32 %v3504, %v3728
      %v3737 = vmul.f32 %v3505, %v3729
      %v3738 = vmul.f32 %v3506, %v3730
      %v3739 = vmul.f32 %v3507, %v3731
      %v3740 = vmul.f32 %v3508, %v3732
      %3741 = vst.msk [vmem:[#allocation3] sm:$0xf] %vm359, 0.0
      %3742 = vst.msk [vmem:[#allocation3 + $0x20] sm:$0xf] %vm350, 0.0
      %v3751 = vcombine.low %v3733, %v3734
      %v3752 = vcombine.low %v3735, %v3736
      %v3753 = vcombine.low %v3737, %v3738
      %v3754 = vcombine.low %v3739, %v3740
      %3755 = vrot.lane.b32.xlu0 %v3751, 64
      %v3756 = vpop.permute.xlu0 %3755
      %3757 = vrot.lane.b32.xlu0 %v3752, 64
      %v3758 = vpop.permute.xlu0 %3757
      %3759 = vrot.lane.b32.xlu0 %v3753, 64
      %v3760 = vpop.permute.xlu0 %3759
      %3761 = vrot.lane.b32.xlu0 %v3754, 64
      %v3762 = vpop.permute.xlu0 %3761
      %v3763 = vrot.slane %v3756, 4
      %v3764 = vrot.slane %v3758, 4
      %v3765 = vrot.slane %v3760, 4
      %v3766 = vrot.slane %v3762, 4
      %v3767 = vsel %vm302, %v3763, %v3756
      %vm3768 = vcmask 1043456
      %v3769 = vsel %vm3768, %v3763, %v3764
      %v3770 = vsel %vm302, %v3769, %v3758
      %v3771 = vsel %vm3768, %v3764, %v3765
      %v3772 = vsel %vm302, %v3771, %v3760
      %v3773 = vsel %vm3768, %v3765, %v3766
      %v3774 = vsel %vm302, %v3773, %v3762
      %vm3780 = vcmask 1047556
      %vm3781 = vmor %vm3780, %vm350
      %3782 = vst.msk [vmem:[#allocation3] sm:$0xff] %vm3781, %v3767
      %3783 = vst [vmem:[#allocation3 + $0x8] sm:$0xff] %v3770
      %3784 = vst [vmem:[#allocation3 + $0x10] sm:$0xff] %v3772
      %3785 = vst [vmem:[#allocation3 + $0x18] sm:$0xff] %v3774
      %3786 = vst.msk [vmem:[#allocation3 + $0x20] sm:$0xf] %vm359, %v3766
      %v3787 = vld [vmem:[%s4] sm:$0xf]
      %v3788 = vld [vmem:[#allocation3] sm:$0xff]
      %v3789 = vld [vmem:[#allocation3 + $0x8] sm:$0xff]
      %v3790 = vld [vmem:[#allocation3 + $0x10] sm:$0xff]
      %v3791 = vld [vmem:[#allocation3 + $0x18] sm:$0xff]
      %v3792 = vld [vmem:[#allocation3 + $0x20] sm:$0xf]
      %s3793 = scalar_lea.vmem %s4, 12
      %v3794 = vld [vmem:[%s3793] sm:$0xf]
      %v3800 = vcombine.high %v3788, %v3788
      %v3801 = vcombine.high %v3789, %v3789
      %v3802 = vcombine.high %v3790, %v3790
      %v3803 = vcombine.high %v3791, %v3791
      %3804 = vrot.lane.b32.xlu0 %v3788, 65
      %v3805 = vpop.permute.xlu0 %3804
      %3806 = vrot.lane.b32.xlu0 %v3800, 65
      %v3807 = vpop.permute.xlu0 %3806
      %3808 = vrot.lane.b32.xlu0 %v3789, 65
      %v3809 = vpop.permute.xlu0 %3808
      %3810 = vrot.lane.b32.xlu0 %v3801, 65
      %v3811 = vpop.permute.xlu0 %3810
      %3812 = vrot.lane.b32.xlu0 %v3790, 65
      %v3813 = vpop.permute.xlu0 %3812
      %3814 = vrot.lane.b32.xlu0 %v3802, 65
      %v3815 = vpop.permute.xlu0 %3814
      %3816 = vrot.lane.b32.xlu0 %v3791, 65
      %v3817 = vpop.permute.xlu0 %3816
      %3818 = vrot.lane.b32.xlu0 %v3803, 65
      %v3819 = vpop.permute.xlu0 %3818
      %3820 = vrot.lane.b32.xlu0 %v3792, 65
      %v3821 = vpop.permute.xlu0 %3820
      %v3822 = vsel %vm455, %v3805, %v3807
      %v3823 = vsel %vm455, %v3807, %v3809
      %v3824 = vsel %vm455, %v3809, %v3811
      %v3825 = vsel %vm455, %v3811, %v3813
      %v3826 = vsel %vm455, %v3813, %v3815
      %v3827 = vsel %vm455, %v3815, %v3817
      %v3828 = vsel %vm455, %v3817, %v3819
      %v3829 = vsel %vm455, %v3819, %v3821
      %vm3830 = vcmask 31744
      %v3832 = vsel %vm3830, %v3794, 0
      %v3834 = vsel %vm3768, %v3822, 0
      %v3836 = vsel %vm3768, %v3823, 0
      %v3838 = vsel %vm3768, %v3824, 0
      %v3840 = vsel %vm3768, %v3825, 0
      %v3842 = vsel %vm3768, %v3826, 0
      %v3844 = vsel %vm3768, %v3827, 0
      %v3846 = vsel %vm3768, %v3828, 0
      %v3848 = vsel %vm3768, %v3829, 0
      %3850 = vmatprep.subr.mxu0 %v3836
      %3851 = vmatpush1.msra.mxu0 %v3834
      %3852 = vmatprep.subr.mxu0 0.0
      %3853 = vmatpush1.msra.mxu0 0.0
      %3854 = vmatprep.subr.mxu0 0.0
      %3855 = vmatpush1.msra.mxu0 0.0
      %3856 = vmatprep.subr.mxu0 0.0
      %3857 = vmatpush1.msra.mxu0 0.0
      %3858 = vmatprep.subr.mxu0 0.0
      %3859 = vmatpush1.msra.mxu0 0.0
      %3860 = vmatprep.subr.mxu0 0.0
      %3861 = vmatpush1.msra.mxu0 0.0
      %3862 = vmatprep.subr.mxu0 0.0
      %3863 = vmatpush1.msra.mxu0 0.0
      %3864 = vmatprep.subr.mxu0 0.0
      %3865 = vmatpush1.msra.mxu0 0.0
      %3866 = vmatprep.subr.mxu0 0.0
      %3867 = vmatpush1.msra.mxu0 0.0
      %3868 = vmatprep.subr.mxu0 0.0
      %3869 = vmatpush1.msra.mxu0 0.0
      %3870 = vmatprep.subr.mxu0 0.0
      %3871 = vmatpush1.msra.mxu0 0.0
      %3872 = vmatprep.subr.mxu0 0.0
      %3873 = vmatpush1.msra.mxu0 0.0
      %3874 = vmatprep.subr.mxu0 0.0
      %3875 = vmatpush1.msra.mxu0 0.0
      %3876 = vmatprep.subr.mxu0 0.0
      %3877 = vmatpush1.msra.mxu0 0.0
      %3878 = vmatprep.subr.mxu0 0.0
      %3879 = vmatpush1.msra.mxu0 0.0
      %3880 = vmatprep.subr.mxu0 0.0
      %3881 = vmatpush1.msra.mxu0 0.0
      %3882 = vmatprep.subr.mxu0 0.0
      %3883 = vmatpush1.msra.mxu0 0.0
      %3884 = vmatprep.subr.mxu0 0.0
      %3885 = vmatpush1.msra.mxu0 0.0
      %3886 = vmatprep.subr.mxu0 0.0
      %3887 = vmatpush1.msra.mxu0 0.0
      %3888 = vmatprep.subr.mxu0 0.0
      %3889 = vmatpush1.msra.mxu0 0.0
      %3890 = vmatprep.subr.mxu0 0.0
      %3891 = vmatpush1.msra.mxu0 0.0
      %3892 = vmatprep.subr.mxu0 0.0
      %3893 = vmatpush1.msra.mxu0 0.0
      %3894 = vmatprep.subr.mxu0 0.0
      %3895 = vmatpush1.msra.mxu0 0.0
      %3896 = vmatprep.subr.mxu0 0.0
      %3897 = vmatpush1.msra.mxu0 0.0
      %3898 = vmatprep.subr.mxu0 0.0
      %3899 = vmatpush1.msra.mxu0 0.0
      %3900 = vmatprep.subr.mxu0 0.0
      %3901 = vmatpush1.msra.mxu0 0.0
      %3902 = vmatprep.subr.mxu0 0.0
      %3903 = vmatpush1.msra.mxu0 0.0
      %3904 = vmatprep.subr.mxu0 0.0
      %3905 = vmatpush1.msra.mxu0 0.0
      %3906 = vmatprep.subr.mxu0 0.0
      %3907 = vmatpush1.msra.mxu0 0.0
      %3908 = vmatprep.subr.mxu0 0.0
      %3909 = vmatpush1.msra.mxu0 0.0
      %3910 = vmatprep.subr.mxu0 0.0
      %3911 = vmatpush1.msra.mxu0 0.0
      %3912 = vmatprep.subr.mxu0 0.0
      %3913 = vmatpush1.msra.mxu0 0.0
      %3914 = vmatprep.mubr.f32.mxu0 0.0
      %3915 = vmatmul.mubr.f32.gmra.mrb[0].mxu0 %v3832
      %v3916 = vpop.f32.mrb[0].mxu0
      %v3917 = vadd.f32 0.0, %v3916
      %v3918 = vpop.f32.mrb[0].mxu0
      %v3919 = vadd.f32 0.0, %v3918
      %3920 = vdwg.mxu0
      %3921 = vmatprep.subr.mxu0 %v3840
      %3922 = vmatpush1.msra.mxu0 %v3838
      %3923 = vmatprep.subr.mxu0 0.0
      %3924 = vmatpush1.msra.mxu0 0.0
      %3925 = vmatprep.subr.mxu0 0.0
      %3926 = vmatpush1.msra.mxu0 0.0
      %3927 = vmatprep.subr.mxu0 0.0
      %3928 = vmatpush1.msra.mxu0 0.0
      %3929 = vmatprep.subr.mxu0 0.0
      %3930 = vmatpush1.msra.mxu0 0.0
      %3931 = vmatprep.subr.mxu0 0.0
      %3932 = vmatpush1.msra.mxu0 0.0
      %3933 = vmatprep.subr.mxu0 0.0
      %3934 = vmatpush1.msra.mxu0 0.0
      %3935 = vmatprep.subr.mxu0 0.0
      %3936 = vmatpush1.msra.mxu0 0.0
      %3937 = vmatprep.subr.mxu0 0.0
      %3938 = vmatpush1.msra.mxu0 0.0
      %3939 = vmatprep.subr.mxu0 0.0
      %3940 = vmatpush1.msra.mxu0 0.0
      %3941 = vmatprep.subr.mxu0 0.0
      %3942 = vmatpush1.msra.mxu0 0.0
      %3943 = vmatprep.subr.mxu0 0.0
      %3944 = vmatpush1.msra.mxu0 0.0
      %3945 = vmatprep.subr.mxu0 0.0
      %3946 = vmatpush1.msra.mxu0 0.0
      %3947 = vmatprep.subr.mxu0 0.0
      %3948 = vmatpush1.msra.mxu0 0.0
      %3949 = vmatprep.subr.mxu0 0.0
      %3950 = vmatpush1.msra.mxu0 0.0
      %3951 = vmatprep.subr.mxu0 0.0
      %3952 = vmatpush1.msra.mxu0 0.0
      %3953 = vmatprep.subr.mxu0 0.0
      %3954 = vmatpush1.msra.mxu0 0.0
      %3955 = vmatprep.subr.mxu0 0.0
      %3956 = vmatpush1.msra.mxu0 0.0
      %3957 = vmatprep.subr.mxu0 0.0
      %3958 = vmatpush1.msra.mxu0 0.0
      %3959 = vmatprep.subr.mxu0 0.0
      %3960 = vmatpush1.msra.mxu0 0.0
      %3961 = vmatprep.subr.mxu0 0.0
      %3962 = vmatpush1.msra.mxu0 0.0
      %3963 = vmatprep.subr.mxu0 0.0
      %3964 = vmatpush1.msra.mxu0 0.0
      %3965 = vmatprep.subr.mxu0 0.0
      %3966 = vmatpush1.msra.mxu0 0.0
      %3967 = vmatprep.subr.mxu0 0.0
      %3968 = vmatpush1.msra.mxu0 0.0
      %3969 = vmatprep.subr.mxu0 0.0
      %3970 = vmatpush1.msra.mxu0 0.0
      %3971 = vmatprep.subr.mxu0 0.0
      %3972 = vmatpush1.msra.mxu0 0.0
      %3973 = vmatprep.subr.mxu0 0.0
      %3974 = vmatpush1.msra.mxu0 0.0
      %3975 = vmatprep.subr.mxu0 0.0
      %3976 = vmatpush1.msra.mxu0 0.0
      %3977 = vmatprep.subr.mxu0 0.0
      %3978 = vmatpush1.msra.mxu0 0.0
      %3979 = vmatprep.subr.mxu0 0.0
      %3980 = vmatpush1.msra.mxu0 0.0
      %3981 = vmatprep.subr.mxu0 0.0
      %3982 = vmatpush1.msra.mxu0 0.0
      %3983 = vmatprep.subr.mxu0 0.0
      %3984 = vmatpush1.msra.mxu0 0.0
      %3985 = vmatprep.mubr.f32.mxu0 0.0
      %3986 = vmatmul.mubr.f32.gmra.mrb[0].mxu0 %v3832
      %v3987 = vpop.f32.mrb[0].mxu0
      %v3988 = vadd.f32 0.0, %v3987
      %v3989 = vpop.f32.mrb[0].mxu0
      %v3990 = vadd.f32 0.0, %v3989
      %3991 = vdwg.mxu0
      %3992 = vmatprep.subr.mxu0 %v3844
      %3993 = vmatpush1.msra.mxu0 %v3842
      %3994 = vmatprep.subr.mxu0 0.0
      %3995 = vmatpush1.msra.mxu0 0.0
      %3996 = vmatprep.subr.mxu0 0.0
      %3997 = vmatpush1.msra.mxu0 0.0
      %3998 = vmatprep.subr.mxu0 0.0
      %3999 = vmatpush1.msra.mxu0 0.0
      %4000 = vmatprep.subr.mxu0 0.0
      %4001 = vmatpush1.msra.mxu0 0.0
      %4002 = vmatprep.subr.mxu0 0.0
      %4003 = vmatpush1.msra.mxu0 0.0
      %4004 = vmatprep.subr.mxu0 0.0
      %4005 = vmatpush1.msra.mxu0 0.0
      %4006 = vmatprep.subr.mxu0 0.0
      %4007 = vmatpush1.msra.mxu0 0.0
      %4008 = vmatprep.subr.mxu0 0.0
      %4009 = vmatpush1.msra.mxu0 0.0
      %4010 = vmatprep.subr.mxu0 0.0
      %4011 = vmatpush1.msra.mxu0 0.0
      %4012 = vmatprep.subr.mxu0 0.0
      %4013 = vmatpush1.msra.mxu0 0.0
      %4014 = vmatprep.subr.mxu0 0.0
      %4015 = vmatpush1.msra.mxu0 0.0
      %4016 = vmatprep.subr.mxu0 0.0
      %4017 = vmatpush1.msra.mxu0 0.0
      %4018 = vmatprep.subr.mxu0 0.0
      %4019 = vmatpush1.msra.mxu0 0.0
      %4020 = vmatprep.subr.mxu0 0.0
      %4021 = vmatpush1.msra.mxu0 0.0
      %4022 = vmatprep.subr.mxu0 0.0
      %4023 = vmatpush1.msra.mxu0 0.0
      %4024 = vmatprep.subr.mxu0 0.0
      %4025 = vmatpush1.msra.mxu0 0.0
      %4026 = vmatprep.subr.mxu0 0.0
      %4027 = vmatpush1.msra.mxu0 0.0
      %4028 = vmatprep.subr.mxu0 0.0
      %4029 = vmatpush1.msra.mxu0 0.0
      %4030 = vmatprep.subr.mxu0 0.0
      %4031 = vmatpush1.msra.mxu0 0.0
      %4032 = vmatprep.subr.mxu0 0.0
      %4033 = vmatpush1.msra.mxu0 0.0
      %4034 = vmatprep.subr.mxu0 0.0
      %4035 = vmatpush1.msra.mxu0 0.0
      %4036 = vmatprep.subr.mxu0 0.0
      %4037 = vmatpush1.msra.mxu0 0.0
      %4038 = vmatprep.subr.mxu0 0.0
      %4039 = vmatpush1.msra.mxu0 0.0
      %4040 = vmatprep.subr.mxu0 0.0
      %4041 = vmatpush1.msra.mxu0 0.0
      %4042 = vmatprep.subr.mxu0 0.0
      %4043 = vmatpush1.msra.mxu0 0.0
      %4044 = vmatprep.subr.mxu0 0.0
      %4045 = vmatpush1.msra.mxu0 0.0
      %4046 = vmatprep.subr.mxu0 0.0
      %4047 = vmatpush1.msra.mxu0 0.0
      %4048 = vmatprep.subr.mxu0 0.0
      %4049 = vmatpush1.msra.mxu0 0.0
      %4050 = vmatprep.subr.mxu0 0.0
      %4051 = vmatpush1.msra.mxu0 0.0
      %4052 = vmatprep.subr.mxu0 0.0
      %4053 = vmatpush1.msra.mxu0 0.0
      %4054 = vmatprep.subr.mxu0 0.0
      %4055 = vmatpush1.msra.mxu0 0.0
      %4056 = vmatprep.mubr.f32.mxu0 0.0
      %4057 = vmatmul.mubr.f32.gmra.mrb[0].mxu0 %v3832
      %v4058 = vpop.f32.mrb[0].mxu0
      %v4059 = vadd.f32 0.0, %v4058
      %v4060 = vpop.f32.mrb[0].mxu0
      %v4061 = vadd.f32 0.0, %v4060
      %4062 = vdwg.mxu0
      %4063 = vmatprep.subr.mxu0 %v3848
      %4064 = vmatpush1.msra.mxu0 %v3846
      %4065 = vmatprep.subr.mxu0 0.0
      %4066 = vmatpush1.msra.mxu0 0.0
      %4067 = vmatprep.subr.mxu0 0.0
      %4068 = vmatpush1.msra.mxu0 0.0
      %4069 = vmatprep.subr.mxu0 0.0
      %4070 = vmatpush1.msra.mxu0 0.0
      %4071 = vmatprep.subr.mxu0 0.0
      %4072 = vmatpush1.msra.mxu0 0.0
      %4073 = vmatprep.subr.mxu0 0.0
      %4074 = vmatpush1.msra.mxu0 0.0
      %4075 = vmatprep.subr.mxu0 0.0
      %4076 = vmatpush1.msra.mxu0 0.0
      %4077 = vmatprep.subr.mxu0 0.0
      %4078 = vmatpush1.msra.mxu0 0.0
      %4079 = vmatprep.subr.mxu0 0.0
      %4080 = vmatpush1.msra.mxu0 0.0
      %4081 = vmatprep.subr.mxu0 0.0
      %4082 = vmatpush1.msra.mxu0 0.0
      %4083 = vmatprep.subr.mxu0 0.0
      %4084 = vmatpush1.msra.mxu0 0.0
      %4085 = vmatprep.subr.mxu0 0.0
      %4086 = vmatpush1.msra.mxu0 0.0
      %4087 = vmatprep.subr.mxu0 0.0
      %4088 = vmatpush1.msra.mxu0 0.0
      %4089 = vmatprep.subr.mxu0 0.0
      %4090 = vmatpush1.msra.mxu0 0.0
      %4091 = vmatprep.subr.mxu0 0.0
      %4092 = vmatpush1.msra.mxu0 0.0
      %4093 = vmatprep.subr.mxu0 0.0
      %4094 = vmatpush1.msra.mxu0 0.0
      %4095 = vmatprep.subr.mxu0 0.0
      %4096 = vmatpush1.msra.mxu0 0.0
      %4097 = vmatprep.subr.mxu0 0.0
      %4098 = vmatpush1.msra.mxu0 0.0
      %4099 = vmatprep.subr.mxu0 0.0
      %4100 = vmatpush1.msra.mxu0 0.0
      %4101 = vmatprep.subr.mxu0 0.0
      %4102 = vmatpush1.msra.mxu0 0.0
      %4103 = vmatprep.subr.mxu0 0.0
      %4104 = vmatpush1.msra.mxu0 0.0
      %4105 = vmatprep.subr.mxu0 0.0
      %4106 = vmatpush1.msra.mxu0 0.0
      %4107 = vmatprep.subr.mxu0 0.0
      %4108 = vmatpush1.msra.mxu0 0.0
      %4109 = vmatprep.subr.mxu0 0.0
      %4110 = vmatpush1.msra.mxu0 0.0
      %4111 = vmatprep.subr.mxu0 0.0
      %4112 = vmatpush1.msra.mxu0 0.0
      %4113 = vmatprep.subr.mxu0 0.0
      %4114 = vmatpush1.msra.mxu0 0.0
      %4115 = vmatprep.subr.mxu0 0.0
      %4116 = vmatpush1.msra.mxu0 0.0
      %4117 = vmatprep.subr.mxu0 0.0
      %4118 = vmatpush1.msra.mxu0 0.0
      %4119 = vmatprep.subr.mxu0 0.0
      %4120 = vmatpush1.msra.mxu0 0.0
      %4121 = vmatprep.subr.mxu0 0.0
      %4122 = vmatpush1.msra.mxu0 0.0
      %4123 = vmatprep.subr.mxu0 0.0
      %4124 = vmatpush1.msra.mxu0 0.0
      %4125 = vmatprep.subr.mxu0 0.0
      %4126 = vmatpush1.msra.mxu0 0.0
      %4127 = vmatprep.mubr.f32.mxu0 0.0
      %4128 = vmatmul.mubr.f32.gmra.mrb[0].mxu0 %v3832
      %v4129 = vpop.f32.mrb[0].mxu0
      %v4130 = vadd.f32 0.0, %v4129
      %v4131 = vpop.f32.mrb[0].mxu0
      %v4132 = vadd.f32 0.0, %v4131
      %4133 = vdwg.mxu0
      %4134 = vrot.lane.b32.xlu0 %v3788, 97
      %v4135 = vpop.permute.xlu0 %4134
      %4136 = vrot.lane.b32.xlu0 %v3800, 97
      %v4137 = vpop.permute.xlu0 %4136
      %4138 = vrot.lane.b32.xlu0 %v3789, 97
      %v4139 = vpop.permute.xlu0 %4138
      %4140 = vrot.lane.b32.xlu0 %v3801, 97
      %v4141 = vpop.permute.xlu0 %4140
      %4142 = vrot.lane.b32.xlu0 %v3790, 97
      %v4143 = vpop.permute.xlu0 %4142
      %4144 = vrot.lane.b32.xlu0 %v3802, 97
      %v4145 = vpop.permute.xlu0 %4144
      %4146 = vrot.lane.b32.xlu0 %v3791, 97
      %v4147 = vpop.permute.xlu0 %4146
      %4148 = vrot.lane.b32.xlu0 %v3803, 97
      %v4149 = vpop.permute.xlu0 %4148
      %4150 = vrot.lane.b32.xlu0 %v3792, 97
      %v4151 = vpop.permute.xlu0 %4150
      %v4152 = vsel %vm778, %v4135, %v4137
      %v4153 = vsel %vm778, %v4137, %v4139
      %v4154 = vsel %vm778, %v4139, %v4141
      %v4155 = vsel %vm778, %v4141, %v4143
      %v4156 = vsel %vm778, %v4143, %v4145
      %v4157 = vsel %vm778, %v4145, %v4147
      %v4158 = vsel %vm778, %v4147, %v4149
      %v4159 = vsel %vm778, %v4149, %v4151
      %v4161 = vsel %vm3830, %v3787, 0
      %v4163 = vsel %vm3768, %v4152, 0
      %v4165 = vsel %vm3768, %v4153, 0
      %v4167 = vsel %vm3768, %v4154, 0
      %v4169 = vsel %vm3768, %v4155, 0
      %v4171 = vsel %vm3768, %v4156, 0
      %v4173 = vsel %vm3768, %v4157, 0
      %v4175 = vsel %vm3768, %v4158, 0
      %v4177 = vsel %vm3768, %v4159, 0
      %4179 = vmatprep.subr.mxu0 %v4165
      %4180 = vmatpush1.msra.mxu0 %v4163
      %4181 = vmatprep.subr.mxu0 0.0
      %4182 = vmatpush1.msra.mxu0 0.0
      %4183 = vmatprep.subr.mxu0 0.0
      %4184 = vmatpush1.msra.mxu0 0.0
      %4185 = vmatprep.subr.mxu0 0.0
      %4186 = vmatpush1.msra.mxu0 0.0
      %4187 = vmatprep.subr.mxu0 0.0
      %4188 = vmatpush1.msra.mxu0 0.0
      %4189 = vmatprep.subr.mxu0 0.0
      %4190 = vmatpush1.msra.mxu0 0.0
      %4191 = vmatprep.subr.mxu0 0.0
      %4192 = vmatpush1.msra.mxu0 0.0
      %4193 = vmatprep.subr.mxu0 0.0
      %4194 = vmatpush1.msra.mxu0 0.0
      %4195 = vmatprep.subr.mxu0 0.0
      %4196 = vmatpush1.msra.mxu0 0.0
      %4197 = vmatprep.subr.mxu0 0.0
      %4198 = vmatpush1.msra.mxu0 0.0
      %4199 = vmatprep.subr.mxu0 0.0
      %4200 = vmatpush1.msra.mxu0 0.0
      %4201 = vmatprep.subr.mxu0 0.0
      %4202 = vmatpush1.msra.mxu0 0.0
      %4203 = vmatprep.subr.mxu0 0.0
      %4204 = vmatpush1.msra.mxu0 0.0
      %4205 = vmatprep.subr.mxu0 0.0
      %4206 = vmatpush1.msra.mxu0 0.0
      %4207 = vmatprep.subr.mxu0 0.0
      %4208 = vmatpush1.msra.mxu0 0.0
      %4209 = vmatprep.subr.mxu0 0.0
      %4210 = vmatpush1.msra.mxu0 0.0
      %4211 = vmatprep.subr.mxu0 0.0
      %4212 = vmatpush1.msra.mxu0 0.0
      %4213 = vmatprep.subr.mxu0 0.0
      %4214 = vmatpush1.msra.mxu0 0.0
      %4215 = vmatprep.subr.mxu0 0.0
      %4216 = vmatpush1.msra.mxu0 0.0
      %4217 = vmatprep.subr.mxu0 0.0
      %4218 = vmatpush1.msra.mxu0 0.0
      %4219 = vmatprep.subr.mxu0 0.0
      %4220 = vmatpush1.msra.mxu0 0.0
      %4221 = vmatprep.subr.mxu0 0.0
      %4222 = vmatpush1.msra.mxu0 0.0
      %4223 = vmatprep.subr.mxu0 0.0
      %4224 = vmatpush1.msra.mxu0 0.0
      %4225 = vmatprep.subr.mxu0 0.0
      %4226 = vmatpush1.msra.mxu0 0.0
      %4227 = vmatprep.subr.mxu0 0.0
      %4228 = vmatpush1.msra.mxu0 0.0
      %4229 = vmatprep.subr.mxu0 0.0
      %4230 = vmatpush1.msra.mxu0 0.0
      %4231 = vmatprep.subr.mxu0 0.0
      %4232 = vmatpush1.msra.mxu0 0.0
      %4233 = vmatprep.subr.mxu0 0.0
      %4234 = vmatpush1.msra.mxu0 0.0
      %4235 = vmatprep.subr.mxu0 0.0
      %4236 = vmatpush1.msra.mxu0 0.0
      %4237 = vmatprep.subr.mxu0 0.0
      %4238 = vmatpush1.msra.mxu0 0.0
      %4239 = vmatprep.subr.mxu0 0.0
      %4240 = vmatpush1.msra.mxu0 0.0
      %4241 = vmatprep.subr.mxu0 0.0
      %4242 = vmatpush1.msra.mxu0 0.0
      %4243 = vmatprep.mubr.f32.mxu0 0.0
      %4244 = vmatmul.mubr.f32.gmra.mrb[0].mxu0 %v4161
      %v4245 = vpop.f32.mrb[0].mxu0
      %v4246 = vadd.f32 %v3917, %v4245
      %v4247 = vpop.f32.mrb[0].mxu0
      %v4248 = vadd.f32 %v3919, %v4247
      %4249 = vdwg.mxu0
      %4250 = vmatprep.subr.mxu0 %v4169
      %4251 = vmatpush1.msra.mxu0 %v4167
      %4252 = vmatprep.subr.mxu0 0.0
      %4253 = vmatpush1.msra.mxu0 0.0
      %4254 = vmatprep.subr.mxu0 0.0
      %4255 = vmatpush1.msra.mxu0 0.0
      %4256 = vmatprep.subr.mxu0 0.0
      %4257 = vmatpush1.msra.mxu0 0.0
      %4258 = vmatprep.subr.mxu0 0.0
      %4259 = vmatpush1.msra.mxu0 0.0
      %4260 = vmatprep.subr.mxu0 0.0
      %4261 = vmatpush1.msra.mxu0 0.0
      %4262 = vmatprep.subr.mxu0 0.0
      %4263 = vmatpush1.msra.mxu0 0.0
      %4264 = vmatprep.subr.mxu0 0.0
      %4265 = vmatpush1.msra.mxu0 0.0
      %4266 = vmatprep.subr.mxu0 0.0
      %4267 = vmatpush1.msra.mxu0 0.0
      %4268 = vmatprep.subr.mxu0 0.0
      %4269 = vmatpush1.msra.mxu0 0.0
      %4270 = vmatprep.subr.mxu0 0.0
      %4271 = vmatpush1.msra.mxu0 0.0
      %4272 = vmatprep.subr.mxu0 0.0
      %4273 = vmatpush1.msra.mxu0 0.0
      %4274 = vmatprep.subr.mxu0 0.0
      %4275 = vmatpush1.msra.mxu0 0.0
      %4276 = vmatprep.subr.mxu0 0.0
      %4277 = vmatpush1.msra.mxu0 0.0
      %4278 = vmatprep.subr.mxu0 0.0
      %4279 = vmatpush1.msra.mxu0 0.0
      %4280 = vmatprep.subr.mxu0 0.0
      %4281 = vmatpush1.msra.mxu0 0.0
      %4282 = vmatprep.subr.mxu0 0.0
      %4283 = vmatpush1.msra.mxu0 0.0
      %4284 = vmatprep.subr.mxu0 0.0
      %4285 = vmatpush1.msra.mxu0 0.0
      %4286 = vmatprep.subr.mxu0 0.0
      %4287 = vmatpush1.msra.mxu0 0.0
      %4288 = vmatprep.subr.mxu0 0.0
      %4289 = vmatpush1.msra.mxu0 0.0
      %4290 = vmatprep.subr.mxu0 0.0
      %4291 = vmatpush1.msra.mxu0 0.0
      %4292 = vmatprep.subr.mxu0 0.0
      %4293 = vmatpush1.msra.mxu0 0.0
      %4294 = vmatprep.subr.mxu0 0.0
      %4295 = vmatpush1.msra.mxu0 0.0
      %4296 = vmatprep.subr.mxu0 0.0
      %4297 = vmatpush1.msra.mxu0 0.0
      %4298 = vmatprep.subr.mxu0 0.0
      %4299 = vmatpush1.msra.mxu0 0.0
      %4300 = vmatprep.subr.mxu0 0.0
      %4301 = vmatpush1.msra.mxu0 0.0
      %4302 = vmatprep.subr.mxu0 0.0
      %4303 = vmatpush1.msra.mxu0 0.0
      %4304 = vmatprep.subr.mxu0 0.0
      %4305 = vmatpush1.msra.mxu0 0.0
      %4306 = vmatprep.subr.mxu0 0.0
      %4307 = vmatpush1.msra.mxu0 0.0
      %4308 = vmatprep.subr.mxu0 0.0
      %4309 = vmatpush1.msra.mxu0 0.0
      %4310 = vmatprep.subr.mxu0 0.0
      %4311 = vmatpush1.msra.mxu0 0.0
      %4312 = vmatprep.subr.mxu0 0.0
      %4313 = vmatpush1.msra.mxu0 0.0
      %4314 = vmatprep.mubr.f32.mxu0 0.0
      %4315 = vmatmul.mubr.f32.gmra.mrb[0].mxu0 %v4161
      %v4316 = vpop.f32.mrb[0].mxu0
      %v4317 = vadd.f32 %v3988, %v4316
      %v4318 = vpop.f32.mrb[0].mxu0
      %v4319 = vadd.f32 %v3990, %v4318
      %4320 = vdwg.mxu0
      %4321 = vmatprep.subr.mxu0 %v4173
      %4322 = vmatpush1.msra.mxu0 %v4171
      %4323 = vmatprep.subr.mxu0 0.0
      %4324 = vmatpush1.msra.mxu0 0.0
      %4325 = vmatprep.subr.mxu0 0.0
      %4326 = vmatpush1.msra.mxu0 0.0
      %4327 = vmatprep.subr.mxu0 0.0
      %4328 = vmatpush1.msra.mxu0 0.0
      %4329 = vmatprep.subr.mxu0 0.0
      %4330 = vmatpush1.msra.mxu0 0.0
      %4331 = vmatprep.subr.mxu0 0.0
      %4332 = vmatpush1.msra.mxu0 0.0
      %4333 = vmatprep.subr.mxu0 0.0
      %4334 = vmatpush1.msra.mxu0 0.0
      %4335 = vmatprep.subr.mxu0 0.0
      %4336 = vmatpush1.msra.mxu0 0.0
      %4337 = vmatprep.subr.mxu0 0.0
      %4338 = vmatpush1.msra.mxu0 0.0
      %4339 = vmatprep.subr.mxu0 0.0
      %4340 = vmatpush1.msra.mxu0 0.0
      %4341 = vmatprep.subr.mxu0 0.0
      %4342 = vmatpush1.msra.mxu0 0.0
      %4343 = vmatprep.subr.mxu0 0.0
      %4344 = vmatpush1.msra.mxu0 0.0
      %4345 = vmatprep.subr.mxu0 0.0
      %4346 = vmatpush1.msra.mxu0 0.0
      %4347 = vmatprep.subr.mxu0 0.0
      %4348 = vmatpush1.msra.mxu0 0.0
      %4349 = vmatprep.subr.mxu0 0.0
      %4350 = vmatpush1.msra.mxu0 0.0
      %4351 = vmatprep.subr.mxu0 0.0
      %4352 = vmatpush1.msra.mxu0 0.0
      %4353 = vmatprep.subr.mxu0 0.0
      %4354 = vmatpush1.msra.mxu0 0.0
      %4355 = vmatprep.subr.mxu0 0.0
      %4356 = vmatpush1.msra.mxu0 0.0
      %4357 = vmatprep.subr.mxu0 0.0
      %4358 = vmatpush1.msra.mxu0 0.0
      %4359 = vmatprep.subr.mxu0 0.0
      %4360 = vmatpush1.msra.mxu0 0.0
      %4361 = vmatprep.subr.mxu0 0.0
      %4362 = vmatpush1.msra.mxu0 0.0
      %4363 = vmatprep.subr.mxu0 0.0
      %4364 = vmatpush1.msra.mxu0 0.0
      %4365 = vmatprep.subr.mxu0 0.0
      %4366 = vmatpush1.msra.mxu0 0.0
      %4367 = vmatprep.subr.mxu0 0.0
      %4368 = vmatpush1.msra.mxu0 0.0
      %4369 = vmatprep.subr.mxu0 0.0
      %4370 = vmatpush1.msra.mxu0 0.0
      %4371 = vmatprep.subr.mxu0 0.0
      %4372 = vmatpush1.msra.mxu0 0.0
      %4373 = vmatprep.subr.mxu0 0.0
      %4374 = vmatpush1.msra.mxu0 0.0
      %4375 = vmatprep.subr.mxu0 0.0
      %4376 = vmatpush1.msra.mxu0 0.0
      %4377 = vmatprep.subr.mxu0 0.0
      %4378 = vmatpush1.msra.mxu0 0.0
      %4379 = vmatprep.subr.mxu0 0.0
      %4380 = vmatpush1.msra.mxu0 0.0
      %4381 = vmatprep.subr.mxu0 0.0
      %4382 = vmatpush1.msra.mxu0 0.0
      %4383 = vmatprep.subr.mxu0 0.0
      %4384 = vmatpush1.msra.mxu0 0.0
      %4385 = vmatprep.mubr.f32.mxu0 0.0
      %4386 = vmatmul.mubr.f32.gmra.mrb[0].mxu0 %v4161
      %v4387 = vpop.f32.mrb[0].mxu0
      %v4388 = vadd.f32 %v4059, %v4387
      %v4389 = vpop.f32.mrb[0].mxu0
      %v4390 = vadd.f32 %v4061, %v4389
      %4391 = vdwg.mxu0
      %4392 = vmatprep.subr.mxu0 %v4177
      %4393 = vmatpush1.msra.mxu0 %v4175
      %4394 = vmatprep.subr.mxu0 0.0
      %4395 = vmatpush1.msra.mxu0 0.0
      %4396 = vmatprep.subr.mxu0 0.0
      %4397 = vmatpush1.msra.mxu0 0.0
      %4398 = vmatprep.subr.mxu0 0.0
      %4399 = vmatpush1.msra.mxu0 0.0
      %4400 = vmatprep.subr.mxu0 0.0
      %4401 = vmatpush1.msra.mxu0 0.0
      %4402 = vmatprep.subr.mxu0 0.0
      %4403 = vmatpush1.msra.mxu0 0.0
      %4404 = vmatprep.subr.mxu0 0.0
      %4405 = vmatpush1.msra.mxu0 0.0
      %4406 = vmatprep.subr.mxu0 0.0
      %4407 = vmatpush1.msra.mxu0 0.0
      %4408 = vmatprep.subr.mxu0 0.0
      %4409 = vmatpush1.msra.mxu0 0.0
      %4410 = vmatprep.subr.mxu0 0.0
      %4411 = vmatpush1.msra.mxu0 0.0
      %4412 = vmatprep.subr.mxu0 0.0
      %4413 = vmatpush1.msra.mxu0 0.0
      %4414 = vmatprep.subr.mxu0 0.0
      %4415 = vmatpush1.msra.mxu0 0.0
      %4416 = vmatprep.subr.mxu0 0.0
      %4417 = vmatpush1.msra.mxu0 0.0
      %4418 = vmatprep.subr.mxu0 0.0
      %4419 = vmatpush1.msra.mxu0 0.0
      %4420 = vmatprep.subr.mxu0 0.0
      %4421 = vmatpush1.msra.mxu0 0.0
      %4422 = vmatprep.subr.mxu0 0.0
      %4423 = vmatpush1.msra.mxu0 0.0
      %4424 = vmatprep.subr.mxu0 0.0
      %4425 = vmatpush1.msra.mxu0 0.0
      %4426 = vmatprep.subr.mxu0 0.0
      %4427 = vmatpush1.msra.mxu0 0.0
      %4428 = vmatprep.subr.mxu0 0.0
      %4429 = vmatpush1.msra.mxu0 0.0
      %4430 = vmatprep.subr.mxu0 0.0
      %4431 = vmatpush1.msra.mxu0 0.0
      %4432 = vmatprep.subr.mxu0 0.0
      %4433 = vmatpush1.msra.mxu0 0.0
      %4434 = vmatprep.subr.mxu0 0.0
      %4435 = vmatpush1.msra.mxu0 0.0
      %4436 = vmatprep.subr.mxu0 0.0
      %4437 = vmatpush1.msra.mxu0 0.0
      %4438 = vmatprep.subr.mxu0 0.0
      %4439 = vmatpush1.msra.mxu0 0.0
      %4440 = vmatprep.subr.mxu0 0.0
      %4441 = vmatpush1.msra.mxu0 0.0
      %4442 = vmatprep.subr.mxu0 0.0
      %4443 = vmatpush1.msra.mxu0 0.0
      %4444 = vmatprep.subr.mxu0 0.0
      %4445 = vmatpush1.msra.mxu0 0.0
      %4446 = vmatprep.subr.mxu0 0.0
      %4447 = vmatpush1.msra.mxu0 0.0
      %4448 = vmatprep.subr.mxu0 0.0
      %4449 = vmatpush1.msra.mxu0 0.0
      %4450 = vmatprep.subr.mxu0 0.0
      %4451 = vmatpush1.msra.mxu0 0.0
      %4452 = vmatprep.subr.mxu0 0.0
      %4453 = vmatpush1.msra.mxu0 0.0
      %4454 = vmatprep.subr.mxu0 0.0
      %4455 = vmatpush1.msra.mxu0 0.0
      %4456 = vmatprep.mubr.f32.mxu0 0.0
      %4457 = vmatmul.mubr.f32.gmra.mrb[0].mxu0 %v4161
      %v4458 = vpop.f32.mrb[0].mxu0
      %v4459 = vadd.f32 %v4130, %v4458
      %v4460 = vpop.f32.mrb[0].mxu0
      %v4461 = vadd.f32 %v4132, %v4460
      %4462 = vdwg.mxu0
      %s4463 = scalar_lea.vmem %s4, 24
      %v4464 = vld [vmem:[%s4463] sm:$0xf]
      %v4465 = vld [vmem:[#allocation3] sm:$0xff]
      %v4466 = vld [vmem:[#allocation3 + $0x8] sm:$0xff]
      %v4467 = vld [vmem:[#allocation3 + $0x10] sm:$0xff]
      %v4468 = vld [vmem:[#allocation3 + $0x18] sm:$0xff]
      %v4469 = vld [vmem:[#allocation3 + $0x20] sm:$0xf]
      %v4475 = vcombine.high %v4465, %v4465
      %v4476 = vcombine.high %v4466, %v4466
      %v4477 = vcombine.high %v4467, %v4467
      %v4478 = vcombine.high %v4468, %v4468
      %4479 = vrot.lane.b32.xlu0 %v4465, 33
      %v4480 = vpop.permute.xlu0 %4479
      %4481 = vrot.lane.b32.xlu0 %v4475, 33
      %v4482 = vpop.permute.xlu0 %4481
      %4483 = vrot.lane.b32.xlu0 %v4466, 33
      %v4484 = vpop.permute.xlu0 %4483
      %4485 = vrot.lane.b32.xlu0 %v4476, 33
      %v4486 = vpop.permute.xlu0 %4485
      %4487 = vrot.lane.b32.xlu0 %v4467, 33
      %v4488 = vpop.permute.xlu0 %4487
      %4489 = vrot.lane.b32.xlu0 %v4477, 33
      %v4490 = vpop.permute.xlu0 %4489
      %4491 = vrot.lane.b32.xlu0 %v4468, 33
      %v4492 = vpop.permute.xlu0 %4491
      %4493 = vrot.lane.b32.xlu0 %v4478, 33
      %v4494 = vpop.permute.xlu0 %4493
      %4495 = vrot.lane.b32.xlu0 %v4469, 33
      %v4496 = vpop.permute.xlu0 %4495
      %v4497 = vsel %vm1102, %v4480, %v4482
      %v4498 = vsel %vm1102, %v4482, %v4484
      %v4499 = vsel %vm1102, %v4484, %v4486
      %v4500 = vsel %vm1102, %v4486, %v4488
      %v4501 = vsel %vm1102, %v4488, %v4490
      %v4502 = vsel %vm1102, %v4490, %v4492
      %v4503 = vsel %vm1102, %v4492, %v4494
      %v4504 = vsel %vm1102, %v4494, %v4496
      %v4506 = vsel %vm3830, %v4464, 0
      %v4508 = vsel %vm3768, %v4497, 0
      %v4510 = vsel %vm3768, %v4498, 0
      %v4512 = vsel %vm3768, %v4499, 0
      %v4514 = vsel %vm3768, %v4500, 0
      %v4516 = vsel %vm3768, %v4501, 0
      %v4518 = vsel %vm3768, %v4502, 0
      %v4520 = vsel %vm3768, %v4503, 0
      %v4522 = vsel %vm3768, %v4504, 0
      %4524 = vmatprep.subr.mxu0 %v4510
      %4525 = vmatpush1.msra.mxu0 %v4508
      %4526 = vmatprep.subr.mxu0 0.0
      %4527 = vmatpush1.msra.mxu0 0.0
      %4528 = vmatprep.subr.mxu0 0.0
      %4529 = vmatpush1.msra.mxu0 0.0
      %4530 = vmatprep.subr.mxu0 0.0
      %4531 = vmatpush1.msra.mxu0 0.0
      %4532 = vmatprep.subr.mxu0 0.0
      %4533 = vmatpush1.msra.mxu0 0.0
      %4534 = vmatprep.subr.mxu0 0.0
      %4535 = vmatpush1.msra.mxu0 0.0
      %4536 = vmatprep.subr.mxu0 0.0
      %4537 = vmatpush1.msra.mxu0 0.0
      %4538 = vmatprep.subr.mxu0 0.0
      %4539 = vmatpush1.msra.mxu0 0.0
      %4540 = vmatprep.subr.mxu0 0.0
      %4541 = vmatpush1.msra.mxu0 0.0
      %4542 = vmatprep.subr.mxu0 0.0
      %4543 = vmatpush1.msra.mxu0 0.0
      %4544 = vmatprep.subr.mxu0 0.0
      %4545 = vmatpush1.msra.mxu0 0.0
      %4546 = vmatprep.subr.mxu0 0.0
      %4547 = vmatpush1.msra.mxu0 0.0
      %4548 = vmatprep.subr.mxu0 0.0
      %4549 = vmatpush1.msra.mxu0 0.0
      %4550 = vmatprep.subr.mxu0 0.0
      %4551 = vmatpush1.msra.mxu0 0.0
      %4552 = vmatprep.subr.mxu0 0.0
      %4553 = vmatpush1.msra.mxu0 0.0
      %4554 = vmatprep.subr.mxu0 0.0
      %4555 = vmatpush1.msra.mxu0 0.0
      %4556 = vmatprep.subr.mxu0 0.0
      %4557 = vmatpush1.msra.mxu0 0.0
      %4558 = vmatprep.subr.mxu0 0.0
      %4559 = vmatpush1.msra.mxu0 0.0
      %4560 = vmatprep.subr.mxu0 0.0
      %4561 = vmatpush1.msra.mxu0 0.0
      %4562 = vmatprep.subr.mxu0 0.0
      %4563 = vmatpush1.msra.mxu0 0.0
      %4564 = vmatprep.subr.mxu0 0.0
      %4565 = vmatpush1.msra.mxu0 0.0
      %4566 = vmatprep.subr.mxu0 0.0
      %4567 = vmatpush1.msra.mxu0 0.0
      %4568 = vmatprep.subr.mxu0 0.0
      %4569 = vmatpush1.msra.mxu0 0.0
      %4570 = vmatprep.subr.mxu0 0.0
      %4571 = vmatpush1.msra.mxu0 0.0
      %4572 = vmatprep.subr.mxu0 0.0
      %4573 = vmatpush1.msra.mxu0 0.0
      %4574 = vmatprep.subr.mxu0 0.0
      %4575 = vmatpush1.msra.mxu0 0.0
      %4576 = vmatprep.subr.mxu0 0.0
      %4577 = vmatpush1.msra.mxu0 0.0
      %4578 = vmatprep.subr.mxu0 0.0
      %4579 = vmatpush1.msra.mxu0 0.0
      %4580 = vmatprep.subr.mxu0 0.0
      %4581 = vmatpush1.msra.mxu0 0.0
      %4582 = vmatprep.subr.mxu0 0.0
      %4583 = vmatpush1.msra.mxu0 0.0
      %4584 = vmatprep.subr.mxu0 0.0
      %4585 = vmatpush1.msra.mxu0 0.0
      %4586 = vmatprep.subr.mxu0 0.0
      %4587 = vmatpush1.msra.mxu0 0.0
      %4588 = vmatprep.mubr.f32.mxu0 0.0
      %4589 = vmatmul.mubr.f32.gmra.mrb[0].mxu0 %v4506
      %v4590 = vpop.f32.mrb[0].mxu0
      %v4591 = vadd.f32 0.0, %v4590
      %v4592 = vpop.f32.mrb[0].mxu0
      %v4593 = vadd.f32 0.0, %v4592
      %4594 = vdwg.mxu0
      %4595 = vmatprep.subr.mxu0 %v4514
      %4596 = vmatpush1.msra.mxu0 %v4512
      %4597 = vmatprep.subr.mxu0 0.0
      %4598 = vmatpush1.msra.mxu0 0.0
      %4599 = vmatprep.subr.mxu0 0.0
      %4600 = vmatpush1.msra.mxu0 0.0
      %4601 = vmatprep.subr.mxu0 0.0
      %4602 = vmatpush1.msra.mxu0 0.0
      %4603 = vmatprep.subr.mxu0 0.0
      %4604 = vmatpush1.msra.mxu0 0.0
      %4605 = vmatprep.subr.mxu0 0.0
      %4606 = vmatpush1.msra.mxu0 0.0
      %4607 = vmatprep.subr.mxu0 0.0
      %4608 = vmatpush1.msra.mxu0 0.0
      %4609 = vmatprep.subr.mxu0 0.0
      %4610 = vmatpush1.msra.mxu0 0.0
      %4611 = vmatprep.subr.mxu0 0.0
      %4612 = vmatpush1.msra.mxu0 0.0
      %4613 = vmatprep.subr.mxu0 0.0
      %4614 = vmatpush1.msra.mxu0 0.0
      %4615 = vmatprep.subr.mxu0 0.0
      %4616 = vmatpush1.msra.mxu0 0.0
      %4617 = vmatprep.subr.mxu0 0.0
      %4618 = vmatpush1.msra.mxu0 0.0
      %4619 = vmatprep.subr.mxu0 0.0
      %4620 = vmatpush1.msra.mxu0 0.0
      %4621 = vmatprep.subr.mxu0 0.0
      %4622 = vmatpush1.msra.mxu0 0.0
      %4623 = vmatprep.subr.mxu0 0.0
      %4624 = vmatpush1.msra.mxu0 0.0
      %4625 = vmatprep.subr.mxu0 0.0
      %4626 = vmatpush1.msra.mxu0 0.0
      %4627 = vmatprep.subr.mxu0 0.0
      %4628 = vmatpush1.msra.mxu0 0.0
      %4629 = vmatprep.subr.mxu0 0.0
      %4630 = vmatpush1.msra.mxu0 0.0
      %4631 = vmatprep.subr.mxu0 0.0
      %4632 = vmatpush1.msra.mxu0 0.0
      %4633 = vmatprep.subr.mxu0 0.0
      %4634 = vmatpush1.msra.mxu0 0.0
      %4635 = vmatprep.subr.mxu0 0.0
      %4636 = vmatpush1.msra.mxu0 0.0
      %4637 = vmatprep.subr.mxu0 0.0
      %4638 = vmatpush1.msra.mxu0 0.0
      %4639 = vmatprep.subr.mxu0 0.0
      %4640 = vmatpush1.msra.mxu0 0.0
      %4641 = vmatprep.subr.mxu0 0.0
      %4642 = vmatpush1.msra.mxu0 0.0
      %4643 = vmatprep.subr.mxu0 0.0
      %4644 = vmatpush1.msra.mxu0 0.0
      %4645 = vmatprep.subr.mxu0 0.0
      %4646 = vmatpush1.msra.mxu0 0.0
      %4647 = vmatprep.subr.mxu0 0.0
      %4648 = vmatpush1.msra.mxu0 0.0
      %4649 = vmatprep.subr.mxu0 0.0
      %4650 = vmatpush1.msra.mxu0 0.0
      %4651 = vmatprep.subr.mxu0 0.0
      %4652 = vmatpush1.msra.mxu0 0.0
      %4653 = vmatprep.subr.mxu0 0.0
      %4654 = vmatpush1.msra.mxu0 0.0
      %4655 = vmatprep.subr.mxu0 0.0
      %4656 = vmatpush1.msra.mxu0 0.0
      %4657 = vmatprep.subr.mxu0 0.0
      %4658 = vmatpush1.msra.mxu0 0.0
      %4659 = vmatprep.mubr.f32.mxu0 0.0
      %4660 = vmatmul.mubr.f32.gmra.mrb[0].mxu0 %v4506
      %v4661 = vpop.f32.mrb[0].mxu0
      %v4662 = vadd.f32 0.0, %v4661
      %v4663 = vpop.f32.mrb[0].mxu0
      %v4664 = vadd.f32 0.0, %v4663
      %4665 = vdwg.mxu0
      %4666 = vmatprep.subr.mxu0 %v4518
      %4667 = vmatpush1.msra.mxu0 %v4516
      %4668 = vmatprep.subr.mxu0 0.0
      %4669 = vmatpush1.msra.mxu0 0.0
      %4670 = vmatprep.subr.mxu0 0.0
      %4671 = vmatpush1.msra.mxu0 0.0
      %4672 = vmatprep.subr.mxu0 0.0
      %4673 = vmatpush1.msra.mxu0 0.0
      %4674 = vmatprep.subr.mxu0 0.0
      %4675 = vmatpush1.msra.mxu0 0.0
      %4676 = vmatprep.subr.mxu0 0.0
      %4677 = vmatpush1.msra.mxu0 0.0
      %4678 = vmatprep.subr.mxu0 0.0
      %4679 = vmatpush1.msra.mxu0 0.0
      %4680 = vmatprep.subr.mxu0 0.0
      %4681 = vmatpush1.msra.mxu0 0.0
      %4682 = vmatprep.subr.mxu0 0.0
      %4683 = vmatpush1.msra.mxu0 0.0
      %4684 = vmatprep.subr.mxu0 0.0
      %4685 = vmatpush1.msra.mxu0 0.0
      %4686 = vmatprep.subr.mxu0 0.0
      %4687 = vmatpush1.msra.mxu0 0.0
      %4688 = vmatprep.subr.mxu0 0.0
      %4689 = vmatpush1.msra.mxu0 0.0
      %4690 = vmatprep.subr.mxu0 0.0
      %4691 = vmatpush1.msra.mxu0 0.0
      %4692 = vmatprep.subr.mxu0 0.0
      %4693 = vmatpush1.msra.mxu0 0.0
      %4694 = vmatprep.subr.mxu0 0.0
      %4695 = vmatpush1.msra.mxu0 0.0
      %4696 = vmatprep.subr.mxu0 0.0
      %4697 = vmatpush1.msra.mxu0 0.0
      %4698 = vmatprep.subr.mxu0 0.0
      %4699 = vmatpush1.msra.mxu0 0.0
      %4700 = vmatprep.subr.mxu0 0.0
      %4701 = vmatpush1.msra.mxu0 0.0
      %4702 = vmatprep.subr.mxu0 0.0
      %4703 = vmatpush1.msra.mxu0 0.0
      %4704 = vmatprep.subr.mxu0 0.0
      %4705 = vmatpush1.msra.mxu0 0.0
      %4706 = vmatprep.subr.mxu0 0.0
      %4707 = vmatpush1.msra.mxu0 0.0
      %4708 = vmatprep.subr.mxu0 0.0
      %4709 = vmatpush1.msra.mxu0 0.0
      %4710 = vmatprep.subr.mxu0 0.0
      %4711 = vmatpush1.msra.mxu0 0.0
      %4712 = vmatprep.subr.mxu0 0.0
      %4713 = vmatpush1.msra.mxu0 0.0
      %4714 = vmatprep.subr.mxu0 0.0
      %4715 = vmatpush1.msra.mxu0 0.0
      %4716 = vmatprep.subr.mxu0 0.0
      %4717 = vmatpush1.msra.mxu0 0.0
      %4718 = vmatprep.subr.mxu0 0.0
      %4719 = vmatpush1.msra.mxu0 0.0
      %4720 = vmatprep.subr.mxu0 0.0
      %4721 = vmatpush1.msra.mxu0 0.0
      %4722 = vmatprep.subr.mxu0 0.0
      %4723 = vmatpush1.msra.mxu0 0.0
      %4724 = vmatprep.subr.mxu0 0.0
      %4725 = vmatpush1.msra.mxu0 0.0
      %4726 = vmatprep.subr.mxu0 0.0
      %4727 = vmatpush1.msra.mxu0 0.0
      %4728 = vmatprep.subr.mxu0 0.0
      %4729 = vmatpush1.msra.mxu0 0.0
      %4730 = vmatprep.mubr.f32.mxu0 0.0
      %4731 = vmatmul.mubr.f32.gmra.mrb[0].mxu0 %v4506
      %v4732 = vpop.f32.mrb[0].mxu0
      %v4733 = vadd.f32 0.0, %v4732
      %v4734 = vpop.f32.mrb[0].mxu0
      %v4735 = vadd.f32 0.0, %v4734
      %4736 = vdwg.mxu0
      %4737 = vmatprep.subr.mxu0 %v4522
      %4738 = vmatpush1.msra.mxu0 %v4520
      %4739 = vmatprep.subr.mxu0 0.0
      %4740 = vmatpush1.msra.mxu0 0.0
      %4741 = vmatprep.subr.mxu0 0.0
      %4742 = vmatpush1.msra.mxu0 0.0
      %4743 = vmatprep.subr.mxu0 0.0
      %4744 = vmatpush1.msra.mxu0 0.0
      %4745 = vmatprep.subr.mxu0 0.0
      %4746 = vmatpush1.msra.mxu0 0.0
      %4747 = vmatprep.subr.mxu0 0.0
      %4748 = vmatpush1.msra.mxu0 0.0
      %4749 = vmatprep.subr.mxu0 0.0
      %4750 = vmatpush1.msra.mxu0 0.0
      %4751 = vmatprep.subr.mxu0 0.0
      %4752 = vmatpush1.msra.mxu0 0.0
      %4753 = vmatprep.subr.mxu0 0.0
      %4754 = vmatpush1.msra.mxu0 0.0
      %4755 = vmatprep.subr.mxu0 0.0
      %4756 = vmatpush1.msra.mxu0 0.0
      %4757 = vmatprep.subr.mxu0 0.0
      %4758 = vmatpush1.msra.mxu0 0.0
      %4759 = vmatprep.subr.mxu0 0.0
      %4760 = vmatpush1.msra.mxu0 0.0
      %4761 = vmatprep.subr.mxu0 0.0
      %4762 = vmatpush1.msra.mxu0 0.0
      %4763 = vmatprep.subr.mxu0 0.0
      %4764 = vmatpush1.msra.mxu0 0.0
      %4765 = vmatprep.subr.mxu0 0.0
      %4766 = vmatpush1.msra.mxu0 0.0
      %4767 = vmatprep.subr.mxu0 0.0
      %4768 = vmatpush1.msra.mxu0 0.0
      %4769 = vmatprep.subr.mxu0 0.0
      %4770 = vmatpush1.msra.mxu0 0.0
      %4771 = vmatprep.subr.mxu0 0.0
      %4772 = vmatpush1.msra.mxu0 0.0
      %4773 = vmatprep.subr.mxu0 0.0
      %4774 = vmatpush1.msra.mxu0 0.0
      %4775 = vmatprep.subr.mxu0 0.0
      %4776 = vmatpush1.msra.mxu0 0.0
      %4777 = vmatprep.subr.mxu0 0.0
      %4778 = vmatpush1.msra.mxu0 0.0
      %4779 = vmatprep.subr.mxu0 0.0
      %4780 = vmatpush1.msra.mxu0 0.0
      %4781 = vmatprep.subr.mxu0 0.0
      %4782 = vmatpush1.msra.mxu0 0.0
      %4783 = vmatprep.subr.mxu0 0.0
      %4784 = vmatpush1.msra.mxu0 0.0
      %4785 = vmatprep.subr.mxu0 0.0
      %4786 = vmatpush1.msra.mxu0 0.0
      %4787 = vmatprep.subr.mxu0 0.0
      %4788 = vmatpush1.msra.mxu0 0.0
      %4789 = vmatprep.subr.mxu0 0.0
      %4790 = vmatpush1.msra.mxu0 0.0
      %4791 = vmatprep.subr.mxu0 0.0
      %4792 = vmatpush1.msra.mxu0 0.0
      %4793 = vmatprep.subr.mxu0 0.0
      %4794 = vmatpush1.msra.mxu0 0.0
      %4795 = vmatprep.subr.mxu0 0.0
      %4796 = vmatpush1.msra.mxu0 0.0
      %4797 = vmatprep.subr.mxu0 0.0
      %4798 = vmatpush1.msra.mxu0 0.0
      %4799 = vmatprep.subr.mxu0 0.0
      %4800 = vmatpush1.msra.mxu0 0.0
      %4801 = vmatprep.mubr.f32.mxu0 0.0
      %4802 = vmatmul.mubr.f32.gmra.mrb[0].mxu0 %v4506
      %v4803 = vpop.f32.mrb[0].mxu0
      %v4804 = vadd.f32 0.0, %v4803
      %v4805 = vpop.f32.mrb[0].mxu0
      %v4806 = vadd.f32 0.0, %v4805
      %4807 = vdwg.mxu0
      %v4808 = vadd.f32 %v4246, %v4591
      %v4809 = vadd.f32 %v4248, %v4593
      %v4810 = vadd.f32 %v4317, %v4662
      %v4811 = vadd.f32 %v4319, %v4664
      %v4812 = vadd.f32 %v4388, %v4733
      %v4813 = vadd.f32 %v4390, %v4735
      %v4814 = vadd.f32 %v4459, %v4804
      %v4815 = vadd.f32 %v4461, %v4806
      %v4816 = vmul.f32 %v4808, %v1418
      %v4817 = vmul.f32 %v4809, %v1422
      %v4818 = vmul.f32 %v4810, %v1426
      %v4819 = vmul.f32 %v4811, %v1430
      %v4820 = vmul.f32 %v4812, %v1434
      %v4821 = vmul.f32 %v4813, %v1438
      %v4822 = vmul.f32 %v4814, %v1442
      %v4823 = vmul.f32 %v4815, %v1446
      %s4824 = scalar_lea.vmem %s4, 4
      %v4825 = vld [vmem:[%s4824] sm:$0xf]
      %v4826 = vld [vmem:[#allocation3] sm:$0xff]
      %v4827 = vld [vmem:[#allocation3 + $0x8] sm:$0xff]
      %v4828 = vld [vmem:[#allocation3 + $0x10] sm:$0xff]
      %v4829 = vld [vmem:[#allocation3 + $0x18] sm:$0xff]
      %v4830 = vld [vmem:[#allocation3 + $0x20] sm:$0xf]
      %s4831 = scalar_lea.vmem %s4, 16
      %v4832 = vld [vmem:[%s4831] sm:$0xf]
      %v4838 = vcombine.high %v4826, %v4826
      %v4839 = vcombine.high %v4827, %v4827
      %v4840 = vcombine.high %v4828, %v4828
      %v4841 = vcombine.high %v4829, %v4829
      %4842 = vrot.lane.b32.xlu0 %v4826, 64
      %v4843 = vpop.permute.xlu0 %4842
      %4844 = vrot.lane.b32.xlu0 %v4838, 64
      %v4845 = vpop.permute.xlu0 %4844
      %4846 = vrot.lane.b32.xlu0 %v4827, 64
      %v4847 = vpop.permute.xlu0 %4846
      %4848 = vrot.lane.b32.xlu0 %v4839, 64
      %v4849 = vpop.permute.xlu0 %4848
      %4850 = vrot.lane.b32.xlu0 %v4828, 64
      %v4851 = vpop.permute.xlu0 %4850
      %4852 = vrot.lane.b32.xlu0 %v4840, 64
      %v4853 = vpop.permute.xlu0 %4852
      %4854 = vrot.lane.b32.xlu0 %v4829, 64
      %v4855 = vpop.permute.xlu0 %4854
      %4856 = vrot.lane.b32.xlu0 %v4841, 64
      %v4857 = vpop.permute.xlu0 %4856
      %4858 = vrot.lane.b32.xlu0 %v4830, 64
      %v4859 = vpop.permute.xlu0 %4858
      %v4860 = vsel %vm302, %v4843, %v4845
      %v4861 = vsel %vm302, %v4845, %v4847
      %v4862 = vsel %vm302, %v4847, %v4849
      %v4863 = vsel %vm302, %v4849, %v4851
      %v4864 = vsel %vm302, %v4851, %v4853
      %v4865 = vsel %vm302, %v4853, %v4855
      %v4866 = vsel %vm302, %v4855, %v4857
      %v4867 = vsel %vm302, %v4857, %v4859
      %v4869 = vsel %vm3830, %v4832, 0
      %v4871 = vsel %vm3768, %v4860, 0
      %v4873 = vsel %vm3768, %v4861, 0
      %v4875 = vsel %vm3768, %v4862, 0
      %v4877 = vsel %vm3768, %v4863, 0
      %v4879 = vsel %vm3768, %v4864, 0
      %v4881 = vsel %vm3768, %v4865, 0
      %v4883 = vsel %vm3768, %v4866, 0
      %v4885 = vsel %vm3768, %v4867, 0
      %4887 = vmatprep.subr.mxu0 %v4873
      %4888 = vmatpush1.msra.mxu0 %v4871
      %4889 = vmatprep.subr.mxu0 0.0
      %4890 = vmatpush1.msra.mxu0 0.0
      %4891 = vmatprep.subr.mxu0 0.0
      %4892 = vmatpush1.msra.mxu0 0.0
      %4893 = vmatprep.subr.mxu0 0.0
      %4894 = vmatpush1.msra.mxu0 0.0
      %4895 = vmatprep.subr.mxu0 0.0
      %4896 = vmatpush1.msra.mxu0 0.0
      %4897 = vmatprep.subr.mxu0 0.0
      %4898 = vmatpush1.msra.mxu0 0.0
      %4899 = vmatprep.subr.mxu0 0.0
      %4900 = vmatpush1.msra.mxu0 0.0
      %4901 = vmatprep.subr.mxu0 0.0
      %4902 = vmatpush1.msra.mxu0 0.0
      %4903 = vmatprep.subr.mxu0 0.0
      %4904 = vmatpush1.msra.mxu0 0.0
      %4905 = vmatprep.subr.mxu0 0.0
      %4906 = vmatpush1.msra.mxu0 0.0
      %4907 = vmatprep.subr.mxu0 0.0
      %4908 = vmatpush1.msra.mxu0 0.0
      %4909 = vmatprep.subr.mxu0 0.0
      %4910 = vmatpush1.msra.mxu0 0.0
      %4911 = vmatprep.subr.mxu0 0.0
      %4912 = vmatpush1.msra.mxu0 0.0
      %4913 = vmatprep.subr.mxu0 0.0
      %4914 = vmatpush1.msra.mxu0 0.0
      %4915 = vmatprep.subr.mxu0 0.0
      %4916 = vmatpush1.msra.mxu0 0.0
      %4917 = vmatprep.subr.mxu0 0.0
      %4918 = vmatpush1.msra.mxu0 0.0
      %4919 = vmatprep.subr.mxu0 0.0
      %4920 = vmatpush1.msra.mxu0 0.0
      %4921 = vmatprep.subr.mxu0 0.0
      %4922 = vmatpush1.msra.mxu0 0.0
      %4923 = vmatprep.subr.mxu0 0.0
      %4924 = vmatpush1.msra.mxu0 0.0
      %4925 = vmatprep.subr.mxu0 0.0
      %4926 = vmatpush1.msra.mxu0 0.0
      %4927 = vmatprep.subr.mxu0 0.0
      %4928 = vmatpush1.msra.mxu0 0.0
      %4929 = vmatprep.subr.mxu0 0.0
      %4930 = vmatpush1.msra.mxu0 0.0
      %4931 = vmatprep.subr.mxu0 0.0
      %4932 = vmatpush1.msra.mxu0 0.0
      %4933 = vmatprep.subr.mxu0 0.0
      %4934 = vmatpush1.msra.mxu0 0.0
      %4935 = vmatprep.subr.mxu0 0.0
      %4936 = vmatpush1.msra.mxu0 0.0
      %4937 = vmatprep.subr.mxu0 0.0
      %4938 = vmatpush1.msra.mxu0 0.0
      %4939 = vmatprep.subr.mxu0 0.0
      %4940 = vmatpush1.msra.mxu0 0.0
      %4941 = vmatprep.subr.mxu0 0.0
      %4942 = vmatpush1.msra.mxu0 0.0
      %4943 = vmatprep.subr.mxu0 0.0
      %4944 = vmatpush1.msra.mxu0 0.0
      %4945 = vmatprep.subr.mxu0 0.0
      %4946 = vmatpush1.msra.mxu0 0.0
      %4947 = vmatprep.subr.mxu0 0.0
      %4948 = vmatpush1.msra.mxu0 0.0
      %4949 = vmatprep.subr.mxu0 0.0
      %4950 = vmatpush1.msra.mxu0 0.0
      %4951 = vmatprep.mubr.f32.mxu0 0.0
      %4952 = vmatmul.mubr.f32.gmra.mrb[0].mxu0 %v4869
      %v4953 = vpop.f32.mrb[0].mxu0
      %v4954 = vadd.f32 0.0, %v4953
      %v4955 = vpop.f32.mrb[0].mxu0
      %v4956 = vadd.f32 0.0, %v4955
      %4957 = vdwg.mxu0
      %4958 = vmatprep.subr.mxu0 %v4877
      %4959 = vmatpush1.msra.mxu0 %v4875
      %4960 = vmatprep.subr.mxu0 0.0
      %4961 = vmatpush1.msra.mxu0 0.0
      %4962 = vmatprep.subr.mxu0 0.0
      %4963 = vmatpush1.msra.mxu0 0.0
      %4964 = vmatprep.subr.mxu0 0.0
      %4965 = vmatpush1.msra.mxu0 0.0
      %4966 = vmatprep.subr.mxu0 0.0
      %4967 = vmatpush1.msra.mxu0 0.0
      %4968 = vmatprep.subr.mxu0 0.0
      %4969 = vmatpush1.msra.mxu0 0.0
      %4970 = vmatprep.subr.mxu0 0.0
      %4971 = vmatpush1.msra.mxu0 0.0
      %4972 = vmatprep.subr.mxu0 0.0
      %4973 = vmatpush1.msra.mxu0 0.0
      %4974 = vmatprep.subr.mxu0 0.0
      %4975 = vmatpush1.msra.mxu0 0.0
      %4976 = vmatprep.subr.mxu0 0.0
      %4977 = vmatpush1.msra.mxu0 0.0
      %4978 = vmatprep.subr.mxu0 0.0
      %4979 = vmatpush1.msra.mxu0 0.0
      %4980 = vmatprep.subr.mxu0 0.0
      %4981 = vmatpush1.msra.mxu0 0.0
      %4982 = vmatprep.subr.mxu0 0.0
      %4983 = vmatpush1.msra.mxu0 0.0
      %4984 = vmatprep.subr.mxu0 0.0
      %4985 = vmatpush1.msra.mxu0 0.0
      %4986 = vmatprep.subr.mxu0 0.0
      %4987 = vmatpush1.msra.mxu0 0.0
      %4988 = vmatprep.subr.mxu0 0.0
      %4989 = vmatpush1.msra.mxu0 0.0
      %4990 = vmatprep.subr.mxu0 0.0
      %4991 = vmatpush1.msra.mxu0 0.0
      %4992 = vmatprep.subr.mxu0 0.0
      %4993 = vmatpush1.msra.mxu0 0.0
      %4994 = vmatprep.subr.mxu0 0.0
      %4995 = vmatpush1.msra.mxu0 0.0
      %4996 = vmatprep.subr.mxu0 0.0
      %4997 = vmatpush1.msra.mxu0 0.0
      %4998 = vmatprep.subr.mxu0 0.0
      %4999 = vmatpush1.msra.mxu0 0.0
      %5000 = vmatprep.subr.mxu0 0.0
      %5001 = vmatpush1.msra.mxu0 0.0
      %5002 = vmatprep.subr.mxu0 0.0
      %5003 = vmatpush1.msra.mxu0 0.0
      %5004 = vmatprep.subr.mxu0 0.0
      %5005 = vmatpush1.msra.mxu0 0.0
      %5006 = vmatprep.subr.mxu0 0.0
      %5007 = vmatpush1.msra.mxu0 0.0
      %5008 = vmatprep.subr.mxu0 0.0
      %5009 = vmatpush1.msra.mxu0 0.0
      %5010 = vmatprep.subr.mxu0 0.0
      %5011 = vmatpush1.msra.mxu0 0.0
      %5012 = vmatprep.subr.mxu0 0.0
      %5013 = vmatpush1.msra.mxu0 0.0
      %5014 = vmatprep.subr.mxu0 0.0
      %5015 = vmatpush1.msra.mxu0 0.0
      %5016 = vmatprep.subr.mxu0 0.0
      %5017 = vmatpush1.msra.mxu0 0.0
      %5018 = vmatprep.subr.mxu0 0.0
      %5019 = vmatpush1.msra.mxu0 0.0
      %5020 = vmatprep.subr.mxu0 0.0
      %5021 = vmatpush1.msra.mxu0 0.0
      %5022 = vmatprep.mubr.f32.mxu0 0.0
      %5023 = vmatmul.mubr.f32.gmra.mrb[0].mxu0 %v4869
      %v5024 = vpop.f32.mrb[0].mxu0
      %v5025 = vadd.f32 0.0, %v5024
      %v5026 = vpop.f32.mrb[0].mxu0
      %v5027 = vadd.f32 0.0, %v5026
      %5028 = vdwg.mxu0
      %5029 = vmatprep.subr.mxu0 %v4881
      %5030 = vmatpush1.msra.mxu0 %v4879
      %5031 = vmatprep.subr.mxu0 0.0
      %5032 = vmatpush1.msra.mxu0 0.0
      %5033 = vmatprep.subr.mxu0 0.0
      %5034 = vmatpush1.msra.mxu0 0.0
      %5035 = vmatprep.subr.mxu0 0.0
      %5036 = vmatpush1.msra.mxu0 0.0
      %5037 = vmatprep.subr.mxu0 0.0
      %5038 = vmatpush1.msra.mxu0 0.0
      %5039 = vmatprep.subr.mxu0 0.0
      %5040 = vmatpush1.msra.mxu0 0.0
      %5041 = vmatprep.subr.mxu0 0.0
      %5042 = vmatpush1.msra.mxu0 0.0
      %5043 = vmatprep.subr.mxu0 0.0
      %5044 = vmatpush1.msra.mxu0 0.0
      %5045 = vmatprep.subr.mxu0 0.0
      %5046 = vmatpush1.msra.mxu0 0.0
      %5047 = vmatprep.subr.mxu0 0.0
      %5048 = vmatpush1.msra.mxu0 0.0
      %5049 = vmatprep.subr.mxu0 0.0
      %5050 = vmatpush1.msra.mxu0 0.0
      %5051 = vmatprep.subr.mxu0 0.0
      %5052 = vmatpush1.msra.mxu0 0.0
      %5053 = vmatprep.subr.mxu0 0.0
      %5054 = vmatpush1.msra.mxu0 0.0
      %5055 = vmatprep.subr.mxu0 0.0
      %5056 = vmatpush1.msra.mxu0 0.0
      %5057 = vmatprep.subr.mxu0 0.0
      %5058 = vmatpush1.msra.mxu0 0.0
      %5059 = vmatprep.subr.mxu0 0.0
      %5060 = vmatpush1.msra.mxu0 0.0
      %5061 = vmatprep.subr.mxu0 0.0
      %5062 = vmatpush1.msra.mxu0 0.0
      %5063 = vmatprep.subr.mxu0 0.0
      %5064 = vmatpush1.msra.mxu0 0.0
      %5065 = vmatprep.subr.mxu0 0.0
      %5066 = vmatpush1.msra.mxu0 0.0
      %5067 = vmatprep.subr.mxu0 0.0
      %5068 = vmatpush1.msra.mxu0 0.0
      %5069 = vmatprep.subr.mxu0 0.0
      %5070 = vmatpush1.msra.mxu0 0.0
      %5071 = vmatprep.subr.mxu0 0.0
      %5072 = vmatpush1.msra.mxu0 0.0
      %5073 = vmatprep.subr.mxu0 0.0
      %5074 = vmatpush1.msra.mxu0 0.0
      %5075 = vmatprep.subr.mxu0 0.0
      %5076 = vmatpush1.msra.mxu0 0.0
      %5077 = vmatprep.subr.mxu0 0.0
      %5078 = vmatpush1.msra.mxu0 0.0
      %5079 = vmatprep.subr.mxu0 0.0
      %5080 = vmatpush1.msra.mxu0 0.0
      %5081 = vmatprep.subr.mxu0 0.0
      %5082 = vmatpush1.msra.mxu0 0.0
      %5083 = vmatprep.subr.mxu0 0.0
      %5084 = vmatpush1.msra.mxu0 0.0
      %5085 = vmatprep.subr.mxu0 0.0
      %5086 = vmatpush1.msra.mxu0 0.0
      %5087 = vmatprep.subr.mxu0 0.0
      %5088 = vmatpush1.msra.mxu0 0.0
      %5089 = vmatprep.subr.mxu0 0.0
      %5090 = vmatpush1.msra.mxu0 0.0
      %5091 = vmatprep.subr.mxu0 0.0
      %5092 = vmatpush1.msra.mxu0 0.0
      %5093 = vmatprep.mubr.f32.mxu0 0.0
      %5094 = vmatmul.mubr.f32.gmra.mrb[0].mxu0 %v4869
      %v5095 = vpop.f32.mrb[0].mxu0
      %v5096 = vadd.f32 0.0, %v5095
      %v5097 = vpop.f32.mrb[0].mxu0
      %v5098 = vadd.f32 0.0, %v5097
      %5099 = vdwg.mxu0
      %5100 = vmatprep.subr.mxu0 %v4885
      %5101 = vmatpush1.msra.mxu0 %v4883
      %5102 = vmatprep.subr.mxu0 0.0
      %5103 = vmatpush1.msra.mxu0 0.0
      %5104 = vmatprep.subr.mxu0 0.0
      %5105 = vmatpush1.msra.mxu0 0.0
      %5106 = vmatprep.subr.mxu0 0.0
      %5107 = vmatpush1.msra.mxu0 0.0
      %5108 = vmatprep.subr.mxu0 0.0
      %5109 = vmatpush1.msra.mxu0 0.0
      %5110 = vmatprep.subr.mxu0 0.0
      %5111 = vmatpush1.msra.mxu0 0.0
      %5112 = vmatprep.subr.mxu0 0.0
      %5113 = vmatpush1.msra.mxu0 0.0
      %5114 = vmatprep.subr.mxu0 0.0
      %5115 = vmatpush1.msra.mxu0 0.0
      %5116 = vmatprep.subr.mxu0 0.0
      %5117 = vmatpush1.msra.mxu0 0.0
      %5118 = vmatprep.subr.mxu0 0.0
      %5119 = vmatpush1.msra.mxu0 0.0
      %5120 = vmatprep.subr.mxu0 0.0
      %5121 = vmatpush1.msra.mxu0 0.0
      %5122 = vmatprep.subr.mxu0 0.0
      %5123 = vmatpush1.msra.mxu0 0.0
      %5124 = vmatprep.subr.mxu0 0.0
      %5125 = vmatpush1.msra.mxu0 0.0
      %5126 = vmatprep.subr.mxu0 0.0
      %5127 = vmatpush1.msra.mxu0 0.0
      %5128 = vmatprep.subr.mxu0 0.0
      %5129 = vmatpush1.msra.mxu0 0.0
      %5130 = vmatprep.subr.mxu0 0.0
      %5131 = vmatpush1.msra.mxu0 0.0
      %5132 = vmatprep.subr.mxu0 0.0
      %5133 = vmatpush1.msra.mxu0 0.0
      %5134 = vmatprep.subr.mxu0 0.0
      %5135 = vmatpush1.msra.mxu0 0.0
      %5136 = vmatprep.subr.mxu0 0.0
      %5137 = vmatpush1.msra.mxu0 0.0
      %5138 = vmatprep.subr.mxu0 0.0
      %5139 = vmatpush1.msra.mxu0 0.0
      %5140 = vmatprep.subr.mxu0 0.0
      %5141 = vmatpush1.msra.mxu0 0.0
      %5142 = vmatprep.subr.mxu0 0.0
      %5143 = vmatpush1.msra.mxu0 0.0
      %5144 = vmatprep.subr.mxu0 0.0
      %5145 = vmatpush1.msra.mxu0 0.0
      %5146 = vmatprep.subr.mxu0 0.0
      %5147 = vmatpush1.msra.mxu0 0.0
      %5148 = vmatprep.subr.mxu0 0.0
      %5149 = vmatpush1.msra.mxu0 0.0
      %5150 = vmatprep.subr.mxu0 0.0
      %5151 = vmatpush1.msra.mxu0 0.0
      %5152 = vmatprep.subr.mxu0 0.0
      %5153 = vmatpush1.msra.mxu0 0.0
      %5154 = vmatprep.subr.mxu0 0.0
      %5155 = vmatpush1.msra.mxu0 0.0
      %5156 = vmatprep.subr.mxu0 0.0
      %5157 = vmatpush1.msra.mxu0 0.0
      %5158 = vmatprep.subr.mxu0 0.0
      %5159 = vmatpush1.msra.mxu0 0.0
      %5160 = vmatprep.subr.mxu0 0.0
      %5161 = vmatpush1.msra.mxu0 0.0
      %5162 = vmatprep.subr.mxu0 0.0
      %5163 = vmatpush1.msra.mxu0 0.0
      %5164 = vmatprep.mubr.f32.mxu0 0.0
      %5165 = vmatmul.mubr.f32.gmra.mrb[0].mxu0 %v4869
      %v5166 = vpop.f32.mrb[0].mxu0
      %v5167 = vadd.f32 0.0, %v5166
      %v5168 = vpop.f32.mrb[0].mxu0
      %v5169 = vadd.f32 0.0, %v5168
      %5170 = vdwg.mxu0
      %5171 = vrot.lane.b32.xlu0 %v4826, 96
      %v5172 = vpop.permute.xlu0 %5171
      %5173 = vrot.lane.b32.xlu0 %v4838, 96
      %v5174 = vpop.permute.xlu0 %5173
      %5175 = vrot.lane.b32.xlu0 %v4827, 96
      %v5176 = vpop.permute.xlu0 %5175
      %5177 = vrot.lane.b32.xlu0 %v4839, 96
      %v5178 = vpop.permute.xlu0 %5177
      %5179 = vrot.lane.b32.xlu0 %v4828, 96
      %v5180 = vpop.permute.xlu0 %5179
      %5181 = vrot.lane.b32.xlu0 %v4840, 96
      %v5182 = vpop.permute.xlu0 %5181
      %5183 = vrot.lane.b32.xlu0 %v4829, 96
      %v5184 = vpop.permute.xlu0 %5183
      %5185 = vrot.lane.b32.xlu0 %v4841, 96
      %v5186 = vpop.permute.xlu0 %5185
      %5187 = vrot.lane.b32.xlu0 %v4830, 96
      %v5188 = vpop.permute.xlu0 %5187
      %v5189 = vsel %vm1806, %v5172, %v5174
      %v5190 = vsel %vm1806, %v5174, %v5176
      %v5191 = vsel %vm1806, %v5176, %v5178
      %v5192 = vsel %vm1806, %v5178, %v5180
      %v5193 = vsel %vm1806, %v5180, %v5182
      %v5194 = vsel %vm1806, %v5182, %v5184
      %v5195 = vsel %vm1806, %v5184, %v5186
      %v5196 = vsel %vm1806, %v5186, %v5188
      %v5198 = vsel %vm3830, %v4825, 0
      %v5200 = vsel %vm3768, %v5189, 0
      %v5202 = vsel %vm3768, %v5190, 0
      %v5204 = vsel %vm3768, %v5191, 0
      %v5206 = vsel %vm3768, %v5192, 0
      %v5208 = vsel %vm3768, %v5193, 0
      %v5210 = vsel %vm3768, %v5194, 0
      %v5212 = vsel %vm3768, %v5195, 0
      %v5214 = vsel %vm3768, %v5196, 0
      %5216 = vmatprep.subr.mxu0 %v5202
      %5217 = vmatpush1.msra.mxu0 %v5200
      %5218 = vmatprep.subr.mxu0 0.0
      %5219 = vmatpush1.msra.mxu0 0.0
      %5220 = vmatprep.subr.mxu0 0.0
      %5221 = vmatpush1.msra.mxu0 0.0
      %5222 = vmatprep.subr.mxu0 0.0
      %5223 = vmatpush1.msra.mxu0 0.0
      %5224 = vmatprep.subr.mxu0 0.0
      %5225 = vmatpush1.msra.mxu0 0.0
      %5226 = vmatprep.subr.mxu0 0.0
      %5227 = vmatpush1.msra.mxu0 0.0
      %5228 = vmatprep.subr.mxu0 0.0
      %5229 = vmatpush1.msra.mxu0 0.0
      %5230 = vmatprep.subr.mxu0 0.0
      %5231 = vmatpush1.msra.mxu0 0.0
      %5232 = vmatprep.subr.mxu0 0.0
      %5233 = vmatpush1.msra.mxu0 0.0
      %5234 = vmatprep.subr.mxu0 0.0
      %5235 = vmatpush1.msra.mxu0 0.0
      %5236 = vmatprep.subr.mxu0 0.0
      %5237 = vmatpush1.msra.mxu0 0.0
      %5238 = vmatprep.subr.mxu0 0.0
      %5239 = vmatpush1.msra.mxu0 0.0
      %5240 = vmatprep.subr.mxu0 0.0
      %5241 = vmatpush1.msra.mxu0 0.0
      %5242 = vmatprep.subr.mxu0 0.0
      %5243 = vmatpush1.msra.mxu0 0.0
      %5244 = vmatprep.subr.mxu0 0.0
      %5245 = vmatpush1.msra.mxu0 0.0
      %5246 = vmatprep.subr.mxu0 0.0
      %5247 = vmatpush1.msra.mxu0 0.0
      %5248 = vmatprep.subr.mxu0 0.0
      %5249 = vmatpush1.msra.mxu0 0.0
      %5250 = vmatprep.subr.mxu0 0.0
      %5251 = vmatpush1.msra.mxu0 0.0
      %5252 = vmatprep.subr.mxu0 0.0
      %5253 = vmatpush1.msra.mxu0 0.0
      %5254 = vmatprep.subr.mxu0 0.0
      %5255 = vmatpush1.msra.mxu0 0.0
      %5256 = vmatprep.subr.mxu0 0.0
      %5257 = vmatpush1.msra.mxu0 0.0
      %5258 = vmatprep.subr.mxu0 0.0
      %5259 = vmatpush1.msra.mxu0 0.0
      %5260 = vmatprep.subr.mxu0 0.0
      %5261 = vmatpush1.msra.mxu0 0.0
      %5262 = vmatprep.subr.mxu0 0.0
      %5263 = vmatpush1.msra.mxu0 0.0
      %5264 = vmatprep.subr.mxu0 0.0
      %5265 = vmatpush1.msra.mxu0 0.0
      %5266 = vmatprep.subr.mxu0 0.0
      %5267 = vmatpush1.msra.mxu0 0.0
      %5268 = vmatprep.subr.mxu0 0.0
      %5269 = vmatpush1.msra.mxu0 0.0
      %5270 = vmatprep.subr.mxu0 0.0
      %5271 = vmatpush1.msra.mxu0 0.0
      %5272 = vmatprep.subr.mxu0 0.0
      %5273 = vmatpush1.msra.mxu0 0.0
      %5274 = vmatprep.subr.mxu0 0.0
      %5275 = vmatpush1.msra.mxu0 0.0
      %5276 = vmatprep.subr.mxu0 0.0
      %5277 = vmatpush1.msra.mxu0 0.0
      %5278 = vmatprep.subr.mxu0 0.0
      %5279 = vmatpush1.msra.mxu0 0.0
      %5280 = vmatprep.mubr.f32.mxu0 0.0
      %5281 = vmatmul.mubr.f32.gmra.mrb[0].mxu0 %v5198
      %v5282 = vpop.f32.mrb[0].mxu0
      %v5283 = vadd.f32 %v4954, %v5282
      %v5284 = vpop.f32.mrb[0].mxu0
      %v5285 = vadd.f32 %v4956, %v5284
      %5286 = vdwg.mxu0
      %5287 = vmatprep.subr.mxu0 %v5206
      %5288 = vmatpush1.msra.mxu0 %v5204
      %5289 = vmatprep.subr.mxu0 0.0
      %5290 = vmatpush1.msra.mxu0 0.0
      %5291 = vmatprep.subr.mxu0 0.0
      %5292 = vmatpush1.msra.mxu0 0.0
      %5293 = vmatprep.subr.mxu0 0.0
      %5294 = vmatpush1.msra.mxu0 0.0
      %5295 = vmatprep.subr.mxu0 0.0
      %5296 = vmatpush1.msra.mxu0 0.0
      %5297 = vmatprep.subr.mxu0 0.0
      %5298 = vmatpush1.msra.mxu0 0.0
      %5299 = vmatprep.subr.mxu0 0.0
      %5300 = vmatpush1.msra.mxu0 0.0
      %5301 = vmatprep.subr.mxu0 0.0
      %5302 = vmatpush1.msra.mxu0 0.0
      %5303 = vmatprep.subr.mxu0 0.0
      %5304 = vmatpush1.msra.mxu0 0.0
      %5305 = vmatprep.subr.mxu0 0.0
      %5306 = vmatpush1.msra.mxu0 0.0
      %5307 = vmatprep.subr.mxu0 0.0
      %5308 = vmatpush1.msra.mxu0 0.0
      %5309 = vmatprep.subr.mxu0 0.0
      %5310 = vmatpush1.msra.mxu0 0.0
      %5311 = vmatprep.subr.mxu0 0.0
      %5312 = vmatpush1.msra.mxu0 0.0
      %5313 = vmatprep.subr.mxu0 0.0
      %5314 = vmatpush1.msra.mxu0 0.0
      %5315 = vmatprep.subr.mxu0 0.0
      %5316 = vmatpush1.msra.mxu0 0.0
      %5317 = vmatprep.subr.mxu0 0.0
      %5318 = vmatpush1.msra.mxu0 0.0
      %5319 = vmatprep.subr.mxu0 0.0
      %5320 = vmatpush1.msra.mxu0 0.0
      %5321 = vmatprep.subr.mxu0 0.0
      %5322 = vmatpush1.msra.mxu0 0.0
      %5323 = vmatprep.subr.mxu0 0.0
      %5324 = vmatpush1.msra.mxu0 0.0
      %5325 = vmatprep.subr.mxu0 0.0
      %5326 = vmatpush1.msra.mxu0 0.0
      %5327 = vmatprep.subr.mxu0 0.0
      %5328 = vmatpush1.msra.mxu0 0.0
      %5329 = vmatprep.subr.mxu0 0.0
      %5330 = vmatpush1.msra.mxu0 0.0
      %5331 = vmatprep.subr.mxu0 0.0
      %5332 = vmatpush1.msra.mxu0 0.0
      %5333 = vmatprep.subr.mxu0 0.0
      %5334 = vmatpush1.msra.mxu0 0.0
      %5335 = vmatprep.subr.mxu0 0.0
      %5336 = vmatpush1.msra.mxu0 0.0
      %5337 = vmatprep.subr.mxu0 0.0
      %5338 = vmatpush1.msra.mxu0 0.0
      %5339 = vmatprep.subr.mxu0 0.0
      %5340 = vmatpush1.msra.mxu0 0.0
      %5341 = vmatprep.subr.mxu0 0.0
      %5342 = vmatpush1.msra.mxu0 0.0
      %5343 = vmatprep.subr.mxu0 0.0
      %5344 = vmatpush1.msra.mxu0 0.0
      %5345 = vmatprep.subr.mxu0 0.0
      %5346 = vmatpush1.msra.mxu0 0.0
      %5347 = vmatprep.subr.mxu0 0.0
      %5348 = vmatpush1.msra.mxu0 0.0
      %5349 = vmatprep.subr.mxu0 0.0
      %5350 = vmatpush1.msra.mxu0 0.0
      %5351 = vmatprep.mubr.f32.mxu0 0.0
      %5352 = vmatmul.mubr.f32.gmra.mrb[0].mxu0 %v5198
      %v5353 = vpop.f32.mrb[0].mxu0
      %v5354 = vadd.f32 %v5025, %v5353
      %v5355 = vpop.f32.mrb[0].mxu0
      %v5356 = vadd.f32 %v5027, %v5355
      %5357 = vdwg.mxu0
      %5358 = vmatprep.subr.mxu0 %v5210
      %5359 = vmatpush1.msra.mxu0 %v5208
      %5360 = vmatprep.subr.mxu0 0.0
      %5361 = vmatpush1.msra.mxu0 0.0
      %5362 = vmatprep.subr.mxu0 0.0
      %5363 = vmatpush1.msra.mxu0 0.0
      %5364 = vmatprep.subr.mxu0 0.0
      %5365 = vmatpush1.msra.mxu0 0.0
      %5366 = vmatprep.subr.mxu0 0.0
      %5367 = vmatpush1.msra.mxu0 0.0
      %5368 = vmatprep.subr.mxu0 0.0
      %5369 = vmatpush1.msra.mxu0 0.0
      %5370 = vmatprep.subr.mxu0 0.0
      %5371 = vmatpush1.msra.mxu0 0.0
      %5372 = vmatprep.subr.mxu0 0.0
      %5373 = vmatpush1.msra.mxu0 0.0
      %5374 = vmatprep.subr.mxu0 0.0
      %5375 = vmatpush1.msra.mxu0 0.0
      %5376 = vmatprep.subr.mxu0 0.0
      %5377 = vmatpush1.msra.mxu0 0.0
      %5378 = vmatprep.subr.mxu0 0.0
      %5379 = vmatpush1.msra.mxu0 0.0
      %5380 = vmatprep.subr.mxu0 0.0
      %5381 = vmatpush1.msra.mxu0 0.0
      %5382 = vmatprep.subr.mxu0 0.0
      %5383 = vmatpush1.msra.mxu0 0.0
      %5384 = vmatprep.subr.mxu0 0.0
      %5385 = vmatpush1.msra.mxu0 0.0
      %5386 = vmatprep.subr.mxu0 0.0
      %5387 = vmatpush1.msra.mxu0 0.0
      %5388 = vmatprep.subr.mxu0 0.0
      %5389 = vmatpush1.msra.mxu0 0.0
      %5390 = vmatprep.subr.mxu0 0.0
      %5391 = vmatpush1.msra.mxu0 0.0
      %5392 = vmatprep.subr.mxu0 0.0
      %5393 = vmatpush1.msra.mxu0 0.0
      %5394 = vmatprep.subr.mxu0 0.0
      %5395 = vmatpush1.msra.mxu0 0.0
      %5396 = vmatprep.subr.mxu0 0.0
      %5397 = vmatpush1.msra.mxu0 0.0
      %5398 = vmatprep.subr.mxu0 0.0
      %5399 = vmatpush1.msra.mxu0 0.0
      %5400 = vmatprep.subr.mxu0 0.0
      %5401 = vmatpush1.msra.mxu0 0.0
      %5402 = vmatprep.subr.mxu0 0.0
      %5403 = vmatpush1.msra.mxu0 0.0
      %5404 = vmatprep.subr.mxu0 0.0
      %5405 = vmatpush1.msra.mxu0 0.0
      %5406 = vmatprep.subr.mxu0 0.0
      %5407 = vmatpush1.msra.mxu0 0.0
      %5408 = vmatprep.subr.mxu0 0.0
      %5409 = vmatpush1.msra.mxu0 0.0
      %5410 = vmatprep.subr.mxu0 0.0
      %5411 = vmatpush1.msra.mxu0 0.0
      %5412 = vmatprep.subr.mxu0 0.0
      %5413 = vmatpush1.msra.mxu0 0.0
      %5414 = vmatprep.subr.mxu0 0.0
      %5415 = vmatpush1.msra.mxu0 0.0
      %5416 = vmatprep.subr.mxu0 0.0
      %5417 = vmatpush1.msra.mxu0 0.0
      %5418 = vmatprep.subr.mxu0 0.0
      %5419 = vmatpush1.msra.mxu0 0.0
      %5420 = vmatprep.subr.mxu0 0.0
      %5421 = vmatpush1.msra.mxu0 0.0
      %5422 = vmatprep.mubr.f32.mxu0 0.0
      %5423 = vmatmul.mubr.f32.gmra.mrb[0].mxu0 %v5198
      %v5424 = vpop.f32.mrb[0].mxu0
      %v5425 = vadd.f32 %v5096, %v5424
      %v5426 = vpop.f32.mrb[0].mxu0
      %v5427 = vadd.f32 %v5098, %v5426
      %5428 = vdwg.mxu0
      %5429 = vmatprep.subr.mxu0 %v5214
      %5430 = vmatpush1.msra.mxu0 %v5212
      %5431 = vmatprep.subr.mxu0 0.0
      %5432 = vmatpush1.msra.mxu0 0.0
      %5433 = vmatprep.subr.mxu0 0.0
      %5434 = vmatpush1.msra.mxu0 0.0
      %5435 = vmatprep.subr.mxu0 0.0
      %5436 = vmatpush1.msra.mxu0 0.0
      %5437 = vmatprep.subr.mxu0 0.0
      %5438 = vmatpush1.msra.mxu0 0.0
      %5439 = vmatprep.subr.mxu0 0.0
      %5440 = vmatpush1.msra.mxu0 0.0
      %5441 = vmatprep.subr.mxu0 0.0
      %5442 = vmatpush1.msra.mxu0 0.0
      %5443 = vmatprep.subr.mxu0 0.0
      %5444 = vmatpush1.msra.mxu0 0.0
      %5445 = vmatprep.subr.mxu0 0.0
      %5446 = vmatpush1.msra.mxu0 0.0
      %5447 = vmatprep.subr.mxu0 0.0
      %5448 = vmatpush1.msra.mxu0 0.0
      %5449 = vmatprep.subr.mxu0 0.0
      %5450 = vmatpush1.msra.mxu0 0.0
      %5451 = vmatprep.subr.mxu0 0.0
      %5452 = vmatpush1.msra.mxu0 0.0
      %5453 = vmatprep.subr.mxu0 0.0
      %5454 = vmatpush1.msra.mxu0 0.0
      %5455 = vmatprep.subr.mxu0 0.0
      %5456 = vmatpush1.msra.mxu0 0.0
      %5457 = vmatprep.subr.mxu0 0.0
      %5458 = vmatpush1.msra.mxu0 0.0
      %5459 = vmatprep.subr.mxu0 0.0
      %5460 = vmatpush1.msra.mxu0 0.0
      %5461 = vmatprep.subr.mxu0 0.0
      %5462 = vmatpush1.msra.mxu0 0.0
      %5463 = vmatprep.subr.mxu0 0.0
      %5464 = vmatpush1.msra.mxu0 0.0
      %5465 = vmatprep.subr.mxu0 0.0
      %5466 = vmatpush1.msra.mxu0 0.0
      %5467 = vmatprep.subr.mxu0 0.0
      %5468 = vmatpush1.msra.mxu0 0.0
      %5469 = vmatprep.subr.mxu0 0.0
      %5470 = vmatpush1.msra.mxu0 0.0
      %5471 = vmatprep.subr.mxu0 0.0
      %5472 = vmatpush1.msra.mxu0 0.0
      %5473 = vmatprep.subr.mxu0 0.0
      %5474 = vmatpush1.msra.mxu0 0.0
      %5475 = vmatprep.subr.mxu0 0.0
      %5476 = vmatpush1.msra.mxu0 0.0
      %5477 = vmatprep.subr.mxu0 0.0
      %5478 = vmatpush1.msra.mxu0 0.0
      %5479 = vmatprep.subr.mxu0 0.0
      %5480 = vmatpush1.msra.mxu0 0.0
      %5481 = vmatprep.subr.mxu0 0.0
      %5482 = vmatpush1.msra.mxu0 0.0
      %5483 = vmatprep.subr.mxu0 0.0
      %5484 = vmatpush1.msra.mxu0 0.0
      %5485 = vmatprep.subr.mxu0 0.0
      %5486 = vmatpush1.msra.mxu0 0.0
      %5487 = vmatprep.subr.mxu0 0.0
      %5488 = vmatpush1.msra.mxu0 0.0
      %5489 = vmatprep.subr.mxu0 0.0
      %5490 = vmatpush1.msra.mxu0 0.0
      %5491 = vmatprep.subr.mxu0 0.0
      %5492 = vmatpush1.msra.mxu0 0.0
      %5493 = vmatprep.mubr.f32.mxu0 0.0
      %5494 = vmatmul.mubr.f32.gmra.mrb[0].mxu0 %v5198
      %v5495 = vpop.f32.mrb[0].mxu0
      %v5496 = vadd.f32 %v5167, %v5495
      %v5497 = vpop.f32.mrb[0].mxu0
      %v5498 = vadd.f32 %v5169, %v5497
      %5499 = vdwg.mxu0
      %s5500 = scalar_lea.vmem %s4, 28
      %v5501 = vld [vmem:[%s5500] sm:$0xf]
      %v5502 = vld [vmem:[#allocation3] sm:$0xff]
      %v5503 = vld [vmem:[#allocation3 + $0x8] sm:$0xff]
      %v5504 = vld [vmem:[#allocation3 + $0x10] sm:$0xff]
      %v5505 = vld [vmem:[#allocation3 + $0x18] sm:$0xff]
      %v5506 = vld [vmem:[#allocation3 + $0x20] sm:$0xf]
      %v5512 = vcombine.high %v5502, %v5502
      %v5513 = vcombine.high %v5503, %v5503
      %v5514 = vcombine.high %v5504, %v5504
      %v5515 = vcombine.high %v5505, %v5505
      %5516 = vrot.lane.b32.xlu0 %v5502, 32
      %v5517 = vpop.permute.xlu0 %5516
      %5518 = vrot.lane.b32.xlu0 %v5512, 32
      %v5519 = vpop.permute.xlu0 %5518
      %5520 = vrot.lane.b32.xlu0 %v5503, 32
      %v5521 = vpop.permute.xlu0 %5520
      %5522 = vrot.lane.b32.xlu0 %v5513, 32
      %v5523 = vpop.permute.xlu0 %5522
      %5524 = vrot.lane.b32.xlu0 %v5504, 32
      %v5525 = vpop.permute.xlu0 %5524
      %5526 = vrot.lane.b32.xlu0 %v5514, 32
      %v5527 = vpop.permute.xlu0 %5526
      %5528 = vrot.lane.b32.xlu0 %v5505, 32
      %v5529 = vpop.permute.xlu0 %5528
      %5530 = vrot.lane.b32.xlu0 %v5515, 32
      %v5531 = vpop.permute.xlu0 %5530
      %5532 = vrot.lane.b32.xlu0 %v5506, 32
      %v5533 = vpop.permute.xlu0 %5532
      %v5534 = vsel %vm2130, %v5517, %v5519
      %v5535 = vsel %vm2130, %v5519, %v5521
      %v5536 = vsel %vm2130, %v5521, %v5523
      %v5537 = vsel %vm2130, %v5523, %v5525
      %v5538 = vsel %vm2130, %v5525, %v5527
      %v5539 = vsel %vm2130, %v5527, %v5529
      %v5540 = vsel %vm2130, %v5529, %v5531
      %v5541 = vsel %vm2130, %v5531, %v5533
      %v5543 = vsel %vm3830, %v5501, 0
      %v5545 = vsel %vm3768, %v5534, 0
      %v5547 = vsel %vm3768, %v5535, 0
      %v5549 = vsel %vm3768, %v5536, 0
      %v5551 = vsel %vm3768, %v5537, 0
      %v5553 = vsel %vm3768, %v5538, 0
      %v5555 = vsel %vm3768, %v5539, 0
      %v5557 = vsel %vm3768, %v5540, 0
      %v5559 = vsel %vm3768, %v5541, 0
      %5561 = vmatprep.subr.mxu0 %v5547
      %5562 = vmatpush1.msra.mxu0 %v5545
      %5563 = vmatprep.subr.mxu0 0.0
      %5564 = vmatpush1.msra.mxu0 0.0
      %5565 = vmatprep.subr.mxu0 0.0
      %5566 = vmatpush1.msra.mxu0 0.0
      %5567 = vmatprep.subr.mxu0 0.0
      %5568 = vmatpush1.msra.mxu0 0.0
      %5569 = vmatprep.subr.mxu0 0.0
      %5570 = vmatpush1.msra.mxu0 0.0
      %5571 = vmatprep.subr.mxu0 0.0
      %5572 = vmatpush1.msra.mxu0 0.0
      %5573 = vmatprep.subr.mxu0 0.0
      %5574 = vmatpush1.msra.mxu0 0.0
      %5575 = vmatprep.subr.mxu0 0.0
      %5576 = vmatpush1.msra.mxu0 0.0
      %5577 = vmatprep.subr.mxu0 0.0
      %5578 = vmatpush1.msra.mxu0 0.0
      %5579 = vmatprep.subr.mxu0 0.0
      %5580 = vmatpush1.msra.mxu0 0.0
      %5581 = vmatprep.subr.mxu0 0.0
      %5582 = vmatpush1.msra.mxu0 0.0
      %5583 = vmatprep.subr.mxu0 0.0
      %5584 = vmatpush1.msra.mxu0 0.0
      %5585 = vmatprep.subr.mxu0 0.0
      %5586 = vmatpush1.msra.mxu0 0.0
      %5587 = vmatprep.subr.mxu0 0.0
      %5588 = vmatpush1.msra.mxu0 0.0
      %5589 = vmatprep.subr.mxu0 0.0
      %5590 = vmatpush1.msra.mxu0 0.0
      %5591 = vmatprep.subr.mxu0 0.0
      %5592 = vmatpush1.msra.mxu0 0.0
      %5593 = vmatprep.subr.mxu0 0.0
      %5594 = vmatpush1.msra.mxu0 0.0
      %5595 = vmatprep.subr.mxu0 0.0
      %5596 = vmatpush1.msra.mxu0 0.0
      %5597 = vmatprep.subr.mxu0 0.0
      %5598 = vmatpush1.msra.mxu0 0.0
      %5599 = vmatprep.subr.mxu0 0.0
      %5600 = vmatpush1.msra.mxu0 0.0
      %5601 = vmatprep.subr.mxu0 0.0
      %5602 = vmatpush1.msra.mxu0 0.0
      %5603 = vmatprep.subr.mxu0 0.0
      %5604 = vmatpush1.msra.mxu0 0.0
      %5605 = vmatprep.subr.mxu0 0.0
      %5606 = vmatpush1.msra.mxu0 0.0
      %5607 = vmatprep.subr.mxu0 0.0
      %5608 = vmatpush1.msra.mxu0 0.0
      %5609 = vmatprep.subr.mxu0 0.0
      %5610 = vmatpush1.msra.mxu0 0.0
      %5611 = vmatprep.subr.mxu0 0.0
      %5612 = vmatpush1.msra.mxu0 0.0
      %5613 = vmatprep.subr.mxu0 0.0
      %5614 = vmatpush1.msra.mxu0 0.0
      %5615 = vmatprep.subr.mxu0 0.0
      %5616 = vmatpush1.msra.mxu0 0.0
      %5617 = vmatprep.subr.mxu0 0.0
      %5618 = vmatpush1.msra.mxu0 0.0
      %5619 = vmatprep.subr.mxu0 0.0
      %5620 = vmatpush1.msra.mxu0 0.0
      %5621 = vmatprep.subr.mxu0 0.0
      %5622 = vmatpush1.msra.mxu0 0.0
      %5623 = vmatprep.subr.mxu0 0.0
      %5624 = vmatpush1.msra.mxu0 0.0
      %5625 = vmatprep.mubr.f32.mxu0 0.0
      %5626 = vmatmul.mubr.f32.gmra.mrb[0].mxu0 %v5543
      %v5627 = vpop.f32.mrb[0].mxu0
      %v5628 = vadd.f32 0.0, %v5627
      %v5629 = vpop.f32.mrb[0].mxu0
      %v5630 = vadd.f32 0.0, %v5629
      %5631 = vdwg.mxu0
      %5632 = vmatprep.subr.mxu0 %v5551
      %5633 = vmatpush1.msra.mxu0 %v5549
      %5634 = vmatprep.subr.mxu0 0.0
      %5635 = vmatpush1.msra.mxu0 0.0
      %5636 = vmatprep.subr.mxu0 0.0
      %5637 = vmatpush1.msra.mxu0 0.0
      %5638 = vmatprep.subr.mxu0 0.0
      %5639 = vmatpush1.msra.mxu0 0.0
      %5640 = vmatprep.subr.mxu0 0.0
      %5641 = vmatpush1.msra.mxu0 0.0
      %5642 = vmatprep.subr.mxu0 0.0
      %5643 = vmatpush1.msra.mxu0 0.0
      %5644 = vmatprep.subr.mxu0 0.0
      %5645 = vmatpush1.msra.mxu0 0.0
      %5646 = vmatprep.subr.mxu0 0.0
      %5647 = vmatpush1.msra.mxu0 0.0
      %5648 = vmatprep.subr.mxu0 0.0
      %5649 = vmatpush1.msra.mxu0 0.0
      %5650 = vmatprep.subr.mxu0 0.0
      %5651 = vmatpush1.msra.mxu0 0.0
      %5652 = vmatprep.subr.mxu0 0.0
      %5653 = vmatpush1.msra.mxu0 0.0
      %5654 = vmatprep.subr.mxu0 0.0
      %5655 = vmatpush1.msra.mxu0 0.0
      %5656 = vmatprep.subr.mxu0 0.0
      %5657 = vmatpush1.msra.mxu0 0.0
      %5658 = vmatprep.subr.mxu0 0.0
      %5659 = vmatpush1.msra.mxu0 0.0
      %5660 = vmatprep.subr.mxu0 0.0
      %5661 = vmatpush1.msra.mxu0 0.0
      %5662 = vmatprep.subr.mxu0 0.0
      %5663 = vmatpush1.msra.mxu0 0.0
      %5664 = vmatprep.subr.mxu0 0.0
      %5665 = vmatpush1.msra.mxu0 0.0
      %5666 = vmatprep.subr.mxu0 0.0
      %5667 = vmatpush1.msra.mxu0 0.0
      %5668 = vmatprep.subr.mxu0 0.0
      %5669 = vmatpush1.msra.mxu0 0.0
      %5670 = vmatprep.subr.mxu0 0.0
      %5671 = vmatpush1.msra.mxu0 0.0
      %5672 = vmatprep.subr.mxu0 0.0
      %5673 = vmatpush1.msra.mxu0 0.0
      %5674 = vmatprep.subr.mxu0 0.0
      %5675 = vmatpush1.msra.mxu0 0.0
      %5676 = vmatprep.subr.mxu0 0.0
      %5677 = vmatpush1.msra.mxu0 0.0
      %5678 = vmatprep.subr.mxu0 0.0
      %5679 = vmatpush1.msra.mxu0 0.0
      %5680 = vmatprep.subr.mxu0 0.0
      %5681 = vmatpush1.msra.mxu0 0.0
      %5682 = vmatprep.subr.mxu0 0.0
      %5683 = vmatpush1.msra.mxu0 0.0
      %5684 = vmatprep.subr.mxu0 0.0
      %5685 = vmatpush1.msra.mxu0 0.0
      %5686 = vmatprep.subr.mxu0 0.0
      %5687 = vmatpush1.msra.mxu0 0.0
      %5688 = vmatprep.subr.mxu0 0.0
      %5689 = vmatpush1.msra.mxu0 0.0
      %5690 = vmatprep.subr.mxu0 0.0
      %5691 = vmatpush1.msra.mxu0 0.0
      %5692 = vmatprep.subr.mxu0 0.0
      %5693 = vmatpush1.msra.mxu0 0.0
      %5694 = vmatprep.subr.mxu0 0.0
      %5695 = vmatpush1.msra.mxu0 0.0
      %5696 = vmatprep.mubr.f32.mxu0 0.0
      %5697 = vmatmul.mubr.f32.gmra.mrb[0].mxu0 %v5543
      %v5698 = vpop.f32.mrb[0].mxu0
      %v5699 = vadd.f32 0.0, %v5698
      %v5700 = vpop.f32.mrb[0].mxu0
      %v5701 = vadd.f32 0.0, %v5700
      %5702 = vdwg.mxu0
      %5703 = vmatprep.subr.mxu0 %v5555
      %5704 = vmatpush1.msra.mxu0 %v5553
      %5705 = vmatprep.subr.mxu0 0.0
      %5706 = vmatpush1.msra.mxu0 0.0
      %5707 = vmatprep.subr.mxu0 0.0
      %5708 = vmatpush1.msra.mxu0 0.0
      %5709 = vmatprep.subr.mxu0 0.0
      %5710 = vmatpush1.msra.mxu0 0.0
      %5711 = vmatprep.subr.mxu0 0.0
      %5712 = vmatpush1.msra.mxu0 0.0
      %5713 = vmatprep.subr.mxu0 0.0
      %5714 = vmatpush1.msra.mxu0 0.0
      %5715 = vmatprep.subr.mxu0 0.0
      %5716 = vmatpush1.msra.mxu0 0.0
      %5717 = vmatprep.subr.mxu0 0.0
      %5718 = vmatpush1.msra.mxu0 0.0
      %5719 = vmatprep.subr.mxu0 0.0
      %5720 = vmatpush1.msra.mxu0 0.0
      %5721 = vmatprep.subr.mxu0 0.0
      %5722 = vmatpush1.msra.mxu0 0.0
      %5723 = vmatprep.subr.mxu0 0.0
      %5724 = vmatpush1.msra.mxu0 0.0
      %5725 = vmatprep.subr.mxu0 0.0
      %5726 = vmatpush1.msra.mxu0 0.0
      %5727 = vmatprep.subr.mxu0 0.0
      %5728 = vmatpush1.msra.mxu0 0.0
      %5729 = vmatprep.subr.mxu0 0.0
      %5730 = vmatpush1.msra.mxu0 0.0
      %5731 = vmatprep.subr.mxu0 0.0
      %5732 = vmatpush1.msra.mxu0 0.0
      %5733 = vmatprep.subr.mxu0 0.0
      %5734 = vmatpush1.msra.mxu0 0.0
      %5735 = vmatprep.subr.mxu0 0.0
      %5736 = vmatpush1.msra.mxu0 0.0
      %5737 = vmatprep.subr.mxu0 0.0
      %5738 = vmatpush1.msra.mxu0 0.0
      %5739 = vmatprep.subr.mxu0 0.0
      %5740 = vmatpush1.msra.mxu0 0.0
      %5741 = vmatprep.subr.mxu0 0.0
      %5742 = vmatpush1.msra.mxu0 0.0
      %5743 = vmatprep.subr.mxu0 0.0
      %5744 = vmatpush1.msra.mxu0 0.0
      %5745 = vmatprep.subr.mxu0 0.0
      %5746 = vmatpush1.msra.mxu0 0.0
      %5747 = vmatprep.subr.mxu0 0.0
      %5748 = vmatpush1.msra.mxu0 0.0
      %5749 = vmatprep.subr.mxu0 0.0
      %5750 = vmatpush1.msra.mxu0 0.0
      %5751 = vmatprep.subr.mxu0 0.0
      %5752 = vmatpush1.msra.mxu0 0.0
      %5753 = vmatprep.subr.mxu0 0.0
      %5754 = vmatpush1.msra.mxu0 0.0
      %5755 = vmatprep.subr.mxu0 0.0
      %5756 = vmatpush1.msra.mxu0 0.0
      %5757 = vmatprep.subr.mxu0 0.0
      %5758 = vmatpush1.msra.mxu0 0.0
      %5759 = vmatprep.subr.mxu0 0.0
      %5760 = vmatpush1.msra.mxu0 0.0
      %5761 = vmatprep.subr.mxu0 0.0
      %5762 = vmatpush1.msra.mxu0 0.0
      %5763 = vmatprep.subr.mxu0 0.0
      %5764 = vmatpush1.msra.mxu0 0.0
      %5765 = vmatprep.subr.mxu0 0.0
      %5766 = vmatpush1.msra.mxu0 0.0
      %5767 = vmatprep.mubr.f32.mxu0 0.0
      %5768 = vmatmul.mubr.f32.gmra.mrb[0].mxu0 %v5543
      %v5769 = vpop.f32.mrb[0].mxu0
      %v5770 = vadd.f32 0.0, %v5769
      %v5771 = vpop.f32.mrb[0].mxu0
      %v5772 = vadd.f32 0.0, %v5771
      %5773 = vdwg.mxu0
      %5774 = vmatprep.subr.mxu0 %v5559
      %5775 = vmatpush1.msra.mxu0 %v5557
      %5776 = vmatprep.subr.mxu0 0.0
      %5777 = vmatpush1.msra.mxu0 0.0
      %5778 = vmatprep.subr.mxu0 0.0
      %5779 = vmatpush1.msra.mxu0 0.0
      %5780 = vmatprep.subr.mxu0 0.0
      %5781 = vmatpush1.msra.mxu0 0.0
      %5782 = vmatprep.subr.mxu0 0.0
      %5783 = vmatpush1.msra.mxu0 0.0
      %5784 = vmatprep.subr.mxu0 0.0
      %5785 = vmatpush1.msra.mxu0 0.0
      %5786 = vmatprep.subr.mxu0 0.0
      %5787 = vmatpush1.msra.mxu0 0.0
      %5788 = vmatprep.subr.mxu0 0.0
      %5789 = vmatpush1.msra.mxu0 0.0
      %5790 = vmatprep.subr.mxu0 0.0
      %5791 = vmatpush1.msra.mxu0 0.0
      %5792 = vmatprep.subr.mxu0 0.0
      %5793 = vmatpush1.msra.mxu0 0.0
      %5794 = vmatprep.subr.mxu0 0.0
      %5795 = vmatpush1.msra.mxu0 0.0
      %5796 = vmatprep.subr.mxu0 0.0
      %5797 = vmatpush1.msra.mxu0 0.0
      %5798 = vmatprep.subr.mxu0 0.0
      %5799 = vmatpush1.msra.mxu0 0.0
      %5800 = vmatprep.subr.mxu0 0.0
      %5801 = vmatpush1.msra.mxu0 0.0
      %5802 = vmatprep.subr.mxu0 0.0
      %5803 = vmatpush1.msra.mxu0 0.0
      %5804 = vmatprep.subr.mxu0 0.0
      %5805 = vmatpush1.msra.mxu0 0.0
      %5806 = vmatprep.subr.mxu0 0.0
      %5807 = vmatpush1.msra.mxu0 0.0
      %5808 = vmatprep.subr.mxu0 0.0
      %5809 = vmatpush1.msra.mxu0 0.0
      %5810 = vmatprep.subr.mxu0 0.0
      %5811 = vmatpush1.msra.mxu0 0.0
      %5812 = vmatprep.subr.mxu0 0.0
      %5813 = vmatpush1.msra.mxu0 0.0
      %5814 = vmatprep.subr.mxu0 0.0
      %5815 = vmatpush1.msra.mxu0 0.0
      %5816 = vmatprep.subr.mxu0 0.0
      %5817 = vmatpush1.msra.mxu0 0.0
      %5818 = vmatprep.subr.mxu0 0.0
      %5819 = vmatpush1.msra.mxu0 0.0
      %5820 = vmatprep.subr.mxu0 0.0
      %5821 = vmatpush1.msra.mxu0 0.0
      %5822 = vmatprep.subr.mxu0 0.0
      %5823 = vmatpush1.msra.mxu0 0.0
      %5824 = vmatprep.subr.mxu0 0.0
      %5825 = vmatpush1.msra.mxu0 0.0
      %5826 = vmatprep.subr.mxu0 0.0
      %5827 = vmatpush1.msra.mxu0 0.0
      %5828 = vmatprep.subr.mxu0 0.0
      %5829 = vmatpush1.msra.mxu0 0.0
      %5830 = vmatprep.subr.mxu0 0.0
      %5831 = vmatpush1.msra.mxu0 0.0
      %5832 = vmatprep.subr.mxu0 0.0
      %5833 = vmatpush1.msra.mxu0 0.0
      %5834 = vmatprep.subr.mxu0 0.0
      %5835 = vmatpush1.msra.mxu0 0.0
      %5836 = vmatprep.subr.mxu0 0.0
      %5837 = vmatpush1.msra.mxu0 0.0
      %5838 = vmatprep.mubr.f32.mxu0 0.0
      %5839 = vmatmul.mubr.f32.gmra.mrb[0].mxu0 %v5543
      %v5840 = vpop.f32.mrb[0].mxu0
      %v5841 = vadd.f32 0.0, %v5840
      %v5842 = vpop.f32.mrb[0].mxu0
      %v5843 = vadd.f32 0.0, %v5842
      %5844 = vdwg.mxu0
      %v5845 = vadd.f32 %v5283, %v5628
      %v5846 = vadd.f32 %v5285, %v5630
      %v5847 = vadd.f32 %v5354, %v5699
      %v5848 = vadd.f32 %v5356, %v5701
      %v5849 = vadd.f32 %v5425, %v5770
      %v5850 = vadd.f32 %v5427, %v5772
      %v5851 = vadd.f32 %v5496, %v5841
      %v5852 = vadd.f32 %v5498, %v5843
      %v5853 = vadd.f32 %v4816, %v5845
      %v5854 = vadd.f32 %v4817, %v5846
      %v5855 = vadd.f32 %v4818, %v5847
      %v5856 = vadd.f32 %v4819, %v5848
      %v5857 = vadd.f32 %v4820, %v5849
      %v5858 = vadd.f32 %v4821, %v5850
      %v5859 = vadd.f32 %v4822, %v5851
      %v5860 = vadd.f32 %v4823, %v5852
      %s5861 = scalar_lea.vmem %s4, 8
      %v5862 = vld [vmem:[%s5861] sm:$0xf]
      %v5863 = vld [vmem:[#allocation3] sm:$0xff]
      %v5864 = vld [vmem:[#allocation3 + $0x8] sm:$0xff]
      %v5865 = vld [vmem:[#allocation3 + $0x10] sm:$0xff]
      %v5866 = vld [vmem:[#allocation3 + $0x18] sm:$0xff]
      %v5867 = vld [vmem:[#allocation3 + $0x20] sm:$0xf]
      %s5868 = scalar_lea.vmem %s4, 20
      %v5869 = vld [vmem:[%s5868] sm:$0xf]
      %v5875 = vcombine.high %v5863, %v5863
      %v5876 = vcombine.high %v5864, %v5864
      %v5877 = vcombine.high %v5865, %v5865
      %v5878 = vcombine.high %v5866, %v5866
      %5879 = vrot.lane.b32.xlu0 %v5863, 63
      %v5880 = vpop.permute.xlu0 %5879
      %5881 = vrot.lane.b32.xlu0 %v5875, 63
      %v5882 = vpop.permute.xlu0 %5881
      %5883 = vrot.lane.b32.xlu0 %v5864, 63
      %v5884 = vpop.permute.xlu0 %5883
      %5885 = vrot.lane.b32.xlu0 %v5876, 63
      %v5886 = vpop.permute.xlu0 %5885
      %5887 = vrot.lane.b32.xlu0 %v5865, 63
      %v5888 = vpop.permute.xlu0 %5887
      %5889 = vrot.lane.b32.xlu0 %v5877, 63
      %v5890 = vpop.permute.xlu0 %5889
      %5891 = vrot.lane.b32.xlu0 %v5866, 63
      %v5892 = vpop.permute.xlu0 %5891
      %5893 = vrot.lane.b32.xlu0 %v5878, 63
      %v5894 = vpop.permute.xlu0 %5893
      %5895 = vrot.lane.b32.xlu0 %v5867, 63
      %v5896 = vpop.permute.xlu0 %5895
      %v5897 = vsel %vm2472, %v5880, %v5882
      %v5898 = vsel %vm2472, %v5882, %v5884
      %v5899 = vsel %vm2472, %v5884, %v5886
      %v5900 = vsel %vm2472, %v5886, %v5888
      %v5901 = vsel %vm2472, %v5888, %v5890
      %v5902 = vsel %vm2472, %v5890, %v5892
      %v5903 = vsel %vm2472, %v5892, %v5894
      %v5904 = vsel %vm2472, %v5894, %v5896
      %v5906 = vsel %vm3830, %v5869, 0
      %v5908 = vsel %vm3768, %v5897, 0
      %v5910 = vsel %vm3768, %v5898, 0
      %v5912 = vsel %vm3768, %v5899, 0
      %v5914 = vsel %vm3768, %v5900, 0
      %v5916 = vsel %vm3768, %v5901, 0
      %v5918 = vsel %vm3768, %v5902, 0
      %v5920 = vsel %vm3768, %v5903, 0
      %v5922 = vsel %vm3768, %v5904, 0
      %5924 = vmatprep.subr.mxu0 %v5910
      %5925 = vmatpush1.msra.mxu0 %v5908
      %5926 = vmatprep.subr.mxu0 0.0
      %5927 = vmatpush1.msra.mxu0 0.0
      %5928 = vmatprep.subr.mxu0 0.0
      %5929 = vmatpush1.msra.mxu0 0.0
      %5930 = vmatprep.subr.mxu0 0.0
      %5931 = vmatpush1.msra.mxu0 0.0
      %5932 = vmatprep.subr.mxu0 0.0
      %5933 = vmatpush1.msra.mxu0 0.0
      %5934 = vmatprep.subr.mxu0 0.0
      %5935 = vmatpush1.msra.mxu0 0.0
      %5936 = vmatprep.subr.mxu0 0.0
      %5937 = vmatpush1.msra.mxu0 0.0
      %5938 = vmatprep.subr.mxu0 0.0
      %5939 = vmatpush1.msra.mxu0 0.0
      %5940 = vmatprep.subr.mxu0 0.0
      %5941 = vmatpush1.msra.mxu0 0.0
      %5942 = vmatprep.subr.mxu0 0.0
      %5943 = vmatpush1.msra.mxu0 0.0
      %5944 = vmatprep.subr.mxu0 0.0
      %5945 = vmatpush1.msra.mxu0 0.0
      %5946 = vmatprep.subr.mxu0 0.0
      %5947 = vmatpush1.msra.mxu0 0.0
      %5948 = vmatprep.subr.mxu0 0.0
      %5949 = vmatpush1.msra.mxu0 0.0
      %5950 = vmatprep.subr.mxu0 0.0
      %5951 = vmatpush1.msra.mxu0 0.0
      %5952 = vmatprep.subr.mxu0 0.0
      %5953 = vmatpush1.msra.mxu0 0.0
      %5954 = vmatprep.subr.mxu0 0.0
      %5955 = vmatpush1.msra.mxu0 0.0
      %5956 = vmatprep.subr.mxu0 0.0
      %5957 = vmatpush1.msra.mxu0 0.0
      %5958 = vmatprep.subr.mxu0 0.0
      %5959 = vmatpush1.msra.mxu0 0.0
      %5960 = vmatprep.subr.mxu0 0.0
      %5961 = vmatpush1.msra.mxu0 0.0
      %5962 = vmatprep.subr.mxu0 0.0
      %5963 = vmatpush1.msra.mxu0 0.0
      %5964 = vmatprep.subr.mxu0 0.0
      %5965 = vmatpush1.msra.mxu0 0.0
      %5966 = vmatprep.subr.mxu0 0.0
      %5967 = vmatpush1.msra.mxu0 0.0
      %5968 = vmatprep.subr.mxu0 0.0
      %5969 = vmatpush1.msra.mxu0 0.0
      %5970 = vmatprep.subr.mxu0 0.0
      %5971 = vmatpush1.msra.mxu0 0.0
      %5972 = vmatprep.subr.mxu0 0.0
      %5973 = vmatpush1.msra.mxu0 0.0
      %5974 = vmatprep.subr.mxu0 0.0
      %5975 = vmatpush1.msra.mxu0 0.0
      %5976 = vmatprep.subr.mxu0 0.0
      %5977 = vmatpush1.msra.mxu0 0.0
      %5978 = vmatprep.subr.mxu0 0.0
      %5979 = vmatpush1.msra.mxu0 0.0
      %5980 = vmatprep.subr.mxu0 0.0
      %5981 = vmatpush1.msra.mxu0 0.0
      %5982 = vmatprep.subr.mxu0 0.0
      %5983 = vmatpush1.msra.mxu0 0.0
      %5984 = vmatprep.subr.mxu0 0.0
      %5985 = vmatpush1.msra.mxu0 0.0
      %5986 = vmatprep.subr.mxu0 0.0
      %5987 = vmatpush1.msra.mxu0 0.0
      %5988 = vmatprep.mubr.f32.mxu0 0.0
      %5989 = vmatmul.mubr.f32.gmra.mrb[0].mxu0 %v5906
      %v5990 = vpop.f32.mrb[0].mxu0
      %v5991 = vadd.f32 0.0, %v5990
      %v5992 = vpop.f32.mrb[0].mxu0
      %v5993 = vadd.f32 0.0, %v5992
      %5994 = vdwg.mxu0
      %5995 = vmatprep.subr.mxu0 %v5914
      %5996 = vmatpush1.msra.mxu0 %v5912
      %5997 = vmatprep.subr.mxu0 0.0
      %5998 = vmatpush1.msra.mxu0 0.0
      %5999 = vmatprep.subr.mxu0 0.0
      %6000 = vmatpush1.msra.mxu0 0.0
      %6001 = vmatprep.subr.mxu0 0.0
      %6002 = vmatpush1.msra.mxu0 0.0
      %6003 = vmatprep.subr.mxu0 0.0
      %6004 = vmatpush1.msra.mxu0 0.0
      %6005 = vmatprep.subr.mxu0 0.0
      %6006 = vmatpush1.msra.mxu0 0.0
      %6007 = vmatprep.subr.mxu0 0.0
      %6008 = vmatpush1.msra.mxu0 0.0
      %6009 = vmatprep.subr.mxu0 0.0
      %6010 = vmatpush1.msra.mxu0 0.0
      %6011 = vmatprep.subr.mxu0 0.0
      %6012 = vmatpush1.msra.mxu0 0.0
      %6013 = vmatprep.subr.mxu0 0.0
      %6014 = vmatpush1.msra.mxu0 0.0
      %6015 = vmatprep.subr.mxu0 0.0
      %6016 = vmatpush1.msra.mxu0 0.0
      %6017 = vmatprep.subr.mxu0 0.0
      %6018 = vmatpush1.msra.mxu0 0.0
      %6019 = vmatprep.subr.mxu0 0.0
      %6020 = vmatpush1.msra.mxu0 0.0
      %6021 = vmatprep.subr.mxu0 0.0
      %6022 = vmatpush1.msra.mxu0 0.0
      %6023 = vmatprep.subr.mxu0 0.0
      %6024 = vmatpush1.msra.mxu0 0.0
      %6025 = vmatprep.subr.mxu0 0.0
      %6026 = vmatpush1.msra.mxu0 0.0
      %6027 = vmatprep.subr.mxu0 0.0
      %6028 = vmatpush1.msra.mxu0 0.0
      %6029 = vmatprep.subr.mxu0 0.0
      %6030 = vmatpush1.msra.mxu0 0.0
      %6031 = vmatprep.subr.mxu0 0.0
      %6032 = vmatpush1.msra.mxu0 0.0
      %6033 = vmatprep.subr.mxu0 0.0
      %6034 = vmatpush1.msra.mxu0 0.0
      %6035 = vmatprep.subr.mxu0 0.0
      %6036 = vmatpush1.msra.mxu0 0.0
      %6037 = vmatprep.subr.mxu0 0.0
      %6038 = vmatpush1.msra.mxu0 0.0
      %6039 = vmatprep.subr.mxu0 0.0
      %6040 = vmatpush1.msra.mxu0 0.0
      %6041 = vmatprep.subr.mxu0 0.0
      %6042 = vmatpush1.msra.mxu0 0.0
      %6043 = vmatprep.subr.mxu0 0.0
      %6044 = vmatpush1.msra.mxu0 0.0
      %6045 = vmatprep.subr.mxu0 0.0
      %6046 = vmatpush1.msra.mxu0 0.0
      %6047 = vmatprep.subr.mxu0 0.0
      %6048 = vmatpush1.msra.mxu0 0.0
      %6049 = vmatprep.subr.mxu0 0.0
      %6050 = vmatpush1.msra.mxu0 0.0
      %6051 = vmatprep.subr.mxu0 0.0
      %6052 = vmatpush1.msra.mxu0 0.0
      %6053 = vmatprep.subr.mxu0 0.0
      %6054 = vmatpush1.msra.mxu0 0.0
      %6055 = vmatprep.subr.mxu0 0.0
      %6056 = vmatpush1.msra.mxu0 0.0
      %6057 = vmatprep.subr.mxu0 0.0
      %6058 = vmatpush1.msra.mxu0 0.0
      %6059 = vmatprep.mubr.f32.mxu0 0.0
      %6060 = vmatmul.mubr.f32.gmra.mrb[0].mxu0 %v5906
      %v6061 = vpop.f32.mrb[0].mxu0
      %v6062 = vadd.f32 0.0, %v6061
      %v6063 = vpop.f32.mrb[0].mxu0
      %v6064 = vadd.f32 0.0, %v6063
      %6065 = vdwg.mxu0
      %6066 = vmatprep.subr.mxu0 %v5918
      %6067 = vmatpush1.msra.mxu0 %v5916
      %6068 = vmatprep.subr.mxu0 0.0
      %6069 = vmatpush1.msra.mxu0 0.0
      %6070 = vmatprep.subr.mxu0 0.0
      %6071 = vmatpush1.msra.mxu0 0.0
      %6072 = vmatprep.subr.mxu0 0.0
      %6073 = vmatpush1.msra.mxu0 0.0
      %6074 = vmatprep.subr.mxu0 0.0
      %6075 = vmatpush1.msra.mxu0 0.0
      %6076 = vmatprep.subr.mxu0 0.0
      %6077 = vmatpush1.msra.mxu0 0.0
      %6078 = vmatprep.subr.mxu0 0.0
      %6079 = vmatpush1.msra.mxu0 0.0
      %6080 = vmatprep.subr.mxu0 0.0
      %6081 = vmatpush1.msra.mxu0 0.0
      %6082 = vmatprep.subr.mxu0 0.0
      %6083 = vmatpush1.msra.mxu0 0.0
      %6084 = vmatprep.subr.mxu0 0.0
      %6085 = vmatpush1.msra.mxu0 0.0
      %6086 = vmatprep.subr.mxu0 0.0
      %6087 = vmatpush1.msra.mxu0 0.0
      %6088 = vmatprep.subr.mxu0 0.0
      %6089 = vmatpush1.msra.mxu0 0.0
      %6090 = vmatprep.subr.mxu0 0.0
      %6091 = vmatpush1.msra.mxu0 0.0
      %6092 = vmatprep.subr.mxu0 0.0
      %6093 = vmatpush1.msra.mxu0 0.0
      %6094 = vmatprep.subr.mxu0 0.0
      %6095 = vmatpush1.msra.mxu0 0.0
      %6096 = vmatprep.subr.mxu0 0.0
      %6097 = vmatpush1.msra.mxu0 0.0
      %6098 = vmatprep.subr.mxu0 0.0
      %6099 = vmatpush1.msra.mxu0 0.0
      %6100 = vmatprep.subr.mxu0 0.0
      %6101 = vmatpush1.msra.mxu0 0.0
      %6102 = vmatprep.subr.mxu0 0.0
      %6103 = vmatpush1.msra.mxu0 0.0
      %6104 = vmatprep.subr.mxu0 0.0
      %6105 = vmatpush1.msra.mxu0 0.0
      %6106 = vmatprep.subr.mxu0 0.0
      %6107 = vmatpush1.msra.mxu0 0.0
      %6108 = vmatprep.subr.mxu0 0.0
      %6109 = vmatpush1.msra.mxu0 0.0
      %6110 = vmatprep.subr.mxu0 0.0
      %6111 = vmatpush1.msra.mxu0 0.0
      %6112 = vmatprep.subr.mxu0 0.0
      %6113 = vmatpush1.msra.mxu0 0.0
      %6114 = vmatprep.subr.mxu0 0.0
      %6115 = vmatpush1.msra.mxu0 0.0
      %6116 = vmatprep.subr.mxu0 0.0
      %6117 = vmatpush1.msra.mxu0 0.0
      %6118 = vmatprep.subr.mxu0 0.0
      %6119 = vmatpush1.msra.mxu0 0.0
      %6120 = vmatprep.subr.mxu0 0.0
      %6121 = vmatpush1.msra.mxu0 0.0
      %6122 = vmatprep.subr.mxu0 0.0
      %6123 = vmatpush1.msra.mxu0 0.0
      %6124 = vmatprep.subr.mxu0 0.0
      %6125 = vmatpush1.msra.mxu0 0.0
      %6126 = vmatprep.subr.mxu0 0.0
      %6127 = vmatpush1.msra.mxu0 0.0
      %6128 = vmatprep.subr.mxu0 0.0
      %6129 = vmatpush1.msra.mxu0 0.0
      %6130 = vmatprep.mubr.f32.mxu0 0.0
      %6131 = vmatmul.mubr.f32.gmra.mrb[0].mxu0 %v5906
      %v6132 = vpop.f32.mrb[0].mxu0
      %v6133 = vadd.f32 0.0, %v6132
      %v6134 = vpop.f32.mrb[0].mxu0
      %v6135 = vadd.f32 0.0, %v6134
      %6136 = vdwg.mxu0
      %6137 = vmatprep.subr.mxu0 %v5922
      %6138 = vmatpush1.msra.mxu0 %v5920
      %6139 = vmatprep.subr.mxu0 0.0
      %6140 = vmatpush1.msra.mxu0 0.0
      %6141 = vmatprep.subr.mxu0 0.0
      %6142 = vmatpush1.msra.mxu0 0.0
      %6143 = vmatprep.subr.mxu0 0.0
      %6144 = vmatpush1.msra.mxu0 0.0
      %6145 = vmatprep.subr.mxu0 0.0
      %6146 = vmatpush1.msra.mxu0 0.0
      %6147 = vmatprep.subr.mxu0 0.0
      %6148 = vmatpush1.msra.mxu0 0.0
      %6149 = vmatprep.subr.mxu0 0.0
      %6150 = vmatpush1.msra.mxu0 0.0
      %6151 = vmatprep.subr.mxu0 0.0
      %6152 = vmatpush1.msra.mxu0 0.0
      %6153 = vmatprep.subr.mxu0 0.0
      %6154 = vmatpush1.msra.mxu0 0.0
      %6155 = vmatprep.subr.mxu0 0.0
      %6156 = vmatpush1.msra.mxu0 0.0
      %6157 = vmatprep.subr.mxu0 0.0
      %6158 = vmatpush1.msra.mxu0 0.0
      %6159 = vmatprep.subr.mxu0 0.0
      %6160 = vmatpush1.msra.mxu0 0.0
      %6161 = vmatprep.subr.mxu0 0.0
      %6162 = vmatpush1.msra.mxu0 0.0
      %6163 = vmatprep.subr.mxu0 0.0
      %6164 = vmatpush1.msra.mxu0 0.0
      %6165 = vmatprep.subr.mxu0 0.0
      %6166 = vmatpush1.msra.mxu0 0.0
      %6167 = vmatprep.subr.mxu0 0.0
      %6168 = vmatpush1.msra.mxu0 0.0
      %6169 = vmatprep.subr.mxu0 0.0
      %6170 = vmatpush1.msra.mxu0 0.0
      %6171 = vmatprep.subr.mxu0 0.0
      %6172 = vmatpush1.msra.mxu0 0.0
      %6173 = vmatprep.subr.mxu0 0.0
      %6174 = vmatpush1.msra.mxu0 0.0
      %6175 = vmatprep.subr.mxu0 0.0
      %6176 = vmatpush1.msra.mxu0 0.0
      %6177 = vmatprep.subr.mxu0 0.0
      %6178 = vmatpush1.msra.mxu0 0.0
      %6179 = vmatprep.subr.mxu0 0.0
      %6180 = vmatpush1.msra.mxu0 0.0
      %6181 = vmatprep.subr.mxu0 0.0
      %6182 = vmatpush1.msra.mxu0 0.0
      %6183 = vmatprep.subr.mxu0 0.0
      %6184 = vmatpush1.msra.mxu0 0.0
      %6185 = vmatprep.subr.mxu0 0.0
      %6186 = vmatpush1.msra.mxu0 0.0
      %6187 = vmatprep.subr.mxu0 0.0
      %6188 = vmatpush1.msra.mxu0 0.0
      %6189 = vmatprep.subr.mxu0 0.0
      %6190 = vmatpush1.msra.mxu0 0.0
      %6191 = vmatprep.subr.mxu0 0.0
      %6192 = vmatpush1.msra.mxu0 0.0
      %6193 = vmatprep.subr.mxu0 0.0
      %6194 = vmatpush1.msra.mxu0 0.0
      %6195 = vmatprep.subr.mxu0 0.0
      %6196 = vmatpush1.msra.mxu0 0.0
      %6197 = vmatprep.subr.mxu0 0.0
      %6198 = vmatpush1.msra.mxu0 0.0
      %6199 = vmatprep.subr.mxu0 0.0
      %6200 = vmatpush1.msra.mxu0 0.0
      %6201 = vmatprep.mubr.f32.mxu0 0.0
      %6202 = vmatmul.mubr.f32.gmra.mrb[0].mxu0 %v5906
      %v6203 = vpop.f32.mrb[0].mxu0
      %v6204 = vadd.f32 0.0, %v6203
      %v6205 = vpop.f32.mrb[0].mxu0
      %v6206 = vadd.f32 0.0, %v6205
      %6207 = vdwg.mxu0
      %6208 = vrot.lane.b32.xlu0 %v5863, 95
      %v6209 = vpop.permute.xlu0 %6208
      %6210 = vrot.lane.b32.xlu0 %v5875, 95
      %v6211 = vpop.permute.xlu0 %6210
      %6212 = vrot.lane.b32.xlu0 %v5864, 95
      %v6213 = vpop.permute.xlu0 %6212
      %6214 = vrot.lane.b32.xlu0 %v5876, 95
      %v6215 = vpop.permute.xlu0 %6214
      %6216 = vrot.lane.b32.xlu0 %v5865, 95
      %v6217 = vpop.permute.xlu0 %6216
      %6218 = vrot.lane.b32.xlu0 %v5877, 95
      %v6219 = vpop.permute.xlu0 %6218
      %6220 = vrot.lane.b32.xlu0 %v5866, 95
      %v6221 = vpop.permute.xlu0 %6220
      %6222 = vrot.lane.b32.xlu0 %v5878, 95
      %v6223 = vpop.permute.xlu0 %6222
      %6224 = vrot.lane.b32.xlu0 %v5867, 95
      %v6225 = vpop.permute.xlu0 %6224
      %v6226 = vsel %vm2794, %v6209, %v6211
      %v6227 = vsel %vm2794, %v6211, %v6213
      %v6228 = vsel %vm2794, %v6213, %v6215
      %v6229 = vsel %vm2794, %v6215, %v6217
      %v6230 = vsel %vm2794, %v6217, %v6219
      %v6231 = vsel %vm2794, %v6219, %v6221
      %v6232 = vsel %vm2794, %v6221, %v6223
      %v6233 = vsel %vm2794, %v6223, %v6225
      %v6235 = vsel %vm3830, %v5862, 0
      %v6237 = vsel %vm3768, %v6226, 0
      %v6239 = vsel %vm3768, %v6227, 0
      %v6241 = vsel %vm3768, %v6228, 0
      %v6243 = vsel %vm3768, %v6229, 0
      %v6245 = vsel %vm3768, %v6230, 0
      %v6247 = vsel %vm3768, %v6231, 0
      %v6249 = vsel %vm3768, %v6232, 0
      %v6251 = vsel %vm3768, %v6233, 0
      %6253 = vmatprep.subr.mxu0 %v6239
      %6254 = vmatpush1.msra.mxu0 %v6237
      %6255 = vmatprep.subr.mxu0 0.0
      %6256 = vmatpush1.msra.mxu0 0.0
      %6257 = vmatprep.subr.mxu0 0.0
      %6258 = vmatpush1.msra.mxu0 0.0
      %6259 = vmatprep.subr.mxu0 0.0
      %6260 = vmatpush1.msra.mxu0 0.0
      %6261 = vmatprep.subr.mxu0 0.0
      %6262 = vmatpush1.msra.mxu0 0.0
      %6263 = vmatprep.subr.mxu0 0.0
      %6264 = vmatpush1.msra.mxu0 0.0
      %6265 = vmatprep.subr.mxu0 0.0
      %6266 = vmatpush1.msra.mxu0 0.0
      %6267 = vmatprep.subr.mxu0 0.0
      %6268 = vmatpush1.msra.mxu0 0.0
      %6269 = vmatprep.subr.mxu0 0.0
      %6270 = vmatpush1.msra.mxu0 0.0
      %6271 = vmatprep.subr.mxu0 0.0
      %6272 = vmatpush1.msra.mxu0 0.0
      %6273 = vmatprep.subr.mxu0 0.0
      %6274 = vmatpush1.msra.mxu0 0.0
      %6275 = vmatprep.subr.mxu0 0.0
      %6276 = vmatpush1.msra.mxu0 0.0
      %6277 = vmatprep.subr.mxu0 0.0
      %6278 = vmatpush1.msra.mxu0 0.0
      %6279 = vmatprep.subr.mxu0 0.0
      %6280 = vmatpush1.msra.mxu0 0.0
      %6281 = vmatprep.subr.mxu0 0.0
      %6282 = vmatpush1.msra.mxu0 0.0
      %6283 = vmatprep.subr.mxu0 0.0
      %6284 = vmatpush1.msra.mxu0 0.0
      %6285 = vmatprep.subr.mxu0 0.0
      %6286 = vmatpush1.msra.mxu0 0.0
      %6287 = vmatprep.subr.mxu0 0.0
      %6288 = vmatpush1.msra.mxu0 0.0
      %6289 = vmatprep.subr.mxu0 0.0
      %6290 = vmatpush1.msra.mxu0 0.0
      %6291 = vmatprep.subr.mxu0 0.0
      %6292 = vmatpush1.msra.mxu0 0.0
      %6293 = vmatprep.subr.mxu0 0.0
      %6294 = vmatpush1.msra.mxu0 0.0
      %6295 = vmatprep.subr.mxu0 0.0
      %6296 = vmatpush1.msra.mxu0 0.0
      %6297 = vmatprep.subr.mxu0 0.0
      %6298 = vmatpush1.msra.mxu0 0.0
      %6299 = vmatprep.subr.mxu0 0.0
      %6300 = vmatpush1.msra.mxu0 0.0
      %6301 = vmatprep.subr.mxu0 0.0
      %6302 = vmatpush1.msra.mxu0 0.0
      %6303 = vmatprep.subr.mxu0 0.0
      %6304 = vmatpush1.msra.mxu0 0.0
      %6305 = vmatprep.subr.mxu0 0.0
      %6306 = vmatpush1.msra.mxu0 0.0
      %6307 = vmatprep.subr.mxu0 0.0
      %6308 = vmatpush1.msra.mxu0 0.0
      %6309 = vmatprep.subr.mxu0 0.0
      %6310 = vmatpush1.msra.mxu0 0.0
      %6311 = vmatprep.subr.mxu0 0.0
      %6312 = vmatpush1.msra.mxu0 0.0
      %6313 = vmatprep.subr.mxu0 0.0
      %6314 = vmatpush1.msra.mxu0 0.0
      %6315 = vmatprep.subr.mxu0 0.0
      %6316 = vmatpush1.msra.mxu0 0.0
      %6317 = vmatprep.mubr.f32.mxu0 0.0
      %6318 = vmatmul.mubr.f32.gmra.mrb[0].mxu0 %v6235
      %v6319 = vpop.f32.mrb[0].mxu0
      %v6320 = vadd.f32 %v5991, %v6319
      %v6321 = vpop.f32.mrb[0].mxu0
      %v6322 = vadd.f32 %v5993, %v6321
      %6323 = vdwg.mxu0
      %6324 = vmatprep.subr.mxu0 %v6243
      %6325 = vmatpush1.msra.mxu0 %v6241
      %6326 = vmatprep.subr.mxu0 0.0
      %6327 = vmatpush1.msra.mxu0 0.0
      %6328 = vmatprep.subr.mxu0 0.0
      %6329 = vmatpush1.msra.mxu0 0.0
      %6330 = vmatprep.subr.mxu0 0.0
      %6331 = vmatpush1.msra.mxu0 0.0
      %6332 = vmatprep.subr.mxu0 0.0
      %6333 = vmatpush1.msra.mxu0 0.0
      %6334 = vmatprep.subr.mxu0 0.0
      %6335 = vmatpush1.msra.mxu0 0.0
      %6336 = vmatprep.subr.mxu0 0.0
      %6337 = vmatpush1.msra.mxu0 0.0
      %6338 = vmatprep.subr.mxu0 0.0
      %6339 = vmatpush1.msra.mxu0 0.0
      %6340 = vmatprep.subr.mxu0 0.0
      %6341 = vmatpush1.msra.mxu0 0.0
      %6342 = vmatprep.subr.mxu0 0.0
      %6343 = vmatpush1.msra.mxu0 0.0
      %6344 = vmatprep.subr.mxu0 0.0
      %6345 = vmatpush1.msra.mxu0 0.0
      %6346 = vmatprep.subr.mxu0 0.0
      %6347 = vmatpush1.msra.mxu0 0.0
      %6348 = vmatprep.subr.mxu0 0.0
      %6349 = vmatpush1.msra.mxu0 0.0
      %6350 = vmatprep.subr.mxu0 0.0
      %6351 = vmatpush1.msra.mxu0 0.0
      %6352 = vmatprep.subr.mxu0 0.0
      %6353 = vmatpush1.msra.mxu0 0.0
      %6354 = vmatprep.subr.mxu0 0.0
      %6355 = vmatpush1.msra.mxu0 0.0
      %6356 = vmatprep.subr.mxu0 0.0
      %6357 = vmatpush1.msra.mxu0 0.0
      %6358 = vmatprep.subr.mxu0 0.0
      %6359 = vmatpush1.msra.mxu0 0.0
      %6360 = vmatprep.subr.mxu0 0.0
      %6361 = vmatpush1.msra.mxu0 0.0
      %6362 = vmatprep.subr.mxu0 0.0
      %6363 = vmatpush1.msra.mxu0 0.0
      %6364 = vmatprep.subr.mxu0 0.0
      %6365 = vmatpush1.msra.mxu0 0.0
      %6366 = vmatprep.subr.mxu0 0.0
      %6367 = vmatpush1.msra.mxu0 0.0
      %6368 = vmatprep.subr.mxu0 0.0
      %6369 = vmatpush1.msra.mxu0 0.0
      %6370 = vmatprep.subr.mxu0 0.0
      %6371 = vmatpush1.msra.mxu0 0.0
      %6372 = vmatprep.subr.mxu0 0.0
      %6373 = vmatpush1.msra.mxu0 0.0
      %6374 = vmatprep.subr.mxu0 0.0
      %6375 = vmatpush1.msra.mxu0 0.0
      %6376 = vmatprep.subr.mxu0 0.0
      %6377 = vmatpush1.msra.mxu0 0.0
      %6378 = vmatprep.subr.mxu0 0.0
      %6379 = vmatpush1.msra.mxu0 0.0
      %6380 = vmatprep.subr.mxu0 0.0
      %6381 = vmatpush1.msra.mxu0 0.0
      %6382 = vmatprep.subr.mxu0 0.0
      %6383 = vmatpush1.msra.mxu0 0.0
      %6384 = vmatprep.subr.mxu0 0.0
      %6385 = vmatpush1.msra.mxu0 0.0
      %6386 = vmatprep.subr.mxu0 0.0
      %6387 = vmatpush1.msra.mxu0 0.0
      %6388 = vmatprep.mubr.f32.mxu0 0.0
      %6389 = vmatmul.mubr.f32.gmra.mrb[0].mxu0 %v6235
      %v6390 = vpop.f32.mrb[0].mxu0
      %v6391 = vadd.f32 %v6062, %v6390
      %v6392 = vpop.f32.mrb[0].mxu0
      %v6393 = vadd.f32 %v6064, %v6392
      %6394 = vdwg.mxu0
      %6395 = vmatprep.subr.mxu0 %v6247
      %6396 = vmatpush1.msra.mxu0 %v6245
      %6397 = vmatprep.subr.mxu0 0.0
      %6398 = vmatpush1.msra.mxu0 0.0
      %6399 = vmatprep.subr.mxu0 0.0
      %6400 = vmatpush1.msra.mxu0 0.0
      %6401 = vmatprep.subr.mxu0 0.0
      %6402 = vmatpush1.msra.mxu0 0.0
      %6403 = vmatprep.subr.mxu0 0.0
      %6404 = vmatpush1.msra.mxu0 0.0
      %6405 = vmatprep.subr.mxu0 0.0
      %6406 = vmatpush1.msra.mxu0 0.0
      %6407 = vmatprep.subr.mxu0 0.0
      %6408 = vmatpush1.msra.mxu0 0.0
      %6409 = vmatprep.subr.mxu0 0.0
      %6410 = vmatpush1.msra.mxu0 0.0
      %6411 = vmatprep.subr.mxu0 0.0
      %6412 = vmatpush1.msra.mxu0 0.0
      %6413 = vmatprep.subr.mxu0 0.0
      %6414 = vmatpush1.msra.mxu0 0.0
      %6415 = vmatprep.subr.mxu0 0.0
      %6416 = vmatpush1.msra.mxu0 0.0
      %6417 = vmatprep.subr.mxu0 0.0
      %6418 = vmatpush1.msra.mxu0 0.0
      %6419 = vmatprep.subr.mxu0 0.0
      %6420 = vmatpush1.msra.mxu0 0.0
      %6421 = vmatprep.subr.mxu0 0.0
      %6422 = vmatpush1.msra.mxu0 0.0
      %6423 = vmatprep.subr.mxu0 0.0
      %6424 = vmatpush1.msra.mxu0 0.0
      %6425 = vmatprep.subr.mxu0 0.0
      %6426 = vmatpush1.msra.mxu0 0.0
      %6427 = vmatprep.subr.mxu0 0.0
      %6428 = vmatpush1.msra.mxu0 0.0
      %6429 = vmatprep.subr.mxu0 0.0
      %6430 = vmatpush1.msra.mxu0 0.0
      %6431 = vmatprep.subr.mxu0 0.0
      %6432 = vmatpush1.msra.mxu0 0.0
      %6433 = vmatprep.subr.mxu0 0.0
      %6434 = vmatpush1.msra.mxu0 0.0
      %6435 = vmatprep.subr.mxu0 0.0
      %6436 = vmatpush1.msra.mxu0 0.0
      %6437 = vmatprep.subr.mxu0 0.0
      %6438 = vmatpush1.msra.mxu0 0.0
      %6439 = vmatprep.subr.mxu0 0.0
      %6440 = vmatpush1.msra.mxu0 0.0
      %6441 = vmatprep.subr.mxu0 0.0
      %6442 = vmatpush1.msra.mxu0 0.0
      %6443 = vmatprep.subr.mxu0 0.0
      %6444 = vmatpush1.msra.mxu0 0.0
      %6445 = vmatprep.subr.mxu0 0.0
      %6446 = vmatpush1.msra.mxu0 0.0
      %6447 = vmatprep.subr.mxu0 0.0
      %6448 = vmatpush1.msra.mxu0 0.0
      %6449 = vmatprep.subr.mxu0 0.0
      %6450 = vmatpush1.msra.mxu0 0.0
      %6451 = vmatprep.subr.mxu0 0.0
      %6452 = vmatpush1.msra.mxu0 0.0
      %6453 = vmatprep.subr.mxu0 0.0
      %6454 = vmatpush1.msra.mxu0 0.0
      %6455 = vmatprep.subr.mxu0 0.0
      %6456 = vmatpush1.msra.mxu0 0.0
      %6457 = vmatprep.subr.mxu0 0.0
      %6458 = vmatpush1.msra.mxu0 0.0
      %6459 = vmatprep.mubr.f32.mxu0 0.0
      %6460 = vmatmul.mubr.f32.gmra.mrb[0].mxu0 %v6235
      %v6461 = vpop.f32.mrb[0].mxu0
      %v6462 = vadd.f32 %v6133, %v6461
      %v6463 = vpop.f32.mrb[0].mxu0
      %v6464 = vadd.f32 %v6135, %v6463
      %6465 = vdwg.mxu0
      %6466 = vmatprep.subr.mxu0 %v6251
      %6467 = vmatpush1.msra.mxu0 %v6249
      %6468 = vmatprep.subr.mxu0 0.0
      %6469 = vmatpush1.msra.mxu0 0.0
      %6470 = vmatprep.subr.mxu0 0.0
      %6471 = vmatpush1.msra.mxu0 0.0
      %6472 = vmatprep.subr.mxu0 0.0
      %6473 = vmatpush1.msra.mxu0 0.0
      %6474 = vmatprep.subr.mxu0 0.0
      %6475 = vmatpush1.msra.mxu0 0.0
      %6476 = vmatprep.subr.mxu0 0.0
      %6477 = vmatpush1.msra.mxu0 0.0
      %6478 = vmatprep.subr.mxu0 0.0
      %6479 = vmatpush1.msra.mxu0 0.0
      %6480 = vmatprep.subr.mxu0 0.0
      %6481 = vmatpush1.msra.mxu0 0.0
      %6482 = vmatprep.subr.mxu0 0.0
      %6483 = vmatpush1.msra.mxu0 0.0
      %6484 = vmatprep.subr.mxu0 0.0
      %6485 = vmatpush1.msra.mxu0 0.0
      %6486 = vmatprep.subr.mxu0 0.0
      %6487 = vmatpush1.msra.mxu0 0.0
      %6488 = vmatprep.subr.mxu0 0.0
      %6489 = vmatpush1.msra.mxu0 0.0
      %6490 = vmatprep.subr.mxu0 0.0
      %6491 = vmatpush1.msra.mxu0 0.0
      %6492 = vmatprep.subr.mxu0 0.0
      %6493 = vmatpush1.msra.mxu0 0.0
      %6494 = vmatprep.subr.mxu0 0.0
      %6495 = vmatpush1.msra.mxu0 0.0
      %6496 = vmatprep.subr.mxu0 0.0
      %6497 = vmatpush1.msra.mxu0 0.0
      %6498 = vmatprep.subr.mxu0 0.0
      %6499 = vmatpush1.msra.mxu0 0.0
      %6500 = vmatprep.subr.mxu0 0.0
      %6501 = vmatpush1.msra.mxu0 0.0
      %6502 = vmatprep.subr.mxu0 0.0
      %6503 = vmatpush1.msra.mxu0 0.0
      %6504 = vmatprep.subr.mxu0 0.0
      %6505 = vmatpush1.msra.mxu0 0.0
      %6506 = vmatprep.subr.mxu0 0.0
      %6507 = vmatpush1.msra.mxu0 0.0
      %6508 = vmatprep.subr.mxu0 0.0
      %6509 = vmatpush1.msra.mxu0 0.0
      %6510 = vmatprep.subr.mxu0 0.0
      %6511 = vmatpush1.msra.mxu0 0.0
      %6512 = vmatprep.subr.mxu0 0.0
      %6513 = vmatpush1.msra.mxu0 0.0
      %6514 = vmatprep.subr.mxu0 0.0
      %6515 = vmatpush1.msra.mxu0 0.0
      %6516 = vmatprep.subr.mxu0 0.0
      %6517 = vmatpush1.msra.mxu0 0.0
      %6518 = vmatprep.subr.mxu0 0.0
      %6519 = vmatpush1.msra.mxu0 0.0
      %6520 = vmatprep.subr.mxu0 0.0
      %6521 = vmatpush1.msra.mxu0 0.0
      %6522 = vmatprep.subr.mxu0 0.0
      %6523 = vmatpush1.msra.mxu0 0.0
      %6524 = vmatprep.subr.mxu0 0.0
      %6525 = vmatpush1.msra.mxu0 0.0
      %6526 = vmatprep.subr.mxu0 0.0
      %6527 = vmatpush1.msra.mxu0 0.0
      %6528 = vmatprep.subr.mxu0 0.0
      %6529 = vmatpush1.msra.mxu0 0.0
      %6530 = vmatprep.mubr.f32.mxu0 0.0
      %6531 = vmatmul.mubr.f32.gmra.mrb[0].mxu0 %v6235
      %v6532 = vpop.f32.mrb[0].mxu0
      %v6533 = vadd.f32 %v6204, %v6532
      %v6534 = vpop.f32.mrb[0].mxu0
      %v6535 = vadd.f32 %v6206, %v6534
      %6536 = vdwg.mxu0
      %s6537 = scalar_lea.vmem %s4, 32
      %v6538 = vld [vmem:[%s6537] sm:$0xf]
      %v6539 = vld [vmem:[#allocation3] sm:$0xff]
      %v6540 = vld [vmem:[#allocation3 + $0x8] sm:$0xff]
      %v6541 = vld [vmem:[#allocation3 + $0x10] sm:$0xff]
      %v6542 = vld [vmem:[#allocation3 + $0x18] sm:$0xff]
      %v6543 = vld [vmem:[#allocation3 + $0x20] sm:$0xf]
      %v6549 = vcombine.high %v6539, %v6539
      %v6550 = vcombine.high %v6540, %v6540
      %v6551 = vcombine.high %v6541, %v6541
      %v6552 = vcombine.high %v6542, %v6542
      %6553 = vrot.lane.b32.xlu0 %v6539, 31
      %v6554 = vpop.permute.xlu0 %6553
      %6555 = vrot.lane.b32.xlu0 %v6549, 31
      %v6556 = vpop.permute.xlu0 %6555
      %6557 = vrot.lane.b32.xlu0 %v6540, 31
      %v6558 = vpop.permute.xlu0 %6557
      %6559 = vrot.lane.b32.xlu0 %v6550, 31
      %v6560 = vpop.permute.xlu0 %6559
      %6561 = vrot.lane.b32.xlu0 %v6541, 31
      %v6562 = vpop.permute.xlu0 %6561
      %6563 = vrot.lane.b32.xlu0 %v6551, 31
      %v6564 = vpop.permute.xlu0 %6563
      %6565 = vrot.lane.b32.xlu0 %v6542, 31
      %v6566 = vpop.permute.xlu0 %6565
      %6567 = vrot.lane.b32.xlu0 %v6552, 31
      %v6568 = vpop.permute.xlu0 %6567
      %6569 = vrot.lane.b32.xlu0 %v6543, 31
      %v6570 = vpop.permute.xlu0 %6569
      %v6571 = vsel %vm3118, %v6554, %v6556
      %v6572 = vsel %vm3118, %v6556, %v6558
      %v6573 = vsel %vm3118, %v6558, %v6560
      %v6574 = vsel %vm3118, %v6560, %v6562
      %v6575 = vsel %vm3118, %v6562, %v6564
      %v6576 = vsel %vm3118, %v6564, %v6566
      %v6577 = vsel %vm3118, %v6566, %v6568
      %v6578 = vsel %vm3118, %v6568, %v6570
      %v6580 = vsel %vm3830, %v6538, 0
      %v6582 = vsel %vm3768, %v6571, 0
      %v6584 = vsel %vm3768, %v6572, 0
      %v6586 = vsel %vm3768, %v6573, 0
      %v6588 = vsel %vm3768, %v6574, 0
      %v6590 = vsel %vm3768, %v6575, 0
      %v6592 = vsel %vm3768, %v6576, 0
      %v6594 = vsel %vm3768, %v6577, 0
      %v6596 = vsel %vm3768, %v6578, 0
      %6598 = vmatprep.subr.mxu0 %v6584
      %6599 = vmatpush1.msra.mxu0 %v6582
      %6600 = vmatprep.subr.mxu0 0.0
      %6601 = vmatpush1.msra.mxu0 0.0
      %6602 = vmatprep.subr.mxu0 0.0
      %6603 = vmatpush1.msra.mxu0 0.0
      %6604 = vmatprep.subr.mxu0 0.0
      %6605 = vmatpush1.msra.mxu0 0.0
      %6606 = vmatprep.subr.mxu0 0.0
      %6607 = vmatpush1.msra.mxu0 0.0
      %6608 = vmatprep.subr.mxu0 0.0
      %6609 = vmatpush1.msra.mxu0 0.0
      %6610 = vmatprep.subr.mxu0 0.0
      %6611 = vmatpush1.msra.mxu0 0.0
      %6612 = vmatprep.subr.mxu0 0.0
      %6613 = vmatpush1.msra.mxu0 0.0
      %6614 = vmatprep.subr.mxu0 0.0
      %6615 = vmatpush1.msra.mxu0 0.0
      %6616 = vmatprep.subr.mxu0 0.0
      %6617 = vmatpush1.msra.mxu0 0.0
      %6618 = vmatprep.subr.mxu0 0.0
      %6619 = vmatpush1.msra.mxu0 0.0
      %6620 = vmatprep.subr.mxu0 0.0
      %6621 = vmatpush1.msra.mxu0 0.0
      %6622 = vmatprep.subr.mxu0 0.0
      %6623 = vmatpush1.msra.mxu0 0.0
      %6624 = vmatprep.subr.mxu0 0.0
      %6625 = vmatpush1.msra.mxu0 0.0
      %6626 = vmatprep.subr.mxu0 0.0
      %6627 = vmatpush1.msra.mxu0 0.0
      %6628 = vmatprep.subr.mxu0 0.0
      %6629 = vmatpush1.msra.mxu0 0.0
      %6630 = vmatprep.subr.mxu0 0.0
      %6631 = vmatpush1.msra.mxu0 0.0
      %6632 = vmatprep.subr.mxu0 0.0
      %6633 = vmatpush1.msra.mxu0 0.0
      %6634 = vmatprep.subr.mxu0 0.0
      %6635 = vmatpush1.msra.mxu0 0.0
      %6636 = vmatprep.subr.mxu0 0.0
      %6637 = vmatpush1.msra.mxu0 0.0
      %6638 = vmatprep.subr.mxu0 0.0
      %6639 = vmatpush1.msra.mxu0 0.0
      %6640 = vmatprep.subr.mxu0 0.0
      %6641 = vmatpush1.msra.mxu0 0.0
      %6642 = vmatprep.subr.mxu0 0.0
      %6643 = vmatpush1.msra.mxu0 0.0
      %6644 = vmatprep.subr.mxu0 0.0
      %6645 = vmatpush1.msra.mxu0 0.0
      %6646 = vmatprep.subr.mxu0 0.0
      %6647 = vmatpush1.msra.mxu0 0.0
      %6648 = vmatprep.subr.mxu0 0.0
      %6649 = vmatpush1.msra.mxu0 0.0
      %6650 = vmatprep.subr.mxu0 0.0
      %6651 = vmatpush1.msra.mxu0 0.0
      %6652 = vmatprep.subr.mxu0 0.0
      %6653 = vmatpush1.msra.mxu0 0.0
      %6654 = vmatprep.subr.mxu0 0.0
      %6655 = vmatpush1.msra.mxu0 0.0
      %6656 = vmatprep.subr.mxu0 0.0
      %6657 = vmatpush1.msra.mxu0 0.0
      %6658 = vmatprep.subr.mxu0 0.0
      %6659 = vmatpush1.msra.mxu0 0.0
      %6660 = vmatprep.subr.mxu0 0.0
      %6661 = vmatpush1.msra.mxu0 0.0
      %6662 = vmatprep.mubr.f32.mxu0 0.0
      %6663 = vmatmul.mubr.f32.gmra.mrb[0].mxu0 %v6580
      %v6664 = vpop.f32.mrb[0].mxu0
      %v6665 = vadd.f32 0.0, %v6664
      %v6666 = vpop.f32.mrb[0].mxu0
      %v6667 = vadd.f32 0.0, %v6666
      %6668 = vdwg.mxu0
      %6669 = vmatprep.subr.mxu0 %v6588
      %6670 = vmatpush1.msra.mxu0 %v6586
      %6671 = vmatprep.subr.mxu0 0.0
      %6672 = vmatpush1.msra.mxu0 0.0
      %6673 = vmatprep.subr.mxu0 0.0
      %6674 = vmatpush1.msra.mxu0 0.0
      %6675 = vmatprep.subr.mxu0 0.0
      %6676 = vmatpush1.msra.mxu0 0.0
      %6677 = vmatprep.subr.mxu0 0.0
      %6678 = vmatpush1.msra.mxu0 0.0
      %6679 = vmatprep.subr.mxu0 0.0
      %6680 = vmatpush1.msra.mxu0 0.0
      %6681 = vmatprep.subr.mxu0 0.0
      %6682 = vmatpush1.msra.mxu0 0.0
      %6683 = vmatprep.subr.mxu0 0.0
      %6684 = vmatpush1.msra.mxu0 0.0
      %6685 = vmatprep.subr.mxu0 0.0
      %6686 = vmatpush1.msra.mxu0 0.0
      %6687 = vmatprep.subr.mxu0 0.0
      %6688 = vmatpush1.msra.mxu0 0.0
      %6689 = vmatprep.subr.mxu0 0.0
      %6690 = vmatpush1.msra.mxu0 0.0
      %6691 = vmatprep.subr.mxu0 0.0
      %6692 = vmatpush1.msra.mxu0 0.0
      %6693 = vmatprep.subr.mxu0 0.0
      %6694 = vmatpush1.msra.mxu0 0.0
      %6695 = vmatprep.subr.mxu0 0.0
      %6696 = vmatpush1.msra.mxu0 0.0
      %6697 = vmatprep.subr.mxu0 0.0
      %6698 = vmatpush1.msra.mxu0 0.0
      %6699 = vmatprep.subr.mxu0 0.0
      %6700 = vmatpush1.msra.mxu0 0.0
      %6701 = vmatprep.subr.mxu0 0.0
      %6702 = vmatpush1.msra.mxu0 0.0
      %6703 = vmatprep.subr.mxu0 0.0
      %6704 = vmatpush1.msra.mxu0 0.0
      %6705 = vmatprep.subr.mxu0 0.0
      %6706 = vmatpush1.msra.mxu0 0.0
      %6707 = vmatprep.subr.mxu0 0.0
      %6708 = vmatpush1.msra.mxu0 0.0
      %6709 = vmatprep.subr.mxu0 0.0
      %6710 = vmatpush1.msra.mxu0 0.0
      %6711 = vmatprep.subr.mxu0 0.0
      %6712 = vmatpush1.msra.mxu0 0.0
      %6713 = vmatprep.subr.mxu0 0.0
      %6714 = vmatpush1.msra.mxu0 0.0
      %6715 = vmatprep.subr.mxu0 0.0
      %6716 = vmatpush1.msra.mxu0 0.0
      %6717 = vmatprep.subr.mxu0 0.0
      %6718 = vmatpush1.msra.mxu0 0.0
      %6719 = vmatprep.subr.mxu0 0.0
      %6720 = vmatpush1.msra.mxu0 0.0
      %6721 = vmatprep.subr.mxu0 0.0
      %6722 = vmatpush1.msra.mxu0 0.0
      %6723 = vmatprep.subr.mxu0 0.0
      %6724 = vmatpush1.msra.mxu0 0.0
      %6725 = vmatprep.subr.mxu0 0.0
      %6726 = vmatpush1.msra.mxu0 0.0
      %6727 = vmatprep.subr.mxu0 0.0
      %6728 = vmatpush1.msra.mxu0 0.0
      %6729 = vmatprep.subr.mxu0 0.0
      %6730 = vmatpush1.msra.mxu0 0.0
      %6731 = vmatprep.subr.mxu0 0.0
      %6732 = vmatpush1.msra.mxu0 0.0
      %6733 = vmatprep.mubr.f32.mxu0 0.0
      %6734 = vmatmul.mubr.f32.gmra.mrb[0].mxu0 %v6580
      %v6735 = vpop.f32.mrb[0].mxu0
      %v6736 = vadd.f32 0.0, %v6735
      %v6737 = vpop.f32.mrb[0].mxu0
      %v6738 = vadd.f32 0.0, %v6737
      %6739 = vdwg.mxu0
      %6740 = vmatprep.subr.mxu0 %v6592
      %6741 = vmatpush1.msra.mxu0 %v6590
      %6742 = vmatprep.subr.mxu0 0.0
      %6743 = vmatpush1.msra.mxu0 0.0
      %6744 = vmatprep.subr.mxu0 0.0
      %6745 = vmatpush1.msra.mxu0 0.0
      %6746 = vmatprep.subr.mxu0 0.0
      %6747 = vmatpush1.msra.mxu0 0.0
      %6748 = vmatprep.subr.mxu0 0.0
      %6749 = vmatpush1.msra.mxu0 0.0
      %6750 = vmatprep.subr.mxu0 0.0
      %6751 = vmatpush1.msra.mxu0 0.0
      %6752 = vmatprep.subr.mxu0 0.0
      %6753 = vmatpush1.msra.mxu0 0.0
      %6754 = vmatprep.subr.mxu0 0.0
      %6755 = vmatpush1.msra.mxu0 0.0
      %6756 = vmatprep.subr.mxu0 0.0
      %6757 = vmatpush1.msra.mxu0 0.0
      %6758 = vmatprep.subr.mxu0 0.0
      %6759 = vmatpush1.msra.mxu0 0.0
      %6760 = vmatprep.subr.mxu0 0.0
      %6761 = vmatpush1.msra.mxu0 0.0
      %6762 = vmatprep.subr.mxu0 0.0
      %6763 = vmatpush1.msra.mxu0 0.0
      %6764 = vmatprep.subr.mxu0 0.0
      %6765 = vmatpush1.msra.mxu0 0.0
      %6766 = vmatprep.subr.mxu0 0.0
      %6767 = vmatpush1.msra.mxu0 0.0
      %6768 = vmatprep.subr.mxu0 0.0
      %6769 = vmatpush1.msra.mxu0 0.0
      %6770 = vmatprep.subr.mxu0 0.0
      %6771 = vmatpush1.msra.mxu0 0.0
      %6772 = vmatprep.subr.mxu0 0.0
      %6773 = vmatpush1.msra.mxu0 0.0
      %6774 = vmatprep.subr.mxu0 0.0
      %6775 = vmatpush1.msra.mxu0 0.0
      %6776 = vmatprep.subr.mxu0 0.0
      %6777 = vmatpush1.msra.mxu0 0.0
      %6778 = vmatprep.subr.mxu0 0.0
      %6779 = vmatpush1.msra.mxu0 0.0
      %6780 = vmatprep.subr.mxu0 0.0
      %6781 = vmatpush1.msra.mxu0 0.0
      %6782 = vmatprep.subr.mxu0 0.0
      %6783 = vmatpush1.msra.mxu0 0.0
      %6784 = vmatprep.subr.mxu0 0.0
      %6785 = vmatpush1.msra.mxu0 0.0
      %6786 = vmatprep.subr.mxu0 0.0
      %6787 = vmatpush1.msra.mxu0 0.0
      %6788 = vmatprep.subr.mxu0 0.0
      %6789 = vmatpush1.msra.mxu0 0.0
      %6790 = vmatprep.subr.mxu0 0.0
      %6791 = vmatpush1.msra.mxu0 0.0
      %6792 = vmatprep.subr.mxu0 0.0
      %6793 = vmatpush1.msra.mxu0 0.0
      %6794 = vmatprep.subr.mxu0 0.0
      %6795 = vmatpush1.msra.mxu0 0.0
      %6796 = vmatprep.subr.mxu0 0.0
      %6797 = vmatpush1.msra.mxu0 0.0
      %6798 = vmatprep.subr.mxu0 0.0
      %6799 = vmatpush1.msra.mxu0 0.0
      %6800 = vmatprep.subr.mxu0 0.0
      %6801 = vmatpush1.msra.mxu0 0.0
      %6802 = vmatprep.subr.mxu0 0.0
      %6803 = vmatpush1.msra.mxu0 0.0
      %6804 = vmatprep.mubr.f32.mxu0 0.0
      %6805 = vmatmul.mubr.f32.gmra.mrb[0].mxu0 %v6580
      %v6806 = vpop.f32.mrb[0].mxu0
      %v6807 = vadd.f32 0.0, %v6806
      %v6808 = vpop.f32.mrb[0].mxu0
      %v6809 = vadd.f32 0.0, %v6808
      %6810 = vdwg.mxu0
      %6811 = vmatprep.subr.mxu0 %v6596
      %6812 = vmatpush1.msra.mxu0 %v6594
      %6813 = vmatprep.subr.mxu0 0.0
      %6814 = vmatpush1.msra.mxu0 0.0
      %6815 = vmatprep.subr.mxu0 0.0
      %6816 = vmatpush1.msra.mxu0 0.0
      %6817 = vmatprep.subr.mxu0 0.0
      %6818 = vmatpush1.msra.mxu0 0.0
      %6819 = vmatprep.subr.mxu0 0.0
      %6820 = vmatpush1.msra.mxu0 0.0
      %6821 = vmatprep.subr.mxu0 0.0
      %6822 = vmatpush1.msra.mxu0 0.0
      %6823 = vmatprep.subr.mxu0 0.0
      %6824 = vmatpush1.msra.mxu0 0.0
      %6825 = vmatprep.subr.mxu0 0.0
      %6826 = vmatpush1.msra.mxu0 0.0
      %6827 = vmatprep.subr.mxu0 0.0
      %6828 = vmatpush1.msra.mxu0 0.0
      %6829 = vmatprep.subr.mxu0 0.0
      %6830 = vmatpush1.msra.mxu0 0.0
      %6831 = vmatprep.subr.mxu0 0.0
      %6832 = vmatpush1.msra.mxu0 0.0
      %6833 = vmatprep.subr.mxu0 0.0
      %6834 = vmatpush1.msra.mxu0 0.0
      %6835 = vmatprep.subr.mxu0 0.0
      %6836 = vmatpush1.msra.mxu0 0.0
      %6837 = vmatprep.subr.mxu0 0.0
      %6838 = vmatpush1.msra.mxu0 0.0
      %6839 = vmatprep.subr.mxu0 0.0
      %6840 = vmatpush1.msra.mxu0 0.0
      %6841 = vmatprep.subr.mxu0 0.0
      %6842 = vmatpush1.msra.mxu0 0.0
      %6843 = vmatprep.subr.mxu0 0.0
      %6844 = vmatpush1.msra.mxu0 0.0
      %6845 = vmatprep.subr.mxu0 0.0
      %6846 = vmatpush1.msra.mxu0 0.0
      %6847 = vmatprep.subr.mxu0 0.0
      %6848 = vmatpush1.msra.mxu0 0.0
      %6849 = vmatprep.subr.mxu0 0.0
      %6850 = vmatpush1.msra.mxu0 0.0
      %6851 = vmatprep.subr.mxu0 0.0
      %6852 = vmatpush1.msra.mxu0 0.0
      %6853 = vmatprep.subr.mxu0 0.0
      %6854 = vmatpush1.msra.mxu0 0.0
      %6855 = vmatprep.subr.mxu0 0.0
      %6856 = vmatpush1.msra.mxu0 0.0
      %6857 = vmatprep.subr.mxu0 0.0
      %6858 = vmatpush1.msra.mxu0 0.0
      %6859 = vmatprep.subr.mxu0 0.0
      %6860 = vmatpush1.msra.mxu0 0.0
      %6861 = vmatprep.subr.mxu0 0.0
      %6862 = vmatpush1.msra.mxu0 0.0
      %6863 = vmatprep.subr.mxu0 0.0
      %6864 = vmatpush1.msra.mxu0 0.0
      %6865 = vmatprep.subr.mxu0 0.0
      %6866 = vmatpush1.msra.mxu0 0.0
      %6867 = vmatprep.subr.mxu0 0.0
      %6868 = vmatpush1.msra.mxu0 0.0
      %6869 = vmatprep.subr.mxu0 0.0
      %6870 = vmatpush1.msra.mxu0 0.0
      %6871 = vmatprep.subr.mxu0 0.0
      %6872 = vmatpush1.msra.mxu0 0.0
      %6873 = vmatprep.subr.mxu0 0.0
      %6874 = vmatpush1.msra.mxu0 0.0
      %6875 = vmatprep.mubr.f32.mxu0 0.0
      %6876 = vmatmul.mubr.f32.gmra.mrb[0].mxu0 %v6580
      %v6877 = vpop.f32.mrb[0].mxu0
      %v6878 = vadd.f32 0.0, %v6877
      %v6879 = vpop.f32.mrb[0].mxu0
      %v6880 = vadd.f32 0.0, %v6879
      %6881 = vdwg.mxu0
      %v6882 = vadd.f32 %v6320, %v6665
      %v6883 = vadd.f32 %v6322, %v6667
      %v6884 = vadd.f32 %v6391, %v6736
      %v6885 = vadd.f32 %v6393, %v6738
      %v6886 = vadd.f32 %v6462, %v6807
      %v6887 = vadd.f32 %v6464, %v6809
      %v6888 = vadd.f32 %v6533, %v6878
      %v6889 = vadd.f32 %v6535, %v6880
      %v6890 = vmul.f32 %v6882, %v3434
      %v6891 = vmul.f32 %v6883, %v3438
      %v6892 = vmul.f32 %v6884, %v3442
      %v6893 = vmul.f32 %v6885, %v3446
      %v6894 = vmul.f32 %v6886, %v3450
      %v6895 = vmul.f32 %v6887, %v3454
      %v6896 = vmul.f32 %v6888, %v3458
      %v6897 = vmul.f32 %v6889, %v3462
      %v6898 = vadd.f32 %v5853, %v6890
      %v6899 = vadd.f32 %v5854, %v6891
      %v6900 = vadd.f32 %v5855, %v6892
      %v6901 = vadd.f32 %v5856, %v6893
      %v6902 = vadd.f32 %v5857, %v6894
      %v6903 = vadd.f32 %v5858, %v6895
      %v6904 = vadd.f32 %v5859, %v6896
      %v6905 = vadd.f32 %v5860, %v6897
      %v6906 = vld [vmem:[%s6] sm:$0xf]
      %6908 = vset.pattern.permute.xlu0 0
      %6909 = vperm.xlu0 %6908, %v6906
      %v6910 = vpop.permute.xlu0 %6909
      %v6912 = vadd.f32 %v6898, %v6910
      %v6913 = vadd.f32 %v6899, %v6910
      %v6914 = vadd.f32 %v6900, %v6910
      %v6915 = vadd.f32 %v6901, %v6910
      %v6916 = vadd.f32 %v6902, %v6910
      %v6917 = vadd.f32 %v6903, %v6910
      %v6918 = vadd.f32 %v6904, %v6910
      %v6919 = vadd.f32 %v6905, %v6910
      %v6920 = vmul.f32 %v6912, 0.5
      %v6921 = vmul.f32 %v6913, 0.5
      %v6922 = vmul.f32 %v6914, 0.5
      %v6923 = vmul.f32 %v6915, 0.5
      %v6924 = vmul.f32 %v6916, 0.5
      %v6925 = vmul.f32 %v6917, 0.5
      %v6926 = vmul.f32 %v6918, 0.5
      %v6927 = vmul.f32 %v6919, 0.5
      %v6928 = vmul.f32 %v6912, 0.70710677
      %v6929 = vmul.f32 %v6913, 0.70710677
      %v6930 = vmul.f32 %v6914, 0.70710677
      %v6931 = vmul.f32 %v6915, 0.70710677
      %v6932 = vmul.f32 %v6916, 0.70710677
      %v6933 = vmul.f32 %v6917, 0.70710677
      %v6934 = vmul.f32 %v6918, 0.70710677
      %v6935 = vmul.f32 %v6919, 0.70710677
      %v6936 = vmax.f32 %v6928, -4.0
      %v6937 = vmax.f32 %v6929, -4.0
      %v6938 = vmax.f32 %v6930, -4.0
      %v6939 = vmax.f32 %v6931, -4.0
      %v6940 = vmax.f32 %v6932, -4.0
      %v6941 = vmax.f32 %v6933, -4.0
      %v6942 = vmax.f32 %v6934, -4.0
      %v6943 = vmax.f32 %v6935, -4.0
      %v6944 = vmin.f32 %v6936, 4.0
      %v6945 = vmin.f32 %v6937, 4.0
      %v6946 = vmin.f32 %v6938, 4.0
      %v6947 = vmin.f32 %v6939, 4.0
      %v6948 = vmin.f32 %v6940, 4.0
      %v6949 = vmin.f32 %v6941, 4.0
      %v6950 = vmin.f32 %v6942, 4.0
      %v6951 = vmin.f32 %v6943, 4.0
      %v6952 = vmul.f32 %v6944, %v6944
      %v6953 = vmul.f32 %v6945, %v6945
      %v6954 = vmul.f32 %v6946, %v6946
      %v6955 = vmul.f32 %v6947, %v6947
      %v6956 = vmul.f32 %v6948, %v6948
      %v6957 = vmul.f32 %v6949, %v6949
      %v6958 = vmul.f32 %v6950, %v6950
      %v6959 = vmul.f32 %v6951, %v6951
      %v6960 = vmul.f32 %v6952, -2.7261424e-10
      %v6961 = vmul.f32 %v6953, -2.7261424e-10
      %v6962 = vmul.f32 %v6954, -2.7261424e-10
      %v6963 = vmul.f32 %v6955, -2.7261424e-10
      %v6964 = vmul.f32 %v6956, -2.7261424e-10
      %v6965 = vmul.f32 %v6957, -2.7261424e-10
      %v6966 = vmul.f32 %v6958, -2.7261424e-10
      %v6967 = vmul.f32 %v6959, -2.7261424e-10
      %v6968 = vadd.f32 %v6960, 2.7706815e-08
      %v6969 = vadd.f32 %v6961, 2.7706815e-08
      %v6970 = vadd.f32 %v6962, 2.7706815e-08
      %v6971 = vadd.f32 %v6963, 2.7706815e-08
      %v6972 = vadd.f32 %v6964, 2.7706815e-08
      %v6973 = vadd.f32 %v6965, 2.7706815e-08
      %v6974 = vadd.f32 %v6966, 2.7706815e-08
      %v6975 = vadd.f32 %v6967, 2.7706815e-08
      %v6976 = vmul.f32 %v6968, %v6952
      %v6977 = vmul.f32 %v6969, %v6953
      %v6978 = vmul.f32 %v6970, %v6954
      %v6979 = vmul.f32 %v6971, %v6955
      %v6980 = vmul.f32 %v6972, %v6956
      %v6981 = vmul.f32 %v6973, %v6957
      %v6982 = vmul.f32 %v6974, %v6958
      %v6983 = vmul.f32 %v6975, %v6959
      %v6984 = vadd.f32 %v6976, -2.101024e-06
      %v6985 = vadd.f32 %v6977, -2.101024e-06
      %v6986 = vadd.f32 %v6978, -2.101024e-06
      %v6987 = vadd.f32 %v6979, -2.101024e-06
      %v6988 = vadd.f32 %v6980, -2.101024e-06
      %v6989 = vadd.f32 %v6981, -2.101024e-06
      %v6990 = vadd.f32 %v6982, -2.101024e-06
      %v6991 = vadd.f32 %v6983, -2.101024e-06
      %v6992 = vmul.f32 %v6984, %v6952
      %v6993 = vmul.f32 %v6985, %v6953
      %v6994 = vmul.f32 %v6986, %v6954
      %v6995 = vmul.f32 %v6987, %v6955
      %v6996 = vmul.f32 %v6988, %v6956
      %v6997 = vmul.f32 %v6989, %v6957
      %v6998 = vmul.f32 %v6990, %v6958
      %v6999 = vmul.f32 %v6991, %v6959
      %v7000 = vadd.f32 %v6992, -5.6925062e-05
      %v7001 = vadd.f32 %v6993, -5.6925062e-05
      %v7002 = vadd.f32 %v6994, -5.6925062e-05
      %v7003 = vadd.f32 %v6995, -5.6925062e-05
      %v7004 = vadd.f32 %v6996, -5.6925062e-05
      %v7005 = vadd.f32 %v6997, -5.6925062e-05
      %v7006 = vadd.f32 %v6998, -5.6925062e-05
      %v7007 = vadd.f32 %v6999, -5.6925062e-05
      %v7008 = vmul.f32 %v7000, %v6952
      %v7009 = vmul.f32 %v7001, %v6953
      %v7010 = vmul.f32 %v7002, %v6954
      %v7011 = vmul.f32 %v7003, %v6955
      %v7012 = vmul.f32 %v7004, %v6956
      %v7013 = vmul.f32 %v7005, %v6957
      %v7014 = vmul.f32 %v7006, %v6958
      %v7015 = vmul.f32 %v7007, %v6959
      %v7016 = vadd.f32 %v7008, -0.00073499064
      %v7017 = vadd.f32 %v7009, -0.00073499064
      %v7018 = vadd.f32 %v7010, -0.00073499064
      %v7019 = vadd.f32 %v7011, -0.00073499064
      %v7020 = vadd.f32 %v7012, -0.00073499064
      %v7021 = vadd.f32 %v7013, -0.00073499064
      %v7022 = vadd.f32 %v7014, -0.00073499064
      %v7023 = vadd.f32 %v7015, -0.00073499064
      %v7024 = vmul.f32 %v7016, %v6952
      %v7025 = vmul.f32 %v7017, %v6953
      %v7026 = vmul.f32 %v7018, %v6954
      %v7027 = vmul.f32 %v7019, %v6955
      %v7028 = vmul.f32 %v7020, %v6956
      %v7029 = vmul.f32 %v7021, %v6957
      %v7030 = vmul.f32 %v7022, %v6958
      %v7031 = vmul.f32 %v7023, %v6959
      %v7032 = vadd.f32 %v7024, -0.0029546
      %v7033 = vadd.f32 %v7025, -0.0029546
      %v7034 = vadd.f32 %v7026, -0.0029546
      %v7035 = vadd.f32 %v7027, -0.0029546
      %v7036 = vadd.f32 %v7028, -0.0029546
      %v7037 = vadd.f32 %v7029, -0.0029546
      %v7038 = vadd.f32 %v7030, -0.0029546
      %v7039 = vadd.f32 %v7031, -0.0029546
      %v7040 = vmul.f32 %v7032, %v6952
      %v7041 = vmul.f32 %v7033, %v6953
      %v7042 = vmul.f32 %v7034, %v6954
      %v7043 = vmul.f32 %v7035, %v6955
      %v7044 = vmul.f32 %v7036, %v6956
      %v7045 = vmul.f32 %v7037, %v6957
      %v7046 = vmul.f32 %v7038, %v6958
      %v7047 = vmul.f32 %v7039, %v6959
      %v7048 = vadd.f32 %v7040, -0.016096033
      %v7049 = vadd.f32 %v7041, -0.016096033
      %v7050 = vadd.f32 %v7042, -0.016096033
      %v7051 = vadd.f32 %v7043, -0.016096033
      %v7052 = vadd.f32 %v7044, -0.016096033
      %v7053 = vadd.f32 %v7045, -0.016096033
      %v7054 = vadd.f32 %v7046, -0.016096033
      %v7055 = vadd.f32 %v7047, -0.016096033
      %v7056 = vmul.f32 %v6952, -1.45660715e-05
      %v7057 = vmul.f32 %v6953, -1.45660715e-05
      %v7058 = vmul.f32 %v6954, -1.45660715e-05
      %v7059 = vmul.f32 %v6955, -1.45660715e-05
      %v7060 = vmul.f32 %v6956, -1.45660715e-05
      %v7061 = vmul.f32 %v6957, -1.45660715e-05
      %v7062 = vmul.f32 %v6958, -1.45660715e-05
      %v7063 = vmul.f32 %v6959, -1.45660715e-05
      %v7064 = vadd.f32 %v7056, -0.00021337405
      %v7065 = vadd.f32 %v7057, -0.00021337405
      %v7066 = vadd.f32 %v7058, -0.00021337405
      %v7067 = vadd.f32 %v7059, -0.00021337405
      %v7068 = vadd.f32 %v7060, -0.00021337405
      %v7069 = vadd.f32 %v7061, -0.00021337405
      %v7070 = vadd.f32 %v7062, -0.00021337405
      %v7071 = vadd.f32 %v7063, -0.00021337405
      %v7072 = vmul.f32 %v7064, %v6952
      %v7073 = vmul.f32 %v7065, %v6953
      %v7074 = vmul.f32 %v7066, %v6954
      %v7075 = vmul.f32 %v7067, %v6955
      %v7076 = vmul.f32 %v7068, %v6956
      %v7077 = vmul.f32 %v7069, %v6957
      %v7078 = vmul.f32 %v7070, %v6958
      %v7079 = vmul.f32 %v7071, %v6959
      %v7080 = vadd.f32 %v7072, -0.001682827
      %v7081 = vadd.f32 %v7073, -0.001682827
      %v7082 = vadd.f32 %v7074, -0.001682827
      %v7083 = vadd.f32 %v7075, -0.001682827
      %v7084 = vadd.f32 %v7076, -0.001682827
      %v7085 = vadd.f32 %v7077, -0.001682827
      %v7086 = vadd.f32 %v7078, -0.001682827
      %v7087 = vadd.f32 %v7079, -0.001682827
      %v7088 = vmul.f32 %v7080, %v6952
      %v7089 = vmul.f32 %v7081, %v6953
      %v7090 = vmul.f32 %v7082, %v6954
      %v7091 = vmul.f32 %v7083, %v6955
      %v7092 = vmul.f32 %v7084, %v6956
      %v7093 = vmul.f32 %v7085, %v6957
      %v7094 = vmul.f32 %v7086, %v6958
      %v7095 = vmul.f32 %v7087, %v6959
      %v7096 = vadd.f32 %v7088, -0.0073733293
      %v7097 = vadd.f32 %v7089, -0.0073733293
      %v7098 = vadd.f32 %v7090, -0.0073733293
      %v7099 = vadd.f32 %v7091, -0.0073733293
      %v7100 = vadd.f32 %v7092, -0.0073733293
      %v7101 = vadd.f32 %v7093, -0.0073733293
      %v7102 = vadd.f32 %v7094, -0.0073733293
      %v7103 = vadd.f32 %v7095, -0.0073733293
      %v7104 = vmul.f32 %v7096, %v6952
      %v7105 = vmul.f32 %v7097, %v6953
      %v7106 = vmul.f32 %v7098, %v6954
      %v7107 = vmul.f32 %v7099, %v6955
      %v7108 = vmul.f32 %v7100, %v6956
      %v7109 = vmul.f32 %v7101, %v6957
      %v7110 = vmul.f32 %v7102, %v6958
      %v7111 = vmul.f32 %v7103, %v6959
      %v7112 = vadd.f32 %v7104, -0.014264739
      %v7113 = vadd.f32 %v7105, -0.014264739
      %v7114 = vadd.f32 %v7106, -0.014264739
      %v7115 = vadd.f32 %v7107, -0.014264739
      %v7116 = vadd.f32 %v7108, -0.014264739
      %v7117 = vadd.f32 %v7109, -0.014264739
      %v7118 = vadd.f32 %v7110, -0.014264739
      %v7119 = vadd.f32 %v7111, -0.014264739
      %v7120 = vmul.f32 %v6944, %v7048
      %v7121 = vmul.f32 %v6945, %v7049
      %v7122 = vmul.f32 %v6946, %v7050
      %v7123 = vmul.f32 %v6947, %v7051
      %v7124 = vmul.f32 %v6948, %v7052
      %v7125 = vmul.f32 %v6949, %v7053
      %v7126 = vmul.f32 %v6950, %v7054
      %v7127 = vmul.f32 %v6951, %v7055
      %v7128 = vrcp.pop %v7112
      %v7129 = vrcp.pop %v7113
      %v7130 = vrcp.pop %v7114
      %v7131 = vrcp.pop %v7115
      %v7132 = vrcp.pop %v7116
      %v7133 = vrcp.pop %v7117
      %v7134 = vrcp.pop %v7118
      %v7135 = vrcp.pop %v7119
      %v7136 = vmul.f32 %v7120, %v7128
      %v7137 = vmul.f32 %v7121, %v7129
      %v7138 = vmul.f32 %v7122, %v7130
      %v7139 = vmul.f32 %v7123, %v7131
      %v7140 = vmul.f32 %v7124, %v7132
      %v7141 = vmul.f32 %v7125, %v7133
      %v7142 = vmul.f32 %v7126, %v7134
      %v7143 = vmul.f32 %v7127, %v7135
      %v7144 = vadd.f32 %v7136, 1.0
      %v7145 = vadd.f32 %v7137, 1.0
      %v7146 = vadd.f32 %v7138, 1.0
      %v7147 = vadd.f32 %v7139, 1.0
      %v7148 = vadd.f32 %v7140, 1.0
      %v7149 = vadd.f32 %v7141, 1.0
      %v7150 = vadd.f32 %v7142, 1.0
      %v7151 = vadd.f32 %v7143, 1.0
      %v7152 = vmul.f32 %v6920, %v7144
      %v7153 = vmul.f32 %v6921, %v7145
      %v7154 = vmul.f32 %v6922, %v7146
      %v7155 = vmul.f32 %v6923, %v7147
      %v7156 = vmul.f32 %v6924, %v7148
      %v7157 = vmul.f32 %v6925, %v7149
      %v7158 = vmul.f32 %v6926, %v7150
      %v7159 = vmul.f32 %v6927, %v7151
      %v7168 = vcombine.low %v7152, %v7153
      %v7169 = vcombine.low %v7154, %v7155
      %v7170 = vcombine.low %v7156, %v7157
      %v7171 = vcombine.low %v7158, %v7159
      %7176 = vst [vmem:[%s298] sm:$0xff] %v7168
      %7177 = vst [vmem:[%s298 + $0x8] sm:$0xff] %v7169
      %7178 = vst [vmem:[%s298 + $0x10] sm:$0xff] %v7170
      %7179 = vst [vmem:[%s298 + $0x18] sm:$0xff] %v7171
      %p7180 = scmp.lt.s32.totalorder %s18, 1
      %s7181 = scalar_select %p7180, %s18, 1
      %s7182 = smul.addr %s7181, 8
      %s7183 = smul.addr %s7182, 4
      %s7184 = scalar_lea.vmem %s7, %s7183
      // Predicated region
      $region49: #{upblock_forward.3} parent=47 // pred_check
        %p7185 = pneg %p193
      $region50: #{upblock_forward.3} parent=47 // pred_check_branch
        %7187 = sbr.rel (%p7185) target = $region52
      $region51: #{upblock_forward.3} parent=47 // pred_region
        _
      $region52: #{upblock_forward.3} parent=47 // pred_fallthru
        _
    $region48: #{upblock_forward.3} parent=5 // pred_fallthru
      _
    %p7188 = scmp.le.s32.totalorder 2, %s13
    // Predicated region
    $region53: #{upblock_forward.3} parent=5 // pred_check
      %p7189 = pneg %p7188
    $region54: #{upblock_forward.3} parent=5 // pred_check_branch
      %7191 = sbr.rel (%p7189) target = $region56
    $region55: #{upblock_forward.3} parent=5 // pred_region
      %s7192 = ssub.s32 %s13, 2
      // Predicated region
      $region57: #{upblock_forward.3} parent=55 // pred_check
        %p7193 = pneg %p199
      $region58: #{upblock_forward.3} parent=55 // pred_check_branch
        %7195 = sbr.rel (%p7193) target = $region60
      $region59: #{upblock_forward.3} parent=55 // pred_region
        %p7196 = scmp.lt.s32.totalorder %s19, 1
        %s7197 = scalar_select %p7196, %s19, 1
        %s7198 = smul.addr %s7197, 8
        %s7199 = smul.addr %s7198, 4
        %s7200 = scalar_lea.vmem %s7, %s7199
      $region60: #{upblock_forward.3} parent=55 // pred_fallthru
        _
    $region56: #{upblock_forward.3} parent=5 // pred_fallthru
      _
  $region6: #{upblock_forward.3} parent=0 // loop_footer
    %s17 = sadd.s32 1, %s13
  $region7: #{upblock_forward.3} parent=0 // loop_footer_branch
    %12 = sbr.rel target = $region3
  $region8: #{upblock_forward.3} parent=0 // loop_exit
    _

</llo_original>
